<compile_context>
chip_gen: v6e
topology: v6e:2x2x1
jax: 0.10.0
libtpu: 0.0.40
codegen_flags: <defaults>
</compile_context>

<pallas_src>
import functools
import math

import jax
import jax.numpy as jnp
from jax.experimental import pallas as pl
from jax.experimental.pallas import tpu as pltpu


# All grids in this file are 1-D.  Mark them parallel (v7x has 2 TensorCores)
# and raise the scoped-VMEM budget above the 16/32 MiB v5e/v6e defaults while
# staying below v7x's 64 MiB physical VMEM.
_CPARAMS = pltpu.CompilerParams(
    dimension_semantics=("parallel",),
    vmem_limit_bytes=48 * 1024 * 1024,
)

_LN_EPS = 1e-5   # nn.LayerNorm default


# ----------------------------------------------------------------------------
# small helpers
# ----------------------------------------------------------------------------
def _round_up(x, m):
    return ((x + m - 1) // m) * m


def _row_tile(M, cap=512):
    """Row tiling (tile_rows, padded_rows): tiles are multiples of 8 sublanes,
    capped for VMEM, and chosen so there are >=2 grid steps whenever possible
    (gives v7x's second TensorCore work; v5e/v6e just see one extra cheap step)."""
    m8 = _round_up(M, 8)
    if m8 <= 8:
        return m8, m8
    tm = min(cap, _round_up(-(-m8 // 2), 8))
    return tm, _round_up(m8, tm)


def _pad_rows(a, mp):
    M = a.shape[0]
    if M == mp:
        return a
    return jnp.pad(a, ((0, mp - M),) + ((0, 0),) * (a.ndim - 1))


def _silu(y):
    return y * jax.nn.sigmoid(y)


def _gelu_erf(y):
    # exact (erf) GELU, matching torch.nn.GELU() default.
    # TODO(synk): on v5e the erf polynomial is VALU-bound; switch to the tanh
    # approximation (EUP slot) if bit-parity with torch is not required.
    return 0.5 * y * (1.0 + jax.lax.erf(y * jnp.float32(0.7071067811865476)))


def _layer_norm(z, g, b, eps=_LN_EPS):
    mu = jnp.mean(z, axis=-1, keepdims=True)
    zc = z - mu
    var = jnp.mean(zc * zc, axis=-1, keepdims=True)
    return zc * jax.lax.rsqrt(var + eps) * g + b


# ----------------------------------------------------------------------------
# Pallas kernels
# ----------------------------------------------------------------------------
def _mm_affine_act_kernel(x_ref, w_ref, scale_ref, shift_ref, o_ref):
    """o = silu((x @ w) * scale + shift) — 1x1 conv + folded BN + SiLU."""
    y = jnp.dot(x_ref[...].astype(jnp.bfloat16), w_ref[...],
                preferred_element_type=jnp.float32)
    y = y * scale_ref[...] + shift_ref[...]
    o_ref[...] = _silu(y).astype(o_ref.dtype)


def _conv3x3_kernel(xflat_ref, w_ref, scale_ref, shift_ref, o_ref, *, H, W):
    """3x3 'same' conv + folded BN + SiLU for ONE image as a single K=9C matmul.

    xflat_ref: (1, (H+3)*(W+2), C) zero-padded image flattened row-major
               (single pad supplies both the conv halo and the band slack)
    w_ref    : (9*C, N) bf16, tap-major (kh*3+kw) then channel
    o_ref    : (1, H*W, N)   — dense output, junk columns removed in VMEM
    """
    W2 = W + 2
    L = H * W2
    # 9 shifted row-band loads -> virtual im2col, assembled in VMEM (f32 for
    # robust unaligned lane concat, cast to bf16 right before the MXU).
    bands = [xflat_ref[0, kh * W2 + kw: kh * W2 + kw + L, :].astype(jnp.float32)
             for kh in range(3) for kw in range(3)]
    cols = jnp.concatenate(bands, axis=-1)                        # (L, 9C)
    # Drop the 2 junk width-columns per image row *before* the matmul so both
    # the MXU pass and the store are dense (no wrapper-side HBM crop pass).
    cols = jnp.concatenate([cols[i * W2: i * W2 + W, :] for i in range(H)],
                           axis=0)                                # (H*W, 9C)
    y = jnp.dot(cols.astype(jnp.bfloat16), w_ref[...],
                preferred_element_type=jnp.float32)               # (H*W, N), K=9C
    y = y * scale_ref[...] + shift_ref[...]
    o_ref[0] = _silu(y).astype(o_ref.dtype)


def _crater_attn_kernel(x_ref, wqkv_ref, bqkv_ref, wout_ref, bout_ref,
                        w1_ref, b1_ref, w2_ref, b2_ref, g_ref, beta_ref,
                        o_ref, *, nh):
    """Whole CraterAttention block for ONE batch element, fully fused in VMEM:
    qkv proj -> nh-head attention -> out_proj(+residual+LN) -> FFN(+residual+LN).

    x_ref / o_ref: (1, S, C).  Weights are broadcast blocks (VMEM resident).
    """
    S = x_ref.shape[1]
    C = x_ref.shape[2]
    dh = C // nh
    scale = 1.0 / math.sqrt(dh)

    x = x_ref[0].astype(jnp.float32)                                    # (S, C)

    # fused qkv projection (one K=C matmul for all heads)
    qkv = jnp.dot(x_ref[0].astype(jnp.bfloat16), wqkv_ref[...],
                  preferred_element_type=jnp.float32) + bqkv_ref[...]   # (S, 3C)

    # Per-head attention.  Head outputs are accumulated straight into the
    # out-projection (split-K over heads): the head split/merge never touches
    # HBM and no (S, C) concat is needed.
    wout = wout_ref[...]                                                # (C, C) bf16
    acc = jnp.zeros((S, C), jnp.float32)
    for h in range(nh):   # static unroll; dh is even whenever C % 16 == 0
        q = qkv[:, h * dh:(h + 1) * dh].astype(jnp.bfloat16)
        k = qkv[:, C + h * dh:C + (h + 1) * dh].astype(jnp.bfloat16)
        v = qkv[:, 2 * C + h * dh:2 * C + (h + 1) * dh].astype(jnp.bfloat16)
        s = jax.lax.dot_general(q, k, (((1,), (1,)), ((), ())),
                                preferred_element_type=jnp.float32) * scale
        m = jnp.max(s, axis=-1, keepdims=True)
        p = jnp.exp(s - m)
        p = p / jnp.sum(p, axis=-1, keepdims=True)   # exact softmax (matches torch)
        o_h = jnp.dot(p.astype(jnp.bfloat16), v,
                      preferred_element_type=jnp.float32)               # (S, dh)
        acc = acc + jnp.dot(o_h.astype(jnp.bfloat16),
                            wout[h * dh:(h + 1) * dh, :],
                            preferred_element_type=jnp.float32)

    # x1 = LayerNorm(x + out_proj(attn))
    x1 = _layer_norm(x + acc + bout_ref[...], g_ref[...], beta_ref[...])

    # x2 = LayerNorm(x1 + ffn(x1)) — the reference module has a single
    # self.norm reused for BOTH residual branches, so the same gamma/beta apply.
    h1 = _gelu_erf(jnp.dot(x1.astype(jnp.bfloat16), w1_ref[...],
                           preferred_element_type=jnp.float32) + b1_ref[...])
    y2 = jnp.dot(h1.astype(jnp.bfloat16), w2_ref[...],
                 preferred_element_type=jnp.float32) + b2_ref[...]
    x2 = _layer_norm(x1 + y2, g_ref[...], beta_ref[...])
    o_ref[0] = x2.astype(o_ref.dtype)
    # TODO(synk): flash-style KV tiling (grid over key blocks) once nh*S*S*4B
    # approaches the VMEM budget (S ~ 1k on v7x); demo sizes fit trivially.


def _make_split_concat_mm_kernel(n_chunks):
    """o = silu((sum_i x_i @ w_i) * scale + shift): 1x1 conv over a *virtual*
    channel-concat of `n_chunks` inputs, without materializing the concat."""
    def kernel(*refs):
        xs = refs[:n_chunks]
        ws = refs[n_chunks:2 * n_chunks]
        scale_ref, shift_ref, o_ref = refs[2 * n_chunks:]
        acc = jnp.dot(xs[0][...].astype(jnp.bfloat16), ws[0][...],
                      preferred_element_type=jnp.float32)
        for xr, wr in zip(xs[1:], ws[1:]):
            acc = acc + jnp.dot(xr[...].astype(jnp.bfloat16), wr[...],
                                preferred_element_type=jnp.float32)
        y = acc * scale_ref[...] + shift_ref[...]
        o_ref[...] = _silu(y).astype(o_ref.dtype)
    return kernel


# ----------------------------------------------------------------------------
# Pallas wrappers
# ----------------------------------------------------------------------------
# TODO(synk): add K/N weight tiling (3-D grid + VMEM accumulator) for very
# large channel counts; at these sizes the full bf16 weight fits VMEM.
def conv1x1_bn_silu(x, w, scale, shift):
    """1x1 conv + folded BN + SiLU.  x: (B,H,W,C) -> (B,H,W,N) bf16."""
    B, H, W, C = x.shape
    N = w.shape[1]
    M = B * H * W
    tm, mp = _row_tile(M)
    out = pl.pallas_call(
        _mm_affine_act_kernel,
        out_shape=jax.ShapeDtypeStruct((mp, N), jnp.bfloat16),
        grid=(mp // tm,),
        in_specs=[
            pl.BlockSpec((tm, C), lambda i: (i, 0)),
            pl.BlockSpec((C, N), lambda i: (0, 0)),
            pl.BlockSpec((1, N), lambda i: (0, 0)),
            pl.BlockSpec((1, N), lambda i: (0, 0)),
        ],
        out_specs=pl.BlockSpec((tm, N), lambda i: (i, 0)),
        compiler_params=_CPARAMS,
    )(_pad_rows(x.reshape(M, C), mp), w, scale.reshape(1, N), shift.reshape(1, N))
    return out[:M].reshape(B, H, W, N)


def conv3x3_bn_silu(x, w9, scale, shift):
    """3x3 'same' conv + folded BN + SiLU.  x: (B,H,W,C), w9: (9*C, N) bf16."""
    B, H, W, C = x.shape
    N = w9.shape[-1]
    W2 = W + 2
    PF = (H + 3) * W2   # halo (1,1) + 1 slack row, all from a SINGLE pad
    xp = jnp.pad(x, ((0, 0), (1, 2), (1, 1), (0, 0))).reshape(B, PF, C)
    out = pl.pallas_call(
        functools.partial(_conv3x3_kernel, H=H, W=W),
        out_shape=jax.ShapeDtypeStruct((B, H * W, N), jnp.bfloat16),
        grid=(B,),
        in_specs=[
            pl.BlockSpec((1, PF, C), lambda b: (b, 0, 0)),
            pl.BlockSpec((9 * C, N), lambda b: (0, 0)),
            pl.BlockSpec((1, N), lambda b: (0, 0)),
            pl.BlockSpec((1, N), lambda b: (0, 0)),
        ],
        out_specs=pl.BlockSpec((1, H * W, N), lambda b: (b, 0, 0)),
        compiler_params=_CPARAMS,
    )(xp, w9, scale.reshape(1, N), shift.reshape(1, N))
    # TODO(synk): add an H row-band grid axis (halo'd input blocks) for large
    # images so whole-image blocks never exceed the scoped-VMEM budget.
    return out.reshape(B, H, W, N)


def crater_attention(x, p):
    """x: (B,H,W,C) -> (B,H,W,C) bf16.  Matches CraterAttention.forward."""
    B, H, W, C = x.shape
    S = H * W
    nh = 8
    out = pl.pallas_call(
        functools.partial(_crater_attn_kernel, nh=nh),
        out_shape=jax.ShapeDtypeStruct((B, S, C), jnp.bfloat16),
        grid=(B,),
        in_specs=[
            pl.BlockSpec((1, S, C), lambda b: (b, 0, 0)),
            pl.BlockSpec((C, 3 * C), lambda b: (0, 0)),
            pl.BlockSpec((1, 3 * C), lambda b: (0, 0)),
            pl.BlockSpec((C, C), lambda b: (0, 0)),
            pl.BlockSpec((1, C), lambda b: (0, 0)),
            pl.BlockSpec((C, 4 * C), lambda b: (0, 0)),
            pl.BlockSpec((1, 4 * C), lambda b: (0, 0)),
            pl.BlockSpec((4 * C, C), lambda b: (0, 0)),
            pl.BlockSpec((1, C), lambda b: (0, 0)),
            pl.BlockSpec((1, C), lambda b: (0, 0)),
            pl.BlockSpec((1, C), lambda b: (0, 0)),
        ],
        out_specs=pl.BlockSpec((1, S, C), lambda b: (b, 0, 0)),
        compiler_params=_CPARAMS,
    )(x.reshape(B, S, C),
      p["in_proj_w_t"], p["in_proj_b"].reshape(1, 3 * C),
      p["out_proj_w_t"], p["out_proj_b"].reshape(1, C),
      p["ffn_w1_t"], p["ffn_b1"].reshape(1, 4 * C),
      p["ffn_w2_t"], p["ffn_b2"].reshape(1, C),
      p["ln_g"].reshape(1, C), p["ln_b"].reshape(1, C))
    return out.reshape(B, H, W, C)


def conv1x1_split_concat(chunks, w_chunks, scale, shift):
    """1x1 conv(+BN+SiLU) over the virtual channel-concat of `chunks` (f32 out)."""
    M = chunks[0].shape[0]
    N = w_chunks[0].shape[1]
    n = len(chunks)
    tm, mp = _row_tile(M)
    in_specs = ([pl.BlockSpec((tm, ch.shape[1]), lambda i: (i, 0)) for ch in chunks]
                + [pl.BlockSpec(w.shape, lambda i: (0, 0)) for w in w_chunks]
                + [pl.BlockSpec((1, N), lambda i: (0, 0)),
                   pl.BlockSpec((1, N), lambda i: (0, 0))])
    out = pl.pallas_call(
        _make_split_concat_mm_kernel(n),
        out_shape=jax.ShapeDtypeStruct((mp, N), jnp.float32),
        grid=(mp // tm,),
        in_specs=in_specs,
        out_specs=pl.BlockSpec((tm, N), lambda i: (i, 0)),
        compiler_params=_CPARAMS,
    )(*[_pad_rows(ch, mp) for ch in chunks], *w_chunks,
      scale.reshape(1, N), shift.reshape(1, N))
    return out[:M]


# ----------------------------------------------------------------------------
# C2f forward (NHWC internally)
# ----------------------------------------------------------------------------
def c2f_forward(x_nchw, params):
    """C2f.forward.  Input/output NCHW float32; internals NHWC bf16."""
    x = jnp.transpose(x_nchw, (0, 2, 3, 1)).astype(jnp.float32)   # -> NHWC
    B, H, W, _ = x.shape
    c = params["c"]

    cv1 = params["cv1"]
    y0 = conv1x1_bn_silu(x, cv1["w"], cv1["scale"], cv1["shift"])  # (B,H,W,2c) bf16

    chunks = [y0.reshape(B * H * W, 2 * c)]   # y0 == cat(split(y0)): one 2c chunk
    y_prev = y0[..., c:]                      # second half feeds the first block
    for blk in params["m"]:
        ca, cb = blk["conv_a"], blk["conv_b"]
        z = conv3x3_bn_silu(y_prev, ca["w"], ca["scale"], ca["shift"])
        z = crater_attention(z, blk["attn"])
        z = conv3x3_bn_silu(z, cb["w"], cb["scale"], cb["shift"])
        chunks.append(z.reshape(B * H * W, c))
        y_prev = z

    cv2 = params["cv2"]
    out = conv1x1_split_concat(chunks, cv2["w_chunks"], cv2["scale"], cv2["shift"])
    out = out.reshape(B, H, W, -1)
    return jnp.transpose(out, (0, 3, 1, 2))   # -> NCHW


# ----------------------------------------------------------------------------
# Deterministic parameter construction (synthetic; eval-mode BN folded)
# ----------------------------------------------------------------------------
def _bn_fold(gamma, beta, mean, var, eps=1e-5):
    scale = gamma / jnp.sqrt(var + eps)
    shift = beta - mean * scale
    return scale, shift


def init_params(key, c1, c2, n=1, e=0.5):
    c = int(c2 * e)
    keys = list(jax.random.split(key, 128))
    it = iter(keys)

    def nrm(shape, std=0.1):
        return std * jax.random.normal(next(it), shape, jnp.float32)

    def conv_params(cin, cout, k):
        # torch conv layout (cout, cin, kh, kw) -> (kh*kw*cin, cout) tap-major
        w = nrm((cout, cin, k, k))
        wt = jnp.transpose(w, (2, 3, 1, 0)).reshape(k * k * cin, cout)
        gamma = 1.0 + nrm((cout,))
        beta = nrm((cout,))
        mean = jnp.zeros((cout,), jnp.float32)   # default BN running stats (eval)
        var = jnp.ones((cout,), jnp.float32)
        scale, shift = _bn_fold(gamma, beta, mean, var)
        return dict(w=wt.astype(jnp.bfloat16), scale=scale, shift=shift)

    def attn_params(C):
        return dict(
            in_proj_w_t=nrm((3 * C, C)).T.astype(jnp.bfloat16),
            in_proj_b=nrm((3 * C,)),
            out_proj_w_t=nrm((C, C)).T.astype(jnp.bfloat16),
            out_proj_b=nrm((C,)),
            ln_g=1.0 + nrm((C,)),
            ln_b=nrm((C,)),
            ffn_w1_t=nrm((4 * C, C)).T.astype(jnp.bfloat16),
            ffn_b1=nrm((4 * C,)),
            ffn_w2_t=nrm((C, 4 * C)).T.astype(jnp.bfloat16),
            ffn_b2=nrm((C,)),
        )

    cv2 = conv_params((2 + n) * c, c2, 1)
    # split cv2's weight along input channels: [y0 (2c)] + n block outputs (c each)
    cv2["w_chunks"] = ([cv2["w"][:2 * c]] +
                       [cv2["w"][2 * c + i * c: 2 * c + (i + 1) * c]
                        for i in range(n)])

    return dict(
        c=c,
        cv1=conv_params(c1, 2 * c, 1),
        cv2=cv2,
        m=[dict(conv_a=conv_params(c, c, 3),
                attn=attn_params(c),
                conv_b=conv_params(c, c, 3)) for _ in range(n)],
    )


# ----------------------------------------------------------------------------
if __name__ == "__main__":
    # B=2, c1=16, c2=32 (-> hidden c=16, divisible by the 8 attention heads), 8x8 spatial.
    B, C1, H, W = 2, 16, 8, 8
    C2, N_BLOCKS = 32, 1

    x = jax.random.normal(jax.random.PRNGKey(0), (B, C1, H, W), jnp.float32)
    params = init_params(jax.random.PRNGKey(1), C1, C2, n=N_BLOCKS)

    fwd = jax.jit(lambda t: c2f_forward(t, params))
    y = jax.block_until_ready(fwd(x))

    assert y.shape == (B, C2, H, W), y.shape
    assert bool(jnp.all(jnp.isfinite(y)))
    print("KERNEL_OK")
</pallas_src>

<mosaic_0001>
module attributes {stable_mosaic.version = 11 : i64} {
  func.func @_mm_affine_act_kernel(%arg0: i32, %arg1: memref<64x16xf32, #tpu.memory_space<vmem>>, %arg2: memref<16x32xbf16, #tpu.memory_space<vmem>>, %arg3: memref<1x32xf32, #tpu.memory_space<vmem>>, %arg4: memref<1x32xf32, #tpu.memory_space<vmem>>, %arg5: memref<64x32xbf16, #tpu.memory_space<vmem>>) attributes {dimension_semantics = [#tpu.dimension_semantics<parallel>], iteration_bounds = array<i64: 2>, scalar_prefetch = 0 : i64, scratch_operands = 0 : i64, tpu.core_type = #tpu.core_type<tc>, window_params = [{transform_indices = @transform_0, window_bounds = array<i64: 64, 16>}, {pipeline_mode = #tpu.pipeline_mode<synchronous>, transform_indices = @transform_1, window_bounds = array<i64: 16, 32>}, {pipeline_mode = #tpu.pipeline_mode<synchronous>, transform_indices = @transform_2, window_bounds = array<i64: 1, 32>}, {pipeline_mode = #tpu.pipeline_mode<synchronous>, transform_indices = @transform_3, window_bounds = array<i64: 1, 32>}, {transform_indices = @transform_4, window_bounds = array<i64: 64, 32>}]} {
    %c0 = arith.constant 0 : index
    %c0_0 = arith.constant 0 : index
    %0 = vector.load %arg1[%c0, %c0_0] : memref<64x16xf32, #tpu.memory_space<vmem>>, vector<64x16xf32>
    %1 = arith.truncf %0 : vector<64x16xf32> to vector<64x16xbf16>
    %c0_1 = arith.constant 0 : index
    %c0_2 = arith.constant 0 : index
    %2 = vector.load %arg2[%c0_1, %c0_2] : memref<16x32xbf16, #tpu.memory_space<vmem>>, vector<16x32xbf16>
    %cst = arith.constant dense<0.000000e+00> : vector<64x32xf32>
    %3 = tpu.matmul %1, %2, %cst {dimension_numbers = #tpu.dot_dimension_numbers<[1], [0], [0], [1], [0, 0, 1, 1], [], []>} : vector<64x16xbf16>, vector<16x32xbf16>, vector<64x32xf32> -> vector<64x32xf32>
    %c0_3 = arith.constant 0 : index
    %c0_4 = arith.constant 0 : index
    %4 = vector.load %arg3[%c0_3, %c0_4] : memref<1x32xf32, #tpu.memory_space<vmem>>, vector<1x32xf32>
    %5 = vector.broadcast %4 : vector<1x32xf32> to vector<64x32xf32>
    %6 = arith.mulf %3, %5 : vector<64x32xf32>
    %c0_5 = arith.constant 0 : index
    %c0_6 = arith.constant 0 : index
    %7 = vector.load %arg4[%c0_5, %c0_6] : memref<1x32xf32, #tpu.memory_space<vmem>>, vector<1x32xf32>
    %8 = vector.broadcast %7 : vector<1x32xf32> to vector<64x32xf32>
    %9 = arith.addf %6, %8 : vector<64x32xf32>
    %10 = arith.negf %9 : vector<64x32xf32>
    %11 = math.exp %10 : vector<64x32xf32>
    %cst_7 = arith.constant 1.000000e+00 : f32
    %12 = vector.broadcast %cst_7 : f32 to vector<64x32xf32>
    %13 = arith.addf %12, %11 : vector<64x32xf32>
    %14 = arith.divf %12, %13 : vector<64x32xf32>
    %15 = arith.mulf %9, %14 : vector<64x32xf32>
    %16 = arith.truncf %15 : vector<64x32xf32> to vector<64x32xbf16>
    %c0_8 = arith.constant 0 : index
    %c0_9 = arith.constant 0 : index
    %17 = vector.load %arg5[%c0_8, %c0_9] : memref<64x32xbf16, #tpu.memory_space<vmem>>, vector<64x32xbf16>
    tpu.vector_store %arg5[%c0_8, %c0_9], %16 {strides = array<i32>} : memref<64x32xbf16, #tpu.memory_space<vmem>>, vector<64x32xbf16>,
    return
  }
  func.func @transform_0(%arg0: i32) -> (i32, i32) {
    %c0_i32 = arith.constant 0 : i32
    %c0_i32_0 = arith.constant 0 : i32
    return %arg0, %c0_i32 : i32, i32
  }
  func.func @transform_1(%arg0: i32) -> (i32, i32) {
    %c0_i32 = arith.constant 0 : i32
    %c0_i32_0 = arith.constant 0 : i32
    %c0_i32_1 = arith.constant 0 : i32
    return %c0_i32, %c0_i32_0 : i32, i32
  }
  func.func @transform_2(%arg0: i32) -> (i32, i32) {
    %c0_i32 = arith.constant 0 : i32
    %c0_i32_0 = arith.constant 0 : i32
    %c0_i32_1 = arith.constant 0 : i32
    return %c0_i32, %c0_i32_0 : i32, i32
  }
  func.func @transform_3(%arg0: i32) -> (i32, i32) {
    %c0_i32 = arith.constant 0 : i32
    %c0_i32_0 = arith.constant 0 : i32
    %c0_i32_1 = arith.constant 0 : i32
    return %c0_i32, %c0_i32_0 : i32, i32
  }
  func.func @transform_4(%arg0: i32) -> (i32, i32) {
    %c0_i32 = arith.constant 0 : i32
    %c0_i32_0 = arith.constant 0 : i32
    return %arg0, %c0_i32 : i32, i32
  }
}

module attributes {stable_mosaic.version = 11 : i64} {
  func.func @kernel(%arg0: i32, %arg1: memref<64x32xbf16, #tpu.memory_space<vmem>>, %arg2: memref<64x16xbf16, #tpu.memory_space<vmem>>, %arg3: memref<32x32xbf16, #tpu.memory_space<vmem>>, %arg4: memref<16x32xbf16, #tpu.memory_space<vmem>>, %arg5: memref<1x32xf32, #tpu.memory_space<vmem>>, %arg6: memref<1x32xf32, #tpu.memory_space<vmem>>, %arg7: memref<64x32xf32, #tpu.memory_space<vmem>>) attributes {dimension_semantics = [#tpu.dimension_semantics<parallel>], iteration_bounds = array<i64: 2>, scalar_prefetch = 0 : i64, scratch_operands = 0 : i64, tpu.core_type = #tpu.core_type<tc>, window_params = [{transform_indices = @transform_0, window_bounds = array<i64: 64, 32>}, {transform_indices = @transform_1, window_bounds = array<i64: 64, 16>}, {pipeline_mode = #tpu.pipeline_mode<synchronous>, transform_indices = @transform_2, window_bounds = array<i64: 32, 32>}, {pipeline_mode = #tpu.pipeline_mode<synchronous>, transform_indices = @transform_3, window_bounds = array<i64: 16, 32>}, {pipeline_mode = #tpu.pipeline_mode<synchronous>, transform_indices = @transform_4, window_bounds = array<i64: 1, 32>}, {pipeline_mode = #tpu.pipeline_mode<synchronous>, transform_indices = @transform_5, window_bounds = array<i64: 1, 32>}, {transform_indices = @transform_6, window_bounds = array<i64: 64, 32>}]} {
    %c0 = arith.constant 0 : index
    %c0_0 = arith.constant 0 : index
    %0 = vector.load %arg1[%c0, %c0_0] : memref<64x32xbf16, #tpu.memory_space<vmem>>, vector<64x32xbf16>
    %c0_1 = arith.constant 0 : index
    %c0_2 = arith.constant 0 : index
    %1 = vector.load %arg3[%c0_1, %c0_2] : memref<32x32xbf16, #tpu.memory_space<vmem>>, vector<32x32xbf16>
    %cst = arith.constant dense<0.000000e+00> : vector<64x32xf32>
    %2 = tpu.matmul %0, %1, %cst {dimension_numbers = #tpu.dot_dimension_numbers<[1], [0], [0], [1], [0, 0, 1, 1], [], []>} : vector<64x32xbf16>, vector<32x32xbf16>, vector<64x32xf32> -> vector<64x32xf32>
    %c0_3 = arith.constant 0 : index
    %c0_4 = arith.constant 0 : index
    %3 = vector.load %arg2[%c0_3, %c0_4] : memref<64x16xbf16, #tpu.memory_space<vmem>>, vector<64x16xbf16>
    %c0_5 = arith.constant 0 : index
    %c0_6 = arith.constant 0 : index
    %4 = vector.load %arg4[%c0_5, %c0_6] : memref<16x32xbf16, #tpu.memory_space<vmem>>, vector<16x32xbf16>
    %cst_7 = arith.constant dense<0.000000e+00> : vector<64x32xf32>
    %5 = tpu.matmul %3, %4, %cst_7 {dimension_numbers = #tpu.dot_dimension_numbers<[1], [0], [0], [1], [0, 0, 1, 1], [], []>} : vector<64x16xbf16>, vector<16x32xbf16>, vector<64x32xf32> -> vector<64x32xf32>
    %6 = arith.addf %2, %5 : vector<64x32xf32>
    %c0_8 = arith.constant 0 : index
    %c0_9 = arith.constant 0 : index
    %7 = vector.load %arg5[%c0_8, %c0_9] : memref<1x32xf32, #tpu.memory_space<vmem>>, vector<1x32xf32>
    %8 = vector.broadcast %7 : vector<1x32xf32> to vector<64x32xf32>
    %9 = arith.mulf %6, %8 : vector<64x32xf32>
    %c0_10 = arith.constant 0 : index
    %c0_11 = arith.constant 0 : index
    %10 = vector.load %arg6[%c0_10, %c0_11] : memref<1x32xf32, #tpu.memory_space<vmem>>, vector<1x32xf32>
    %11 = vector.broadcast %10 : vector<1x32xf32> to vector<64x32xf32>
    %12 = arith.addf %9, %11 : vector<64x32xf32>
    %13 = arith.negf %12 : vector<64x32xf32>
    %14 = math.exp %13 : vector<64x32xf32>
    %cst_12 = arith.constant 1.000000e+00 : f32
    %15 = vector.broadcast %cst_12 : f32 to vector<64x32xf32>
    %16 = arith.addf %15, %14 : vector<64x32xf32>
    %17 = arith.divf %15, %16 : vector<64x32xf32>
    %18 = arith.mulf %12, %17 : vector<64x32xf32>
    %c0_13 = arith.constant 0 : index
    %c0_14 = arith.constant 0 : index
    %19 = vector.load %arg7[%c0_13, %c0_14] : memref<64x32xf32, #tpu.memory_space<vmem>>, vector<64x32xf32>
    tpu.vector_store %arg7[%c0_13, %c0_14], %18 {strides = array<i32>} : memref<64x32xf32, #tpu.memory_space<vmem>>, vector<64x32xf32>,
    return
  }
  func.func @transform_0(%arg0: i32) -> (i32, i32) {
    %c0_i32 = arith.constant 0 : i32
    %c0_i32_0 = arith.constant 0 : i32
    return %arg0, %c0_i32 : i32, i32
  }
  func.func @transform_1(%arg0: i32) -> (i32, i32) {
    %c0_i32 = arith.constant 0 : i32
    %c0_i32_0 = arith.constant 0 : i32
    return %arg0, %c0_i32 : i32, i32
  }
  func.func @transform_2(%arg0: i32) -> (i32, i32) {
    %c0_i32 = arith.constant 0 : i32
    %c0_i32_0 = arith.constant 0 : i32
    %c0_i32_1 = arith.constant 0 : i32
    return %c0_i32, %c0_i32_0 : i32, i32
  }
  func.func @transform_3(%arg0: i32) -> (i32, i32) {
    %c0_i32 = arith.constant 0 : i32
    %c0_i32_0 = arith.constant 0 : i32
    %c0_i32_1 = arith.constant 0 : i32
    return %c0_i32, %c0_i32_0 : i32, i32
  }
  func.func @transform_4(%arg0: i32) -> (i32, i32) {
    %c0_i32 = arith.constant 0 : i32
    %c0_i32_0 = arith.constant 0 : i32
    %c0_i32_1 = arith.constant 0 : i32
    return %c0_i32, %c0_i32_0 : i32, i32
  }
  func.func @transform_5(%arg0: i32) -> (i32, i32) {
    %c0_i32 = arith.constant 0 : i32
    %c0_i32_0 = arith.constant 0 : i32
    %c0_i32_1 = arith.constant 0 : i32
    return %c0_i32, %c0_i32_0 : i32, i32
  }
  func.func @transform_6(%arg0: i32) -> (i32, i32) {
    %c0_i32 = arith.constant 0 : i32
    %c0_i32_0 = arith.constant 0 : i32
    return %arg0, %c0_i32 : i32, i32
  }
}

module attributes {stable_mosaic.version = 11 : i64} {
  func.func @_conv3x3_kernel(%arg0: i32, %arg1: memref<1x110x16xbf16, #tpu.memory_space<vmem>>, %arg2: memref<144x16xbf16, #tpu.memory_space<vmem>>, %arg3: memref<1x16xf32, #tpu.memory_space<vmem>>, %arg4: memref<1x16xf32, #tpu.memory_space<vmem>>, %arg5: memref<1x64x16xbf16, #tpu.memory_space<vmem>>) attributes {dimension_semantics = [#tpu.dimension_semantics<parallel>], iteration_bounds = array<i64: 2>, scalar_prefetch = 0 : i64, scratch_operands = 0 : i64, tpu.core_type = #tpu.core_type<tc>, window_params = [{transform_indices = @transform_0, window_bounds = array<i64: 1, 110, 16>}, {pipeline_mode = #tpu.pipeline_mode<synchronous>, transform_indices = @transform_1, window_bounds = array<i64: 144, 16>}, {pipeline_mode = #tpu.pipeline_mode<synchronous>, transform_indices = @transform_2, window_bounds = array<i64: 1, 16>}, {pipeline_mode = #tpu.pipeline_mode<synchronous>, transform_indices = @transform_3, window_bounds = array<i64: 1, 16>}, {transform_indices = @transform_4, window_bounds = array<i64: 1, 64, 16>}]} {
    %c0 = arith.constant 0 : index
    %c0_0 = arith.constant 0 : index
    %c0_1 = arith.constant 0 : index
    %0 = vector.load %arg1[%c0, %c0_0, %c0_1] : memref<1x110x16xbf16, #tpu.memory_space<vmem>>, vector<1x80x16xbf16>
    %1 = vector.shape_cast %0 : vector<1x80x16xbf16> to vector<80x16xbf16>
    %2 = arith.extf %1 : vector<80x16xbf16> to vector<80x16xf32>
    %c0_2 = arith.constant 0 : index
    %c1 = arith.constant 1 : index
    %c0_3 = arith.constant 0 : index
    %3 = vector.load %arg1[%c0_2, %c1, %c0_3] : memref<1x110x16xbf16, #tpu.memory_space<vmem>>, vector<1x80x16xbf16>
    %4 = vector.shape_cast %3 : vector<1x80x16xbf16> to vector<80x16xbf16>
    %5 = arith.extf %4 : vector<80x16xbf16> to vector<80x16xf32>
    %c0_4 = arith.constant 0 : index
    %c2 = arith.constant 2 : index
    %c0_5 = arith.constant 0 : index
    %6 = vector.load %arg1[%c0_4, %c2, %c0_5] : memref<1x110x16xbf16, #tpu.memory_space<vmem>>, vector<1x80x16xbf16>
    %7 = vector.shape_cast %6 : vector<1x80x16xbf16> to vector<80x16xbf16>
    %8 = arith.extf %7 : vector<80x16xbf16> to vector<80x16xf32>
    %c0_6 = arith.constant 0 : index
    %c10 = arith.constant 10 : index
    %c0_7 = arith.constant 0 : index
    %9 = vector.load %arg1[%c0_6, %c10, %c0_7] : memref<1x110x16xbf16, #tpu.memory_space<vmem>>, vector<1x80x16xbf16>
    %10 = vector.shape_cast %9 : vector<1x80x16xbf16> to vector<80x16xbf16>
    %11 = arith.extf %10 : vector<80x16xbf16> to vector<80x16xf32>
    %c0_8 = arith.constant 0 : index
    %c11 = arith.constant 11 : index
    %c0_9 = arith.constant 0 : index
    %12 = vector.load %arg1[%c0_8, %c11, %c0_9] : memref<1x110x16xbf16, #tpu.memory_space<vmem>>, vector<1x80x16xbf16>
    %13 = vector.shape_cast %12 : vector<1x80x16xbf16> to vector<80x16xbf16>
    %14 = arith.extf %13 : vector<80x16xbf16> to vector<80x16xf32>
    %c0_10 = arith.constant 0 : index
    %c12 = arith.constant 12 : index
    %c0_11 = arith.constant 0 : index
    %15 = vector.load %arg1[%c0_10, %c12, %c0_11] : memref<1x110x16xbf16, #tpu.memory_space<vmem>>, vector<1x80x16xbf16>
    %16 = vector.shape_cast %15 : vector<1x80x16xbf16> to vector<80x16xbf16>
    %17 = arith.extf %16 : vector<80x16xbf16> to vector<80x16xf32>
    %c0_12 = arith.constant 0 : index
    %c20 = arith.constant 20 : index
    %c0_13 = arith.constant 0 : index
    %18 = vector.load %arg1[%c0_12, %c20, %c0_13] : memref<1x110x16xbf16, #tpu.memory_space<vmem>>, vector<1x80x16xbf16>
    %19 = vector.shape_cast %18 : vector<1x80x16xbf16> to vector<80x16xbf16>
    %20 = arith.extf %19 : vector<80x16xbf16> to vector<80x16xf32>
    %c0_14 = arith.constant 0 : index
    %c21 = arith.constant 21 : index
    %c0_15 = arith.constant 0 : index
    %21 = vector.load %arg1[%c0_14, %c21, %c0_15] : memref<1x110x16xbf16, #tpu.memory_space<vmem>>, vector<1x80x16xbf16>
    %22 = vector.shape_cast %21 : vector<1x80x16xbf16> to vector<80x16xbf16>
    %23 = arith.extf %22 : vector<80x16xbf16> to vector<80x16xf32>
    %c0_16 = arith.constant 0 : index
    %c22 = arith.constant 22 : index
    %c0_17 = arith.constant 0 : index
    %24 = vector.load %arg1[%c0_16, %c22, %c0_17] : memref<1x110x16xbf16, #tpu.memory_space<vmem>>, vector<1x80x16xbf16>
    %25 = vector.shape_cast %24 : vector<1x80x16xbf16> to vector<80x16xbf16>
    %26 = arith.extf %25 : vector<80x16xbf16> to vector<80x16xf32>
    %27 = tpu.concatenate %2, %5, %8, %11, %14, %17, %20, %23, %26 in 1 : vector<80x16xf32>, vector<80x16xf32>, vector<80x16xf32>, vector<80x16xf32>, vector<80x16xf32>, vector<80x16xf32>, vector<80x16xf32>, vector<80x16xf32>, vector<80x16xf32> -> vector<80x144xf32>
    %28 = vector.extract_strided_slice %27 {offsets = [0, 0], sizes = [8, 144], strides = [1, 1]} : vector<80x144xf32> to vector<8x144xf32>
    %29 = vector.extract_strided_slice %27 {offsets = [10, 0], sizes = [8, 144], strides = [1, 1]} : vector<80x144xf32> to vector<8x144xf32>
    %30 = vector.extract_strided_slice %27 {offsets = [20, 0], sizes = [8, 144], strides = [1, 1]} : vector<80x144xf32> to vector<8x144xf32>
    %31 = vector.extract_strided_slice %27 {offsets = [30, 0], sizes = [8, 144], strides = [1, 1]} : vector<80x144xf32> to vector<8x144xf32>
    %32 = vector.extract_strided_slice %27 {offsets = [40, 0], sizes = [8, 144], strides = [1, 1]} : vector<80x144xf32> to vector<8x144xf32>
    %33 = vector.extract_strided_slice %27 {offsets = [50, 0], sizes = [8, 144], strides = [1, 1]} : vector<80x144xf32> to vector<8x144xf32>
    %34 = vector.extract_strided_slice %27 {offsets = [60, 0], sizes = [8, 144], strides = [1, 1]} : vector<80x144xf32> to vector<8x144xf32>
    %35 = vector.extract_strided_slice %27 {offsets = [70, 0], sizes = [8, 144], strides = [1, 1]} : vector<80x144xf32> to vector<8x144xf32>
    %36 = tpu.concatenate %28, %29, %30, %31, %32, %33, %34, %35 in 0 : vector<8x144xf32>, vector<8x144xf32>, vector<8x144xf32>, vector<8x144xf32>, vector<8x144xf32>, vector<8x144xf32>, vector<8x144xf32>, vector<8x144xf32> -> vector<64x144xf32>
    %37 = arith.truncf %36 : vector<64x144xf32> to vector<64x144xbf16>
    %c0_18 = arith.constant 0 : index
    %c0_19 = arith.constant 0 : index
    %38 = vector.load %arg2[%c0_18, %c0_19] : memref<144x16xbf16, #tpu.memory_space<vmem>>, vector<144x16xbf16>
    %cst = arith.constant dense<0.000000e+00> : vector<64x16xf32>
    %39 = tpu.matmul %37, %38, %cst {dimension_numbers = #tpu.dot_dimension_numbers<[1], [0], [0], [1], [0, 0, 1, 1], [], []>} : vector<64x144xbf16>, vector<144x16xbf16>, vector<64x16xf32> -> vector<64x16xf32>
    %c0_20 = arith.constant 0 : index
    %c0_21 = arith.constant 0 : index
    %40 = vector.load %arg3[%c0_20, %c0_21] : memref<1x16xf32, #tpu.memory_space<vmem>>, vector<1x16xf32>
    %41 = vector.broadcast %40 : vector<1x16xf32> to vector<64x16xf32>
    %42 = arith.mulf %39, %41 : vector<64x16xf32>
    %c0_22 = arith.constant 0 : index
    %c0_23 = arith.constant 0 : index
    %43 = vector.load %arg4[%c0_22, %c0_23] : memref<1x16xf32, #tpu.memory_space<vmem>>, vector<1x16xf32>
    %44 = vector.broadcast %43 : vector<1x16xf32> to vector<64x16xf32>
    %45 = arith.addf %42, %44 : vector<64x16xf32>
    %46 = arith.negf %45 : vector<64x16xf32>
    %47 = math.exp %46 : vector<64x16xf32>
    %cst_24 = arith.constant 1.000000e+00 : f32
    %48 = vector.broadcast %cst_24 : f32 to vector<64x16xf32>
    %49 = arith.addf %48, %47 : vector<64x16xf32>
    %50 = arith.divf %48, %49 : vector<64x16xf32>
    %51 = arith.mulf %45, %50 : vector<64x16xf32>
    %52 = arith.truncf %51 : vector<64x16xf32> to vector<64x16xbf16>
    %c0_25 = arith.constant 0 : index
    %c0_26 = arith.constant 0 : index
    %c0_27 = arith.constant 0 : index
    %53 = vector.load %arg5[%c0_25, %c0_26, %c0_27] : memref<1x64x16xbf16, #tpu.memory_space<vmem>>, vector<1x64x16xbf16>
    %54 = vector.shape_cast %53 : vector<1x64x16xbf16> to vector<64x16xbf16>
    %55 = vector.shape_cast %52 : vector<64x16xbf16> to vector<1x64x16xbf16>
    tpu.vector_store %arg5[%c0_25, %c0_26, %c0_27], %55 {strides = array<i32>} : memref<1x64x16xbf16, #tpu.memory_space<vmem>>, vector<1x64x16xbf16>,
    return
  }
  func.func @transform_0(%arg0: i32) -> (i32, i32, i32) {
    %c0_i32 = arith.constant 0 : i32
    %c0_i32_0 = arith.constant 0 : i32
    %c0_i32_1 = arith.constant 0 : i32
    return %arg0, %c0_i32, %c0_i32_0 : i32, i32, i32
  }
  func.func @transform_1(%arg0: i32) -> (i32, i32) {
    %c0_i32 = arith.constant 0 : i32
    %c0_i32_0 = arith.constant 0 : i32
    %c0_i32_1 = arith.constant 0 : i32
    return %c0_i32, %c0_i32_0 : i32, i32
  }
  func.func @transform_2(%arg0: i32) -> (i32, i32) {
    %c0_i32 = arith.constant 0 : i32
    %c0_i32_0 = arith.constant 0 : i32
    %c0_i32_1 = arith.constant 0 : i32
    return %c0_i32, %c0_i32_0 : i32, i32
  }
  func.func @transform_3(%arg0: i32) -> (i32, i32) {
    %c0_i32 = arith.constant 0 : i32
    %c0_i32_0 = arith.constant 0 : i32
    %c0_i32_1 = arith.constant 0 : i32
    return %c0_i32, %c0_i32_0 : i32, i32
  }
  func.func @transform_4(%arg0: i32) -> (i32, i32, i32) {
    %c0_i32 = arith.constant 0 : i32
    %c0_i32_0 = arith.constant 0 : i32
    %c0_i32_1 = arith.constant 0 : i32
    return %arg0, %c0_i32, %c0_i32_0 : i32, i32, i32
  }
}

module attributes {stable_mosaic.version = 11 : i64} {
  func.func @_crater_attn_kernel(%arg0: i32, %arg1: memref<1x64x16xbf16, #tpu.memory_space<vmem>>, %arg2: memref<16x48xbf16, #tpu.memory_space<vmem>>, %arg3: memref<1x48xf32, #tpu.memory_space<vmem>>, %arg4: memref<16x16xbf16, #tpu.memory_space<vmem>>, %arg5: memref<1x16xf32, #tpu.memory_space<vmem>>, %arg6: memref<16x64xbf16, #tpu.memory_space<vmem>>, %arg7: memref<1x64xf32, #tpu.memory_space<vmem>>, %arg8: memref<64x16xbf16, #tpu.memory_space<vmem>>, %arg9: memref<1x16xf32, #tpu.memory_space<vmem>>, %arg10: memref<1x16xf32, #tpu.memory_space<vmem>>, %arg11: memref<1x16xf32, #tpu.memory_space<vmem>>, %arg12: memref<1x64x16xbf16, #tpu.memory_space<vmem>>) attributes {dimension_semantics = [#tpu.dimension_semantics<parallel>], iteration_bounds = array<i64: 2>, scalar_prefetch = 0 : i64, scratch_operands = 0 : i64, tpu.core_type = #tpu.core_type<tc>, window_params = [{transform_indices = @transform_0, window_bounds = array<i64: 1, 64, 16>}, {pipeline_mode = #tpu.pipeline_mode<synchronous>, transform_indices = @transform_1, window_bounds = array<i64: 16, 48>}, {pipeline_mode = #tpu.pipeline_mode<synchronous>, transform_indices = @transform_2, window_bounds = array<i64: 1, 48>}, {pipeline_mode = #tpu.pipeline_mode<synchronous>, transform_indices = @transform_3, window_bounds = array<i64: 16, 16>}, {pipeline_mode = #tpu.pipeline_mode<synchronous>, transform_indices = @transform_4, window_bounds = array<i64: 1, 16>}, {pipeline_mode = #tpu.pipeline_mode<synchronous>, transform_indices = @transform_5, window_bounds = array<i64: 16, 64>}, {pipeline_mode = #tpu.pipeline_mode<synchronous>, transform_indices = @transform_6, window_bounds = array<i64: 1, 64>}, {pipeline_mode = #tpu.pipeline_mode<synchronous>, transform_indices = @transform_7, window_bounds = array<i64: 64, 16>}, {pipeline_mode = #tpu.pipeline_mode<synchronous>, transform_indices = @transform_8, window_bounds = array<i64: 1, 16>}, {pipeline_mode = #tpu.pipeline_mode<synchronous>, transform_indices = @transform_9, window_bounds = array<i64: 1, 16>}, {pipeline_mode = #tpu.pipeline_mode<synchronous>, transform_indices = @transform_10, window_bounds = array<i64: 1, 16>}, {transform_indices = @transform_11, window_bounds = array<i64: 1, 64, 16>}]} {
    %c0 = arith.constant 0 : index
    %c0_0 = arith.constant 0 : index
    %c0_1 = arith.constant 0 : index
    %0 = vector.load %arg1[%c0, %c0_0, %c0_1] : memref<1x64x16xbf16, #tpu.memory_space<vmem>>, vector<1x64x16xbf16>
    %1 = vector.shape_cast %0 : vector<1x64x16xbf16> to vector<64x16xbf16>
    %2 = arith.extf %1 : vector<64x16xbf16> to vector<64x16xf32>
    %c0_2 = arith.constant 0 : index
    %c0_3 = arith.constant 0 : index
    %c0_4 = arith.constant 0 : index
    %3 = vector.load %arg1[%c0_2, %c0_3, %c0_4] : memref<1x64x16xbf16, #tpu.memory_space<vmem>>, vector<1x64x16xbf16>
    %4 = vector.shape_cast %3 : vector<1x64x16xbf16> to vector<64x16xbf16>
    %c0_5 = arith.constant 0 : index
    %c0_6 = arith.constant 0 : index
    %5 = vector.load %arg2[%c0_5, %c0_6] : memref<16x48xbf16, #tpu.memory_space<vmem>>, vector<16x48xbf16>
    %cst = arith.constant dense<0.000000e+00> : vector<64x48xf32>
    %6 = tpu.matmul %4, %5, %cst {dimension_numbers = #tpu.dot_dimension_numbers<[1], [0], [0], [1], [0, 0, 1, 1], [], []>} : vector<64x16xbf16>, vector<16x48xbf16>, vector<64x48xf32> -> vector<64x48xf32>
    %c0_7 = arith.constant 0 : index
    %c0_8 = arith.constant 0 : index
    %7 = vector.load %arg3[%c0_7, %c0_8] : memref<1x48xf32, #tpu.memory_space<vmem>>, vector<1x48xf32>
    %8 = vector.broadcast %7 : vector<1x48xf32> to vector<64x48xf32>
    %9 = arith.addf %6, %8 : vector<64x48xf32>
    %c0_9 = arith.constant 0 : index
    %c0_10 = arith.constant 0 : index
    %10 = vector.load %arg4[%c0_9, %c0_10] : memref<16x16xbf16, #tpu.memory_space<vmem>>, vector<16x16xbf16>
    %cst_11 = arith.constant 0.000000e+00 : f32
    %11 = vector.broadcast %cst_11 : f32 to vector<64x16xf32>
    %12 = vector.extract_strided_slice %9 {offsets = [0, 0], sizes = [64, 2], strides = [1, 1]} : vector<64x48xf32> to vector<64x2xf32>
    %13 = arith.truncf %12 : vector<64x2xf32> to vector<64x2xbf16>
    %14 = vector.extract_strided_slice %9 {offsets = [0, 16], sizes = [64, 2], strides = [1, 1]} : vector<64x48xf32> to vector<64x2xf32>
    %15 = arith.truncf %14 : vector<64x2xf32> to vector<64x2xbf16>
    %16 = vector.extract_strided_slice %9 {offsets = [0, 32], sizes = [64, 2], strides = [1, 1]} : vector<64x48xf32> to vector<64x2xf32>
    %17 = arith.truncf %16 : vector<64x2xf32> to vector<64x2xbf16>
    %cst_12 = arith.constant dense<0.000000e+00> : vector<64x64xf32>
    %18 = tpu.matmul %13, %15, %cst_12 {dimension_numbers = #tpu.dot_dimension_numbers<[1], [1], [0], [0], [0, 0, 1, 0], [], []>} : vector<64x2xbf16>, vector<64x2xbf16>, vector<64x64xf32> -> vector<64x64xf32>
    %cst_13 = arith.constant 0.707106769 : f32
    %19 = vector.broadcast %cst_13 : f32 to vector<64x64xf32>
    %20 = arith.mulf %18, %19 : vector<64x64xf32>
    %cst_14 = arith.constant dense<0xFF800000> : vector<64xf32>
    %21 = vector.multi_reduction <maximumf>, %20, %cst_14 [1] : vector<64x64xf32> to vector<64xf32>
    %22 = vector.shape_cast %21 : vector<64xf32> to vector<64x1xf32>
    %23 = vector.broadcast %22 : vector<64x1xf32> to vector<64x64xf32>
    %24 = arith.subf %20, %23 : vector<64x64xf32>
    %25 = math.exp %24 : vector<64x64xf32>
    %cst_15 = arith.constant dense<0.000000e+00> : vector<64xf32>
    %26 = vector.multi_reduction <add>, %25, %cst_15 [1] : vector<64x64xf32> to vector<64xf32>
    %27 = vector.shape_cast %26 : vector<64xf32> to vector<64x1xf32>
    %28 = vector.broadcast %27 : vector<64x1xf32> to vector<64x64xf32>
    %29 = arith.divf %25, %28 : vector<64x64xf32>
    %30 = arith.truncf %29 : vector<64x64xf32> to vector<64x64xbf16>
    %cst_16 = arith.constant dense<0.000000e+00> : vector<64x2xf32>
    %31 = tpu.matmul %30, %17, %cst_16 {dimension_numbers = #tpu.dot_dimension_numbers<[1], [0], [0], [1], [0, 0, 1, 1], [], []>} : vector<64x64xbf16>, vector<64x2xbf16>, vector<64x2xf32> -> vector<64x2xf32>
    %32 = arith.truncf %31 : vector<64x2xf32> to vector<64x2xbf16>
    %33 = vector.extract_strided_slice %10 {offsets = [0, 0], sizes = [2, 16], strides = [1, 1]} : vector<16x16xbf16> to vector<2x16xbf16>
    %cst_17 = arith.constant dense<0.000000e+00> : vector<64x16xf32>
    %34 = tpu.matmul %32, %33, %cst_17 {dimension_numbers = #tpu.dot_dimension_numbers<[1], [0], [0], [1], [0, 0, 1, 1], [], []>} : vector<64x2xbf16>, vector<2x16xbf16>, vector<64x16xf32> -> vector<64x16xf32>
    %35 = arith.addf %11, %34 : vector<64x16xf32>
    %36 = vector.extract_strided_slice %9 {offsets = [0, 2], sizes = [64, 2], strides = [1, 1]} : vector<64x48xf32> to vector<64x2xf32>
    %37 = arith.truncf %36 : vector<64x2xf32> to vector<64x2xbf16>
    %38 = vector.extract_strided_slice %9 {offsets = [0, 18], sizes = [64, 2], strides = [1, 1]} : vector<64x48xf32> to vector<64x2xf32>
    %39 = arith.truncf %38 : vector<64x2xf32> to vector<64x2xbf16>
    %40 = vector.extract_strided_slice %9 {offsets = [0, 34], sizes = [64, 2], strides = [1, 1]} : vector<64x48xf32> to vector<64x2xf32>
    %41 = arith.truncf %40 : vector<64x2xf32> to vector<64x2xbf16>
    %cst_18 = arith.constant dense<0.000000e+00> : vector<64x64xf32>
    %42 = tpu.matmul %37, %39, %cst_18 {dimension_numbers = #tpu.dot_dimension_numbers<[1], [1], [0], [0], [0, 0, 1, 0], [], []>} : vector<64x2xbf16>, vector<64x2xbf16>, vector<64x64xf32> -> vector<64x64xf32>
    %cst_19 = arith.constant 0.707106769 : f32
    %43 = vector.broadcast %cst_19 : f32 to vector<64x64xf32>
    %44 = arith.mulf %42, %43 : vector<64x64xf32>
    %cst_20 = arith.constant dense<0xFF800000> : vector<64xf32>
    %45 = vector.multi_reduction <maximumf>, %44, %cst_20 [1] : vector<64x64xf32> to vector<64xf32>
    %46 = vector.shape_cast %45 : vector<64xf32> to vector<64x1xf32>
    %47 = vector.broadcast %46 : vector<64x1xf32> to vector<64x64xf32>
    %48 = arith.subf %44, %47 : vector<64x64xf32>
    %49 = math.exp %48 : vector<64x64xf32>
    %cst_21 = arith.constant dense<0.000000e+00> : vector<64xf32>
    %50 = vector.multi_reduction <add>, %49, %cst_21 [1] : vector<64x64xf32> to vector<64xf32>
    %51 = vector.shape_cast %50 : vector<64xf32> to vector<64x1xf32>
    %52 = vector.broadcast %51 : vector<64x1xf32> to vector<64x64xf32>
    %53 = arith.divf %49, %52 : vector<64x64xf32>
    %54 = arith.truncf %53 : vector<64x64xf32> to vector<64x64xbf16>
    %cst_22 = arith.constant dense<0.000000e+00> : vector<64x2xf32>
    %55 = tpu.matmul %54, %41, %cst_22 {dimension_numbers = #tpu.dot_dimension_numbers<[1], [0], [0], [1], [0, 0, 1, 1], [], []>} : vector<64x64xbf16>, vector<64x2xbf16>, vector<64x2xf32> -> vector<64x2xf32>
    %56 = arith.truncf %55 : vector<64x2xf32> to vector<64x2xbf16>
    %57 = vector.extract_strided_slice %10 {offsets = [2, 0], sizes = [2, 16], strides = [1, 1]} : vector<16x16xbf16> to vector<2x16xbf16>
    %cst_23 = arith.constant dense<0.000000e+00> : vector<64x16xf32>
    %58 = tpu.matmul %56, %57, %cst_23 {dimension_numbers = #tpu.dot_dimension_numbers<[1], [0], [0], [1], [0, 0, 1, 1], [], []>} : vector<64x2xbf16>, vector<2x16xbf16>, vector<64x16xf32> -> vector<64x16xf32>
    %59 = arith.addf %35, %58 : vector<64x16xf32>
    %60 = vector.extract_strided_slice %9 {offsets = [0, 4], sizes = [64, 2], strides = [1, 1]} : vector<64x48xf32> to vector<64x2xf32>
    %61 = arith.truncf %60 : vector<64x2xf32> to vector<64x2xbf16>
    %62 = vector.extract_strided_slice %9 {offsets = [0, 20], sizes = [64, 2], strides = [1, 1]} : vector<64x48xf32> to vector<64x2xf32>
    %63 = arith.truncf %62 : vector<64x2xf32> to vector<64x2xbf16>
    %64 = vector.extract_strided_slice %9 {offsets = [0, 36], sizes = [64, 2], strides = [1, 1]} : vector<64x48xf32> to vector<64x2xf32>
    %65 = arith.truncf %64 : vector<64x2xf32> to vector<64x2xbf16>
    %cst_24 = arith.constant dense<0.000000e+00> : vector<64x64xf32>
    %66 = tpu.matmul %61, %63, %cst_24 {dimension_numbers = #tpu.dot_dimension_numbers<[1], [1], [0], [0], [0, 0, 1, 0], [], []>} : vector<64x2xbf16>, vector<64x2xbf16>, vector<64x64xf32> -> vector<64x64xf32>
    %cst_25 = arith.constant 0.707106769 : f32
    %67 = vector.broadcast %cst_25 : f32 to vector<64x64xf32>
    %68 = arith.mulf %66, %67 : vector<64x64xf32>
    %cst_26 = arith.constant dense<0xFF800000> : vector<64xf32>
    %69 = vector.multi_reduction <maximumf>, %68, %cst_26 [1] : vector<64x64xf32> to vector<64xf32>
    %70 = vector.shape_cast %69 : vector<64xf32> to vector<64x1xf32>
    %71 = vector.broadcast %70 : vector<64x1xf32> to vector<64x64xf32>
    %72 = arith.subf %68, %71 : vector<64x64xf32>
    %73 = math.exp %72 : vector<64x64xf32>
    %cst_27 = arith.constant dense<0.000000e+00> : vector<64xf32>
    %74 = vector.multi_reduction <add>, %73, %cst_27 [1] : vector<64x64xf32> to vector<64xf32>
    %75 = vector.shape_cast %74 : vector<64xf32> to vector<64x1xf32>
    %76 = vector.broadcast %75 : vector<64x1xf32> to vector<64x64xf32>
    %77 = arith.divf %73, %76 : vector<64x64xf32>
    %78 = arith.truncf %77 : vector<64x64xf32> to vector<64x64xbf16>
    %cst_28 = arith.constant dense<0.000000e+00> : vector<64x2xf32>
    %79 = tpu.matmul %78, %65, %cst_28 {dimension_numbers = #tpu.dot_dimension_numbers<[1], [0], [0], [1], [0, 0, 1, 1], [], []>} : vector<64x64xbf16>, vector<64x2xbf16>, vector<64x2xf32> -> vector<64x2xf32>
    %80 = arith.truncf %79 : vector<64x2xf32> to vector<64x2xbf16>
    %81 = vector.extract_strided_slice %10 {offsets = [4, 0], sizes = [2, 16], strides = [1, 1]} : vector<16x16xbf16> to vector<2x16xbf16>
    %cst_29 = arith.constant dense<0.000000e+00> : vector<64x16xf32>
    %82 = tpu.matmul %80, %81, %cst_29 {dimension_numbers = #tpu.dot_dimension_numbers<[1], [0], [0], [1], [0, 0, 1, 1], [], []>} : vector<64x2xbf16>, vector<2x16xbf16>, vector<64x16xf32> -> vector<64x16xf32>
    %83 = arith.addf %59, %82 : vector<64x16xf32>
    %84 = vector.extract_strided_slice %9 {offsets = [0, 6], sizes = [64, 2], strides = [1, 1]} : vector<64x48xf32> to vector<64x2xf32>
    %85 = arith.truncf %84 : vector<64x2xf32> to vector<64x2xbf16>
    %86 = vector.extract_strided_slice %9 {offsets = [0, 22], sizes = [64, 2], strides = [1, 1]} : vector<64x48xf32> to vector<64x2xf32>
    %87 = arith.truncf %86 : vector<64x2xf32> to vector<64x2xbf16>
    %88 = vector.extract_strided_slice %9 {offsets = [0, 38], sizes = [64, 2], strides = [1, 1]} : vector<64x48xf32> to vector<64x2xf32>
    %89 = arith.truncf %88 : vector<64x2xf32> to vector<64x2xbf16>
    %cst_30 = arith.constant dense<0.000000e+00> : vector<64x64xf32>
    %90 = tpu.matmul %85, %87, %cst_30 {dimension_numbers = #tpu.dot_dimension_numbers<[1], [1], [0], [0], [0, 0, 1, 0], [], []>} : vector<64x2xbf16>, vector<64x2xbf16>, vector<64x64xf32> -> vector<64x64xf32>
    %cst_31 = arith.constant 0.707106769 : f32
    %91 = vector.broadcast %cst_31 : f32 to vector<64x64xf32>
    %92 = arith.mulf %90, %91 : vector<64x64xf32>
    %cst_32 = arith.constant dense<0xFF800000> : vector<64xf32>
    %93 = vector.multi_reduction <maximumf>, %92, %cst_32 [1] : vector<64x64xf32> to vector<64xf32>
    %94 = vector.shape_cast %93 : vector<64xf32> to vector<64x1xf32>
    %95 = vector.broadcast %94 : vector<64x1xf32> to vector<64x64xf32>
    %96 = arith.subf %92, %95 : vector<64x64xf32>
    %97 = math.exp %96 : vector<64x64xf32>
    %cst_33 = arith.constant dense<0.000000e+00> : vector<64xf32>
    %98 = vector.multi_reduction <add>, %97, %cst_33 [1] : vector<64x64xf32> to vector<64xf32>
    %99 = vector.shape_cast %98 : vector<64xf32> to vector<64x1xf32>
    %100 = vector.broadcast %99 : vector<64x1xf32> to vector<64x64xf32>
    %101 = arith.divf %97, %100 : vector<64x64xf32>
    %102 = arith.truncf %101 : vector<64x64xf32> to vector<64x64xbf16>
    %cst_34 = arith.constant dense<0.000000e+00> : vector<64x2xf32>
    %103 = tpu.matmul %102, %89, %cst_34 {dimension_numbers = #tpu.dot_dimension_numbers<[1], [0], [0], [1], [0, 0, 1, 1], [], []>} : vector<64x64xbf16>, vector<64x2xbf16>, vector<64x2xf32> -> vector<64x2xf32>
    %104 = arith.truncf %103 : vector<64x2xf32> to vector<64x2xbf16>
    %105 = vector.extract_strided_slice %10 {offsets = [6, 0], sizes = [2, 16], strides = [1, 1]} : vector<16x16xbf16> to vector<2x16xbf16>
    %cst_35 = arith.constant dense<0.000000e+00> : vector<64x16xf32>
    %106 = tpu.matmul %104, %105, %cst_35 {dimension_numbers = #tpu.dot_dimension_numbers<[1], [0], [0], [1], [0, 0, 1, 1], [], []>} : vector<64x2xbf16>, vector<2x16xbf16>, vector<64x16xf32> -> vector<64x16xf32>
    %107 = arith.addf %83, %106 : vector<64x16xf32>
    %108 = vector.extract_strided_slice %9 {offsets = [0, 8], sizes = [64, 2], strides = [1, 1]} : vector<64x48xf32> to vector<64x2xf32>
    %109 = arith.truncf %108 : vector<64x2xf32> to vector<64x2xbf16>
    %110 = vector.extract_strided_slice %9 {offsets = [0, 24], sizes = [64, 2], strides = [1, 1]} : vector<64x48xf32> to vector<64x2xf32>
    %111 = arith.truncf %110 : vector<64x2xf32> to vector<64x2xbf16>
    %112 = vector.extract_strided_slice %9 {offsets = [0, 40], sizes = [64, 2], strides = [1, 1]} : vector<64x48xf32> to vector<64x2xf32>
    %113 = arith.truncf %112 : vector<64x2xf32> to vector<64x2xbf16>
    %cst_36 = arith.constant dense<0.000000e+00> : vector<64x64xf32>
    %114 = tpu.matmul %109, %111, %cst_36 {dimension_numbers = #tpu.dot_dimension_numbers<[1], [1], [0], [0], [0, 0, 1, 0], [], []>} : vector<64x2xbf16>, vector<64x2xbf16>, vector<64x64xf32> -> vector<64x64xf32>
    %cst_37 = arith.constant 0.707106769 : f32
    %115 = vector.broadcast %cst_37 : f32 to vector<64x64xf32>
    %116 = arith.mulf %114, %115 : vector<64x64xf32>
    %cst_38 = arith.constant dense<0xFF800000> : vector<64xf32>
    %117 = vector.multi_reduction <maximumf>, %116, %cst_38 [1] : vector<64x64xf32> to vector<64xf32>
    %118 = vector.shape_cast %117 : vector<64xf32> to vector<64x1xf32>
    %119 = vector.broadcast %118 : vector<64x1xf32> to vector<64x64xf32>
    %120 = arith.subf %116, %119 : vector<64x64xf32>
    %121 = math.exp %120 : vector<64x64xf32>
    %cst_39 = arith.constant dense<0.000000e+00> : vector<64xf32>
    %122 = vector.multi_reduction <add>, %121, %cst_39 [1] : vector<64x64xf32> to vector<64xf32>
    %123 = vector.shape_cast %122 : vector<64xf32> to vector<64x1xf32>
    %124 = vector.broadcast %123 : vector<64x1xf32> to vector<64x64xf32>
    %125 = arith.divf %121, %124 : vector<64x64xf32>
    %126 = arith.truncf %125 : vector<64x64xf32> to vector<64x64xbf16>
    %cst_40 = arith.constant dense<0.000000e+00> : vector<64x2xf32>
    %127 = tpu.matmul %126, %113, %cst_40 {dimension_numbers = #tpu.dot_dimension_numbers<[1], [0], [0], [1], [0, 0, 1, 1], [], []>} : vector<64x64xbf16>, vector<64x2xbf16>, vector<64x2xf32> -> vector<64x2xf32>
    %128 = arith.truncf %127 : vector<64x2xf32> to vector<64x2xbf16>
    %129 = vector.extract_strided_slice %10 {offsets = [8, 0], sizes = [2, 16], strides = [1, 1]} : vector<16x16xbf16> to vector<2x16xbf16>
    %cst_41 = arith.constant dense<0.000000e+00> : vector<64x16xf32>
    %130 = tpu.matmul %128, %129, %cst_41 {dimension_numbers = #tpu.dot_dimension_numbers<[1], [0], [0], [1], [0, 0, 1, 1], [], []>} : vector<64x2xbf16>, vector<2x16xbf16>, vector<64x16xf32> -> vector<64x16xf32>
    %131 = arith.addf %107, %130 : vector<64x16xf32>
    %132 = vector.extract_strided_slice %9 {offsets = [0, 10], sizes = [64, 2], strides = [1, 1]} : vector<64x48xf32> to vector<64x2xf32>
    %133 = arith.truncf %132 : vector<64x2xf32> to vector<64x2xbf16>
    %134 = vector.extract_strided_slice %9 {offsets = [0, 26], sizes = [64, 2], strides = [1, 1]} : vector<64x48xf32> to vector<64x2xf32>
    %135 = arith.truncf %134 : vector<64x2xf32> to vector<64x2xbf16>
    %136 = vector.extract_strided_slice %9 {offsets = [0, 42], sizes = [64, 2], strides = [1, 1]} : vector<64x48xf32> to vector<64x2xf32>
    %137 = arith.truncf %136 : vector<64x2xf32> to vector<64x2xbf16>
    %cst_42 = arith.constant dense<0.000000e+00> : vector<64x64xf32>
    %138 = tpu.matmul %133, %135, %cst_42 {dimension_numbers = #tpu.dot_dimension_numbers<[1], [1], [0], [0], [0, 0, 1, 0], [], []>} : vector<64x2xbf16>, vector<64x2xbf16>, vector<64x64xf32> -> vector<64x64xf32>
    %cst_43 = arith.constant 0.707106769 : f32
    %139 = vector.broadcast %cst_43 : f32 to vector<64x64xf32>
    %140 = arith.mulf %138, %139 : vector<64x64xf32>
    %cst_44 = arith.constant dense<0xFF800000> : vector<64xf32>
    %141 = vector.multi_reduction <maximumf>, %140, %cst_44 [1] : vector<64x64xf32> to vector<64xf32>
    %142 = vector.shape_cast %141 : vector<64xf32> to vector<64x1xf32>
    %143 = vector.broadcast %142 : vector<64x1xf32> to vector<64x64xf32>
    %144 = arith.subf %140, %143 : vector<64x64xf32>
    %145 = math.exp %144 : vector<64x64xf32>
    %cst_45 = arith.constant dense<0.000000e+00> : vector<64xf32>
    %146 = vector.multi_reduction <add>, %145, %cst_45 [1] : vector<64x64xf32> to vector<64xf32>
    %147 = vector.shape_cast %146 : vector<64xf32> to vector<64x1xf32>
    %148 = vector.broadcast %147 : vector<64x1xf32> to vector<64x64xf32>
    %149 = arith.divf %145, %148 : vector<64x64xf32>
    %150 = arith.truncf %149 : vector<64x64xf32> to vector<64x64xbf16>
    %cst_46 = arith.constant dense<0.000000e+00> : vector<64x2xf32>
    %151 = tpu.matmul %150, %137, %cst_46 {dimension_numbers = #tpu.dot_dimension_numbers<[1], [0], [0], [1], [0, 0, 1, 1], [], []>} : vector<64x64xbf16>, vector<64x2xbf16>, vector<64x2xf32> -> vector<64x2xf32>
    %152 = arith.truncf %151 : vector<64x2xf32> to vector<64x2xbf16>
    %153 = vector.extract_strided_slice %10 {offsets = [10, 0], sizes = [2, 16], strides = [1, 1]} : vector<16x16xbf16> to vector<2x16xbf16>
    %cst_47 = arith.constant dense<0.000000e+00> : vector<64x16xf32>
    %154 = tpu.matmul %152, %153, %cst_47 {dimension_numbers = #tpu.dot_dimension_numbers<[1], [0], [0], [1], [0, 0, 1, 1], [], []>} : vector<64x2xbf16>, vector<2x16xbf16>, vector<64x16xf32> -> vector<64x16xf32>
    %155 = arith.addf %131, %154 : vector<64x16xf32>
    %156 = vector.extract_strided_slice %9 {offsets = [0, 12], sizes = [64, 2], strides = [1, 1]} : vector<64x48xf32> to vector<64x2xf32>
    %157 = arith.truncf %156 : vector<64x2xf32> to vector<64x2xbf16>
    %158 = vector.extract_strided_slice %9 {offsets = [0, 28], sizes = [64, 2], strides = [1, 1]} : vector<64x48xf32> to vector<64x2xf32>
    %159 = arith.truncf %158 : vector<64x2xf32> to vector<64x2xbf16>
    %160 = vector.extract_strided_slice %9 {offsets = [0, 44], sizes = [64, 2], strides = [1, 1]} : vector<64x48xf32> to vector<64x2xf32>
    %161 = arith.truncf %160 : vector<64x2xf32> to vector<64x2xbf16>
    %cst_48 = arith.constant dense<0.000000e+00> : vector<64x64xf32>
    %162 = tpu.matmul %157, %159, %cst_48 {dimension_numbers = #tpu.dot_dimension_numbers<[1], [1], [0], [0], [0, 0, 1, 0], [], []>} : vector<64x2xbf16>, vector<64x2xbf16>, vector<64x64xf32> -> vector<64x64xf32>
    %cst_49 = arith.constant 0.707106769 : f32
    %163 = vector.broadcast %cst_49 : f32 to vector<64x64xf32>
    %164 = arith.mulf %162, %163 : vector<64x64xf32>
    %cst_50 = arith.constant dense<0xFF800000> : vector<64xf32>
    %165 = vector.multi_reduction <maximumf>, %164, %cst_50 [1] : vector<64x64xf32> to vector<64xf32>
    %166 = vector.shape_cast %165 : vector<64xf32> to vector<64x1xf32>
    %167 = vector.broadcast %166 : vector<64x1xf32> to vector<64x64xf32>
    %168 = arith.subf %164, %167 : vector<64x64xf32>
    %169 = math.exp %168 : vector<64x64xf32>
    %cst_51 = arith.constant dense<0.000000e+00> : vector<64xf32>
    %170 = vector.multi_reduction <add>, %169, %cst_51 [1] : vector<64x64xf32> to vector<64xf32>
    %171 = vector.shape_cast %170 : vector<64xf32> to vector<64x1xf32>
    %172 = vector.broadcast %171 : vector<64x1xf32> to vector<64x64xf32>
    %173 = arith.divf %169, %172 : vector<64x64xf32>
    %174 = arith.truncf %173 : vector<64x64xf32> to vector<64x64xbf16>
    %cst_52 = arith.constant dense<0.000000e+00> : vector<64x2xf32>
    %175 = tpu.matmul %174, %161, %cst_52 {dimension_numbers = #tpu.dot_dimension_numbers<[1], [0], [0], [1], [0, 0, 1, 1], [], []>} : vector<64x64xbf16>, vector<64x2xbf16>, vector<64x2xf32> -> vector<64x2xf32>
    %176 = arith.truncf %175 : vector<64x2xf32> to vector<64x2xbf16>
    %177 = vector.extract_strided_slice %10 {offsets = [12, 0], sizes = [2, 16], strides = [1, 1]} : vector<16x16xbf16> to vector<2x16xbf16>
    %cst_53 = arith.constant dense<0.000000e+00> : vector<64x16xf32>
    %178 = tpu.matmul %176, %177, %cst_53 {dimension_numbers = #tpu.dot_dimension_numbers<[1], [0], [0], [1], [0, 0, 1, 1], [], []>} : vector<64x2xbf16>, vector<2x16xbf16>, vector<64x16xf32> -> vector<64x16xf32>
    %179 = arith.addf %155, %178 : vector<64x16xf32>
    %180 = vector.extract_strided_slice %9 {offsets = [0, 14], sizes = [64, 2], strides = [1, 1]} : vector<64x48xf32> to vector<64x2xf32>
    %181 = arith.truncf %180 : vector<64x2xf32> to vector<64x2xbf16>
    %182 = vector.extract_strided_slice %9 {offsets = [0, 30], sizes = [64, 2], strides = [1, 1]} : vector<64x48xf32> to vector<64x2xf32>
    %183 = arith.truncf %182 : vector<64x2xf32> to vector<64x2xbf16>
    %184 = vector.extract_strided_slice %9 {offsets = [0, 46], sizes = [64, 2], strides = [1, 1]} : vector<64x48xf32> to vector<64x2xf32>
    %185 = arith.truncf %184 : vector<64x2xf32> to vector<64x2xbf16>
    %cst_54 = arith.constant dense<0.000000e+00> : vector<64x64xf32>
    %186 = tpu.matmul %181, %183, %cst_54 {dimension_numbers = #tpu.dot_dimension_numbers<[1], [1], [0], [0], [0, 0, 1, 0], [], []>} : vector<64x2xbf16>, vector<64x2xbf16>, vector<64x64xf32> -> vector<64x64xf32>
    %cst_55 = arith.constant 0.707106769 : f32
    %187 = vector.broadcast %cst_55 : f32 to vector<64x64xf32>
    %188 = arith.mulf %186, %187 : vector<64x64xf32>
    %cst_56 = arith.constant dense<0xFF800000> : vector<64xf32>
    %189 = vector.multi_reduction <maximumf>, %188, %cst_56 [1] : vector<64x64xf32> to vector<64xf32>
    %190 = vector.shape_cast %189 : vector<64xf32> to vector<64x1xf32>
    %191 = vector.broadcast %190 : vector<64x1xf32> to vector<64x64xf32>
    %192 = arith.subf %188, %191 : vector<64x64xf32>
    %193 = math.exp %192 : vector<64x64xf32>
    %cst_57 = arith.constant dense<0.000000e+00> : vector<64xf32>
    %194 = vector.multi_reduction <add>, %193, %cst_57 [1] : vector<64x64xf32> to vector<64xf32>
    %195 = vector.shape_cast %194 : vector<64xf32> to vector<64x1xf32>
    %196 = vector.broadcast %195 : vector<64x1xf32> to vector<64x64xf32>
    %197 = arith.divf %193, %196 : vector<64x64xf32>
    %198 = arith.truncf %197 : vector<64x64xf32> to vector<64x64xbf16>
    %cst_58 = arith.constant dense<0.000000e+00> : vector<64x2xf32>
    %199 = tpu.matmul %198, %185, %cst_58 {dimension_numbers = #tpu.dot_dimension_numbers<[1], [0], [0], [1], [0, 0, 1, 1], [], []>} : vector<64x64xbf16>, vector<64x2xbf16>, vector<64x2xf32> -> vector<64x2xf32>
    %200 = arith.truncf %199 : vector<64x2xf32> to vector<64x2xbf16>
    %201 = vector.extract_strided_slice %10 {offsets = [14, 0], sizes = [2, 16], strides = [1, 1]} : vector<16x16xbf16> to vector<2x16xbf16>
    %cst_59 = arith.constant dense<0.000000e+00> : vector<64x16xf32>
    %202 = tpu.matmul %200, %201, %cst_59 {dimension_numbers = #tpu.dot_dimension_numbers<[1], [0], [0], [1], [0, 0, 1, 1], [], []>} : vector<64x2xbf16>, vector<2x16xbf16>, vector<64x16xf32> -> vector<64x16xf32>
    %203 = arith.addf %179, %202 : vector<64x16xf32>
    %204 = arith.addf %2, %203 : vector<64x16xf32>
    %c0_60 = arith.constant 0 : index
    %c0_61 = arith.constant 0 : index
    %205 = vector.load %arg5[%c0_60, %c0_61] : memref<1x16xf32, #tpu.memory_space<vmem>>, vector<1x16xf32>
    %206 = vector.broadcast %205 : vector<1x16xf32> to vector<64x16xf32>
    %207 = arith.addf %204, %206 : vector<64x16xf32>
    %c0_62 = arith.constant 0 : index
    %c0_63 = arith.constant 0 : index
    %208 = vector.load %arg10[%c0_62, %c0_63] : memref<1x16xf32, #tpu.memory_space<vmem>>, vector<1x16xf32>
    %c0_64 = arith.constant 0 : index
    %c0_65 = arith.constant 0 : index
    %209 = vector.load %arg11[%c0_64, %c0_65] : memref<1x16xf32, #tpu.memory_space<vmem>>, vector<1x16xf32>
    %cst_66 = arith.constant dense<0.000000e+00> : vector<64xf32>
    %210 = vector.multi_reduction <add>, %207, %cst_66 [1] : vector<64x16xf32> to vector<64xf32>
    %211 = vector.shape_cast %210 : vector<64xf32> to vector<64x1xf32>
    %cst_67 = arith.constant 1.600000e+01 : f32
    %212 = vector.broadcast %cst_67 : f32 to vector<64x1xf32>
    %213 = arith.divf %211, %212 : vector<64x1xf32>
    %214 = vector.broadcast %213 : vector<64x1xf32> to vector<64x16xf32>
    %215 = arith.subf %207, %214 : vector<64x16xf32>
    %216 = arith.mulf %215, %215 : vector<64x16xf32>
    %cst_68 = arith.constant dense<0.000000e+00> : vector<64xf32>
    %217 = vector.multi_reduction <add>, %216, %cst_68 [1] : vector<64x16xf32> to vector<64xf32>
    %218 = vector.shape_cast %217 : vector<64xf32> to vector<64x1xf32>
    %cst_69 = arith.constant 1.600000e+01 : f32
    %219 = vector.broadcast %cst_69 : f32 to vector<64x1xf32>
    %220 = arith.divf %218, %219 : vector<64x1xf32>
    %cst_70 = arith.constant 9.99999974E-6 : f32
    %221 = vector.broadcast %cst_70 : f32 to vector<64x1xf32>
    %222 = arith.addf %220, %221 : vector<64x1xf32>
    %223 = math.rsqrt %222 : vector<64x1xf32>
    %224 = vector.broadcast %223 : vector<64x1xf32> to vector<64x16xf32>
    %225 = arith.mulf %215, %224 : vector<64x16xf32>
    %226 = vector.broadcast %208 : vector<1x16xf32> to vector<64x16xf32>
    %227 = arith.mulf %225, %226 : vector<64x16xf32>
    %228 = vector.broadcast %209 : vector<1x16xf32> to vector<64x16xf32>
    %229 = arith.addf %227, %228 : vector<64x16xf32>
    %230 = arith.truncf %229 : vector<64x16xf32> to vector<64x16xbf16>
    %c0_71 = arith.constant 0 : index
    %c0_72 = arith.constant 0 : index
    %231 = vector.load %arg6[%c0_71, %c0_72] : memref<16x64xbf16, #tpu.memory_space<vmem>>, vector<16x64xbf16>
    %cst_73 = arith.constant dense<0.000000e+00> : vector<64x64xf32>
    %232 = tpu.matmul %230, %231, %cst_73 {dimension_numbers = #tpu.dot_dimension_numbers<[1], [0], [0], [1], [0, 0, 1, 1], [], []>} : vector<64x16xbf16>, vector<16x64xbf16>, vector<64x64xf32> -> vector<64x64xf32>
    %c0_74 = arith.constant 0 : index
    %c0_75 = arith.constant 0 : index
    %233 = vector.load %arg7[%c0_74, %c0_75] : memref<1x64xf32, #tpu.memory_space<vmem>>, vector<1x64xf32>
    %234 = vector.broadcast %233 : vector<1x64xf32> to vector<64x64xf32>
    %235 = arith.addf %232, %234 : vector<64x64xf32>
    %cst_76 = arith.constant 5.000000e-01 : f32
    %236 = vector.broadcast %cst_76 : f32 to vector<64x64xf32>
    %237 = arith.mulf %236, %235 : vector<64x64xf32>
    %cst_77 = arith.constant 0.707106769 : f32
    %238 = vector.broadcast %cst_77 : f32 to vector<64x64xf32>
    %239 = arith.mulf %235, %238 : vector<64x64xf32>
    %240 = math.erf %239 : vector<64x64xf32>
    %cst_78 = arith.constant 1.000000e+00 : f32
    %241 = vector.broadcast %cst_78 : f32 to vector<64x64xf32>
    %242 = arith.addf %241, %240 : vector<64x64xf32>
    %243 = arith.mulf %237, %242 : vector<64x64xf32>
    %244 = arith.truncf %243 : vector<64x64xf32> to vector<64x64xbf16>
    %c0_79 = arith.constant 0 : index
    %c0_80 = arith.constant 0 : index
    %245 = vector.load %arg8[%c0_79, %c0_80] : memref<64x16xbf16, #tpu.memory_space<vmem>>, vector<64x16xbf16>
    %cst_81 = arith.constant dense<0.000000e+00> : vector<64x16xf32>
    %246 = tpu.matmul %244, %245, %cst_81 {dimension_numbers = #tpu.dot_dimension_numbers<[1], [0], [0], [1], [0, 0, 1, 1], [], []>} : vector<64x64xbf16>, vector<64x16xbf16>, vector<64x16xf32> -> vector<64x16xf32>
    %c0_82 = arith.constant 0 : index
    %c0_83 = arith.constant 0 : index
    %247 = vector.load %arg9[%c0_82, %c0_83] : memref<1x16xf32, #tpu.memory_space<vmem>>, vector<1x16xf32>
    %248 = vector.broadcast %247 : vector<1x16xf32> to vector<64x16xf32>
    %249 = arith.addf %246, %248 : vector<64x16xf32>
    %250 = arith.addf %229, %249 : vector<64x16xf32>
    %c0_84 = arith.constant 0 : index
    %c0_85 = arith.constant 0 : index
    %251 = vector.load %arg10[%c0_84, %c0_85] : memref<1x16xf32, #tpu.memory_space<vmem>>, vector<1x16xf32>
    %c0_86 = arith.constant 0 : index
    %c0_87 = arith.constant 0 : index
    %252 = vector.load %arg11[%c0_86, %c0_87] : memref<1x16xf32, #tpu.memory_space<vmem>>, vector<1x16xf32>
    %cst_88 = arith.constant dense<0.000000e+00> : vector<64xf32>
    %253 = vector.multi_reduction <add>, %250, %cst_88 [1] : vector<64x16xf32> to vector<64xf32>
    %254 = vector.shape_cast %253 : vector<64xf32> to vector<64x1xf32>
    %cst_89 = arith.constant 1.600000e+01 : f32
    %255 = vector.broadcast %cst_89 : f32 to vector<64x1xf32>
    %256 = arith.divf %254, %255 : vector<64x1xf32>
    %257 = vector.broadcast %256 : vector<64x1xf32> to vector<64x16xf32>
    %258 = arith.subf %250, %257 : vector<64x16xf32>
    %259 = arith.mulf %258, %258 : vector<64x16xf32>
    %cst_90 = arith.constant dense<0.000000e+00> : vector<64xf32>
    %260 = vector.multi_reduction <add>, %259, %cst_90 [1] : vector<64x16xf32> to vector<64xf32>
    %261 = vector.shape_cast %260 : vector<64xf32> to vector<64x1xf32>
    %cst_91 = arith.constant 1.600000e+01 : f32
    %262 = vector.broadcast %cst_91 : f32 to vector<64x1xf32>
    %263 = arith.divf %261, %262 : vector<64x1xf32>
    %cst_92 = arith.constant 9.99999974E-6 : f32
    %264 = vector.broadcast %cst_92 : f32 to vector<64x1xf32>
    %265 = arith.addf %263, %264 : vector<64x1xf32>
    %266 = math.rsqrt %265 : vector<64x1xf32>
    %267 = vector.broadcast %266 : vector<64x1xf32> to vector<64x16xf32>
    %268 = arith.mulf %258, %267 : vector<64x16xf32>
    %269 = vector.broadcast %251 : vector<1x16xf32> to vector<64x16xf32>
    %270 = arith.mulf %268, %269 : vector<64x16xf32>
    %271 = vector.broadcast %252 : vector<1x16xf32> to vector<64x16xf32>
    %272 = arith.addf %270, %271 : vector<64x16xf32>
    %273 = arith.truncf %272 : vector<64x16xf32> to vector<64x16xbf16>
    %c0_93 = arith.constant 0 : index
    %c0_94 = arith.constant 0 : index
    %c0_95 = arith.constant 0 : index
    %274 = vector.load %arg12[%c0_93, %c0_94, %c0_95] : memref<1x64x16xbf16, #tpu.memory_space<vmem>>, vector<1x64x16xbf16>
    %275 = vector.shape_cast %274 : vector<1x64x16xbf16> to vector<64x16xbf16>
    %276 = vector.shape_cast %273 : vector<64x16xbf16> to vector<1x64x16xbf16>
    tpu.vector_store %arg12[%c0_93, %c0_94, %c0_95], %276 {strides = array<i32>} : memref<1x64x16xbf16, #tpu.memory_space<vmem>>, vector<1x64x16xbf16>,
    return
  }
  func.func @transform_0(%arg0: i32) -> (i32, i32, i32) {
    %c0_i32 = arith.constant 0 : i32
    %c0_i32_0 = arith.constant 0 : i32
    %c0_i32_1 = arith.constant 0 : i32
    return %arg0, %c0_i32, %c0_i32_0 : i32, i32, i32
  }
  func.func @transform_1(%arg0: i32) -> (i32, i32) {
    %c0_i32 = arith.constant 0 : i32
    %c0_i32_0 = arith.constant 0 : i32
    %c0_i32_1 = arith.constant 0 : i32
    return %c0_i32, %c0_i32_0 : i32, i32
  }
  func.func @transform_2(%arg0: i32) -> (i32, i32) {
    %c0_i32 = arith.constant 0 : i32
    %c0_i32_0 = arith.constant 0 : i32
    %c0_i32_1 = arith.constant 0 : i32
    return %c0_i32, %c0_i32_0 : i32, i32
  }
  func.func @transform_3(%arg0: i32) -> (i32, i32) {
    %c0_i32 = arith.constant 0 : i32
    %c0_i32_0 = arith.constant 0 : i32
    %c0_i32_1 = arith.constant 0 : i32
    return %c0_i32, %c0_i32_0 : i32, i32
  }
  func.func @transform_4(%arg0: i32) -> (i32, i32) {
    %c0_i32 = arith.constant 0 : i32
    %c0_i32_0 = arith.constant 0 : i32
    %c0_i32_1 = arith.constant 0 : i32
    return %c0_i32, %c0_i32_0 : i32, i32
  }
  func.func @transform_5(%arg0: i32) -> (i32, i32) {
    %c0_i32 = arith.constant 0 : i32
    %c0_i32_0 = arith.constant 0 : i32
    %c0_i32_1 = arith.constant 0 : i32
    return %c0_i32, %c0_i32_0 : i32, i32
  }
  func.func @transform_6(%arg0: i32) -> (i32, i32) {
    %c0_i32 = arith.constant 0 : i32
    %c0_i32_0 = arith.constant 0 : i32
    %c0_i32_1 = arith.constant 0 : i32
    return %c0_i32, %c0_i32_0 : i32, i32
  }
  func.func @transform_7(%arg0: i32) -> (i32, i32) {
    %c0_i32 = arith.constant 0 : i32
    %c0_i32_0 = arith.constant 0 : i32
    %c0_i32_1 = arith.constant 0 : i32
    return %c0_i32, %c0_i32_0 : i32, i32
  }
  func.func @transform_8(%arg0: i32) -> (i32, i32) {
    %c0_i32 = arith.constant 0 : i32
    %c0_i32_0 = arith.constant 0 : i32
    %c0_i32_1 = arith.constant 0 : i32
    return %c0_i32, %c0_i32_0 : i32, i32
  }
  func.func @transform_9(%arg0: i32) -> (i32, i32) {
    %c0_i32 = arith.constant 0 : i32
    %c0_i32_0 = arith.constant 0 : i32
    %c0_i32_1 = arith.constant 0 : i32
    return %c0_i32, %c0_i32_0 : i32, i32
  }
  func.func @transform_10(%arg0: i32) -> (i32, i32) {
    %c0_i32 = arith.constant 0 : i32
    %c0_i32_0 = arith.constant 0 : i32
    %c0_i32_1 = arith.constant 0 : i32
    return %c0_i32, %c0_i32_0 : i32, i32
  }
  func.func @transform_11(%arg0: i32) -> (i32, i32, i32) {
    %c0_i32 = arith.constant 0 : i32
    %c0_i32_0 = arith.constant 0 : i32
    %c0_i32_1 = arith.constant 0 : i32
    return %arg0, %c0_i32, %c0_i32_0 : i32, i32, i32
  }
}

</mosaic_0001>

<llo_original>
// kernel: _lambda_.5
$region0: #{_lambda_.5}
  #allocation0 [shape = 'u32[]', space=smem, size = 0x4, offset = 0x4, fixed_abs, tag = 'smem constant byte address 0x4 - core index']
  #allocation1 [shape = 'u32[144,128]{1,0:T(1,128)}', space=vmem, size = 0x12000, scoped, tag = 'internal scratch']
  %s0 = inlined_call_operand.hbm [shape: f32[128,16], index: 0, kind: input, shape index: {}]
  %s1 = inlined_call_operand.vmem [shape: bf16[16,32], index: 1, kind: input, shape index: {}]
  %s2 = inlined_call_operand.vmem [shape: f32[1,32], index: 2, kind: input, shape index: {}]
  %s3 = inlined_call_operand.vmem [shape: f32[1,32], index: 3, kind: input, shape index: {}]
  %s4 = inlined_call_operand.vmem [shape: bf16[128,32], index: 4, kind: output, shape index: {}]
  %s5 = sld [smem:[#allocation0]]
  $region53: #{_lambda_.5} parent=0
    _
  %s7 = ssub.s32 1, %s5
  %s8 = scalar_select 0, %s7, %s5
  $region1: #{_lambda_.5} parent=0
    #allocation2 [shape = 'u8[65536]{0}', space=vmem, size = 0x10000, scoped, tag = 'input window, operand 0']
    #allocation3 [shape = 's32[2]{0}', space=sflag, size = 0x8, scoped, tag = 'scoped memory for _lambda_.5']
    %9 = vsyncpa [#allocation3], 0
    %s10 = scalar_lea.sflag [#allocation3], 1
    %11 = vsyncpa %s10, 0
    loop: start=0, step=1, limit=4
    $region2: #{_lambda_.5} parent=1 // loop_pre_header
      _
    $region3: #{_lambda_.5} parent=1 // loop_header
      %s13 = sphi 0, %s17
      %p14 = scmp.ge.s32.totalorder %s13, 4
      %s23 = sphi 0, %s25
      %s26 = sphi 0, %s23
      %s27 = sphi 0, %s26
      %s43 = sphi 0, %s27
      %s47 = sphi 0, %s47
      %s49 = sphi 0, %s47
      %s50 = sphi 0, %s49
      %s64 = sphi 0, %s50
      %s68 = sphi 0, %s68
      %s70 = sphi 0, %s68
      %s71 = sphi 0, %s70
      %s85 = sphi 0, %s71
      %s89 = sphi 0, %s89
      %s91 = sphi 0, %s89
      %s92 = sphi 0, %s91
      %s106 = sphi 0, %s92
      %s112 = sphi 0, %s114
      %s115 = sphi 0, %s112
      %s116 = sphi 0, %s115
      %s132 = sphi 0, %s116
    $region4: #{_lambda_.5} parent=1 // loop_header_branch
      %16 = sbr.rel (%p14) target = $region8
    $region5: #{_lambda_.5} parent=1 // loop_body
      %s18 = ssub.s32 %s13, 1
      %s19 = ssub.s32 %s13, 2
      %s20 = sadd.s32 %s13, 1
      %s21 = ssub.s32 %s13, %s20
      %p22 = scmp.eq.s32.totalorder %s21, 0
      %s24 = sadd.s32 %s23, 1
      %s25 = scalar_select %p22, %s23, %s24
      %p28 = pneg %p22
      %p29 = scmp.eq.s32.totalorder %s13, 1
      %p30 = por %p28, %p29
      %p31 = scmp.ne.s32.totalorder %s23, %s26
      %p32 = scmp.eq.s32.totalorder %s13, 0
      %p33 = por %p31, %p32
      %p34 = scmp.ne.s32.totalorder %s23, %s26
      %p35 = scmp.eq.s32.totalorder %s18, 1
      %p36 = por %p34, %p35
      %p37 = scmp.ne.s32.totalorder %s26, %s27
      %p38 = scmp.eq.s32.totalorder %s18, 0
      %p39 = por %p37, %p38
      %p40 = scmp.ne.s32.totalorder %s26, %s27
      %p41 = scmp.eq.s32.totalorder %s19, 1
      %p42 = por %p40, %p41
      %p44 = scmp.ne.s32.totalorder %s27, %s43
      %p45 = scmp.eq.s32.totalorder %s19, 0
      %p46 = por %p44, %p45
      %s48 = sadd.s32 %s47, 1
      %p51 = scmp.eq.s32.totalorder %s13, 1
      %p52 = scmp.ne.s32.totalorder %s47, %s49
      %p53 = scmp.eq.s32.totalorder %s13, 0
      %p54 = por %p52, %p53
      %p55 = scmp.ne.s32.totalorder %s47, %s49
      %p56 = scmp.eq.s32.totalorder %s18, 1
      %p57 = por %p55, %p56
      %p58 = scmp.ne.s32.totalorder %s49, %s50
      %p59 = scmp.eq.s32.totalorder %s18, 0
      %p60 = por %p58, %p59
      %p61 = scmp.ne.s32.totalorder %s49, %s50
      %p62 = scmp.eq.s32.totalorder %s19, 1
      %p63 = por %p61, %p62
      %p65 = scmp.ne.s32.totalorder %s50, %s64
      %p66 = scmp.eq.s32.totalorder %s19, 0
      %p67 = por %p65, %p66
      %s69 = sadd.s32 %s68, 1
      %p72 = scmp.eq.s32.totalorder %s13, 1
      %p73 = scmp.ne.s32.totalorder %s68, %s70
      %p74 = scmp.eq.s32.totalorder %s13, 0
      %p75 = por %p73, %p74
      %p76 = scmp.ne.s32.totalorder %s68, %s70
      %p77 = scmp.eq.s32.totalorder %s18, 1
      %p78 = por %p76, %p77
      %p79 = scmp.ne.s32.totalorder %s70, %s71
      %p80 = scmp.eq.s32.totalorder %s18, 0
      %p81 = por %p79, %p80
      %p82 = scmp.ne.s32.totalorder %s70, %s71
      %p83 = scmp.eq.s32.totalorder %s19, 1
      %p84 = por %p82, %p83
      %p86 = scmp.ne.s32.totalorder %s71, %s85
      %p87 = scmp.eq.s32.totalorder %s19, 0
      %p88 = por %p86, %p87
      %s90 = sadd.s32 %s89, 1
      %p93 = scmp.eq.s32.totalorder %s13, 1
      %p94 = scmp.ne.s32.totalorder %s89, %s91
      %p95 = scmp.eq.s32.totalorder %s13, 0
      %p96 = por %p94, %p95
      %p97 = scmp.ne.s32.totalorder %s89, %s91
      %p98 = scmp.eq.s32.totalorder %s18, 1
      %p99 = por %p97, %p98
      %p100 = scmp.ne.s32.totalorder %s91, %s92
      %p101 = scmp.eq.s32.totalorder %s18, 0
      %p102 = por %p100, %p101
      %p103 = scmp.ne.s32.totalorder %s91, %s92
      %p104 = scmp.eq.s32.totalorder %s19, 1
      %p105 = por %p103, %p104
      %p107 = scmp.ne.s32.totalorder %s92, %s106
      %p108 = scmp.eq.s32.totalorder %s19, 0
      %p109 = por %p107, %p108
      %s110 = ssub.s32 %s13, %s20
      %p111 = scmp.eq.s32.totalorder %s110, 0
      %s113 = sadd.s32 %s112, 1
      %s114 = scalar_select %p111, %s112, %s113
      %p117 = pneg %p111
      %p118 = scmp.eq.s32.totalorder %s13, 1
      %p119 = por %p117, %p118
      %p120 = scmp.ne.s32.totalorder %s112, %s115
      %p121 = scmp.eq.s32.totalorder %s13, 0
      %p122 = por %p120, %p121
      %p123 = scmp.ne.s32.totalorder %s112, %s115
      %p124 = scmp.eq.s32.totalorder %s18, 1
      %p125 = por %p123, %p124
      %p126 = scmp.ne.s32.totalorder %s115, %s116
      %p127 = scmp.eq.s32.totalorder %s18, 0
      %p128 = por %p126, %p127
      %p129 = scmp.ne.s32.totalorder %s115, %s116
      %p130 = scmp.eq.s32.totalorder %s19, 1
      %p131 = por %p129, %p130
      %p133 = scmp.ne.s32.totalorder %s116, %s132
      %p134 = scmp.eq.s32.totalorder %s19, 0
      %p135 = por %p133, %p134
      %p136 = scmp.le.s32.totalorder 1, %s13
      %p137 = scmp.lt.s32.totalorder %s13, 3
      %p138 = pnand %p136, %p137
      %p139 = pneg %p138
      // Predicated region
      $region9: #{_lambda_.5} parent=5 // pred_check
        _
      $region10: #{_lambda_.5} parent=5 // pred_check_branch
        %141 = sbr.rel (%p138) target = $region12
      $region11: #{_lambda_.5} parent=5 // pred_region
        %s142 = ssub.s32 %s13, 1
        // Predicated region
        $region13: #{_lambda_.5} parent=11 // pred_check
          %p143 = pneg %p60
        $region14: #{_lambda_.5} parent=11 // pred_check_branch
          %145 = sbr.rel (%p143) target = $region16
        $region15: #{_lambda_.5} parent=11 // pred_region
          _
        $region16: #{_lambda_.5} parent=11 // pred_fallthru
          _
        // Predicated region
        $region17: #{_lambda_.5} parent=11 // pred_check
          %p146 = pneg %p81
        $region18: #{_lambda_.5} parent=11 // pred_check_branch
          %148 = sbr.rel (%p146) target = $region20
        $region19: #{_lambda_.5} parent=11 // pred_region
          _
        $region20: #{_lambda_.5} parent=11 // pred_fallthru
          _
        // Predicated region
        $region21: #{_lambda_.5} parent=11 // pred_check
          %p149 = pneg %p102
        $region22: #{_lambda_.5} parent=11 // pred_check_branch
          %151 = sbr.rel (%p149) target = $region24
        $region23: #{_lambda_.5} parent=11 // pred_region
          _
        $region24: #{_lambda_.5} parent=11 // pred_fallthru
          _
      $region12: #{_lambda_.5} parent=5 // pred_fallthru
        _
      %p152 = scmp.lt.s32.totalorder %s13, 2
      // Predicated region
      $region25: #{_lambda_.5} parent=5 // pred_check
        %p153 = pneg %p152
      $region26: #{_lambda_.5} parent=5 // pred_check_branch
        %155 = sbr.rel (%p153) target = $region28
      $region27: #{_lambda_.5} parent=5 // pred_region
        // Predicated region
        $region29: #{_lambda_.5} parent=27 // pred_check
          %p156 = pneg %p33
        $region30: #{_lambda_.5} parent=27 // pred_check_branch
          %158 = sbr.rel (%p156) target = $region32
        $region31: #{_lambda_.5} parent=27 // pred_region
          %s159 = sand.u32 %s23, 1
          %s160 = scalar_lea.sflag [#allocation3], %s159
          %s161 = sand.u32 %s23, 1
          %s162 = smul.addr %s161, 64
          %s163 = scalar_lea.vmem [#allocation2], %s162
          %s164 = smul.u32 8, %s13
          %s166 = ssub.s32 1024, 1024
          %167 = vsyncadd %s160, %s166
          %s168 = smul.addr %s164, 128
          %s169 = scalar_lea.hbm %s0, %s168
          %s170 = sshll.u32 %s163, 4
          %s171 = int_to_ptr.vmem [resolvable:$true] %s170
          %176 = dma.hbm_to_vmem [thread:$0]  %s169, 1024, %s171, %s160, 128, 128, 8
        $region32: #{_lambda_.5} parent=27 // pred_fallthru
          _
      $region28: #{_lambda_.5} parent=5 // pred_fallthru
        _
      %p177 = scmp.le.s32.totalorder 1, %s13
      %p178 = scmp.lt.s32.totalorder %s13, 3
      %p179 = pnand %p177, %p178
      %p180 = pneg %p179
      // Predicated region
      $region33: #{_lambda_.5} parent=5 // pred_check
        _
      $region34: #{_lambda_.5} parent=5 // pred_check_branch
        %182 = sbr.rel (%p179) target = $region36
      $region35: #{_lambda_.5} parent=5 // pred_region
        %s183 = ssub.s32 %s13, 1
        %s184 = sand.u32 %s26, 1
        %s185 = scalar_lea.sflag [#allocation3], %s184
        %s186 = sand.u32 %s26, 1
        %s187 = smul.addr %s186, 64
        %s188 = scalar_lea.vmem [#allocation2], %s187
        // Predicated region
        $region37: #{_lambda_.5} parent=35 // pred_check
          %p189 = pneg %p39
        $region38: #{_lambda_.5} parent=35 // pred_check_branch
          %191 = sbr.rel (%p189) target = $region40
        $region39: #{_lambda_.5} parent=35 // pred_region
          %192 = dma.done %s185, 1024
        $region40: #{_lambda_.5} parent=35 // pred_fallthru
          _
        %s193 = sand.u32 %s26, 1
        %s194 = scalar_lea.sflag [#allocation3], %s193
        %s195 = sand.u32 %s26, 1
        %s196 = smul.addr %s195, 64
        %s197 = scalar_lea.vmem [#allocation2], %s196
        %p198 = pneg %p39
        %p199 = pneg %p36
        %p200 = pneg %p60
        %p201 = pneg %p57
        %p202 = pneg %p81
        %p203 = pneg %p78
        %p204 = pneg %p102
        %p205 = pneg %p99
        %p206 = pneg %p128
        %p207 = pneg %p125
        %s208 = smul.u32 8, %s18
        %p209 = scmp.lt.s32.totalorder %s208, 15
        %s210 = scalar_select %p209, %s208, 15
        %s211 = smul.addr %s210, 4
        %s212 = scalar_lea.vmem %s4, %s211
        %s213 = smul.u32 8, %s18
        %s214 = smul.u32 8, %s18
        %p215 = scmp.lt.s32.totalorder %s214, 15
        %s216 = scalar_select %p215, %s214, 15
        %s217 = smul.addr %s216, 4
        %s218 = scalar_lea.vmem %s4, %s217
        %s219 = smul.u32 8, %s18
        %v221 = vld [vmem:[%s188] sm:$0xff]
        %v222 = vld [vmem:[%s188 + $0x8] sm:$0xff]
        %v223 = vld [vmem:[%s188 + $0x10] sm:$0xff]
        %v224 = vld [vmem:[%s188 + $0x18] sm:$0xff]
        %v225 = vld [vmem:[%s188 + $0x20] sm:$0xff]
        %v226 = vld [vmem:[%s188 + $0x28] sm:$0xff]
        %v227 = vld [vmem:[%s188 + $0x30] sm:$0xff]
        %v228 = vld [vmem:[%s188 + $0x38] sm:$0xff]
        %v229 = vpack.c.bf16 %v222, %v221
        %v230 = vpack.c.bf16 %v224, %v223
        %v231 = vpack.c.bf16 %v226, %v225
        %v232 = vpack.c.bf16 %v228, %v227
        %v233 = vld [vmem:[%s1] sm:$0xf]
        %v234 = vld [vmem:[%s1 + $0x4] sm:$0xf]
        %v237 = vunpack.c.l.b16 %v233
        %v238 = vunpack.c.l.b16 %v234
        %v239 = vpack.c.b16 %v238, %v237
        %vm241 = vcmask 130048
        %v243 = vsel %vm241, %v229, 0
        %v246 = vsel %vm241, %v230, 0
        %v249 = vsel %vm241, %v231, 0
        %v252 = vsel %vm241, %v232, 0
        %254 = vmatprep.subr.bf16.mxu0 0
        %255 = vmatpush1.bf16.msra.mxu0 0
        %256 = vmatprep.subr.bf16.mxu0 0
        %257 = vmatpush1.bf16.msra.mxu0 0
        %258 = vmatprep.subr.bf16.mxu0 0
        %259 = vmatpush1.bf16.msra.mxu0 0
        %260 = vmatprep.subr.bf16.mxu0 0
        %261 = vmatpush1.bf16.msra.mxu0 0
        %262 = vmatprep.subr.bf16.mxu0 0
        %263 = vmatpush1.bf16.msra.mxu0 0
        %264 = vmatprep.subr.bf16.mxu0 0
        %265 = vmatpush1.bf16.msra.mxu0 0
        %266 = vmatprep.subr.bf16.mxu0 0
        %267 = vmatpush1.bf16.msra.mxu0 0
        %268 = vmatprep.subr.bf16.mxu0 0
        %269 = vmatpush1.bf16.msra.mxu0 %v239
        %270 = vmatprep.subr.bf16.mxu0 0
        %271 = vmatpush2.bf16.msra.mxu0 0
        %272 = vmatprep.subr.bf16.mxu0 0
        %273 = vmatpush2.bf16.msra.mxu0 0
        %274 = vmatprep.subr.bf16.mxu0 0
        %275 = vmatpush2.bf16.msra.mxu0 0
        %276 = vmatprep.subr.bf16.mxu0 0
        %277 = vmatpush2.bf16.msra.mxu0 0
        %278 = vmatprep.subr.bf16.mxu0 0
        %279 = vmatpush2.bf16.msra.mxu0 0
        %280 = vmatprep.subr.bf16.mxu0 0
        %281 = vmatpush2.bf16.msra.mxu0 0
        %282 = vmatprep.subr.bf16.mxu0 0
        %283 = vmatpush2.bf16.msra.mxu0 0
        %284 = vmatprep.subr.bf16.mxu0 0
        %285 = vmatpush2.bf16.msra.mxu0 0
        %286 = vmatprep.mubr.bf16.mxu0 0
        %287 = vmatmul.mubr.bf16.gmra.mxu0 %v243
        %v288 = vpop.f32.mrf.mxu0
        %v289 = vadd.f32 0.0, %v288
        %v290 = vpop.f32.mrf.mxu0
        %v291 = vpop.f32.mrf.mxu0
        %v292 = vadd.f32 0.0, %v291
        %v293 = vpop.f32.mrf.mxu0
        %294 = vmatprep.mubr.bf16.mxu0 0
        %295 = vmatmul.mubr.bf16.gmra.mxu0 %v246
        %v296 = vpop.f32.mrf.mxu0
        %v297 = vadd.f32 0.0, %v296
        %v298 = vpop.f32.mrf.mxu0
        %v299 = vpop.f32.mrf.mxu0
        %v300 = vadd.f32 0.0, %v299
        %v301 = vpop.f32.mrf.mxu0
        %302 = vmatprep.mubr.bf16.mxu0 0
        %303 = vmatmul.mubr.bf16.gmra.mxu0 %v249
        %v304 = vpop.f32.mrf.mxu0
        %v305 = vadd.f32 0.0, %v304
        %v306 = vpop.f32.mrf.mxu0
        %v307 = vpop.f32.mrf.mxu0
        %v308 = vadd.f32 0.0, %v307
        %v309 = vpop.f32.mrf.mxu0
        %310 = vmatprep.mubr.bf16.mxu0 0
        %311 = vmatmul.mubr.bf16.gmra.mxu0 %v252
        %v312 = vpop.f32.mrf.mxu0
        %v313 = vadd.f32 0.0, %v312
        %v314 = vpop.f32.mrf.mxu0
        %v315 = vpop.f32.mrf.mxu0
        %v316 = vadd.f32 0.0, %v315
        %v317 = vpop.f32.mrf.mxu0
        %318 = vdwg.mxu0
        %v319 = vld [vmem:[%s2] sm:$0x1]
        %v321 = vlaneseq
        %v322 = vshrl.u32 %v321, 7
        %v323 = vsub.s32 0, %v322
        %v324 = vrot.slane %v319, %v323
        %v326 = vmul.f32 %v289, %v324
        %v327 = vmul.f32 %v292, %v324
        %v328 = vmul.f32 %v297, %v324
        %v329 = vmul.f32 %v300, %v324
        %v330 = vmul.f32 %v305, %v324
        %v331 = vmul.f32 %v308, %v324
        %v332 = vmul.f32 %v313, %v324
        %v333 = vmul.f32 %v316, %v324
        %v334 = vld [vmem:[%s3] sm:$0x1]
        %v336 = vlaneseq
        %v337 = vshrl.u32 %v336, 7
        %v338 = vsub.s32 0, %v337
        %v339 = vrot.slane %v334, %v338
        %v341 = vadd.f32 %v326, %v339
        %v342 = vadd.f32 %v327, %v339
        %v343 = vadd.f32 %v328, %v339
        %v344 = vadd.f32 %v329, %v339
        %v345 = vadd.f32 %v330, %v339
        %v346 = vadd.f32 %v331, %v339
        %v347 = vadd.f32 %v332, %v339
        %v348 = vadd.f32 %v333, %v339
        %v349 = vxor.u32 %v341, 2147483648
        %v350 = vxor.u32 %v342, 2147483648
        %v351 = vxor.u32 %v343, 2147483648
        %v352 = vxor.u32 %v344, 2147483648
        %v353 = vxor.u32 %v345, 2147483648
        %v354 = vxor.u32 %v346, 2147483648
        %v355 = vxor.u32 %v347, 2147483648
        %v356 = vxor.u32 %v348, 2147483648
        %v357 = vmul.f32 %v349, 1.442695
        %v358 = vpow.pop %v357
        %v359 = vmul.f32 %v350, 1.442695
        %v360 = vpow.pop %v359
        %v361 = vmul.f32 %v351, 1.442695
        %v362 = vpow.pop %v361
        %v363 = vmul.f32 %v352, 1.442695
        %v364 = vpow.pop %v363
        %v365 = vmul.f32 %v353, 1.442695
        %v366 = vpow.pop %v365
        %v367 = vmul.f32 %v354, 1.442695
        %v368 = vpow.pop %v367
        %v369 = vmul.f32 %v355, 1.442695
        %v370 = vpow.pop %v369
        %v371 = vmul.f32 %v356, 1.442695
        %v372 = vpow.pop %v371
        %v373 = vadd.f32 %v358, 1.0
        %v374 = vadd.f32 %v360, 1.0
        %v375 = vadd.f32 %v362, 1.0
        %v376 = vadd.f32 %v364, 1.0
        %v377 = vadd.f32 %v366, 1.0
        %v378 = vadd.f32 %v368, 1.0
        %v379 = vadd.f32 %v370, 1.0
        %v380 = vadd.f32 %v372, 1.0
        %v381 = vrcp.pop %v373
        %v382 = vmul.f32 1.0, %v381
        %v383 = vrcp.pop %v374
        %v384 = vmul.f32 1.0, %v383
        %v385 = vrcp.pop %v375
        %v386 = vmul.f32 1.0, %v385
        %v387 = vrcp.pop %v376
        %v388 = vmul.f32 1.0, %v387
        %v389 = vrcp.pop %v377
        %v390 = vmul.f32 1.0, %v389
        %v391 = vrcp.pop %v378
        %v392 = vmul.f32 1.0, %v391
        %v393 = vrcp.pop %v379
        %v394 = vmul.f32 1.0, %v393
        %v395 = vrcp.pop %v380
        %v396 = vmul.f32 1.0, %v395
        %v397 = vmul.f32 %v341, %v382
        %v398 = vmul.f32 %v342, %v384
        %v399 = vmul.f32 %v343, %v386
        %v400 = vmul.f32 %v344, %v388
        %v401 = vmul.f32 %v345, %v390
        %v402 = vmul.f32 %v346, %v392
        %v403 = vmul.f32 %v347, %v394
        %v404 = vmul.f32 %v348, %v396
        %v405 = vpack.c.bf16 %v398, %v397
        %v406 = vpack.c.bf16 %v400, %v399
        %v407 = vpack.c.bf16 %v402, %v401
        %v408 = vpack.c.bf16 %v404, %v403
        %v413 = vunpack.c.l.b16 %v405
        %v414 = vunpack.c.h.b16 %v405
        %v415 = vunpack.c.l.b16 %v406
        %v416 = vunpack.c.h.b16 %v406
        %v417 = vunpack.c.l.b16 %v407
        %v418 = vunpack.c.h.b16 %v407
        %v419 = vunpack.c.l.b16 %v408
        %v420 = vunpack.c.h.b16 %v408
        %v421 = vpack.c.b16 %v413, %v413
        %v422 = vpack.c.b16 %v414, %v414
        %v423 = vpack.c.b16 %v415, %v415
        %v424 = vpack.c.b16 %v416, %v416
        %v425 = vpack.c.b16 %v417, %v417
        %v426 = vpack.c.b16 %v418, %v418
        %v427 = vpack.c.b16 %v419, %v419
        %v428 = vpack.c.b16 %v420, %v420
        %vm437 = vcmask 257024
        %438 = vst.msk [vmem:[%s218] sm:$0xf] %vm437, %v421
        %439 = vst.msk [vmem:[%s218 + $0x4] sm:$0xf] %vm437, %v422
        %440 = vst.msk [vmem:[%s218 + $0x8] sm:$0xf] %vm437, %v423
        %441 = vst.msk [vmem:[%s218 + $0xc] sm:$0xf] %vm437, %v424
        %442 = vst.msk [vmem:[%s218 + $0x10] sm:$0xf] %vm437, %v425
        %443 = vst.msk [vmem:[%s218 + $0x14] sm:$0xf] %vm437, %v426
        %444 = vst.msk [vmem:[%s218 + $0x18] sm:$0xf] %vm437, %v427
        %445 = vst.msk [vmem:[%s218 + $0x1c] sm:$0xf] %vm437, %v428
        %s446 = smul.u32 8, %s18
        %p447 = scmp.lt.s32.totalorder %s446, 15
        %s448 = scalar_select %p447, %s446, 15
        %s449 = smul.addr %s448, 4
        %s450 = scalar_lea.vmem %s4, %s449
        // Predicated region
        $region41: #{_lambda_.5} parent=35 // pred_check
          %p451 = pneg %p125
        $region42: #{_lambda_.5} parent=35 // pred_check_branch
          %453 = sbr.rel (%p451) target = $region44
        $region43: #{_lambda_.5} parent=35 // pred_region
          %s454 = smul.u32 8, %s18
        $region44: #{_lambda_.5} parent=35 // pred_fallthru
          _
      $region36: #{_lambda_.5} parent=5 // pred_fallthru
        _
      %p455 = scmp.le.s32.totalorder 2, %s13
      // Predicated region
      $region45: #{_lambda_.5} parent=5 // pred_check
        %p456 = pneg %p455
      $region46: #{_lambda_.5} parent=5 // pred_check_branch
        %458 = sbr.rel (%p456) target = $region48
      $region47: #{_lambda_.5} parent=5 // pred_region
        %s459 = ssub.s32 %s13, 2
        // Predicated region
        $region49: #{_lambda_.5} parent=47 // pred_check
          %p460 = pneg %p131
        $region50: #{_lambda_.5} parent=47 // pred_check_branch
          %462 = sbr.rel (%p460) target = $region52
        $region51: #{_lambda_.5} parent=47 // pred_region
          %s463 = smul.u32 8, %s19
          %p464 = scmp.lt.s32.totalorder %s463, 15
          %s465 = scalar_select %p464, %s463, 15
          %s466 = smul.addr %s465, 4
          %s467 = scalar_lea.vmem %s4, %s466
        $region52: #{_lambda_.5} parent=47 // pred_fallthru
          _
      $region48: #{_lambda_.5} parent=5 // pred_fallthru
        _
    $region6: #{_lambda_.5} parent=1 // loop_footer
      %s17 = sadd.s32 1, %s13
    $region7: #{_lambda_.5} parent=1 // loop_footer_branch
      %12 = sbr.rel target = $region3
    $region8: #{_lambda_.5} parent=1 // loop_exit
      _
    %468 = vsyncpa [#allocation3], 1
    %s469 = scalar_lea.sflag [#allocation3], 1
    %470 = vsyncpa %s469, 1

// kernel: _lambda_.9
$region0: #{_lambda_.9}
  #allocation0 [shape = 'u32[]', space=smem, size = 0x4, offset = 0x4, fixed_abs, tag = 'smem constant byte address 0x4 - core index']
  #allocation1 [shape = 'u32[144,128]{1,0:T(1,128)}', space=vmem, size = 0x12000, scoped, tag = 'internal scratch']
  %s0 = inlined_call_operand.vmem [shape: bf16[128,32], index: 0, kind: input, shape index: {}]
  %s1 = inlined_call_operand.vmem [shape: bf16[128,16], index: 1, kind: input, shape index: {}]
  %s2 = inlined_call_operand.vmem [shape: bf16[32,32], index: 2, kind: input, shape index: {}]
  %s3 = inlined_call_operand.vmem [shape: bf16[16,32], index: 3, kind: input, shape index: {}]
  %s4 = inlined_call_operand.vmem [shape: f32[1,32], index: 4, kind: input, shape index: {}]
  %s5 = inlined_call_operand.vmem [shape: f32[1,32], index: 5, kind: input, shape index: {}]
  %s6 = inlined_call_operand.hbm [shape: f32[128,32], index: 6, kind: output, shape index: {}]
  %s7 = sld [smem:[#allocation0]]
  $region57: #{_lambda_.9} parent=0
    _
  %s9 = ssub.s32 1, %s7
  %s10 = scalar_select 0, %s9, %s7
  $region1: #{_lambda_.9} parent=0
    #allocation2 [shape = 'u8[65536]{0}', space=vmem, size = 0x10000, scoped, tag = 'output window, operand 0']
    #allocation3 [shape = 's32[2]{0}', space=sflag, size = 0x8, scoped, tag = 'scoped memory for _lambda_.9']
    %11 = vsyncpa [#allocation3], 0
    %s12 = scalar_lea.sflag [#allocation3], 1
    %13 = vsyncpa %s12, 0
    loop: start=0, step=1, limit=4
    $region2: #{_lambda_.9} parent=1 // loop_pre_header
      _
    $region3: #{_lambda_.9} parent=1 // loop_header
      %s15 = sphi 0, %s19
      %p16 = scmp.ge.s32.totalorder %s15, 4
      %s25 = sphi 0, %s27
      %s28 = sphi 0, %s25
      %s29 = sphi 0, %s28
      %s45 = sphi 0, %s29
      %s51 = sphi 0, %s53
      %s54 = sphi 0, %s51
      %s55 = sphi 0, %s54
      %s71 = sphi 0, %s55
      %s75 = sphi 0, %s75
      %s77 = sphi 0, %s75
      %s78 = sphi 0, %s77
      %s92 = sphi 0, %s78
      %s96 = sphi 0, %s96
      %s98 = sphi 0, %s96
      %s99 = sphi 0, %s98
      %s113 = sphi 0, %s99
      %s117 = sphi 0, %s117
      %s119 = sphi 0, %s117
      %s120 = sphi 0, %s119
      %s134 = sphi 0, %s120
      %s138 = sphi 0, %s138
      %s140 = sphi 0, %s138
      %s141 = sphi 0, %s140
      %s155 = sphi 0, %s141
      %s161 = sphi 0, %s163
      %s164 = sphi 0, %s161
      %s165 = sphi 0, %s164
      %s181 = sphi 0, %s165
    $region4: #{_lambda_.9} parent=1 // loop_header_branch
      %18 = sbr.rel (%p16) target = $region8
    $region5: #{_lambda_.9} parent=1 // loop_body
      %s20 = ssub.s32 %s15, 1
      %s21 = ssub.s32 %s15, 2
      %s22 = sadd.s32 %s15, 1
      %s23 = ssub.s32 %s15, %s22
      %p24 = scmp.eq.s32.totalorder %s23, 0
      %s26 = sadd.s32 %s25, 1
      %s27 = scalar_select %p24, %s25, %s26
      %p30 = pneg %p24
      %p31 = scmp.eq.s32.totalorder %s15, 1
      %p32 = por %p30, %p31
      %p33 = scmp.ne.s32.totalorder %s25, %s28
      %p34 = scmp.eq.s32.totalorder %s15, 0
      %p35 = por %p33, %p34
      %p36 = scmp.ne.s32.totalorder %s25, %s28
      %p37 = scmp.eq.s32.totalorder %s20, 1
      %p38 = por %p36, %p37
      %p39 = scmp.ne.s32.totalorder %s28, %s29
      %p40 = scmp.eq.s32.totalorder %s20, 0
      %p41 = por %p39, %p40
      %p42 = scmp.ne.s32.totalorder %s28, %s29
      %p43 = scmp.eq.s32.totalorder %s21, 1
      %p44 = por %p42, %p43
      %p46 = scmp.ne.s32.totalorder %s29, %s45
      %p47 = scmp.eq.s32.totalorder %s21, 0
      %p48 = por %p46, %p47
      %s49 = ssub.s32 %s15, %s22
      %p50 = scmp.eq.s32.totalorder %s49, 0
      %s52 = sadd.s32 %s51, 1
      %s53 = scalar_select %p50, %s51, %s52
      %p56 = pneg %p50
      %p57 = scmp.eq.s32.totalorder %s15, 1
      %p58 = por %p56, %p57
      %p59 = scmp.ne.s32.totalorder %s51, %s54
      %p60 = scmp.eq.s32.totalorder %s15, 0
      %p61 = por %p59, %p60
      %p62 = scmp.ne.s32.totalorder %s51, %s54
      %p63 = scmp.eq.s32.totalorder %s20, 1
      %p64 = por %p62, %p63
      %p65 = scmp.ne.s32.totalorder %s54, %s55
      %p66 = scmp.eq.s32.totalorder %s20, 0
      %p67 = por %p65, %p66
      %p68 = scmp.ne.s32.totalorder %s54, %s55
      %p69 = scmp.eq.s32.totalorder %s21, 1
      %p70 = por %p68, %p69
      %p72 = scmp.ne.s32.totalorder %s55, %s71
      %p73 = scmp.eq.s32.totalorder %s21, 0
      %p74 = por %p72, %p73
      %s76 = sadd.s32 %s75, 1
      %p79 = scmp.eq.s32.totalorder %s15, 1
      %p80 = scmp.ne.s32.totalorder %s75, %s77
      %p81 = scmp.eq.s32.totalorder %s15, 0
      %p82 = por %p80, %p81
      %p83 = scmp.ne.s32.totalorder %s75, %s77
      %p84 = scmp.eq.s32.totalorder %s20, 1
      %p85 = por %p83, %p84
      %p86 = scmp.ne.s32.totalorder %s77, %s78
      %p87 = scmp.eq.s32.totalorder %s20, 0
      %p88 = por %p86, %p87
      %p89 = scmp.ne.s32.totalorder %s77, %s78
      %p90 = scmp.eq.s32.totalorder %s21, 1
      %p91 = por %p89, %p90
      %p93 = scmp.ne.s32.totalorder %s78, %s92
      %p94 = scmp.eq.s32.totalorder %s21, 0
      %p95 = por %p93, %p94
      %s97 = sadd.s32 %s96, 1
      %p100 = scmp.eq.s32.totalorder %s15, 1
      %p101 = scmp.ne.s32.totalorder %s96, %s98
      %p102 = scmp.eq.s32.totalorder %s15, 0
      %p103 = por %p101, %p102
      %p104 = scmp.ne.s32.totalorder %s96, %s98
      %p105 = scmp.eq.s32.totalorder %s20, 1
      %p106 = por %p104, %p105
      %p107 = scmp.ne.s32.totalorder %s98, %s99
      %p108 = scmp.eq.s32.totalorder %s20, 0
      %p109 = por %p107, %p108
      %p110 = scmp.ne.s32.totalorder %s98, %s99
      %p111 = scmp.eq.s32.totalorder %s21, 1
      %p112 = por %p110, %p111
      %p114 = scmp.ne.s32.totalorder %s99, %s113
      %p115 = scmp.eq.s32.totalorder %s21, 0
      %p116 = por %p114, %p115
      %s118 = sadd.s32 %s117, 1
      %p121 = scmp.eq.s32.totalorder %s15, 1
      %p122 = scmp.ne.s32.totalorder %s117, %s119
      %p123 = scmp.eq.s32.totalorder %s15, 0
      %p124 = por %p122, %p123
      %p125 = scmp.ne.s32.totalorder %s117, %s119
      %p126 = scmp.eq.s32.totalorder %s20, 1
      %p127 = por %p125, %p126
      %p128 = scmp.ne.s32.totalorder %s119, %s120
      %p129 = scmp.eq.s32.totalorder %s20, 0
      %p130 = por %p128, %p129
      %p131 = scmp.ne.s32.totalorder %s119, %s120
      %p132 = scmp.eq.s32.totalorder %s21, 1
      %p133 = por %p131, %p132
      %p135 = scmp.ne.s32.totalorder %s120, %s134
      %p136 = scmp.eq.s32.totalorder %s21, 0
      %p137 = por %p135, %p136
      %s139 = sadd.s32 %s138, 1
      %p142 = scmp.eq.s32.totalorder %s15, 1
      %p143 = scmp.ne.s32.totalorder %s138, %s140
      %p144 = scmp.eq.s32.totalorder %s15, 0
      %p145 = por %p143, %p144
      %p146 = scmp.ne.s32.totalorder %s138, %s140
      %p147 = scmp.eq.s32.totalorder %s20, 1
      %p148 = por %p146, %p147
      %p149 = scmp.ne.s32.totalorder %s140, %s141
      %p150 = scmp.eq.s32.totalorder %s20, 0
      %p151 = por %p149, %p150
      %p152 = scmp.ne.s32.totalorder %s140, %s141
      %p153 = scmp.eq.s32.totalorder %s21, 1
      %p154 = por %p152, %p153
      %p156 = scmp.ne.s32.totalorder %s141, %s155
      %p157 = scmp.eq.s32.totalorder %s21, 0
      %p158 = por %p156, %p157
      %s159 = ssub.s32 %s15, %s22
      %p160 = scmp.eq.s32.totalorder %s159, 0
      %s162 = sadd.s32 %s161, 1
      %s163 = scalar_select %p160, %s161, %s162
      %p166 = pneg %p160
      %p167 = scmp.eq.s32.totalorder %s15, 1
      %p168 = por %p166, %p167
      %p169 = scmp.ne.s32.totalorder %s161, %s164
      %p170 = scmp.eq.s32.totalorder %s15, 0
      %p171 = por %p169, %p170
      %p172 = scmp.ne.s32.totalorder %s161, %s164
      %p173 = scmp.eq.s32.totalorder %s20, 1
      %p174 = por %p172, %p173
      %p175 = scmp.ne.s32.totalorder %s164, %s165
      %p176 = scmp.eq.s32.totalorder %s20, 0
      %p177 = por %p175, %p176
      %p178 = scmp.ne.s32.totalorder %s164, %s165
      %p179 = scmp.eq.s32.totalorder %s21, 1
      %p180 = por %p178, %p179
      %p182 = scmp.ne.s32.totalorder %s165, %s181
      %p183 = scmp.eq.s32.totalorder %s21, 0
      %p184 = por %p182, %p183
      %p185 = scmp.le.s32.totalorder 1, %s15
      %p186 = scmp.lt.s32.totalorder %s15, 3
      %p187 = pnand %p185, %p186
      %p188 = pneg %p187
      // Predicated region
      $region9: #{_lambda_.9} parent=5 // pred_check
        _
      $region10: #{_lambda_.9} parent=5 // pred_check_branch
        %190 = sbr.rel (%p187) target = $region12
      $region11: #{_lambda_.9} parent=5 // pred_region
        %s191 = ssub.s32 %s15, 1
        // Predicated region
        $region13: #{_lambda_.9} parent=11 // pred_check
          %p192 = pneg %p88
        $region14: #{_lambda_.9} parent=11 // pred_check_branch
          %194 = sbr.rel (%p192) target = $region16
        $region15: #{_lambda_.9} parent=11 // pred_region
          _
        $region16: #{_lambda_.9} parent=11 // pred_fallthru
          _
        // Predicated region
        $region17: #{_lambda_.9} parent=11 // pred_check
          %p195 = pneg %p109
        $region18: #{_lambda_.9} parent=11 // pred_check_branch
          %197 = sbr.rel (%p195) target = $region20
        $region19: #{_lambda_.9} parent=11 // pred_region
          _
        $region20: #{_lambda_.9} parent=11 // pred_fallthru
          _
        // Predicated region
        $region21: #{_lambda_.9} parent=11 // pred_check
          %p198 = pneg %p130
        $region22: #{_lambda_.9} parent=11 // pred_check_branch
          %200 = sbr.rel (%p198) target = $region24
        $region23: #{_lambda_.9} parent=11 // pred_region
          _
        $region24: #{_lambda_.9} parent=11 // pred_fallthru
          _
        // Predicated region
        $region25: #{_lambda_.9} parent=11 // pred_check
          %p201 = pneg %p151
        $region26: #{_lambda_.9} parent=11 // pred_check_branch
          %203 = sbr.rel (%p201) target = $region28
        $region27: #{_lambda_.9} parent=11 // pred_region
          _
        $region28: #{_lambda_.9} parent=11 // pred_fallthru
          _
      $region12: #{_lambda_.9} parent=5 // pred_fallthru
        _
      %p204 = scmp.lt.s32.totalorder %s15, 2
      // Predicated region
      $region29: #{_lambda_.9} parent=5 // pred_check
        %p205 = pneg %p204
      $region30: #{_lambda_.9} parent=5 // pred_check_branch
        %207 = sbr.rel (%p205) target = $region32
      $region31: #{_lambda_.9} parent=5 // pred_region
        // Predicated region
        $region33: #{_lambda_.9} parent=31 // pred_check
          %p208 = pneg %p35
        $region34: #{_lambda_.9} parent=31 // pred_check_branch
          %210 = sbr.rel (%p208) target = $region36
        $region35: #{_lambda_.9} parent=31 // pred_region
          %s211 = smul.u32 8, %s15
          %p212 = scmp.lt.s32.totalorder %s211, 15
          %s213 = scalar_select %p212, %s211, 15
          %s214 = smul.addr %s213, 4
          %s215 = scalar_lea.vmem %s0, %s214
          %s216 = smul.u32 8, %s15
        $region36: #{_lambda_.9} parent=31 // pred_fallthru
          _
        // Predicated region
        $region37: #{_lambda_.9} parent=31 // pred_check
          %p217 = pneg %p61
        $region38: #{_lambda_.9} parent=31 // pred_check_branch
          %219 = sbr.rel (%p217) target = $region40
        $region39: #{_lambda_.9} parent=31 // pred_region
          %s220 = smul.u32 8, %s15
          %p221 = scmp.lt.s32.totalorder %s220, 15
          %s222 = scalar_select %p221, %s220, 15
          %s223 = smul.addr %s222, 4
          %s224 = scalar_lea.vmem %s1, %s223
          %s225 = smul.u32 8, %s15
        $region40: #{_lambda_.9} parent=31 // pred_fallthru
          _
      $region32: #{_lambda_.9} parent=5 // pred_fallthru
        _
      %p226 = scmp.le.s32.totalorder 1, %s15
      %p227 = scmp.lt.s32.totalorder %s15, 3
      %p228 = pnand %p226, %p227
      %p229 = pneg %p228
      // Predicated region
      $region41: #{_lambda_.9} parent=5 // pred_check
        _
      $region42: #{_lambda_.9} parent=5 // pred_check_branch
        %231 = sbr.rel (%p228) target = $region44
      $region43: #{_lambda_.9} parent=5 // pred_region
        %s232 = ssub.s32 %s15, 1
        %s233 = smul.u32 8, %s20
        %p234 = scmp.lt.s32.totalorder %s233, 15
        %s235 = scalar_select %p234, %s233, 15
        %s236 = smul.addr %s235, 4
        %s237 = scalar_lea.vmem %s0, %s236
        %p238 = pneg %p41
        %p239 = pneg %p38
        %s240 = smul.u32 8, %s20
        %p241 = scmp.lt.s32.totalorder %s240, 15
        %s242 = scalar_select %p241, %s240, 15
        %s243 = smul.addr %s242, 4
        %s244 = scalar_lea.vmem %s1, %s243
        %p245 = pneg %p67
        %p246 = pneg %p64
        %p247 = pneg %p88
        %p248 = pneg %p85
        %p249 = pneg %p109
        %p250 = pneg %p106
        %p251 = pneg %p130
        %p252 = pneg %p127
        %p253 = pneg %p151
        %p254 = pneg %p148
        %p255 = pneg %p177
        %p256 = pneg %p174
        %s257 = sand.u32 %s164, 1
        %s258 = scalar_lea.sflag [#allocation3], %s257
        %s259 = sand.u32 %s164, 1
        %s260 = smul.addr %s259, 64
        %s261 = scalar_lea.vmem [#allocation2], %s260
        %s262 = smul.u32 8, %s20
        %p263 = scmp.lt.s32.totalorder %s262, 15
        %s264 = scalar_select %p263, %s262, 15
        %s265 = smul.addr %s264, 4
        %s266 = scalar_lea.vmem %s0, %s265
        %s267 = smul.u32 8, %s20
        %s268 = smul.u32 8, %s20
        %p269 = scmp.lt.s32.totalorder %s268, 15
        %s270 = scalar_select %p269, %s268, 15
        %s271 = smul.addr %s270, 4
        %s272 = scalar_lea.vmem %s1, %s271
        %s273 = smul.u32 8, %s20
        %s274 = smul.u32 8, %s20
        %v276 = vld [vmem:[%s266] sm:$0xf]
        %v277 = vld [vmem:[%s266 + $0x4] sm:$0xf]
        %v278 = vld [vmem:[%s266 + $0x8] sm:$0xf]
        %v279 = vld [vmem:[%s266 + $0xc] sm:$0xf]
        %v280 = vld [vmem:[%s266 + $0x10] sm:$0xf]
        %v281 = vld [vmem:[%s266 + $0x14] sm:$0xf]
        %v282 = vld [vmem:[%s266 + $0x18] sm:$0xf]
        %v283 = vld [vmem:[%s266 + $0x1c] sm:$0xf]
        %v284 = vld [vmem:[%s2] sm:$0xf]
        %v285 = vld [vmem:[%s2 + $0x4] sm:$0xf]
        %v286 = vld [vmem:[%s2 + $0x8] sm:$0xf]
        %v287 = vld [vmem:[%s2 + $0xc] sm:$0xf]
        %v288 = vld [vmem:[%s272] sm:$0xf]
        %v289 = vld [vmem:[%s272 + $0x4] sm:$0xf]
        %v290 = vld [vmem:[%s272 + $0x8] sm:$0xf]
        %v291 = vld [vmem:[%s272 + $0xc] sm:$0xf]
        %v292 = vld [vmem:[%s272 + $0x10] sm:$0xf]
        %v293 = vld [vmem:[%s272 + $0x14] sm:$0xf]
        %v294 = vld [vmem:[%s272 + $0x18] sm:$0xf]
        %v295 = vld [vmem:[%s272 + $0x1c] sm:$0xf]
        %v296 = vld [vmem:[%s3] sm:$0xf]
        %v297 = vld [vmem:[%s3 + $0x4] sm:$0xf]
        %v306 = vunpack.c.l.b16 %v288
        %v307 = vunpack.c.l.b16 %v289
        %v308 = vunpack.c.l.b16 %v290
        %v309 = vunpack.c.l.b16 %v291
        %v310 = vunpack.c.l.b16 %v292
        %v311 = vunpack.c.l.b16 %v293
        %v312 = vunpack.c.l.b16 %v294
        %v313 = vunpack.c.l.b16 %v295
        %v314 = vpack.c.b16 %v307, %v306
        %v315 = vpack.c.b16 %v309, %v308
        %v316 = vpack.c.b16 %v311, %v310
        %v317 = vpack.c.b16 %v313, %v312
        %v320 = vunpack.c.l.b16 %v296
        %v321 = vunpack.c.l.b16 %v297
        %v322 = vpack.c.b16 %v321, %v320
        %vm324 = vcmask 130048
        %v326 = vsel %vm324, %v314, 0
        %v329 = vsel %vm324, %v315, 0
        %v332 = vsel %vm324, %v316, 0
        %v335 = vsel %vm324, %v317, 0
        %337 = vmatprep.subr.bf16.mxu0 0
        %338 = vmatpush1.bf16.msra.mxu0 0
        %339 = vmatprep.subr.bf16.mxu0 0
        %340 = vmatpush1.bf16.msra.mxu0 0
        %341 = vmatprep.subr.bf16.mxu0 0
        %342 = vmatpush1.bf16.msra.mxu0 0
        %343 = vmatprep.subr.bf16.mxu0 0
        %344 = vmatpush1.bf16.msra.mxu0 0
        %345 = vmatprep.subr.bf16.mxu0 0
        %346 = vmatpush1.bf16.msra.mxu0 0
        %347 = vmatprep.subr.bf16.mxu0 0
        %348 = vmatpush1.bf16.msra.mxu0 0
        %349 = vmatprep.subr.bf16.mxu0 0
        %350 = vmatpush1.bf16.msra.mxu0 0
        %351 = vmatprep.subr.bf16.mxu0 0
        %352 = vmatpush1.bf16.msra.mxu0 %v322
        %353 = vmatprep.subr.bf16.mxu0 0
        %354 = vmatpush2.bf16.msra.mxu0 0
        %355 = vmatprep.subr.bf16.mxu0 0
        %356 = vmatpush2.bf16.msra.mxu0 0
        %357 = vmatprep.subr.bf16.mxu0 0
        %358 = vmatpush2.bf16.msra.mxu0 0
        %359 = vmatprep.subr.bf16.mxu0 0
        %360 = vmatpush2.bf16.msra.mxu0 0
        %361 = vmatprep.subr.bf16.mxu0 0
        %362 = vmatpush2.bf16.msra.mxu0 0
        %363 = vmatprep.subr.bf16.mxu0 0
        %364 = vmatpush2.bf16.msra.mxu0 0
        %365 = vmatprep.subr.bf16.mxu0 0
        %366 = vmatpush2.bf16.msra.mxu0 0
        %367 = vmatprep.subr.bf16.mxu0 0
        %368 = vmatpush2.bf16.msra.mxu0 0
        %369 = vmatprep.mubr.bf16.mxu0 0
        %370 = vmatmul.mubr.bf16.gmra.mxu0 %v326
        %v371 = vpop.f32.mrf.mxu0
        %v372 = vadd.f32 0.0, %v371
        %v373 = vpop.f32.mrf.mxu0
        %v374 = vpop.f32.mrf.mxu0
        %v375 = vadd.f32 0.0, %v374
        %v376 = vpop.f32.mrf.mxu0
        %377 = vmatprep.mubr.bf16.mxu0 0
        %378 = vmatmul.mubr.bf16.gmra.mxu0 %v329
        %v379 = vpop.f32.mrf.mxu0
        %v380 = vadd.f32 0.0, %v379
        %v381 = vpop.f32.mrf.mxu0
        %v382 = vpop.f32.mrf.mxu0
        %v383 = vadd.f32 0.0, %v382
        %v384 = vpop.f32.mrf.mxu0
        %385 = vmatprep.mubr.bf16.mxu0 0
        %386 = vmatmul.mubr.bf16.gmra.mxu0 %v332
        %v387 = vpop.f32.mrf.mxu0
        %v388 = vadd.f32 0.0, %v387
        %v389 = vpop.f32.mrf.mxu0
        %v390 = vpop.f32.mrf.mxu0
        %v391 = vadd.f32 0.0, %v390
        %v392 = vpop.f32.mrf.mxu0
        %393 = vmatprep.mubr.bf16.mxu0 0
        %394 = vmatmul.mubr.bf16.gmra.mxu0 %v335
        %v395 = vpop.f32.mrf.mxu0
        %v396 = vadd.f32 0.0, %v395
        %v397 = vpop.f32.mrf.mxu0
        %v398 = vpop.f32.mrf.mxu0
        %v399 = vadd.f32 0.0, %v398
        %v400 = vpop.f32.mrf.mxu0
        %401 = vdwg.mxu0
        %v410 = vunpack.c.l.b16 %v276
        %v411 = vunpack.c.l.b16 %v277
        %v412 = vunpack.c.l.b16 %v278
        %v413 = vunpack.c.l.b16 %v279
        %v414 = vunpack.c.l.b16 %v280
        %v415 = vunpack.c.l.b16 %v281
        %v416 = vunpack.c.l.b16 %v282
        %v417 = vunpack.c.l.b16 %v283
        %v418 = vpack.c.b16 %v411, %v410
        %v419 = vpack.c.b16 %v413, %v412
        %v420 = vpack.c.b16 %v415, %v414
        %v421 = vpack.c.b16 %v417, %v416
        %v426 = vunpack.c.l.b16 %v284
        %v427 = vunpack.c.l.b16 %v285
        %v428 = vunpack.c.l.b16 %v286
        %v429 = vunpack.c.l.b16 %v287
        %v430 = vpack.c.b16 %v427, %v426
        %v431 = vpack.c.b16 %v429, %v428
        %vm434 = vcmask 261120
        %v436 = vsel %vm434, %v418, 0
        %v439 = vsel %vm434, %v419, 0
        %v442 = vsel %vm434, %v420, 0
        %v445 = vsel %vm434, %v421, 0
        %447 = vmatprep.subr.bf16.mxu0 0
        %448 = vmatpush1.bf16.msra.mxu0 0
        %449 = vmatprep.subr.bf16.mxu0 0
        %450 = vmatpush1.bf16.msra.mxu0 0
        %451 = vmatprep.subr.bf16.mxu0 0
        %452 = vmatpush1.bf16.msra.mxu0 0
        %453 = vmatprep.subr.bf16.mxu0 0
        %454 = vmatpush1.bf16.msra.mxu0 0
        %455 = vmatprep.subr.bf16.mxu0 0
        %456 = vmatpush1.bf16.msra.mxu0 0
        %457 = vmatprep.subr.bf16.mxu0 0
        %458 = vmatpush1.bf16.msra.mxu0 0
        %459 = vmatprep.subr.bf16.mxu0 0
        %460 = vmatpush1.bf16.msra.mxu0 %v431
        %461 = vmatprep.subr.bf16.mxu0 0
        %462 = vmatpush1.bf16.msra.mxu0 %v430
        %463 = vmatprep.subr.bf16.mxu0 0
        %464 = vmatpush2.bf16.msra.mxu0 0
        %465 = vmatprep.subr.bf16.mxu0 0
        %466 = vmatpush2.bf16.msra.mxu0 0
        %467 = vmatprep.subr.bf16.mxu0 0
        %468 = vmatpush2.bf16.msra.mxu0 0
        %469 = vmatprep.subr.bf16.mxu0 0
        %470 = vmatpush2.bf16.msra.mxu0 0
        %471 = vmatprep.subr.bf16.mxu0 0
        %472 = vmatpush2.bf16.msra.mxu0 0
        %473 = vmatprep.subr.bf16.mxu0 0
        %474 = vmatpush2.bf16.msra.mxu0 0
        %475 = vmatprep.subr.bf16.mxu0 0
        %476 = vmatpush2.bf16.msra.mxu0 0
        %477 = vmatprep.subr.bf16.mxu0 0
        %478 = vmatpush2.bf16.msra.mxu0 0
        %479 = vmatprep.mubr.bf16.mxu0 0
        %480 = vmatmul.mubr.bf16.gmra.mxu0 %v436
        %v481 = vpop.f32.mrf.mxu0
        %v482 = vadd.f32 %v372, %v481
        %v483 = vpop.f32.mrf.mxu0
        %v484 = vpop.f32.mrf.mxu0
        %v485 = vadd.f32 %v375, %v484
        %v486 = vpop.f32.mrf.mxu0
        %487 = vmatprep.mubr.bf16.mxu0 0
        %488 = vmatmul.mubr.bf16.gmra.mxu0 %v439
        %v489 = vpop.f32.mrf.mxu0
        %v490 = vadd.f32 %v380, %v489
        %v491 = vpop.f32.mrf.mxu0
        %v492 = vpop.f32.mrf.mxu0
        %v493 = vadd.f32 %v383, %v492
        %v494 = vpop.f32.mrf.mxu0
        %495 = vmatprep.mubr.bf16.mxu0 0
        %496 = vmatmul.mubr.bf16.gmra.mxu0 %v442
        %v497 = vpop.f32.mrf.mxu0
        %v498 = vadd.f32 %v388, %v497
        %v499 = vpop.f32.mrf.mxu0
        %v500 = vpop.f32.mrf.mxu0
        %v501 = vadd.f32 %v391, %v500
        %v502 = vpop.f32.mrf.mxu0
        %503 = vmatprep.mubr.bf16.mxu0 0
        %504 = vmatmul.mubr.bf16.gmra.mxu0 %v445
        %v505 = vpop.f32.mrf.mxu0
        %v506 = vadd.f32 %v396, %v505
        %v507 = vpop.f32.mrf.mxu0
        %v508 = vpop.f32.mrf.mxu0
        %v509 = vadd.f32 %v399, %v508
        %v510 = vpop.f32.mrf.mxu0
        %511 = vdwg.mxu0
        %v512 = vld [vmem:[%s4] sm:$0x1]
        %v514 = vlaneseq
        %v515 = vshrl.u32 %v514, 7
        %v516 = vsub.s32 0, %v515
        %v517 = vrot.slane %v512, %v516
        %v519 = vmul.f32 %v482, %v517
        %v520 = vmul.f32 %v485, %v517
        %v521 = vmul.f32 %v490, %v517
        %v522 = vmul.f32 %v493, %v517
        %v523 = vmul.f32 %v498, %v517
        %v524 = vmul.f32 %v501, %v517
        %v525 = vmul.f32 %v506, %v517
        %v526 = vmul.f32 %v509, %v517
        %v527 = vld [vmem:[%s5] sm:$0x1]
        %v529 = vlaneseq
        %v530 = vshrl.u32 %v529, 7
        %v531 = vsub.s32 0, %v530
        %v532 = vrot.slane %v527, %v531
        %v534 = vadd.f32 %v519, %v532
        %v535 = vadd.f32 %v520, %v532
        %v536 = vadd.f32 %v521, %v532
        %v537 = vadd.f32 %v522, %v532
        %v538 = vadd.f32 %v523, %v532
        %v539 = vadd.f32 %v524, %v532
        %v540 = vadd.f32 %v525, %v532
        %v541 = vadd.f32 %v526, %v532
        %v542 = vxor.u32 %v534, 2147483648
        %v543 = vxor.u32 %v535, 2147483648
        %v544 = vxor.u32 %v536, 2147483648
        %v545 = vxor.u32 %v537, 2147483648
        %v546 = vxor.u32 %v538, 2147483648
        %v547 = vxor.u32 %v539, 2147483648
        %v548 = vxor.u32 %v540, 2147483648
        %v549 = vxor.u32 %v541, 2147483648
        %v550 = vmul.f32 %v542, 1.442695
        %v551 = vpow.pop %v550
        %v552 = vmul.f32 %v543, 1.442695
        %v553 = vpow.pop %v552
        %v554 = vmul.f32 %v544, 1.442695
        %v555 = vpow.pop %v554
        %v556 = vmul.f32 %v545, 1.442695
        %v557 = vpow.pop %v556
        %v558 = vmul.f32 %v546, 1.442695
        %v559 = vpow.pop %v558
        %v560 = vmul.f32 %v547, 1.442695
        %v561 = vpow.pop %v560
        %v562 = vmul.f32 %v548, 1.442695
        %v563 = vpow.pop %v562
        %v564 = vmul.f32 %v549, 1.442695
        %v565 = vpow.pop %v564
        %v566 = vadd.f32 %v551, 1.0
        %v567 = vadd.f32 %v553, 1.0
        %v568 = vadd.f32 %v555, 1.0
        %v569 = vadd.f32 %v557, 1.0
        %v570 = vadd.f32 %v559, 1.0
        %v571 = vadd.f32 %v561, 1.0
        %v572 = vadd.f32 %v563, 1.0
        %v573 = vadd.f32 %v565, 1.0
        %v574 = vrcp.pop %v566
        %v575 = vmul.f32 1.0, %v574
        %v576 = vrcp.pop %v567
        %v577 = vmul.f32 1.0, %v576
        %v578 = vrcp.pop %v568
        %v579 = vmul.f32 1.0, %v578
        %v580 = vrcp.pop %v569
        %v581 = vmul.f32 1.0, %v580
        %v582 = vrcp.pop %v570
        %v583 = vmul.f32 1.0, %v582
        %v584 = vrcp.pop %v571
        %v585 = vmul.f32 1.0, %v584
        %v586 = vrcp.pop %v572
        %v587 = vmul.f32 1.0, %v586
        %v588 = vrcp.pop %v573
        %v589 = vmul.f32 1.0, %v588
        %v590 = vmul.f32 %v534, %v575
        %v591 = vmul.f32 %v535, %v577
        %v592 = vmul.f32 %v536, %v579
        %v593 = vmul.f32 %v537, %v581
        %v594 = vmul.f32 %v538, %v583
        %v595 = vmul.f32 %v539, %v585
        %v596 = vmul.f32 %v540, %v587
        %v597 = vmul.f32 %v541, %v589
        %598 = vst.msk [vmem:[%s261] sm:$0xff] %vm434, %v590
        %599 = vst.msk [vmem:[%s261 + $0x8] sm:$0xff] %vm434, %v591
        %600 = vst.msk [vmem:[%s261 + $0x10] sm:$0xff] %vm434, %v592
        %601 = vst.msk [vmem:[%s261 + $0x18] sm:$0xff] %vm434, %v593
        %602 = vst.msk [vmem:[%s261 + $0x20] sm:$0xff] %vm434, %v594
        %603 = vst.msk [vmem:[%s261 + $0x28] sm:$0xff] %vm434, %v595
        %604 = vst.msk [vmem:[%s261 + $0x30] sm:$0xff] %vm434, %v596
        %605 = vst.msk [vmem:[%s261 + $0x38] sm:$0xff] %vm434, %v597
        %s606 = sand.u32 %s164, 1
        %s607 = scalar_lea.sflag [#allocation3], %s606
        %s608 = sand.u32 %s164, 1
        %s609 = smul.addr %s608, 64
        %s610 = scalar_lea.vmem [#allocation2], %s609
        // Predicated region
        $region45: #{_lambda_.9} parent=43 // pred_check
          %p611 = pneg %p174
        $region46: #{_lambda_.9} parent=43 // pred_check_branch
          %613 = sbr.rel (%p611) target = $region48
        $region47: #{_lambda_.9} parent=43 // pred_region
          %s614 = smul.u32 8, %s20
          %s616 = ssub.s32 1024, 1024
          %617 = vsyncadd %s607, %s616
          %s618 = smul.addr %s614, 128
          %s619 = scalar_lea.hbm %s6, %s618
          %s620 = sshll.u32 %s610, 4
          %s621 = int_to_ptr.vmem [resolvable:$true] %s620
          %626 = dma.vmem_to_hbm [thread:$0]  %s621, 1024, %s619, %s607, 128, 128, 8
        $region48: #{_lambda_.9} parent=43 // pred_fallthru
          _
      $region44: #{_lambda_.9} parent=5 // pred_fallthru
        _
      %p627 = scmp.le.s32.totalorder 2, %s15
      // Predicated region
      $region49: #{_lambda_.9} parent=5 // pred_check
        %p628 = pneg %p627
      $region50: #{_lambda_.9} parent=5 // pred_check_branch
        %630 = sbr.rel (%p628) target = $region52
      $region51: #{_lambda_.9} parent=5 // pred_region
        %s631 = ssub.s32 %s15, 2
        // Predicated region
        $region53: #{_lambda_.9} parent=51 // pred_check
          %p632 = pneg %p180
        $region54: #{_lambda_.9} parent=51 // pred_check_branch
          %634 = sbr.rel (%p632) target = $region56
        $region55: #{_lambda_.9} parent=51 // pred_region
          %s635 = sand.u32 %s165, 1
          %s636 = scalar_lea.sflag [#allocation3], %s635
          %s637 = sand.u32 %s165, 1
          %s638 = smul.addr %s637, 64
          %s639 = scalar_lea.vmem [#allocation2], %s638
          %640 = dma.done %s636, 1024
        $region56: #{_lambda_.9} parent=51 // pred_fallthru
          _
      $region52: #{_lambda_.9} parent=5 // pred_fallthru
        _
    $region6: #{_lambda_.9} parent=1 // loop_footer
      %s19 = sadd.s32 1, %s15
    $region7: #{_lambda_.9} parent=1 // loop_footer_branch
      %14 = sbr.rel target = $region3
    $region8: #{_lambda_.9} parent=1 // loop_exit
      _
    %641 = vsyncpa [#allocation3], 1
    %s642 = scalar_lea.sflag [#allocation3], 1
    %643 = vsyncpa %s642, 1

// kernel: _lambda_.6
$region0: #{_lambda_.6}
  #allocation0 [shape = 'u32[]', space=smem, size = 0x4, offset = 0x4, fixed_abs, tag = 'smem constant byte address 0x4 - core index']
  #allocation1 [shape = 'u32[144,128]{1,0:T(1,128)}', space=vmem, size = 0x12000, scoped, tag = 'internal scratch']
  %s0 = inlined_call_operand.vmem [shape: bf16[2,110,16], index: 0, kind: input, shape index: {}]
  %s1 = inlined_call_operand.vmem [shape: bf16[144,16], index: 1, kind: input, shape index: {}]
  %s2 = inlined_call_operand.vmem [shape: f32[1,16], index: 2, kind: input, shape index: {}]
  %s3 = inlined_call_operand.vmem [shape: f32[1,16], index: 3, kind: input, shape index: {}]
  %s4 = inlined_call_operand.vmem [shape: bf16[2,64,16], index: 4, kind: output, shape index: {}]
  %s5 = sld [smem:[#allocation0]]
  $region49: #{_lambda_.6} parent=0
    _
  %s7 = ssub.s32 1, %s5
  %s8 = scalar_select 0, %s7, %s5
  loop: start=0, step=1, limit=4
  $region2: #{_lambda_.6} parent=0 // loop_pre_header
    _
  $region3: #{_lambda_.6} parent=0 // loop_header
    %s10 = sphi 0, %s14
    %p11 = scmp.ge.s32.totalorder %s10, 4
    %s20 = sphi 0, %s22
    %s23 = sphi 0, %s20
    %s24 = sphi 0, %s23
    %s40 = sphi 0, %s24
    %s44 = sphi 0, %s44
    %s46 = sphi 0, %s44
    %s47 = sphi 0, %s46
    %s61 = sphi 0, %s47
    %s65 = sphi 0, %s65
    %s67 = sphi 0, %s65
    %s68 = sphi 0, %s67
    %s82 = sphi 0, %s68
    %s86 = sphi 0, %s86
    %s88 = sphi 0, %s86
    %s89 = sphi 0, %s88
    %s103 = sphi 0, %s89
    %s109 = sphi 0, %s111
    %s112 = sphi 0, %s109
    %s113 = sphi 0, %s112
    %s129 = sphi 0, %s113
  $region4: #{_lambda_.6} parent=0 // loop_header_branch
    %13 = sbr.rel (%p11) target = $region8
  $region5: #{_lambda_.6} parent=0 // loop_body
    %s15 = ssub.s32 %s10, 1
    %s16 = ssub.s32 %s10, 2
    %s17 = sadd.s32 %s10, 1
    %s18 = ssub.s32 %s10, %s17
    %p19 = scmp.eq.s32.totalorder %s18, 0
    %s21 = sadd.s32 %s20, 1
    %s22 = scalar_select %p19, %s20, %s21
    %p25 = pneg %p19
    %p26 = scmp.eq.s32.totalorder %s10, 1
    %p27 = por %p25, %p26
    %p28 = scmp.ne.s32.totalorder %s20, %s23
    %p29 = scmp.eq.s32.totalorder %s10, 0
    %p30 = por %p28, %p29
    %p31 = scmp.ne.s32.totalorder %s20, %s23
    %p32 = scmp.eq.s32.totalorder %s15, 1
    %p33 = por %p31, %p32
    %p34 = scmp.ne.s32.totalorder %s23, %s24
    %p35 = scmp.eq.s32.totalorder %s15, 0
    %p36 = por %p34, %p35
    %p37 = scmp.ne.s32.totalorder %s23, %s24
    %p38 = scmp.eq.s32.totalorder %s16, 1
    %p39 = por %p37, %p38
    %p41 = scmp.ne.s32.totalorder %s24, %s40
    %p42 = scmp.eq.s32.totalorder %s16, 0
    %p43 = por %p41, %p42
    %s45 = sadd.s32 %s44, 1
    %p48 = scmp.eq.s32.totalorder %s10, 1
    %p49 = scmp.ne.s32.totalorder %s44, %s46
    %p50 = scmp.eq.s32.totalorder %s10, 0
    %p51 = por %p49, %p50
    %p52 = scmp.ne.s32.totalorder %s44, %s46
    %p53 = scmp.eq.s32.totalorder %s15, 1
    %p54 = por %p52, %p53
    %p55 = scmp.ne.s32.totalorder %s46, %s47
    %p56 = scmp.eq.s32.totalorder %s15, 0
    %p57 = por %p55, %p56
    %p58 = scmp.ne.s32.totalorder %s46, %s47
    %p59 = scmp.eq.s32.totalorder %s16, 1
    %p60 = por %p58, %p59
    %p62 = scmp.ne.s32.totalorder %s47, %s61
    %p63 = scmp.eq.s32.totalorder %s16, 0
    %p64 = por %p62, %p63
    %s66 = sadd.s32 %s65, 1
    %p69 = scmp.eq.s32.totalorder %s10, 1
    %p70 = scmp.ne.s32.totalorder %s65, %s67
    %p71 = scmp.eq.s32.totalorder %s10, 0
    %p72 = por %p70, %p71
    %p73 = scmp.ne.s32.totalorder %s65, %s67
    %p74 = scmp.eq.s32.totalorder %s15, 1
    %p75 = por %p73, %p74
    %p76 = scmp.ne.s32.totalorder %s67, %s68
    %p77 = scmp.eq.s32.totalorder %s15, 0
    %p78 = por %p76, %p77
    %p79 = scmp.ne.s32.totalorder %s67, %s68
    %p80 = scmp.eq.s32.totalorder %s16, 1
    %p81 = por %p79, %p80
    %p83 = scmp.ne.s32.totalorder %s68, %s82
    %p84 = scmp.eq.s32.totalorder %s16, 0
    %p85 = por %p83, %p84
    %s87 = sadd.s32 %s86, 1
    %p90 = scmp.eq.s32.totalorder %s10, 1
    %p91 = scmp.ne.s32.totalorder %s86, %s88
    %p92 = scmp.eq.s32.totalorder %s10, 0
    %p93 = por %p91, %p92
    %p94 = scmp.ne.s32.totalorder %s86, %s88
    %p95 = scmp.eq.s32.totalorder %s15, 1
    %p96 = por %p94, %p95
    %p97 = scmp.ne.s32.totalorder %s88, %s89
    %p98 = scmp.eq.s32.totalorder %s15, 0
    %p99 = por %p97, %p98
    %p100 = scmp.ne.s32.totalorder %s88, %s89
    %p101 = scmp.eq.s32.totalorder %s16, 1
    %p102 = por %p100, %p101
    %p104 = scmp.ne.s32.totalorder %s89, %s103
    %p105 = scmp.eq.s32.totalorder %s16, 0
    %p106 = por %p104, %p105
    %s107 = ssub.s32 %s10, %s17
    %p108 = scmp.eq.s32.totalorder %s107, 0
    %s110 = sadd.s32 %s109, 1
    %s111 = scalar_select %p108, %s109, %s110
    %p114 = pneg %p108
    %p115 = scmp.eq.s32.totalorder %s10, 1
    %p116 = por %p114, %p115
    %p117 = scmp.ne.s32.totalorder %s109, %s112
    %p118 = scmp.eq.s32.totalorder %s10, 0
    %p119 = por %p117, %p118
    %p120 = scmp.ne.s32.totalorder %s109, %s112
    %p121 = scmp.eq.s32.totalorder %s15, 1
    %p122 = por %p120, %p121
    %p123 = scmp.ne.s32.totalorder %s112, %s113
    %p124 = scmp.eq.s32.totalorder %s15, 0
    %p125 = por %p123, %p124
    %p126 = scmp.ne.s32.totalorder %s112, %s113
    %p127 = scmp.eq.s32.totalorder %s16, 1
    %p128 = por %p126, %p127
    %p130 = scmp.ne.s32.totalorder %s113, %s129
    %p131 = scmp.eq.s32.totalorder %s16, 0
    %p132 = por %p130, %p131
    %p133 = scmp.le.s32.totalorder 1, %s10
    %p134 = scmp.lt.s32.totalorder %s10, 3
    %p135 = pnand %p133, %p134
    %p136 = pneg %p135
    // Predicated region
    $region9: #{_lambda_.6} parent=5 // pred_check
      _
    $region10: #{_lambda_.6} parent=5 // pred_check_branch
      %138 = sbr.rel (%p135) target = $region12
    $region11: #{_lambda_.6} parent=5 // pred_region
      %s139 = ssub.s32 %s10, 1
      // Predicated region
      $region13: #{_lambda_.6} parent=11 // pred_check
        %p140 = pneg %p57
      $region14: #{_lambda_.6} parent=11 // pred_check_branch
        %142 = sbr.rel (%p140) target = $region16
      $region15: #{_lambda_.6} parent=11 // pred_region
        _
      $region16: #{_lambda_.6} parent=11 // pred_fallthru
        _
      // Predicated region
      $region17: #{_lambda_.6} parent=11 // pred_check
        %p143 = pneg %p78
      $region18: #{_lambda_.6} parent=11 // pred_check_branch
        %145 = sbr.rel (%p143) target = $region20
      $region19: #{_lambda_.6} parent=11 // pred_region
        _
      $region20: #{_lambda_.6} parent=11 // pred_fallthru
        _
      // Predicated region
      $region21: #{_lambda_.6} parent=11 // pred_check
        %p146 = pneg %p99
      $region22: #{_lambda_.6} parent=11 // pred_check_branch
        %148 = sbr.rel (%p146) target = $region24
      $region23: #{_lambda_.6} parent=11 // pred_region
        _
      $region24: #{_lambda_.6} parent=11 // pred_fallthru
        _
    $region12: #{_lambda_.6} parent=5 // pred_fallthru
      _
    %p149 = scmp.lt.s32.totalorder %s10, 2
    // Predicated region
    $region25: #{_lambda_.6} parent=5 // pred_check
      %p150 = pneg %p149
    $region26: #{_lambda_.6} parent=5 // pred_check_branch
      %152 = sbr.rel (%p150) target = $region28
    $region27: #{_lambda_.6} parent=5 // pred_region
      // Predicated region
      $region29: #{_lambda_.6} parent=27 // pred_check
        %p153 = pneg %p30
      $region30: #{_lambda_.6} parent=27 // pred_check_branch
        %155 = sbr.rel (%p153) target = $region32
      $region31: #{_lambda_.6} parent=27 // pred_region
        %p156 = scmp.lt.s32.totalorder %s10, 1
        %s157 = scalar_select %p156, %s10, 1
        %s158 = smul.addr %s157, 14
        %s159 = smul.addr %s158, 4
        %s160 = scalar_lea.vmem %s0, %s159
      $region32: #{_lambda_.6} parent=27 // pred_fallthru
        _
    $region28: #{_lambda_.6} parent=5 // pred_fallthru
      _
    %p161 = scmp.le.s32.totalorder 1, %s10
    %p162 = scmp.lt.s32.totalorder %s10, 3
    %p163 = pnand %p161, %p162
    %p164 = pneg %p163
    // Predicated region
    $region33: #{_lambda_.6} parent=5 // pred_check
      _
    $region34: #{_lambda_.6} parent=5 // pred_check_branch
      %166 = sbr.rel (%p163) target = $region36
    $region35: #{_lambda_.6} parent=5 // pred_region
      %s167 = ssub.s32 %s10, 1
      %p168 = scmp.lt.s32.totalorder %s15, 1
      %s169 = scalar_select %p168, %s15, 1
      %s170 = smul.addr %s169, 14
      %s171 = smul.addr %s170, 4
      %s172 = scalar_lea.vmem %s0, %s171
      %p173 = pneg %p36
      %p174 = pneg %p33
      %p175 = pneg %p57
      %p176 = pneg %p54
      %p177 = pneg %p78
      %p178 = pneg %p75
      %p179 = pneg %p99
      %p180 = pneg %p96
      %p181 = pneg %p125
      %p182 = pneg %p122
      %p183 = scmp.lt.s32.totalorder %s15, 1
      %s184 = scalar_select %p183, %s15, 1
      %s185 = smul.addr %s184, 8
      %s186 = smul.addr %s185, 4
      %s187 = scalar_lea.vmem %s4, %s186
      %p188 = scmp.lt.s32.totalorder %s15, 1
      %s189 = scalar_select %p188, %s15, 1
      %s190 = smul.addr %s189, 14
      %s191 = smul.addr %s190, 4
      %s192 = scalar_lea.vmem %s0, %s191
      %p193 = scmp.lt.s32.totalorder %s15, 1
      %s194 = scalar_select %p193, %s15, 1
      %s195 = smul.addr %s194, 8
      %s196 = smul.addr %s195, 4
      %s197 = scalar_lea.vmem %s4, %s196
      %v199 = vld [vmem:[%s192] sm:$0xf]
      %v200 = vld [vmem:[%s192 + $0x4] sm:$0xf]
      %v201 = vld [vmem:[%s192 + $0x8] sm:$0xf]
      %v202 = vld [vmem:[%s192 + $0xc] sm:$0xf]
      %v203 = vld [vmem:[%s192 + $0x10] sm:$0xf]
      %v204 = vld [vmem:[%s192 + $0x14] sm:$0xf]
      %v205 = vld [vmem:[%s192 + $0x18] sm:$0xf]
      %v206 = vld [vmem:[%s192 + $0x1c] sm:$0xf]
      %v207 = vld [vmem:[%s192 + $0x20] sm:$0xf]
      %v208 = vld [vmem:[%s192 + $0x24] sm:$0xf]
      %v209 = vunpack.c.l.bf16 %v199
      %v210 = vunpack.c.l.bf16 %v200
      %v211 = vunpack.c.l.bf16 %v201
      %v212 = vunpack.c.l.bf16 %v202
      %v213 = vunpack.c.l.bf16 %v203
      %v214 = vunpack.c.l.bf16 %v204
      %v215 = vunpack.c.l.bf16 %v205
      %v216 = vunpack.c.l.bf16 %v206
      %v217 = vunpack.c.l.bf16 %v207
      %v218 = vunpack.c.l.bf16 %v208
      %v219 = vld [vmem:[%s192 + $0x28] sm:$0x1]
      %v220 = vunpack.c.l.bf16 %v219
      %v221 = vld [vmem:[%s192] sm:$0xe]
      %v222 = vunpack.c.l.bf16 %v221
      %v223 = vld [vmem:[%s192 + $0x4] sm:$0xe]
      %v224 = vld [vmem:[%s192 + $0x28] sm:$0xf]
      %v225 = vld [vmem:[%s192 + $0x2c] sm:$0x1]
      %v226 = vunpack.c.l.bf16 %v223
      %v227 = vunpack.c.l.bf16 %v224
      %v228 = vunpack.c.l.bf16 %v225
      %v229 = vld [vmem:[%s192 + $0x2c] sm:$0x3]
      %v230 = vunpack.c.l.bf16 %v229
      %v231 = vld [vmem:[%s192 + $0x4] sm:$0xc]
      %v232 = vunpack.c.l.bf16 %v231
      %v233 = vld [vmem:[%s192 + $0x8] sm:$0xc]
      %v234 = vld [vmem:[%s192 + $0x2c] sm:$0xf]
      %v235 = vld [vmem:[%s192 + $0x30] sm:$0x3]
      %v236 = vunpack.c.l.bf16 %v233
      %v237 = vunpack.c.l.bf16 %v234
      %v238 = vunpack.c.l.bf16 %v235
      %v239 = vld [vmem:[%s192 + $0x30] sm:$0x7]
      %v240 = vunpack.c.l.bf16 %v239
      %v241 = vld [vmem:[%s192 + $0x8] sm:$0x8]
      %v242 = vunpack.c.l.bf16 %v241
      %vm254 = vcmask 1046528
      %v255 = vrot.slane %v209, 1
      %v256 = vrot.slane %v210, 1
      %v257 = vsel %vm254, %v255, %v256
      %v258 = vrot.slane %v211, 1
      %v259 = vsel %vm254, %v256, %v258
      %v260 = vrot.slane %v212, 1
      %v261 = vsel %vm254, %v258, %v260
      %v262 = vrot.slane %v213, 1
      %v263 = vsel %vm254, %v260, %v262
      %v264 = vrot.slane %v214, 1
      %v265 = vsel %vm254, %v262, %v264
      %v266 = vrot.slane %v215, 1
      %v267 = vsel %vm254, %v264, %v266
      %v268 = vrot.slane %v216, 1
      %v269 = vsel %vm254, %v266, %v268
      %v270 = vrot.slane %v217, 1
      %v271 = vsel %vm254, %v268, %v270
      %v272 = vrot.slane %v218, 1
      %v273 = vsel %vm254, %v270, %v272
      %v274 = vrot.slane %v220, 1
      %v275 = vsel %vm254, %v272, %v274
      %276 = vrot.lane.b32.xlu0 %v257, 16
      %v277 = vpop.permute.xlu0 %276
      %278 = vrot.lane.b32.xlu0 %v259, 16
      %v279 = vpop.permute.xlu0 %278
      %280 = vrot.lane.b32.xlu0 %v261, 16
      %v281 = vpop.permute.xlu0 %280
      %282 = vrot.lane.b32.xlu0 %v263, 16
      %v283 = vpop.permute.xlu0 %282
      %284 = vrot.lane.b32.xlu0 %v265, 16
      %v285 = vpop.permute.xlu0 %284
      %286 = vrot.lane.b32.xlu0 %v267, 16
      %v287 = vpop.permute.xlu0 %286
      %288 = vrot.lane.b32.xlu0 %v269, 16
      %v289 = vpop.permute.xlu0 %288
      %290 = vrot.lane.b32.xlu0 %v271, 16
      %v291 = vpop.permute.xlu0 %290
      %292 = vrot.lane.b32.xlu0 %v273, 16
      %v293 = vpop.permute.xlu0 %292
      %294 = vrot.lane.b32.xlu0 %v275, 16
      %v295 = vpop.permute.xlu0 %294
      %vm307 = vcmask 1045504
      %v308 = vrot.slane %v222, 2
      %v309 = vrot.slane %v210, 2
      %v310 = vsel %vm307, %v308, %v309
      %v311 = vrot.slane %v211, 2
      %v312 = vsel %vm307, %v309, %v311
      %v313 = vrot.slane %v212, 2
      %v314 = vsel %vm307, %v311, %v313
      %v315 = vrot.slane %v213, 2
      %v316 = vsel %vm307, %v313, %v315
      %v317 = vrot.slane %v214, 2
      %v318 = vsel %vm307, %v315, %v317
      %v319 = vrot.slane %v215, 2
      %v320 = vsel %vm307, %v317, %v319
      %v321 = vrot.slane %v216, 2
      %v322 = vsel %vm307, %v319, %v321
      %v323 = vrot.slane %v217, 2
      %v324 = vsel %vm307, %v321, %v323
      %v325 = vrot.slane %v218, 2
      %v326 = vsel %vm307, %v323, %v325
      %v327 = vrot.slane %v220, 2
      %v328 = vsel %vm307, %v325, %v327
      %329 = vrot.lane.b32.xlu0 %v310, 32
      %v330 = vpop.permute.xlu0 %329
      %331 = vrot.lane.b32.xlu0 %v312, 32
      %v332 = vpop.permute.xlu0 %331
      %333 = vrot.lane.b32.xlu0 %v314, 32
      %v334 = vpop.permute.xlu0 %333
      %335 = vrot.lane.b32.xlu0 %v316, 32
      %v336 = vpop.permute.xlu0 %335
      %337 = vrot.lane.b32.xlu0 %v318, 32
      %v338 = vpop.permute.xlu0 %337
      %339 = vrot.lane.b32.xlu0 %v320, 32
      %v340 = vpop.permute.xlu0 %339
      %341 = vrot.lane.b32.xlu0 %v322, 32
      %v342 = vpop.permute.xlu0 %341
      %343 = vrot.lane.b32.xlu0 %v324, 32
      %v344 = vpop.permute.xlu0 %343
      %345 = vrot.lane.b32.xlu0 %v326, 32
      %v346 = vpop.permute.xlu0 %345
      %347 = vrot.lane.b32.xlu0 %v328, 32
      %v348 = vpop.permute.xlu0 %347
      %v362 = vrot.slane %v226, 2
      %v363 = vsel %vm307, %v362, %v311
      %v364 = vrot.slane %v227, 2
      %v365 = vsel %vm307, %v325, %v364
      %v366 = vrot.slane %v228, 2
      %v367 = vsel %vm307, %v364, %v366
      %368 = vrot.lane.b32.xlu0 %v363, 48
      %v369 = vpop.permute.xlu0 %368
      %370 = vrot.lane.b32.xlu0 %v314, 48
      %v371 = vpop.permute.xlu0 %370
      %372 = vrot.lane.b32.xlu0 %v316, 48
      %v373 = vpop.permute.xlu0 %372
      %374 = vrot.lane.b32.xlu0 %v318, 48
      %v375 = vpop.permute.xlu0 %374
      %376 = vrot.lane.b32.xlu0 %v320, 48
      %v377 = vpop.permute.xlu0 %376
      %378 = vrot.lane.b32.xlu0 %v322, 48
      %v379 = vpop.permute.xlu0 %378
      %380 = vrot.lane.b32.xlu0 %v324, 48
      %v381 = vpop.permute.xlu0 %380
      %382 = vrot.lane.b32.xlu0 %v326, 48
      %v383 = vpop.permute.xlu0 %382
      %384 = vrot.lane.b32.xlu0 %v365, 48
      %v385 = vpop.permute.xlu0 %384
      %386 = vrot.lane.b32.xlu0 %v367, 48
      %v387 = vpop.permute.xlu0 %386
      %vm399 = vcmask 1044480
      %v400 = vrot.slane %v226, 3
      %v401 = vrot.slane %v211, 3
      %v402 = vsel %vm399, %v400, %v401
      %v403 = vrot.slane %v212, 3
      %v404 = vsel %vm399, %v401, %v403
      %v405 = vrot.slane %v213, 3
      %v406 = vsel %vm399, %v403, %v405
      %v407 = vrot.slane %v214, 3
      %v408 = vsel %vm399, %v405, %v407
      %v409 = vrot.slane %v215, 3
      %v410 = vsel %vm399, %v407, %v409
      %v411 = vrot.slane %v216, 3
      %v412 = vsel %vm399, %v409, %v411
      %v413 = vrot.slane %v217, 3
      %v414 = vsel %vm399, %v411, %v413
      %v415 = vrot.slane %v218, 3
      %v416 = vsel %vm399, %v413, %v415
      %v417 = vrot.slane %v227, 3
      %v418 = vsel %vm399, %v415, %v417
      %v419 = vrot.slane %v230, 3
      %v420 = vsel %vm399, %v417, %v419
      %421 = vrot.lane.b32.xlu0 %v402, 64
      %v422 = vpop.permute.xlu0 %421
      %423 = vrot.lane.b32.xlu0 %v404, 64
      %v424 = vpop.permute.xlu0 %423
      %425 = vrot.lane.b32.xlu0 %v406, 64
      %v426 = vpop.permute.xlu0 %425
      %427 = vrot.lane.b32.xlu0 %v408, 64
      %v428 = vpop.permute.xlu0 %427
      %429 = vrot.lane.b32.xlu0 %v410, 64
      %v430 = vpop.permute.xlu0 %429
      %431 = vrot.lane.b32.xlu0 %v412, 64
      %v432 = vpop.permute.xlu0 %431
      %433 = vrot.lane.b32.xlu0 %v414, 64
      %v434 = vpop.permute.xlu0 %433
      %435 = vrot.lane.b32.xlu0 %v416, 64
      %v436 = vpop.permute.xlu0 %435
      %437 = vrot.lane.b32.xlu0 %v418, 64
      %v438 = vpop.permute.xlu0 %437
      %439 = vrot.lane.b32.xlu0 %v420, 64
      %v440 = vpop.permute.xlu0 %439
      %vm452 = vcmask 1043456
      %v453 = vrot.slane %v232, 4
      %v454 = vrot.slane %v211, 4
      %v455 = vsel %vm452, %v453, %v454
      %v456 = vrot.slane %v212, 4
      %v457 = vsel %vm452, %v454, %v456
      %v458 = vrot.slane %v213, 4
      %v459 = vsel %vm452, %v456, %v458
      %v460 = vrot.slane %v214, 4
      %v461 = vsel %vm452, %v458, %v460
      %v462 = vrot.slane %v215, 4
      %v463 = vsel %vm452, %v460, %v462
      %v464 = vrot.slane %v216, 4
      %v465 = vsel %vm452, %v462, %v464
      %v466 = vrot.slane %v217, 4
      %v467 = vsel %vm452, %v464, %v466
      %v468 = vrot.slane %v218, 4
      %v469 = vsel %vm452, %v466, %v468
      %v470 = vrot.slane %v227, 4
      %v471 = vsel %vm452, %v468, %v470
      %v472 = vrot.slane %v230, 4
      %v473 = vsel %vm452, %v470, %v472
      %474 = vrot.lane.b32.xlu0 %v455, 80
      %v475 = vpop.permute.xlu0 %474
      %476 = vrot.lane.b32.xlu0 %v457, 80
      %v477 = vpop.permute.xlu0 %476
      %478 = vrot.lane.b32.xlu0 %v459, 80
      %v479 = vpop.permute.xlu0 %478
      %480 = vrot.lane.b32.xlu0 %v461, 80
      %v481 = vpop.permute.xlu0 %480
      %482 = vrot.lane.b32.xlu0 %v463, 80
      %v483 = vpop.permute.xlu0 %482
      %484 = vrot.lane.b32.xlu0 %v465, 80
      %v485 = vpop.permute.xlu0 %484
      %486 = vrot.lane.b32.xlu0 %v467, 80
      %v487 = vpop.permute.xlu0 %486
      %488 = vrot.lane.b32.xlu0 %v469, 80
      %v489 = vpop.permute.xlu0 %488
      %490 = vrot.lane.b32.xlu0 %v471, 80
      %v491 = vpop.permute.xlu0 %490
      %492 = vrot.lane.b32.xlu0 %v473, 80
      %v493 = vpop.permute.xlu0 %492
      %v507 = vrot.slane %v236, 4
      %v508 = vsel %vm452, %v507, %v456
      %v509 = vrot.slane %v237, 4
      %v510 = vsel %vm452, %v470, %v509
      %v511 = vrot.slane %v238, 4
      %v512 = vsel %vm452, %v509, %v511
      %513 = vrot.lane.b32.xlu0 %v508, 96
      %v514 = vpop.permute.xlu0 %513
      %515 = vrot.lane.b32.xlu0 %v459, 96
      %v516 = vpop.permute.xlu0 %515
      %517 = vrot.lane.b32.xlu0 %v461, 96
      %v518 = vpop.permute.xlu0 %517
      %519 = vrot.lane.b32.xlu0 %v463, 96
      %v520 = vpop.permute.xlu0 %519
      %521 = vrot.lane.b32.xlu0 %v465, 96
      %v522 = vpop.permute.xlu0 %521
      %523 = vrot.lane.b32.xlu0 %v467, 96
      %v524 = vpop.permute.xlu0 %523
      %525 = vrot.lane.b32.xlu0 %v469, 96
      %v526 = vpop.permute.xlu0 %525
      %527 = vrot.lane.b32.xlu0 %v471, 96
      %v528 = vpop.permute.xlu0 %527
      %529 = vrot.lane.b32.xlu0 %v510, 96
      %v530 = vpop.permute.xlu0 %529
      %531 = vrot.lane.b32.xlu0 %v512, 96
      %v532 = vpop.permute.xlu0 %531
      %vm544 = vcmask 1042432
      %v545 = vrot.slane %v236, 5
      %v546 = vrot.slane %v212, 5
      %v547 = vsel %vm544, %v545, %v546
      %v548 = vrot.slane %v213, 5
      %v549 = vsel %vm544, %v546, %v548
      %v550 = vrot.slane %v214, 5
      %v551 = vsel %vm544, %v548, %v550
      %v552 = vrot.slane %v215, 5
      %v553 = vsel %vm544, %v550, %v552
      %v554 = vrot.slane %v216, 5
      %v555 = vsel %vm544, %v552, %v554
      %v556 = vrot.slane %v217, 5
      %v557 = vsel %vm544, %v554, %v556
      %v558 = vrot.slane %v218, 5
      %v559 = vsel %vm544, %v556, %v558
      %v560 = vrot.slane %v227, 5
      %v561 = vsel %vm544, %v558, %v560
      %v562 = vrot.slane %v237, 5
      %v563 = vsel %vm544, %v560, %v562
      %v564 = vrot.slane %v240, 5
      %v565 = vsel %vm544, %v562, %v564
      %566 = vrot.lane.b32.xlu0 %v547, 112
      %v567 = vpop.permute.xlu0 %566
      %568 = vrot.lane.b32.xlu0 %v549, 112
      %v569 = vpop.permute.xlu0 %568
      %570 = vrot.lane.b32.xlu0 %v551, 112
      %v571 = vpop.permute.xlu0 %570
      %572 = vrot.lane.b32.xlu0 %v553, 112
      %v573 = vpop.permute.xlu0 %572
      %574 = vrot.lane.b32.xlu0 %v555, 112
      %v575 = vpop.permute.xlu0 %574
      %576 = vrot.lane.b32.xlu0 %v557, 112
      %v577 = vpop.permute.xlu0 %576
      %578 = vrot.lane.b32.xlu0 %v559, 112
      %v579 = vpop.permute.xlu0 %578
      %580 = vrot.lane.b32.xlu0 %v561, 112
      %v581 = vpop.permute.xlu0 %580
      %582 = vrot.lane.b32.xlu0 %v563, 112
      %v583 = vpop.permute.xlu0 %582
      %584 = vrot.lane.b32.xlu0 %v565, 112
      %v585 = vpop.permute.xlu0 %584
      %vm597 = vcmask 1041408
      %v598 = vrot.slane %v242, 6
      %v599 = vrot.slane %v212, 6
      %v600 = vsel %vm597, %v598, %v599
      %v601 = vrot.slane %v213, 6
      %v602 = vsel %vm597, %v599, %v601
      %v603 = vrot.slane %v214, 6
      %v604 = vsel %vm597, %v601, %v603
      %v605 = vrot.slane %v215, 6
      %v606 = vsel %vm597, %v603, %v605
      %v607 = vrot.slane %v216, 6
      %v608 = vsel %vm597, %v605, %v607
      %v609 = vrot.slane %v217, 6
      %v610 = vsel %vm597, %v607, %v609
      %v611 = vrot.slane %v218, 6
      %v612 = vsel %vm597, %v609, %v611
      %v613 = vrot.slane %v227, 6
      %v614 = vsel %vm597, %v611, %v613
      %v615 = vrot.slane %v237, 6
      %v616 = vsel %vm597, %v613, %v615
      %v617 = vrot.slane %v240, 6
      %v618 = vsel %vm597, %v615, %v617
      %vm621 = vcmask 130048
      %v622 = vsel %vm621, %v209, %v277
      %v623 = vsel %vm621, %v210, %v279
      %v624 = vsel %vm621, %v211, %v281
      %v625 = vsel %vm621, %v212, %v283
      %v626 = vsel %vm621, %v213, %v285
      %v627 = vsel %vm621, %v214, %v287
      %v628 = vsel %vm621, %v215, %v289
      %v629 = vsel %vm621, %v216, %v291
      %v630 = vsel %vm621, %v217, %v293
      %v631 = vsel %vm621, %v218, %v295
      %vm632 = vcmask 261120
      %v633 = vsel %vm632, %v622, %v330
      %v634 = vsel %vm632, %v623, %v332
      %v635 = vsel %vm632, %v624, %v334
      %v636 = vsel %vm632, %v625, %v336
      %v637 = vsel %vm632, %v626, %v338
      %v638 = vsel %vm632, %v627, %v340
      %v639 = vsel %vm632, %v628, %v342
      %v640 = vsel %vm632, %v629, %v344
      %v641 = vsel %vm632, %v630, %v346
      %v642 = vsel %vm632, %v631, %v348
      %vm643 = vcmask 392192
      %v644 = vsel %vm643, %v633, %v369
      %v645 = vsel %vm643, %v634, %v371
      %v646 = vsel %vm643, %v635, %v373
      %v647 = vsel %vm643, %v636, %v375
      %v648 = vsel %vm643, %v637, %v377
      %v649 = vsel %vm643, %v638, %v379
      %v650 = vsel %vm643, %v639, %v381
      %v651 = vsel %vm643, %v640, %v383
      %v652 = vsel %vm643, %v641, %v385
      %v653 = vsel %vm643, %v642, %v387
      %vm654 = vcmask 523264
      %v655 = vsel %vm654, %v644, %v422
      %v656 = vsel %vm654, %v645, %v424
      %v657 = vsel %vm654, %v646, %v426
      %v658 = vsel %vm654, %v647, %v428
      %v659 = vsel %vm654, %v648, %v430
      %v660 = vsel %vm654, %v649, %v432
      %v661 = vsel %vm654, %v650, %v434
      %v662 = vsel %vm654, %v651, %v436
      %v663 = vsel %vm654, %v652, %v438
      %v664 = vsel %vm654, %v653, %v440
      %vm665 = vcmask 654336
      %v666 = vsel %vm665, %v655, %v475
      %v667 = vsel %vm665, %v656, %v477
      %v668 = vsel %vm665, %v657, %v479
      %v669 = vsel %vm665, %v658, %v481
      %v670 = vsel %vm665, %v659, %v483
      %v671 = vsel %vm665, %v660, %v485
      %v672 = vsel %vm665, %v661, %v487
      %v673 = vsel %vm665, %v662, %v489
      %v674 = vsel %vm665, %v663, %v491
      %v675 = vsel %vm665, %v664, %v493
      %vm676 = vcmask 785408
      %v677 = vsel %vm676, %v666, %v514
      %v678 = vsel %vm676, %v667, %v516
      %v679 = vsel %vm676, %v668, %v518
      %v680 = vsel %vm676, %v669, %v520
      %v681 = vsel %vm676, %v670, %v522
      %v682 = vsel %vm676, %v671, %v524
      %v683 = vsel %vm676, %v672, %v526
      %v684 = vsel %vm676, %v673, %v528
      %v685 = vsel %vm676, %v674, %v530
      %v686 = vsel %vm676, %v675, %v532
      %vm687 = vcmask 916480
      %v688 = vsel %vm687, %v677, %v567
      %v689 = vsel %vm687, %v678, %v569
      %v690 = vsel %vm687, %v679, %v571
      %v691 = vsel %vm687, %v680, %v573
      %v692 = vsel %vm687, %v681, %v575
      %v693 = vsel %vm687, %v682, %v577
      %v694 = vsel %vm687, %v683, %v579
      %v695 = vsel %vm687, %v684, %v581
      %v696 = vsel %vm687, %v685, %v583
      %v697 = vsel %vm687, %v686, %v585
      %v700 = vrot.slane %v689, 2
      %v701 = vrot.slane %v690, 2
      %v702 = vsel %vm307, %v700, %v701
      %v703 = vrot.slane %v602, 2
      %v704 = vrot.slane %v604, 2
      %v705 = vsel %vm307, %v703, %v704
      %v709 = vrot.slane %v690, 4
      %v710 = vrot.slane %v691, 4
      %v711 = vsel %vm452, %v709, %v710
      %v712 = vrot.slane %v604, 4
      %v713 = vrot.slane %v606, 4
      %v714 = vsel %vm452, %v712, %v713
      %v718 = vrot.slane %v691, 6
      %v719 = vrot.slane %v692, 6
      %v720 = vsel %vm597, %v718, %v719
      %v721 = vrot.slane %v606, 6
      %v722 = vrot.slane %v608, 6
      %v723 = vsel %vm597, %v721, %v722
      %v728 = vrot.slane %v694, 2
      %v729 = vrot.slane %v695, 2
      %v730 = vsel %vm307, %v728, %v729
      %v731 = vrot.slane %v612, 2
      %v732 = vrot.slane %v614, 2
      %v733 = vsel %vm307, %v731, %v732
      %v737 = vrot.slane %v695, 4
      %v738 = vrot.slane %v696, 4
      %v739 = vsel %vm452, %v737, %v738
      %v740 = vrot.slane %v614, 4
      %v741 = vrot.slane %v616, 4
      %v742 = vsel %vm452, %v740, %v741
      %v746 = vrot.slane %v696, 6
      %v747 = vrot.slane %v697, 6
      %v748 = vsel %vm597, %v746, %v747
      %v749 = vrot.slane %v616, 6
      %v750 = vrot.slane %v618, 6
      %v751 = vsel %vm597, %v749, %v750
      %v754 = vpack.c.bf16 %v702, %v688
      %v755 = vpack.c.bf16 %v705, %v600
      %v756 = vpack.c.bf16 %v720, %v711
      %v757 = vpack.c.bf16 %v723, %v714
      %v758 = vpack.c.bf16 %v730, %v693
      %v759 = vpack.c.bf16 %v733, %v610
      %v760 = vpack.c.bf16 %v748, %v739
      %v761 = vpack.c.bf16 %v751, %v742
      %v762 = vld [vmem:[%s1] sm:$0xf]
      %v763 = vld [vmem:[%s1 + $0x4] sm:$0xf]
      %v764 = vld [vmem:[%s1 + $0x8] sm:$0xf]
      %v765 = vld [vmem:[%s1 + $0xc] sm:$0xf]
      %v766 = vld [vmem:[%s1 + $0x10] sm:$0xf]
      %v767 = vld [vmem:[%s1 + $0x14] sm:$0xf]
      %v768 = vld [vmem:[%s1 + $0x18] sm:$0xf]
      %v769 = vld [vmem:[%s1 + $0x1c] sm:$0xf]
      %v770 = vld [vmem:[%s1 + $0x20] sm:$0xf]
      %v771 = vld [vmem:[%s1 + $0x24] sm:$0xf]
      %v772 = vld [vmem:[%s1 + $0x28] sm:$0xf]
      %v773 = vld [vmem:[%s1 + $0x2c] sm:$0xf]
      %v774 = vld [vmem:[%s1 + $0x30] sm:$0xf]
      %v775 = vld [vmem:[%s1 + $0x34] sm:$0xf]
      %v776 = vld [vmem:[%s1 + $0x38] sm:$0xf]
      %v777 = vld [vmem:[%s1 + $0x3c] sm:$0xf]
      %v778 = vld [vmem:[%s1 + $0x40] sm:$0xf]
      %v779 = vld [vmem:[%s1 + $0x44] sm:$0xf]
      %v798 = vunpack.c.l.b16 %v762
      %v799 = vunpack.c.l.b16 %v763
      %v800 = vunpack.c.l.b16 %v764
      %v801 = vunpack.c.l.b16 %v765
      %v802 = vunpack.c.l.b16 %v766
      %v803 = vunpack.c.l.b16 %v767
      %v804 = vunpack.c.l.b16 %v768
      %v805 = vunpack.c.l.b16 %v769
      %v806 = vunpack.c.l.b16 %v770
      %v807 = vunpack.c.l.b16 %v771
      %v808 = vunpack.c.l.b16 %v772
      %v809 = vunpack.c.l.b16 %v773
      %v810 = vunpack.c.l.b16 %v774
      %v811 = vunpack.c.l.b16 %v775
      %v812 = vunpack.c.l.b16 %v776
      %v813 = vunpack.c.l.b16 %v777
      %v814 = vunpack.c.l.b16 %v778
      %v815 = vunpack.c.l.b16 %v779
      %v816 = vpack.c.b16 %v799, %v798
      %v817 = vpack.c.b16 %v801, %v800
      %v818 = vpack.c.b16 %v803, %v802
      %v819 = vpack.c.b16 %v805, %v804
      %v820 = vpack.c.b16 %v807, %v806
      %v821 = vpack.c.b16 %v809, %v808
      %v822 = vpack.c.b16 %v811, %v810
      %v823 = vpack.c.b16 %v813, %v812
      %v824 = vpack.c.b16 %v815, %v814
      %v835 = vsel %vm621, %v755, 0
      %v838 = vsel %vm621, %v757, 0
      %v841 = vsel %vm621, %v759, 0
      %v844 = vsel %vm621, %v761, 0
      %846 = vmatprep.subr.bf16.mxu0 0
      %847 = vmatpush1.bf16.msra.mxu0 %v823
      %848 = vmatprep.subr.bf16.mxu0 0
      %849 = vmatpush1.bf16.msra.mxu0 %v822
      %850 = vmatprep.subr.bf16.mxu0 0
      %851 = vmatpush1.bf16.msra.mxu0 %v821
      %852 = vmatprep.subr.bf16.mxu0 0
      %853 = vmatpush1.bf16.msra.mxu0 %v820
      %854 = vmatprep.subr.bf16.mxu0 0
      %855 = vmatpush1.bf16.msra.mxu0 %v819
      %856 = vmatprep.subr.bf16.mxu0 0
      %857 = vmatpush1.bf16.msra.mxu0 %v818
      %858 = vmatprep.subr.bf16.mxu0 0
      %859 = vmatpush1.bf16.msra.mxu0 %v817
      %860 = vmatprep.subr.bf16.mxu0 0
      %861 = vmatpush1.bf16.msra.mxu0 %v816
      %862 = vmatprep.subr.bf16.mxu0 0
      %863 = vmatpush2.bf16.msra.mxu0 0
      %864 = vmatprep.subr.bf16.mxu0 0
      %865 = vmatpush2.bf16.msra.mxu0 0
      %866 = vmatprep.subr.bf16.mxu0 0
      %867 = vmatpush2.bf16.msra.mxu0 0
      %868 = vmatprep.subr.bf16.mxu0 0
      %869 = vmatpush2.bf16.msra.mxu0 0
      %870 = vmatprep.subr.bf16.mxu0 0
      %871 = vmatpush2.bf16.msra.mxu0 0
      %872 = vmatprep.subr.bf16.mxu0 0
      %873 = vmatpush2.bf16.msra.mxu0 0
      %874 = vmatprep.subr.bf16.mxu0 0
      %875 = vmatpush2.bf16.msra.mxu0 0
      %876 = vmatprep.subr.bf16.mxu0 0
      %877 = vmatpush2.bf16.msra.mxu0 %v824
      %878 = vmatprep.mubr.bf16.mxu0 %v835
      %879 = vmatmul.mubr.bf16.gmra.mxu0 %v754
      %v880 = vpop.f32.mrf.mxu0
      %v881 = vadd.f32 0.0, %v880
      %v882 = vpop.f32.mrf.mxu0
      %v883 = vpop.f32.mrf.mxu0
      %v884 = vadd.f32 0.0, %v883
      %v885 = vpop.f32.mrf.mxu0
      %886 = vmatprep.mubr.bf16.mxu0 %v838
      %887 = vmatmul.mubr.bf16.gmra.mxu0 %v756
      %v888 = vpop.f32.mrf.mxu0
      %v889 = vadd.f32 0.0, %v888
      %v890 = vpop.f32.mrf.mxu0
      %v891 = vpop.f32.mrf.mxu0
      %v892 = vadd.f32 0.0, %v891
      %v893 = vpop.f32.mrf.mxu0
      %894 = vmatprep.mubr.bf16.mxu0 %v841
      %895 = vmatmul.mubr.bf16.gmra.mxu0 %v758
      %v896 = vpop.f32.mrf.mxu0
      %v897 = vadd.f32 0.0, %v896
      %v898 = vpop.f32.mrf.mxu0
      %v899 = vpop.f32.mrf.mxu0
      %v900 = vadd.f32 0.0, %v899
      %v901 = vpop.f32.mrf.mxu0
      %902 = vmatprep.mubr.bf16.mxu0 %v844
      %903 = vmatmul.mubr.bf16.gmra.mxu0 %v760
      %v904 = vpop.f32.mrf.mxu0
      %v905 = vadd.f32 0.0, %v904
      %v906 = vpop.f32.mrf.mxu0
      %v907 = vpop.f32.mrf.mxu0
      %v908 = vadd.f32 0.0, %v907
      %v909 = vpop.f32.mrf.mxu0
      %910 = vdwg.mxu0
      %v911 = vld [vmem:[%s2] sm:$0x1]
      %v913 = vlaneseq
      %v914 = vshrl.u32 %v913, 7
      %v915 = vsub.s32 0, %v914
      %v916 = vrot.slane %v911, %v915
      %v918 = vmul.f32 %v881, %v916
      %v919 = vmul.f32 %v884, %v916
      %v920 = vmul.f32 %v889, %v916
      %v921 = vmul.f32 %v892, %v916
      %v922 = vmul.f32 %v897, %v916
      %v923 = vmul.f32 %v900, %v916
      %v924 = vmul.f32 %v905, %v916
      %v925 = vmul.f32 %v908, %v916
      %v926 = vld [vmem:[%s3] sm:$0x1]
      %v928 = vlaneseq
      %v929 = vshrl.u32 %v928, 7
      %v930 = vsub.s32 0, %v929
      %v931 = vrot.slane %v926, %v930
      %v933 = vadd.f32 %v918, %v931
      %v934 = vadd.f32 %v919, %v931
      %v935 = vadd.f32 %v920, %v931
      %v936 = vadd.f32 %v921, %v931
      %v937 = vadd.f32 %v922, %v931
      %v938 = vadd.f32 %v923, %v931
      %v939 = vadd.f32 %v924, %v931
      %v940 = vadd.f32 %v925, %v931
      %v941 = vxor.u32 %v933, 2147483648
      %v942 = vxor.u32 %v934, 2147483648
      %v943 = vxor.u32 %v935, 2147483648
      %v944 = vxor.u32 %v936, 2147483648
      %v945 = vxor.u32 %v937, 2147483648
      %v946 = vxor.u32 %v938, 2147483648
      %v947 = vxor.u32 %v939, 2147483648
      %v948 = vxor.u32 %v940, 2147483648
      %v949 = vmul.f32 %v941, 1.442695
      %v950 = vpow.pop %v949
      %v951 = vmul.f32 %v942, 1.442695
      %v952 = vpow.pop %v951
      %v953 = vmul.f32 %v943, 1.442695
      %v954 = vpow.pop %v953
      %v955 = vmul.f32 %v944, 1.442695
      %v956 = vpow.pop %v955
      %v957 = vmul.f32 %v945, 1.442695
      %v958 = vpow.pop %v957
      %v959 = vmul.f32 %v946, 1.442695
      %v960 = vpow.pop %v959
      %v961 = vmul.f32 %v947, 1.442695
      %v962 = vpow.pop %v961
      %v963 = vmul.f32 %v948, 1.442695
      %v964 = vpow.pop %v963
      %v965 = vadd.f32 %v950, 1.0
      %v966 = vadd.f32 %v952, 1.0
      %v967 = vadd.f32 %v954, 1.0
      %v968 = vadd.f32 %v956, 1.0
      %v969 = vadd.f32 %v958, 1.0
      %v970 = vadd.f32 %v960, 1.0
      %v971 = vadd.f32 %v962, 1.0
      %v972 = vadd.f32 %v964, 1.0
      %v973 = vrcp.pop %v965
      %v974 = vmul.f32 1.0, %v973
      %v975 = vrcp.pop %v966
      %v976 = vmul.f32 1.0, %v975
      %v977 = vrcp.pop %v967
      %v978 = vmul.f32 1.0, %v977
      %v979 = vrcp.pop %v968
      %v980 = vmul.f32 1.0, %v979
      %v981 = vrcp.pop %v969
      %v982 = vmul.f32 1.0, %v981
      %v983 = vrcp.pop %v970
      %v984 = vmul.f32 1.0, %v983
      %v985 = vrcp.pop %v971
      %v986 = vmul.f32 1.0, %v985
      %v987 = vrcp.pop %v972
      %v988 = vmul.f32 1.0, %v987
      %v989 = vmul.f32 %v933, %v974
      %v990 = vmul.f32 %v934, %v976
      %v991 = vmul.f32 %v935, %v978
      %v992 = vmul.f32 %v936, %v980
      %v993 = vmul.f32 %v937, %v982
      %v994 = vmul.f32 %v938, %v984
      %v995 = vmul.f32 %v939, %v986
      %v996 = vmul.f32 %v940, %v988
      %v997 = vpack.c.bf16 %v990, %v989
      %v998 = vpack.c.bf16 %v992, %v991
      %v999 = vpack.c.bf16 %v994, %v993
      %v1000 = vpack.c.bf16 %v996, %v995
      %v1005 = vunpack.c.l.b16 %v997
      %v1006 = vunpack.c.h.b16 %v997
      %v1007 = vunpack.c.l.b16 %v998
      %v1008 = vunpack.c.h.b16 %v998
      %v1009 = vunpack.c.l.b16 %v999
      %v1010 = vunpack.c.h.b16 %v999
      %v1011 = vunpack.c.l.b16 %v1000
      %v1012 = vunpack.c.h.b16 %v1000
      %v1013 = vpack.c.b16 %v1005, %v1005
      %v1014 = vpack.c.b16 %v1006, %v1006
      %v1015 = vpack.c.b16 %v1007, %v1007
      %v1016 = vpack.c.b16 %v1008, %v1008
      %v1017 = vpack.c.b16 %v1009, %v1009
      %v1018 = vpack.c.b16 %v1010, %v1010
      %v1019 = vpack.c.b16 %v1011, %v1011
      %v1020 = vpack.c.b16 %v1012, %v1012
      %vm1029 = vcmask 125952
      %1030 = vst.msk [vmem:[%s197] sm:$0xf] %vm1029, %v1013
      %1031 = vst.msk [vmem:[%s197 + $0x4] sm:$0xf] %vm1029, %v1014
      %1032 = vst.msk [vmem:[%s197 + $0x8] sm:$0xf] %vm1029, %v1015
      %1033 = vst.msk [vmem:[%s197 + $0xc] sm:$0xf] %vm1029, %v1016
      %1034 = vst.msk [vmem:[%s197 + $0x10] sm:$0xf] %vm1029, %v1017
      %1035 = vst.msk [vmem:[%s197 + $0x14] sm:$0xf] %vm1029, %v1018
      %1036 = vst.msk [vmem:[%s197 + $0x18] sm:$0xf] %vm1029, %v1019
      %1037 = vst.msk [vmem:[%s197 + $0x1c] sm:$0xf] %vm1029, %v1020
      %p1038 = scmp.lt.s32.totalorder %s15, 1
      %s1039 = scalar_select %p1038, %s15, 1
      %s1040 = smul.addr %s1039, 8
      %s1041 = smul.addr %s1040, 4
      %s1042 = scalar_lea.vmem %s4, %s1041
      // Predicated region
      $region37: #{_lambda_.6} parent=35 // pred_check
        %p1043 = pneg %p122
      $region38: #{_lambda_.6} parent=35 // pred_check_branch
        %1045 = sbr.rel (%p1043) target = $region40
      $region39: #{_lambda_.6} parent=35 // pred_region
        _
      $region40: #{_lambda_.6} parent=35 // pred_fallthru
        _
    $region36: #{_lambda_.6} parent=5 // pred_fallthru
      _
    %p1046 = scmp.le.s32.totalorder 2, %s10
    // Predicated region
    $region41: #{_lambda_.6} parent=5 // pred_check
      %p1047 = pneg %p1046
    $region42: #{_lambda_.6} parent=5 // pred_check_branch
      %1049 = sbr.rel (%p1047) target = $region44
    $region43: #{_lambda_.6} parent=5 // pred_region
      %s1050 = ssub.s32 %s10, 2
      // Predicated region
      $region45: #{_lambda_.6} parent=43 // pred_check
        %p1051 = pneg %p128
      $region46: #{_lambda_.6} parent=43 // pred_check_branch
        %1053 = sbr.rel (%p1051) target = $region48
      $region47: #{_lambda_.6} parent=43 // pred_region
        %p1054 = scmp.lt.s32.totalorder %s16, 1
        %s1055 = scalar_select %p1054, %s16, 1
        %s1056 = smul.addr %s1055, 8
        %s1057 = smul.addr %s1056, 4
        %s1058 = scalar_lea.vmem %s4, %s1057
      $region48: #{_lambda_.6} parent=43 // pred_fallthru
        _
    $region44: #{_lambda_.6} parent=5 // pred_fallthru
      _
  $region6: #{_lambda_.6} parent=0 // loop_footer
    %s14 = sadd.s32 1, %s10
  $region7: #{_lambda_.6} parent=0 // loop_footer_branch
    %9 = sbr.rel target = $region3
  $region8: #{_lambda_.6} parent=0 // loop_exit
    _

// kernel: _lambda_.7
$region0: #{_lambda_.7}
  #allocation0 [shape = 'u32[]', space=smem, size = 0x4, offset = 0x4, fixed_abs, tag = 'smem constant byte address 0x4 - core index']
  #allocation1 [shape = 'u32[144,128]{1,0:T(1,128)}', space=vmem, size = 0x12000, scoped, tag = 'internal scratch']
  %s0 = inlined_call_operand.vmem [shape: bf16[2,64,16], index: 0, kind: input, shape index: {}]
  %s1 = inlined_call_operand.vmem [shape: bf16[16,48], index: 1, kind: input, shape index: {}]
  %s2 = inlined_call_operand.vmem [shape: f32[1,48], index: 2, kind: input, shape index: {}]
  %s3 = inlined_call_operand.vmem [shape: bf16[16,16], index: 3, kind: input, shape index: {}]
  %s4 = inlined_call_operand.vmem [shape: f32[1,16], index: 4, kind: input, shape index: {}]
  %s5 = inlined_call_operand.vmem [shape: bf16[16,64], index: 5, kind: input, shape index: {}]
  %s6 = inlined_call_operand.vmem [shape: f32[1,64], index: 6, kind: input, shape index: {}]
  %s7 = inlined_call_operand.vmem [shape: bf16[64,16], index: 7, kind: input, shape index: {}]
  %s8 = inlined_call_operand.vmem [shape: f32[1,16], index: 8, kind: input, shape index: {}]
  %s9 = inlined_call_operand.vmem [shape: f32[1,16], index: 9, kind: input, shape index: {}]
  %s10 = inlined_call_operand.vmem [shape: f32[1,16], index: 10, kind: input, shape index: {}]
  %s11 = inlined_call_operand.vmem [shape: bf16[2,64,16], index: 11, kind: output, shape index: {}]
  %s12 = sld [smem:[#allocation0]]
  $region77: #{_lambda_.7} parent=0
    _
  %s14 = ssub.s32 1, %s12
  %s15 = scalar_select 0, %s14, %s12
  loop: start=0, step=1, limit=4
  $region2: #{_lambda_.7} parent=0 // loop_pre_header
    _
  $region3: #{_lambda_.7} parent=0 // loop_header
    %s17 = sphi 0, %s21
    %p18 = scmp.ge.s32.totalorder %s17, 4
    %s27 = sphi 0, %s29
    %s30 = sphi 0, %s27
    %s31 = sphi 0, %s30
    %s47 = sphi 0, %s31
    %s51 = sphi 0, %s51
    %s53 = sphi 0, %s51
    %s54 = sphi 0, %s53
    %s68 = sphi 0, %s54
    %s72 = sphi 0, %s72
    %s74 = sphi 0, %s72
    %s75 = sphi 0, %s74
    %s89 = sphi 0, %s75
    %s93 = sphi 0, %s93
    %s95 = sphi 0, %s93
    %s96 = sphi 0, %s95
    %s110 = sphi 0, %s96
    %s114 = sphi 0, %s114
    %s116 = sphi 0, %s114
    %s117 = sphi 0, %s116
    %s131 = sphi 0, %s117
    %s135 = sphi 0, %s135
    %s137 = sphi 0, %s135
    %s138 = sphi 0, %s137
    %s152 = sphi 0, %s138
    %s156 = sphi 0, %s156
    %s158 = sphi 0, %s156
    %s159 = sphi 0, %s158
    %s173 = sphi 0, %s159
    %s177 = sphi 0, %s177
    %s179 = sphi 0, %s177
    %s180 = sphi 0, %s179
    %s194 = sphi 0, %s180
    %s198 = sphi 0, %s198
    %s200 = sphi 0, %s198
    %s201 = sphi 0, %s200
    %s215 = sphi 0, %s201
    %s219 = sphi 0, %s219
    %s221 = sphi 0, %s219
    %s222 = sphi 0, %s221
    %s236 = sphi 0, %s222
    %s240 = sphi 0, %s240
    %s242 = sphi 0, %s240
    %s243 = sphi 0, %s242
    %s257 = sphi 0, %s243
    %s263 = sphi 0, %s265
    %s266 = sphi 0, %s263
    %s267 = sphi 0, %s266
    %s283 = sphi 0, %s267
  $region4: #{_lambda_.7} parent=0 // loop_header_branch
    %20 = sbr.rel (%p18) target = $region8
  $region5: #{_lambda_.7} parent=0 // loop_body
    %s22 = ssub.s32 %s17, 1
    %s23 = ssub.s32 %s17, 2
    %s24 = sadd.s32 %s17, 1
    %s25 = ssub.s32 %s17, %s24
    %p26 = scmp.eq.s32.totalorder %s25, 0
    %s28 = sadd.s32 %s27, 1
    %s29 = scalar_select %p26, %s27, %s28
    %p32 = pneg %p26
    %p33 = scmp.eq.s32.totalorder %s17, 1
    %p34 = por %p32, %p33
    %p35 = scmp.ne.s32.totalorder %s27, %s30
    %p36 = scmp.eq.s32.totalorder %s17, 0
    %p37 = por %p35, %p36
    %p38 = scmp.ne.s32.totalorder %s27, %s30
    %p39 = scmp.eq.s32.totalorder %s22, 1
    %p40 = por %p38, %p39
    %p41 = scmp.ne.s32.totalorder %s30, %s31
    %p42 = scmp.eq.s32.totalorder %s22, 0
    %p43 = por %p41, %p42
    %p44 = scmp.ne.s32.totalorder %s30, %s31
    %p45 = scmp.eq.s32.totalorder %s23, 1
    %p46 = por %p44, %p45
    %p48 = scmp.ne.s32.totalorder %s31, %s47
    %p49 = scmp.eq.s32.totalorder %s23, 0
    %p50 = por %p48, %p49
    %s52 = sadd.s32 %s51, 1
    %p55 = scmp.eq.s32.totalorder %s17, 1
    %p56 = scmp.ne.s32.totalorder %s51, %s53
    %p57 = scmp.eq.s32.totalorder %s17, 0
    %p58 = por %p56, %p57
    %p59 = scmp.ne.s32.totalorder %s51, %s53
    %p60 = scmp.eq.s32.totalorder %s22, 1
    %p61 = por %p59, %p60
    %p62 = scmp.ne.s32.totalorder %s53, %s54
    %p63 = scmp.eq.s32.totalorder %s22, 0
    %p64 = por %p62, %p63
    %p65 = scmp.ne.s32.totalorder %s53, %s54
    %p66 = scmp.eq.s32.totalorder %s23, 1
    %p67 = por %p65, %p66
    %p69 = scmp.ne.s32.totalorder %s54, %s68
    %p70 = scmp.eq.s32.totalorder %s23, 0
    %p71 = por %p69, %p70
    %s73 = sadd.s32 %s72, 1
    %p76 = scmp.eq.s32.totalorder %s17, 1
    %p77 = scmp.ne.s32.totalorder %s72, %s74
    %p78 = scmp.eq.s32.totalorder %s17, 0
    %p79 = por %p77, %p78
    %p80 = scmp.ne.s32.totalorder %s72, %s74
    %p81 = scmp.eq.s32.totalorder %s22, 1
    %p82 = por %p80, %p81
    %p83 = scmp.ne.s32.totalorder %s74, %s75
    %p84 = scmp.eq.s32.totalorder %s22, 0
    %p85 = por %p83, %p84
    %p86 = scmp.ne.s32.totalorder %s74, %s75
    %p87 = scmp.eq.s32.totalorder %s23, 1
    %p88 = por %p86, %p87
    %p90 = scmp.ne.s32.totalorder %s75, %s89
    %p91 = scmp.eq.s32.totalorder %s23, 0
    %p92 = por %p90, %p91
    %s94 = sadd.s32 %s93, 1
    %p97 = scmp.eq.s32.totalorder %s17, 1
    %p98 = scmp.ne.s32.totalorder %s93, %s95
    %p99 = scmp.eq.s32.totalorder %s17, 0
    %p100 = por %p98, %p99
    %p101 = scmp.ne.s32.totalorder %s93, %s95
    %p102 = scmp.eq.s32.totalorder %s22, 1
    %p103 = por %p101, %p102
    %p104 = scmp.ne.s32.totalorder %s95, %s96
    %p105 = scmp.eq.s32.totalorder %s22, 0
    %p106 = por %p104, %p105
    %p107 = scmp.ne.s32.totalorder %s95, %s96
    %p108 = scmp.eq.s32.totalorder %s23, 1
    %p109 = por %p107, %p108
    %p111 = scmp.ne.s32.totalorder %s96, %s110
    %p112 = scmp.eq.s32.totalorder %s23, 0
    %p113 = por %p111, %p112
    %s115 = sadd.s32 %s114, 1
    %p118 = scmp.eq.s32.totalorder %s17, 1
    %p119 = scmp.ne.s32.totalorder %s114, %s116
    %p120 = scmp.eq.s32.totalorder %s17, 0
    %p121 = por %p119, %p120
    %p122 = scmp.ne.s32.totalorder %s114, %s116
    %p123 = scmp.eq.s32.totalorder %s22, 1
    %p124 = por %p122, %p123
    %p125 = scmp.ne.s32.totalorder %s116, %s117
    %p126 = scmp.eq.s32.totalorder %s22, 0
    %p127 = por %p125, %p126
    %p128 = scmp.ne.s32.totalorder %s116, %s117
    %p129 = scmp.eq.s32.totalorder %s23, 1
    %p130 = por %p128, %p129
    %p132 = scmp.ne.s32.totalorder %s117, %s131
    %p133 = scmp.eq.s32.totalorder %s23, 0
    %p134 = por %p132, %p133
    %s136 = sadd.s32 %s135, 1
    %p139 = scmp.eq.s32.totalorder %s17, 1
    %p140 = scmp.ne.s32.totalorder %s135, %s137
    %p141 = scmp.eq.s32.totalorder %s17, 0
    %p142 = por %p140, %p141
    %p143 = scmp.ne.s32.totalorder %s135, %s137
    %p144 = scmp.eq.s32.totalorder %s22, 1
    %p145 = por %p143, %p144
    %p146 = scmp.ne.s32.totalorder %s137, %s138
    %p147 = scmp.eq.s32.totalorder %s22, 0
    %p148 = por %p146, %p147
    %p149 = scmp.ne.s32.totalorder %s137, %s138
    %p150 = scmp.eq.s32.totalorder %s23, 1
    %p151 = por %p149, %p150
    %p153 = scmp.ne.s32.totalorder %s138, %s152
    %p154 = scmp.eq.s32.totalorder %s23, 0
    %p155 = por %p153, %p154
    %s157 = sadd.s32 %s156, 1
    %p160 = scmp.eq.s32.totalorder %s17, 1
    %p161 = scmp.ne.s32.totalorder %s156, %s158
    %p162 = scmp.eq.s32.totalorder %s17, 0
    %p163 = por %p161, %p162
    %p164 = scmp.ne.s32.totalorder %s156, %s158
    %p165 = scmp.eq.s32.totalorder %s22, 1
    %p166 = por %p164, %p165
    %p167 = scmp.ne.s32.totalorder %s158, %s159
    %p168 = scmp.eq.s32.totalorder %s22, 0
    %p169 = por %p167, %p168
    %p170 = scmp.ne.s32.totalorder %s158, %s159
    %p171 = scmp.eq.s32.totalorder %s23, 1
    %p172 = por %p170, %p171
    %p174 = scmp.ne.s32.totalorder %s159, %s173
    %p175 = scmp.eq.s32.totalorder %s23, 0
    %p176 = por %p174, %p175
    %s178 = sadd.s32 %s177, 1
    %p181 = scmp.eq.s32.totalorder %s17, 1
    %p182 = scmp.ne.s32.totalorder %s177, %s179
    %p183 = scmp.eq.s32.totalorder %s17, 0
    %p184 = por %p182, %p183
    %p185 = scmp.ne.s32.totalorder %s177, %s179
    %p186 = scmp.eq.s32.totalorder %s22, 1
    %p187 = por %p185, %p186
    %p188 = scmp.ne.s32.totalorder %s179, %s180
    %p189 = scmp.eq.s32.totalorder %s22, 0
    %p190 = por %p188, %p189
    %p191 = scmp.ne.s32.totalorder %s179, %s180
    %p192 = scmp.eq.s32.totalorder %s23, 1
    %p193 = por %p191, %p192
    %p195 = scmp.ne.s32.totalorder %s180, %s194
    %p196 = scmp.eq.s32.totalorder %s23, 0
    %p197 = por %p195, %p196
    %s199 = sadd.s32 %s198, 1
    %p202 = scmp.eq.s32.totalorder %s17, 1
    %p203 = scmp.ne.s32.totalorder %s198, %s200
    %p204 = scmp.eq.s32.totalorder %s17, 0
    %p205 = por %p203, %p204
    %p206 = scmp.ne.s32.totalorder %s198, %s200
    %p207 = scmp.eq.s32.totalorder %s22, 1
    %p208 = por %p206, %p207
    %p209 = scmp.ne.s32.totalorder %s200, %s201
    %p210 = scmp.eq.s32.totalorder %s22, 0
    %p211 = por %p209, %p210
    %p212 = scmp.ne.s32.totalorder %s200, %s201
    %p213 = scmp.eq.s32.totalorder %s23, 1
    %p214 = por %p212, %p213
    %p216 = scmp.ne.s32.totalorder %s201, %s215
    %p217 = scmp.eq.s32.totalorder %s23, 0
    %p218 = por %p216, %p217
    %s220 = sadd.s32 %s219, 1
    %p223 = scmp.eq.s32.totalorder %s17, 1
    %p224 = scmp.ne.s32.totalorder %s219, %s221
    %p225 = scmp.eq.s32.totalorder %s17, 0
    %p226 = por %p224, %p225
    %p227 = scmp.ne.s32.totalorder %s219, %s221
    %p228 = scmp.eq.s32.totalorder %s22, 1
    %p229 = por %p227, %p228
    %p230 = scmp.ne.s32.totalorder %s221, %s222
    %p231 = scmp.eq.s32.totalorder %s22, 0
    %p232 = por %p230, %p231
    %p233 = scmp.ne.s32.totalorder %s221, %s222
    %p234 = scmp.eq.s32.totalorder %s23, 1
    %p235 = por %p233, %p234
    %p237 = scmp.ne.s32.totalorder %s222, %s236
    %p238 = scmp.eq.s32.totalorder %s23, 0
    %p239 = por %p237, %p238
    %s241 = sadd.s32 %s240, 1
    %p244 = scmp.eq.s32.totalorder %s17, 1
    %p245 = scmp.ne.s32.totalorder %s240, %s242
    %p246 = scmp.eq.s32.totalorder %s17, 0
    %p247 = por %p245, %p246
    %p248 = scmp.ne.s32.totalorder %s240, %s242
    %p249 = scmp.eq.s32.totalorder %s22, 1
    %p250 = por %p248, %p249
    %p251 = scmp.ne.s32.totalorder %s242, %s243
    %p252 = scmp.eq.s32.totalorder %s22, 0
    %p253 = por %p251, %p252
    %p254 = scmp.ne.s32.totalorder %s242, %s243
    %p255 = scmp.eq.s32.totalorder %s23, 1
    %p256 = por %p254, %p255
    %p258 = scmp.ne.s32.totalorder %s243, %s257
    %p259 = scmp.eq.s32.totalorder %s23, 0
    %p260 = por %p258, %p259
    %s261 = ssub.s32 %s17, %s24
    %p262 = scmp.eq.s32.totalorder %s261, 0
    %s264 = sadd.s32 %s263, 1
    %s265 = scalar_select %p262, %s263, %s264
    %p268 = pneg %p262
    %p269 = scmp.eq.s32.totalorder %s17, 1
    %p270 = por %p268, %p269
    %p271 = scmp.ne.s32.totalorder %s263, %s266
    %p272 = scmp.eq.s32.totalorder %s17, 0
    %p273 = por %p271, %p272
    %p274 = scmp.ne.s32.totalorder %s263, %s266
    %p275 = scmp.eq.s32.totalorder %s22, 1
    %p276 = por %p274, %p275
    %p277 = scmp.ne.s32.totalorder %s266, %s267
    %p278 = scmp.eq.s32.totalorder %s22, 0
    %p279 = por %p277, %p278
    %p280 = scmp.ne.s32.totalorder %s266, %s267
    %p281 = scmp.eq.s32.totalorder %s23, 1
    %p282 = por %p280, %p281
    %p284 = scmp.ne.s32.totalorder %s267, %s283
    %p285 = scmp.eq.s32.totalorder %s23, 0
    %p286 = por %p284, %p285
    %p287 = scmp.le.s32.totalorder 1, %s17
    %p288 = scmp.lt.s32.totalorder %s17, 3
    %p289 = pnand %p287, %p288
    %p290 = pneg %p289
    // Predicated region
    $region9: #{_lambda_.7} parent=5 // pred_check
      _
    $region10: #{_lambda_.7} parent=5 // pred_check_branch
      %292 = sbr.rel (%p289) target = $region12
    $region11: #{_lambda_.7} parent=5 // pred_region
      %s293 = ssub.s32 %s17, 1
      // Predicated region
      $region13: #{_lambda_.7} parent=11 // pred_check
        %p294 = pneg %p64
      $region14: #{_lambda_.7} parent=11 // pred_check_branch
        %296 = sbr.rel (%p294) target = $region16
      $region15: #{_lambda_.7} parent=11 // pred_region
        _
      $region16: #{_lambda_.7} parent=11 // pred_fallthru
        _
      // Predicated region
      $region17: #{_lambda_.7} parent=11 // pred_check
        %p297 = pneg %p85
      $region18: #{_lambda_.7} parent=11 // pred_check_branch
        %299 = sbr.rel (%p297) target = $region20
      $region19: #{_lambda_.7} parent=11 // pred_region
        _
      $region20: #{_lambda_.7} parent=11 // pred_fallthru
        _
      // Predicated region
      $region21: #{_lambda_.7} parent=11 // pred_check
        %p300 = pneg %p106
      $region22: #{_lambda_.7} parent=11 // pred_check_branch
        %302 = sbr.rel (%p300) target = $region24
      $region23: #{_lambda_.7} parent=11 // pred_region
        _
      $region24: #{_lambda_.7} parent=11 // pred_fallthru
        _
      // Predicated region
      $region25: #{_lambda_.7} parent=11 // pred_check
        %p303 = pneg %p127
      $region26: #{_lambda_.7} parent=11 // pred_check_branch
        %305 = sbr.rel (%p303) target = $region28
      $region27: #{_lambda_.7} parent=11 // pred_region
        _
      $region28: #{_lambda_.7} parent=11 // pred_fallthru
        _
      // Predicated region
      $region29: #{_lambda_.7} parent=11 // pred_check
        %p306 = pneg %p148
      $region30: #{_lambda_.7} parent=11 // pred_check_branch
        %308 = sbr.rel (%p306) target = $region32
      $region31: #{_lambda_.7} parent=11 // pred_region
        _
      $region32: #{_lambda_.7} parent=11 // pred_fallthru
        _
      // Predicated region
      $region33: #{_lambda_.7} parent=11 // pred_check
        %p309 = pneg %p169
      $region34: #{_lambda_.7} parent=11 // pred_check_branch
        %311 = sbr.rel (%p309) target = $region36
      $region35: #{_lambda_.7} parent=11 // pred_region
        _
      $region36: #{_lambda_.7} parent=11 // pred_fallthru
        _
      // Predicated region
      $region37: #{_lambda_.7} parent=11 // pred_check
        %p312 = pneg %p190
      $region38: #{_lambda_.7} parent=11 // pred_check_branch
        %314 = sbr.rel (%p312) target = $region40
      $region39: #{_lambda_.7} parent=11 // pred_region
        _
      $region40: #{_lambda_.7} parent=11 // pred_fallthru
        _
      // Predicated region
      $region41: #{_lambda_.7} parent=11 // pred_check
        %p315 = pneg %p211
      $region42: #{_lambda_.7} parent=11 // pred_check_branch
        %317 = sbr.rel (%p315) target = $region44
      $region43: #{_lambda_.7} parent=11 // pred_region
        _
      $region44: #{_lambda_.7} parent=11 // pred_fallthru
        _
      // Predicated region
      $region45: #{_lambda_.7} parent=11 // pred_check
        %p318 = pneg %p232
      $region46: #{_lambda_.7} parent=11 // pred_check_branch
        %320 = sbr.rel (%p318) target = $region48
      $region47: #{_lambda_.7} parent=11 // pred_region
        _
      $region48: #{_lambda_.7} parent=11 // pred_fallthru
        _
      // Predicated region
      $region49: #{_lambda_.7} parent=11 // pred_check
        %p321 = pneg %p253
      $region50: #{_lambda_.7} parent=11 // pred_check_branch
        %323 = sbr.rel (%p321) target = $region52
      $region51: #{_lambda_.7} parent=11 // pred_region
        _
      $region52: #{_lambda_.7} parent=11 // pred_fallthru
        _
    $region12: #{_lambda_.7} parent=5 // pred_fallthru
      _
    %p324 = scmp.lt.s32.totalorder %s17, 2
    // Predicated region
    $region53: #{_lambda_.7} parent=5 // pred_check
      %p325 = pneg %p324
    $region54: #{_lambda_.7} parent=5 // pred_check_branch
      %327 = sbr.rel (%p325) target = $region56
    $region55: #{_lambda_.7} parent=5 // pred_region
      // Predicated region
      $region57: #{_lambda_.7} parent=55 // pred_check
        %p328 = pneg %p37
      $region58: #{_lambda_.7} parent=55 // pred_check_branch
        %330 = sbr.rel (%p328) target = $region60
      $region59: #{_lambda_.7} parent=55 // pred_region
        %p331 = scmp.lt.s32.totalorder %s17, 1
        %s332 = scalar_select %p331, %s17, 1
        %s333 = smul.addr %s332, 8
        %s334 = smul.addr %s333, 4
        %s335 = scalar_lea.vmem %s0, %s334
      $region60: #{_lambda_.7} parent=55 // pred_fallthru
        _
    $region56: #{_lambda_.7} parent=5 // pred_fallthru
      _
    %p336 = scmp.le.s32.totalorder 1, %s17
    %p337 = scmp.lt.s32.totalorder %s17, 3
    %p338 = pnand %p336, %p337
    %p339 = pneg %p338
    // Predicated region
    $region61: #{_lambda_.7} parent=5 // pred_check
      _
    $region62: #{_lambda_.7} parent=5 // pred_check_branch
      %341 = sbr.rel (%p338) target = $region64
    $region63: #{_lambda_.7} parent=5 // pred_region
      %s342 = ssub.s32 %s17, 1
      %p343 = scmp.lt.s32.totalorder %s22, 1
      %s344 = scalar_select %p343, %s22, 1
      %s345 = smul.addr %s344, 8
      %s346 = smul.addr %s345, 4
      %s347 = scalar_lea.vmem %s0, %s346
      %p348 = pneg %p43
      %p349 = pneg %p40
      %p350 = pneg %p64
      %p351 = pneg %p61
      %p352 = pneg %p85
      %p353 = pneg %p82
      %p354 = pneg %p106
      %p355 = pneg %p103
      %p356 = pneg %p127
      %p357 = pneg %p124
      %p358 = pneg %p148
      %p359 = pneg %p145
      %p360 = pneg %p169
      %p361 = pneg %p166
      %p362 = pneg %p190
      %p363 = pneg %p187
      %p364 = pneg %p211
      %p365 = pneg %p208
      %p366 = pneg %p232
      %p367 = pneg %p229
      %p368 = pneg %p253
      %p369 = pneg %p250
      %p370 = pneg %p279
      %p371 = pneg %p276
      %p372 = scmp.lt.s32.totalorder %s22, 1
      %s373 = scalar_select %p372, %s22, 1
      %s374 = smul.addr %s373, 8
      %s375 = smul.addr %s374, 4
      %s376 = scalar_lea.vmem %s11, %s375
      %p377 = scmp.lt.s32.totalorder %s22, 1
      %s378 = scalar_select %p377, %s22, 1
      %s379 = smul.addr %s378, 8
      %s380 = smul.addr %s379, 4
      %s381 = scalar_lea.vmem %s0, %s380
      %p382 = scmp.lt.s32.totalorder %s22, 1
      %s383 = scalar_select %p382, %s22, 1
      %s384 = smul.addr %s383, 8
      %s385 = smul.addr %s384, 4
      %s386 = scalar_lea.vmem %s11, %s385
      %v388 = vld [vmem:[%s381] sm:$0xf]
      %v389 = vld [vmem:[%s381 + $0x4] sm:$0xf]
      %v390 = vld [vmem:[%s381 + $0x8] sm:$0xf]
      %v391 = vld [vmem:[%s381 + $0xc] sm:$0xf]
      %v392 = vld [vmem:[%s381 + $0x10] sm:$0xf]
      %v393 = vld [vmem:[%s381 + $0x14] sm:$0xf]
      %v394 = vld [vmem:[%s381 + $0x18] sm:$0xf]
      %v395 = vld [vmem:[%s381 + $0x1c] sm:$0xf]
      %v396 = vunpack.c.l.bf16 %v388
      %v397 = vunpack.c.l.bf16 %v389
      %v398 = vunpack.c.l.bf16 %v390
      %v399 = vunpack.c.l.bf16 %v391
      %v400 = vunpack.c.l.bf16 %v392
      %v401 = vunpack.c.l.bf16 %v393
      %v402 = vunpack.c.l.bf16 %v394
      %v403 = vunpack.c.l.bf16 %v395
      %v404 = vld [vmem:[%s1] sm:$0xf]
      %v405 = vld [vmem:[%s1 + $0x4] sm:$0xf]
      %v406 = vld [vmem:[%s2] sm:$0x1]
      %v408 = vlaneseq
      %v409 = vshrl.u32 %v408, 7
      %v410 = vsub.s32 0, %v409
      %v411 = vrot.slane %v406, %v410
      %v421 = vunpack.c.l.b16 %v388
      %v422 = vunpack.c.l.b16 %v389
      %v423 = vunpack.c.l.b16 %v390
      %v424 = vunpack.c.l.b16 %v391
      %v425 = vunpack.c.l.b16 %v392
      %v426 = vunpack.c.l.b16 %v393
      %v427 = vunpack.c.l.b16 %v394
      %v428 = vunpack.c.l.b16 %v395
      %v429 = vpack.c.b16 %v422, %v421
      %v430 = vpack.c.b16 %v424, %v423
      %v431 = vpack.c.b16 %v426, %v425
      %v432 = vpack.c.b16 %v428, %v427
      %v435 = vunpack.c.l.b16 %v404
      %v436 = vunpack.c.l.b16 %v405
      %v437 = vpack.c.b16 %v436, %v435
      %vm439 = vcmask 130048
      %v441 = vsel %vm439, %v429, 0
      %v444 = vsel %vm439, %v430, 0
      %v447 = vsel %vm439, %v431, 0
      %v450 = vsel %vm439, %v432, 0
      %452 = vmatprep.subr.bf16.mxu0 0
      %453 = vmatpush1.bf16.msra.mxu0 0
      %454 = vmatprep.subr.bf16.mxu0 0
      %455 = vmatpush1.bf16.msra.mxu0 0
      %456 = vmatprep.subr.bf16.mxu0 0
      %457 = vmatpush1.bf16.msra.mxu0 0
      %458 = vmatprep.subr.bf16.mxu0 0
      %459 = vmatpush1.bf16.msra.mxu0 0
      %460 = vmatprep.subr.bf16.mxu0 0
      %461 = vmatpush1.bf16.msra.mxu0 0
      %462 = vmatprep.subr.bf16.mxu0 0
      %463 = vmatpush1.bf16.msra.mxu0 0
      %464 = vmatprep.subr.bf16.mxu0 0
      %465 = vmatpush1.bf16.msra.mxu0 0
      %466 = vmatprep.subr.bf16.mxu0 0
      %467 = vmatpush1.bf16.msra.mxu0 %v437
      %468 = vmatprep.subr.bf16.mxu0 0
      %469 = vmatpush2.bf16.msra.mxu0 0
      %470 = vmatprep.subr.bf16.mxu0 0
      %471 = vmatpush2.bf16.msra.mxu0 0
      %472 = vmatprep.subr.bf16.mxu0 0
      %473 = vmatpush2.bf16.msra.mxu0 0
      %474 = vmatprep.subr.bf16.mxu0 0
      %475 = vmatpush2.bf16.msra.mxu0 0
      %476 = vmatprep.subr.bf16.mxu0 0
      %477 = vmatpush2.bf16.msra.mxu0 0
      %478 = vmatprep.subr.bf16.mxu0 0
      %479 = vmatpush2.bf16.msra.mxu0 0
      %480 = vmatprep.subr.bf16.mxu0 0
      %481 = vmatpush2.bf16.msra.mxu0 0
      %482 = vmatprep.subr.bf16.mxu0 0
      %483 = vmatpush2.bf16.msra.mxu0 0
      %484 = vmatprep.mubr.bf16.mxu0 0
      %485 = vmatmul.mubr.bf16.gmra.mxu0 %v441
      %v486 = vpop.f32.mrf.mxu0
      %v487 = vadd.f32 %v411, %v486
      %v488 = vpop.f32.mrf.mxu0
      %v489 = vpop.f32.mrf.mxu0
      %v490 = vadd.f32 %v411, %v489
      %v491 = vpop.f32.mrf.mxu0
      %492 = vmatprep.mubr.bf16.mxu0 0
      %493 = vmatmul.mubr.bf16.gmra.mxu0 %v444
      %v494 = vpop.f32.mrf.mxu0
      %v495 = vadd.f32 %v411, %v494
      %v496 = vpop.f32.mrf.mxu0
      %v497 = vpop.f32.mrf.mxu0
      %v498 = vadd.f32 %v411, %v497
      %v499 = vpop.f32.mrf.mxu0
      %500 = vmatprep.mubr.bf16.mxu0 0
      %501 = vmatmul.mubr.bf16.gmra.mxu0 %v447
      %v502 = vpop.f32.mrf.mxu0
      %v503 = vadd.f32 %v411, %v502
      %v504 = vpop.f32.mrf.mxu0
      %v505 = vpop.f32.mrf.mxu0
      %v506 = vadd.f32 %v411, %v505
      %v507 = vpop.f32.mrf.mxu0
      %508 = vmatprep.mubr.bf16.mxu0 0
      %509 = vmatmul.mubr.bf16.gmra.mxu0 %v450
      %v510 = vpop.f32.mrf.mxu0
      %v511 = vadd.f32 %v411, %v510
      %v512 = vpop.f32.mrf.mxu0
      %v513 = vpop.f32.mrf.mxu0
      %v514 = vadd.f32 %v411, %v513
      %v515 = vpop.f32.mrf.mxu0
      %516 = vdwg.mxu0
      %v517 = vld [vmem:[%s3] sm:$0xf]
      %v518 = vld [vmem:[%s3 + $0x4] sm:$0xf]
      %v519 = vpack.c.bf16 %v490, %v487
      %v520 = vpack.c.bf16 %v498, %v495
      %v521 = vpack.c.bf16 %v506, %v503
      %v522 = vpack.c.bf16 %v514, %v511
      %527 = vrot.lane.b32.xlu0 %v519, 112
      %v528 = vpop.permute.xlu0 %527
      %529 = vrot.lane.b32.xlu0 %v520, 112
      %v530 = vpop.permute.xlu0 %529
      %531 = vrot.lane.b32.xlu0 %v521, 112
      %v532 = vpop.permute.xlu0 %531
      %533 = vrot.lane.b32.xlu0 %v522, 112
      %v534 = vpop.permute.xlu0 %533
      %vm535 = vcmask 15360
      %v537 = vsel %vm535, %v519, 0
      %v540 = vsel %vm535, %v520, 0
      %v543 = vsel %vm535, %v521, 0
      %v546 = vsel %vm535, %v522, 0
      %v549 = vsel %vm535, %v528, 0
      %v552 = vsel %vm535, %v530, 0
      %v555 = vsel %vm535, %v532, 0
      %v558 = vsel %vm535, %v534, 0
      %560 = vmatprep.subr.bf16.mxu0 0
      %561 = vmatpush1.bf16.xpose.msra.mxu0 0
      %562 = vmatprep.subr.bf16.mxu0 0
      %563 = vmatpush1.bf16.xpose.msra.mxu0 0
      %564 = vmatprep.subr.bf16.mxu0 0
      %565 = vmatpush1.bf16.xpose.msra.mxu0 0
      %566 = vmatprep.subr.bf16.mxu0 0
      %567 = vmatpush1.bf16.xpose.msra.mxu0 0
      %568 = vmatprep.subr.bf16.mxu0 0
      %569 = vmatpush1.bf16.xpose.msra.mxu0 %v558
      %570 = vmatprep.subr.bf16.mxu0 0
      %571 = vmatpush1.bf16.xpose.msra.mxu0 %v555
      %572 = vmatprep.subr.bf16.mxu0 0
      %573 = vmatpush1.bf16.xpose.msra.mxu0 %v552
      %574 = vmatprep.subr.bf16.mxu0 0
      %575 = vmatpush1.bf16.xpose.msra.mxu0 %v549
      %576 = vmatprep.subr.bf16.mxu0 0
      %577 = vmatpush2.bf16.xpose.msra.mxu0 0
      %578 = vmatprep.subr.bf16.mxu0 0
      %579 = vmatpush2.bf16.xpose.msra.mxu0 0
      %580 = vmatprep.subr.bf16.mxu0 0
      %581 = vmatpush2.bf16.xpose.msra.mxu0 0
      %582 = vmatprep.subr.bf16.mxu0 0
      %583 = vmatpush2.bf16.xpose.msra.mxu0 0
      %584 = vmatprep.subr.bf16.mxu0 0
      %585 = vmatpush2.bf16.xpose.msra.mxu0 0
      %586 = vmatprep.subr.bf16.mxu0 0
      %587 = vmatpush2.bf16.xpose.msra.mxu0 0
      %588 = vmatprep.subr.bf16.mxu0 0
      %589 = vmatpush2.bf16.xpose.msra.mxu0 0
      %590 = vmatprep.subr.bf16.mxu0 0
      %591 = vmatpush2.bf16.xpose.msra.mxu0 0
      %592 = vmatprep.mubr.bf16.mxu0 0
      %593 = vmatmul.mubr.bf16.gmra.mxu0 %v537
      %v594 = vpop.f32.mrf.mxu0
      %v595 = vadd.f32 0.0, %v594
      %v596 = vpop.f32.mrf.mxu0
      %v597 = vpop.f32.mrf.mxu0
      %v598 = vadd.f32 0.0, %v597
      %v599 = vpop.f32.mrf.mxu0
      %600 = vmatprep.mubr.bf16.mxu0 0
      %601 = vmatmul.mubr.bf16.gmra.mxu0 %v540
      %v602 = vpop.f32.mrf.mxu0
      %v603 = vadd.f32 0.0, %v602
      %v604 = vpop.f32.mrf.mxu0
      %v605 = vpop.f32.mrf.mxu0
      %v606 = vadd.f32 0.0, %v605
      %v607 = vpop.f32.mrf.mxu0
      %608 = vmatprep.mubr.bf16.mxu0 0
      %609 = vmatmul.mubr.bf16.gmra.mxu0 %v543
      %v610 = vpop.f32.mrf.mxu0
      %v611 = vadd.f32 0.0, %v610
      %v612 = vpop.f32.mrf.mxu0
      %v613 = vpop.f32.mrf.mxu0
      %v614 = vadd.f32 0.0, %v613
      %v615 = vpop.f32.mrf.mxu0
      %616 = vmatprep.mubr.bf16.mxu0 0
      %617 = vmatmul.mubr.bf16.gmra.mxu0 %v546
      %v618 = vpop.f32.mrf.mxu0
      %v619 = vadd.f32 0.0, %v618
      %v620 = vpop.f32.mrf.mxu0
      %v621 = vpop.f32.mrf.mxu0
      %v622 = vadd.f32 0.0, %v621
      %v623 = vpop.f32.mrf.mxu0
      %624 = vdwg.mxu0
      %v625 = vmul.f32 %v595, 0.70710677
      %v626 = vmul.f32 %v598, 0.70710677
      %v627 = vmul.f32 %v603, 0.70710677
      %v628 = vmul.f32 %v606, 0.70710677
      %v629 = vmul.f32 %v611, 0.70710677
      %v630 = vmul.f32 %v614, 0.70710677
      %v631 = vmul.f32 %v619, 0.70710677
      %v632 = vmul.f32 %v622, 0.70710677
      %vm633 = vcmask 523264
      %v634 = vsel %vm633, %v625, -inf
      %635 = vmax.xlane.f32.xlu0 %v634
      %v636 = vpop.xlane.xlu0 %635
      %v637 = vsel %vm633, %v626, -inf
      %638 = vmax.xlane.f32.xlu0 %v637
      %v639 = vpop.xlane.xlu0 %638
      %v640 = vsel %vm633, %v627, -inf
      %641 = vmax.xlane.f32.xlu0 %v640
      %v642 = vpop.xlane.xlu0 %641
      %v643 = vsel %vm633, %v628, -inf
      %644 = vmax.xlane.f32.xlu0 %v643
      %v645 = vpop.xlane.xlu0 %644
      %v646 = vsel %vm633, %v629, -inf
      %647 = vmax.xlane.f32.xlu0 %v646
      %v648 = vpop.xlane.xlu0 %647
      %v649 = vsel %vm633, %v630, -inf
      %650 = vmax.xlane.f32.xlu0 %v649
      %v651 = vpop.xlane.xlu0 %650
      %v652 = vsel %vm633, %v631, -inf
      %653 = vmax.xlane.f32.xlu0 %v652
      %v654 = vpop.xlane.xlu0 %653
      %v655 = vsel %vm633, %v632, -inf
      %656 = vmax.xlane.f32.xlu0 %v655
      %v657 = vpop.xlane.xlu0 %656
      %v658 = vsub.f32 %v625, %v636
      %v659 = vsub.f32 %v626, %v639
      %v660 = vsub.f32 %v627, %v642
      %v661 = vsub.f32 %v628, %v645
      %v662 = vsub.f32 %v629, %v648
      %v663 = vsub.f32 %v630, %v651
      %v664 = vsub.f32 %v631, %v654
      %v665 = vsub.f32 %v632, %v657
      %v666 = vmul.f32 %v658, 1.442695
      %v667 = vpow.pop %v666
      %v668 = vmul.f32 %v659, 1.442695
      %v669 = vpow.pop %v668
      %v670 = vmul.f32 %v660, 1.442695
      %v671 = vpow.pop %v670
      %v672 = vmul.f32 %v661, 1.442695
      %v673 = vpow.pop %v672
      %v674 = vmul.f32 %v662, 1.442695
      %v675 = vpow.pop %v674
      %v676 = vmul.f32 %v663, 1.442695
      %v677 = vpow.pop %v676
      %v678 = vmul.f32 %v664, 1.442695
      %v679 = vpow.pop %v678
      %v680 = vmul.f32 %v665, 1.442695
      %v681 = vpow.pop %v680
      %v682 = vsel %vm633, %v667, 0.0
      %683 = vadd.xlane.f32.xlu0 %v682
      %v684 = vpop.xlane.xlu0 %683
      %v685 = vsel %vm633, %v669, 0.0
      %686 = vadd.xlane.f32.xlu0 %v685
      %v687 = vpop.xlane.xlu0 %686
      %v688 = vsel %vm633, %v671, 0.0
      %689 = vadd.xlane.f32.xlu0 %v688
      %v690 = vpop.xlane.xlu0 %689
      %v691 = vsel %vm633, %v673, 0.0
      %692 = vadd.xlane.f32.xlu0 %v691
      %v693 = vpop.xlane.xlu0 %692
      %v694 = vsel %vm633, %v675, 0.0
      %695 = vadd.xlane.f32.xlu0 %v694
      %v696 = vpop.xlane.xlu0 %695
      %v697 = vsel %vm633, %v677, 0.0
      %698 = vadd.xlane.f32.xlu0 %v697
      %v699 = vpop.xlane.xlu0 %698
      %v700 = vsel %vm633, %v679, 0.0
      %701 = vadd.xlane.f32.xlu0 %v700
      %v702 = vpop.xlane.xlu0 %701
      %v703 = vsel %vm633, %v681, 0.0
      %704 = vadd.xlane.f32.xlu0 %v703
      %v705 = vpop.xlane.xlu0 %704
      %v706 = vrcp.pop %v684
      %v707 = vmul.f32 %v667, %v706
      %v708 = vrcp.pop %v687
      %v709 = vmul.f32 %v669, %v708
      %v710 = vrcp.pop %v690
      %v711 = vmul.f32 %v671, %v710
      %v712 = vrcp.pop %v693
      %v713 = vmul.f32 %v673, %v712
      %v714 = vrcp.pop %v696
      %v715 = vmul.f32 %v675, %v714
      %v716 = vrcp.pop %v699
      %v717 = vmul.f32 %v677, %v716
      %v718 = vrcp.pop %v702
      %v719 = vmul.f32 %v679, %v718
      %v720 = vrcp.pop %v705
      %v721 = vmul.f32 %v681, %v720
      %v722 = vpack.c.bf16 %v709, %v707
      %v723 = vpack.c.bf16 %v713, %v711
      %v724 = vpack.c.bf16 %v717, %v715
      %v725 = vpack.c.bf16 %v721, %v719
      %726 = vrot.lane.b32.xlu0 %v519, 96
      %v727 = vpop.permute.xlu0 %726
      %728 = vrot.lane.b32.xlu0 %v520, 96
      %v729 = vpop.permute.xlu0 %728
      %730 = vrot.lane.b32.xlu0 %v521, 96
      %v731 = vpop.permute.xlu0 %730
      %732 = vrot.lane.b32.xlu0 %v522, 96
      %v733 = vpop.permute.xlu0 %732
      %v739 = vsel %vm633, %v722, 0
      %v742 = vsel %vm633, %v723, 0
      %v745 = vsel %vm633, %v724, 0
      %v748 = vsel %vm633, %v725, 0
      %750 = vmatprep.subr.bf16.mxu0 0
      %751 = vmatpush1.bf16.msra.mxu0 0
      %752 = vmatprep.subr.bf16.mxu0 0
      %753 = vmatpush1.bf16.msra.mxu0 0
      %754 = vmatprep.subr.bf16.mxu0 0
      %755 = vmatpush1.bf16.msra.mxu0 0
      %756 = vmatprep.subr.bf16.mxu0 0
      %757 = vmatpush1.bf16.msra.mxu0 0
      %758 = vmatprep.subr.bf16.mxu0 0
      %759 = vmatpush1.bf16.msra.mxu0 %v733
      %760 = vmatprep.subr.bf16.mxu0 0
      %761 = vmatpush1.bf16.msra.mxu0 %v731
      %762 = vmatprep.subr.bf16.mxu0 0
      %763 = vmatpush1.bf16.msra.mxu0 %v729
      %764 = vmatprep.subr.bf16.mxu0 0
      %765 = vmatpush1.bf16.msra.mxu0 %v727
      %766 = vmatprep.subr.bf16.mxu0 0
      %767 = vmatpush2.bf16.msra.mxu0 0
      %768 = vmatprep.subr.bf16.mxu0 0
      %769 = vmatpush2.bf16.msra.mxu0 0
      %770 = vmatprep.subr.bf16.mxu0 0
      %771 = vmatpush2.bf16.msra.mxu0 0
      %772 = vmatprep.subr.bf16.mxu0 0
      %773 = vmatpush2.bf16.msra.mxu0 0
      %774 = vmatprep.subr.bf16.mxu0 0
      %775 = vmatpush2.bf16.msra.mxu0 0
      %776 = vmatprep.subr.bf16.mxu0 0
      %777 = vmatpush2.bf16.msra.mxu0 0
      %778 = vmatprep.subr.bf16.mxu0 0
      %779 = vmatpush2.bf16.msra.mxu0 0
      %780 = vmatprep.subr.bf16.mxu0 0
      %781 = vmatpush2.bf16.msra.mxu0 0
      %782 = vmatprep.mubr.bf16.mxu0 0
      %783 = vmatmul.mubr.bf16.gmra.mxu0 %v739
      %v784 = vpop.f32.mrf.mxu0
      %v785 = vadd.f32 0.0, %v784
      %v786 = vpop.f32.mrf.mxu0
      %v787 = vpop.f32.mrf.mxu0
      %v788 = vadd.f32 0.0, %v787
      %v789 = vpop.f32.mrf.mxu0
      %790 = vmatprep.mubr.bf16.mxu0 0
      %791 = vmatmul.mubr.bf16.gmra.mxu0 %v742
      %v792 = vpop.f32.mrf.mxu0
      %v793 = vadd.f32 0.0, %v792
      %v794 = vpop.f32.mrf.mxu0
      %v795 = vpop.f32.mrf.mxu0
      %v796 = vadd.f32 0.0, %v795
      %v797 = vpop.f32.mrf.mxu0
      %798 = vmatprep.mubr.bf16.mxu0 0
      %799 = vmatmul.mubr.bf16.gmra.mxu0 %v745
      %v800 = vpop.f32.mrf.mxu0
      %v801 = vadd.f32 0.0, %v800
      %v802 = vpop.f32.mrf.mxu0
      %v803 = vpop.f32.mrf.mxu0
      %v804 = vadd.f32 0.0, %v803
      %v805 = vpop.f32.mrf.mxu0
      %806 = vmatprep.mubr.bf16.mxu0 0
      %807 = vmatmul.mubr.bf16.gmra.mxu0 %v748
      %v808 = vpop.f32.mrf.mxu0
      %v809 = vadd.f32 0.0, %v808
      %v810 = vpop.f32.mrf.mxu0
      %v811 = vpop.f32.mrf.mxu0
      %v812 = vadd.f32 0.0, %v811
      %v813 = vpop.f32.mrf.mxu0
      %814 = vdwg.mxu0
      %v815 = vpack.c.bf16 %v788, %v785
      %v816 = vpack.c.bf16 %v796, %v793
      %v817 = vpack.c.bf16 %v804, %v801
      %v818 = vpack.c.bf16 %v812, %v809
      %819 = vrot.lane.b32.xlu0 %v519, 126
      %v820 = vpop.permute.xlu0 %819
      %821 = vrot.lane.b32.xlu0 %v520, 126
      %v822 = vpop.permute.xlu0 %821
      %823 = vrot.lane.b32.xlu0 %v521, 126
      %v824 = vpop.permute.xlu0 %823
      %825 = vrot.lane.b32.xlu0 %v522, 126
      %v826 = vpop.permute.xlu0 %825
      %827 = vrot.lane.b32.xlu0 %v519, 110
      %v828 = vpop.permute.xlu0 %827
      %829 = vrot.lane.b32.xlu0 %v520, 110
      %v830 = vpop.permute.xlu0 %829
      %831 = vrot.lane.b32.xlu0 %v521, 110
      %v832 = vpop.permute.xlu0 %831
      %833 = vrot.lane.b32.xlu0 %v522, 110
      %v834 = vpop.permute.xlu0 %833
      %v836 = vsel %vm535, %v820, 0
      %v839 = vsel %vm535, %v822, 0
      %v842 = vsel %vm535, %v824, 0
      %v845 = vsel %vm535, %v826, 0
      %v848 = vsel %vm535, %v828, 0
      %v851 = vsel %vm535, %v830, 0
      %v854 = vsel %vm535, %v832, 0
      %v857 = vsel %vm535, %v834, 0
      %859 = vmatprep.subr.bf16.mxu0 0
      %860 = vmatpush1.bf16.xpose.msra.mxu0 0
      %861 = vmatprep.subr.bf16.mxu0 0
      %862 = vmatpush1.bf16.xpose.msra.mxu0 0
      %863 = vmatprep.subr.bf16.mxu0 0
      %864 = vmatpush1.bf16.xpose.msra.mxu0 0
      %865 = vmatprep.subr.bf16.mxu0 0
      %866 = vmatpush1.bf16.xpose.msra.mxu0 0
      %867 = vmatprep.subr.bf16.mxu0 0
      %868 = vmatpush1.bf16.xpose.msra.mxu0 %v857
      %869 = vmatprep.subr.bf16.mxu0 0
      %870 = vmatpush1.bf16.xpose.msra.mxu0 %v854
      %871 = vmatprep.subr.bf16.mxu0 0
      %872 = vmatpush1.bf16.xpose.msra.mxu0 %v851
      %873 = vmatprep.subr.bf16.mxu0 0
      %874 = vmatpush1.bf16.xpose.msra.mxu0 %v848
      %875 = vmatprep.subr.bf16.mxu0 0
      %876 = vmatpush2.bf16.xpose.msra.mxu0 0
      %877 = vmatprep.subr.bf16.mxu0 0
      %878 = vmatpush2.bf16.xpose.msra.mxu0 0
      %879 = vmatprep.subr.bf16.mxu0 0
      %880 = vmatpush2.bf16.xpose.msra.mxu0 0
      %881 = vmatprep.subr.bf16.mxu0 0
      %882 = vmatpush2.bf16.xpose.msra.mxu0 0
      %883 = vmatprep.subr.bf16.mxu0 0
      %884 = vmatpush2.bf16.xpose.msra.mxu0 0
      %885 = vmatprep.subr.bf16.mxu0 0
      %886 = vmatpush2.bf16.xpose.msra.mxu0 0
      %887 = vmatprep.subr.bf16.mxu0 0
      %888 = vmatpush2.bf16.xpose.msra.mxu0 0
      %889 = vmatprep.subr.bf16.mxu0 0
      %890 = vmatpush2.bf16.xpose.msra.mxu0 0
      %891 = vmatprep.mubr.bf16.mxu0 0
      %892 = vmatmul.mubr.bf16.gmra.mxu0 %v836
      %v893 = vpop.f32.mrf.mxu0
      %v894 = vadd.f32 0.0, %v893
      %v895 = vpop.f32.mrf.mxu0
      %v896 = vpop.f32.mrf.mxu0
      %v897 = vadd.f32 0.0, %v896
      %v898 = vpop.f32.mrf.mxu0
      %899 = vmatprep.mubr.bf16.mxu0 0
      %900 = vmatmul.mubr.bf16.gmra.mxu0 %v839
      %v901 = vpop.f32.mrf.mxu0
      %v902 = vadd.f32 0.0, %v901
      %v903 = vpop.f32.mrf.mxu0
      %v904 = vpop.f32.mrf.mxu0
      %v905 = vadd.f32 0.0, %v904
      %v906 = vpop.f32.mrf.mxu0
      %907 = vmatprep.mubr.bf16.mxu0 0
      %908 = vmatmul.mubr.bf16.gmra.mxu0 %v842
      %v909 = vpop.f32.mrf.mxu0
      %v910 = vadd.f32 0.0, %v909
      %v911 = vpop.f32.mrf.mxu0
      %v912 = vpop.f32.mrf.mxu0
      %v913 = vadd.f32 0.0, %v912
      %v914 = vpop.f32.mrf.mxu0
      %915 = vmatprep.mubr.bf16.mxu0 0
      %916 = vmatmul.mubr.bf16.gmra.mxu0 %v845
      %v917 = vpop.f32.mrf.mxu0
      %v918 = vadd.f32 0.0, %v917
      %v919 = vpop.f32.mrf.mxu0
      %v920 = vpop.f32.mrf.mxu0
      %v921 = vadd.f32 0.0, %v920
      %v922 = vpop.f32.mrf.mxu0
      %923 = vdwg.mxu0
      %v924 = vmul.f32 %v894, 0.70710677
      %v925 = vmul.f32 %v897, 0.70710677
      %v926 = vmul.f32 %v902, 0.70710677
      %v927 = vmul.f32 %v905, 0.70710677
      %v928 = vmul.f32 %v910, 0.70710677
      %v929 = vmul.f32 %v913, 0.70710677
      %v930 = vmul.f32 %v918, 0.70710677
      %v931 = vmul.f32 %v921, 0.70710677
      %v932 = vsel %vm633, %v924, -inf
      %933 = vmax.xlane.f32.xlu0 %v932
      %v934 = vpop.xlane.xlu0 %933
      %v935 = vsel %vm633, %v925, -inf
      %936 = vmax.xlane.f32.xlu0 %v935
      %v937 = vpop.xlane.xlu0 %936
      %v938 = vsel %vm633, %v926, -inf
      %939 = vmax.xlane.f32.xlu0 %v938
      %v940 = vpop.xlane.xlu0 %939
      %v941 = vsel %vm633, %v927, -inf
      %942 = vmax.xlane.f32.xlu0 %v941
      %v943 = vpop.xlane.xlu0 %942
      %v944 = vsel %vm633, %v928, -inf
      %945 = vmax.xlane.f32.xlu0 %v944
      %v946 = vpop.xlane.xlu0 %945
      %v947 = vsel %vm633, %v929, -inf
      %948 = vmax.xlane.f32.xlu0 %v947
      %v949 = vpop.xlane.xlu0 %948
      %v950 = vsel %vm633, %v930, -inf
      %951 = vmax.xlane.f32.xlu0 %v950
      %v952 = vpop.xlane.xlu0 %951
      %v953 = vsel %vm633, %v931, -inf
      %954 = vmax.xlane.f32.xlu0 %v953
      %v955 = vpop.xlane.xlu0 %954
      %v956 = vsub.f32 %v924, %v934
      %v957 = vsub.f32 %v925, %v937
      %v958 = vsub.f32 %v926, %v940
      %v959 = vsub.f32 %v927, %v943
      %v960 = vsub.f32 %v928, %v946
      %v961 = vsub.f32 %v929, %v949
      %v962 = vsub.f32 %v930, %v952
      %v963 = vsub.f32 %v931, %v955
      %v964 = vmul.f32 %v956, 1.442695
      %v965 = vpow.pop %v964
      %v966 = vmul.f32 %v957, 1.442695
      %v967 = vpow.pop %v966
      %v968 = vmul.f32 %v958, 1.442695
      %v969 = vpow.pop %v968
      %v970 = vmul.f32 %v959, 1.442695
      %v971 = vpow.pop %v970
      %v972 = vmul.f32 %v960, 1.442695
      %v973 = vpow.pop %v972
      %v974 = vmul.f32 %v961, 1.442695
      %v975 = vpow.pop %v974
      %v976 = vmul.f32 %v962, 1.442695
      %v977 = vpow.pop %v976
      %v978 = vmul.f32 %v963, 1.442695
      %v979 = vpow.pop %v978
      %v980 = vsel %vm633, %v965, 0.0
      %981 = vadd.xlane.f32.xlu0 %v980
      %v982 = vpop.xlane.xlu0 %981
      %v983 = vsel %vm633, %v967, 0.0
      %984 = vadd.xlane.f32.xlu0 %v983
      %v985 = vpop.xlane.xlu0 %984
      %v986 = vsel %vm633, %v969, 0.0
      %987 = vadd.xlane.f32.xlu0 %v986
      %v988 = vpop.xlane.xlu0 %987
      %v989 = vsel %vm633, %v971, 0.0
      %990 = vadd.xlane.f32.xlu0 %v989
      %v991 = vpop.xlane.xlu0 %990
      %v992 = vsel %vm633, %v973, 0.0
      %993 = vadd.xlane.f32.xlu0 %v992
      %v994 = vpop.xlane.xlu0 %993
      %v995 = vsel %vm633, %v975, 0.0
      %996 = vadd.xlane.f32.xlu0 %v995
      %v997 = vpop.xlane.xlu0 %996
      %v998 = vsel %vm633, %v977, 0.0
      %999 = vadd.xlane.f32.xlu0 %v998
      %v1000 = vpop.xlane.xlu0 %999
      %v1001 = vsel %vm633, %v979, 0.0
      %1002 = vadd.xlane.f32.xlu0 %v1001
      %v1003 = vpop.xlane.xlu0 %1002
      %v1004 = vrcp.pop %v982
      %v1005 = vmul.f32 %v965, %v1004
      %v1006 = vrcp.pop %v985
      %v1007 = vmul.f32 %v967, %v1006
      %v1008 = vrcp.pop %v988
      %v1009 = vmul.f32 %v969, %v1008
      %v1010 = vrcp.pop %v991
      %v1011 = vmul.f32 %v971, %v1010
      %v1012 = vrcp.pop %v994
      %v1013 = vmul.f32 %v973, %v1012
      %v1014 = vrcp.pop %v997
      %v1015 = vmul.f32 %v975, %v1014
      %v1016 = vrcp.pop %v1000
      %v1017 = vmul.f32 %v977, %v1016
      %v1018 = vrcp.pop %v1003
      %v1019 = vmul.f32 %v979, %v1018
      %v1020 = vpack.c.bf16 %v1007, %v1005
      %v1021 = vpack.c.bf16 %v1011, %v1009
      %v1022 = vpack.c.bf16 %v1015, %v1013
      %v1023 = vpack.c.bf16 %v1019, %v1017
      %1024 = vrot.lane.b32.xlu0 %v519, 94
      %v1025 = vpop.permute.xlu0 %1024
      %1026 = vrot.lane.b32.xlu0 %v520, 94
      %v1027 = vpop.permute.xlu0 %1026
      %1028 = vrot.lane.b32.xlu0 %v521, 94
      %v1029 = vpop.permute.xlu0 %1028
      %1030 = vrot.lane.b32.xlu0 %v522, 94
      %v1031 = vpop.permute.xlu0 %1030
      %v1037 = vsel %vm633, %v1020, 0
      %v1040 = vsel %vm633, %v1021, 0
      %v1043 = vsel %vm633, %v1022, 0
      %v1046 = vsel %vm633, %v1023, 0
      %1048 = vmatprep.subr.bf16.mxu0 0
      %1049 = vmatpush1.bf16.msra.mxu0 0
      %1050 = vmatprep.subr.bf16.mxu0 0
      %1051 = vmatpush1.bf16.msra.mxu0 0
      %1052 = vmatprep.subr.bf16.mxu0 0
      %1053 = vmatpush1.bf16.msra.mxu0 0
      %1054 = vmatprep.subr.bf16.mxu0 0
      %1055 = vmatpush1.bf16.msra.mxu0 0
      %1056 = vmatprep.subr.bf16.mxu0 0
      %1057 = vmatpush1.bf16.msra.mxu0 %v1031
      %1058 = vmatprep.subr.bf16.mxu0 0
      %1059 = vmatpush1.bf16.msra.mxu0 %v1029
      %1060 = vmatprep.subr.bf16.mxu0 0
      %1061 = vmatpush1.bf16.msra.mxu0 %v1027
      %1062 = vmatprep.subr.bf16.mxu0 0
      %1063 = vmatpush1.bf16.msra.mxu0 %v1025
      %1064 = vmatprep.subr.bf16.mxu0 0
      %1065 = vmatpush2.bf16.msra.mxu0 0
      %1066 = vmatprep.subr.bf16.mxu0 0
      %1067 = vmatpush2.bf16.msra.mxu0 0
      %1068 = vmatprep.subr.bf16.mxu0 0
      %1069 = vmatpush2.bf16.msra.mxu0 0
      %1070 = vmatprep.subr.bf16.mxu0 0
      %1071 = vmatpush2.bf16.msra.mxu0 0
      %1072 = vmatprep.subr.bf16.mxu0 0
      %1073 = vmatpush2.bf16.msra.mxu0 0
      %1074 = vmatprep.subr.bf16.mxu0 0
      %1075 = vmatpush2.bf16.msra.mxu0 0
      %1076 = vmatprep.subr.bf16.mxu0 0
      %1077 = vmatpush2.bf16.msra.mxu0 0
      %1078 = vmatprep.subr.bf16.mxu0 0
      %1079 = vmatpush2.bf16.msra.mxu0 0
      %1080 = vmatprep.mubr.bf16.mxu0 0
      %1081 = vmatmul.mubr.bf16.gmra.mxu0 %v1037
      %v1082 = vpop.f32.mrf.mxu0
      %v1083 = vadd.f32 0.0, %v1082
      %v1084 = vpop.f32.mrf.mxu0
      %v1085 = vpop.f32.mrf.mxu0
      %v1086 = vadd.f32 0.0, %v1085
      %v1087 = vpop.f32.mrf.mxu0
      %1088 = vmatprep.mubr.bf16.mxu0 0
      %1089 = vmatmul.mubr.bf16.gmra.mxu0 %v1040
      %v1090 = vpop.f32.mrf.mxu0
      %v1091 = vadd.f32 0.0, %v1090
      %v1092 = vpop.f32.mrf.mxu0
      %v1093 = vpop.f32.mrf.mxu0
      %v1094 = vadd.f32 0.0, %v1093
      %v1095 = vpop.f32.mrf.mxu0
      %1096 = vmatprep.mubr.bf16.mxu0 0
      %1097 = vmatmul.mubr.bf16.gmra.mxu0 %v1043
      %v1098 = vpop.f32.mrf.mxu0
      %v1099 = vadd.f32 0.0, %v1098
      %v1100 = vpop.f32.mrf.mxu0
      %v1101 = vpop.f32.mrf.mxu0
      %v1102 = vadd.f32 0.0, %v1101
      %v1103 = vpop.f32.mrf.mxu0
      %1104 = vmatprep.mubr.bf16.mxu0 0
      %1105 = vmatmul.mubr.bf16.gmra.mxu0 %v1046
      %v1106 = vpop.f32.mrf.mxu0
      %v1107 = vadd.f32 0.0, %v1106
      %v1108 = vpop.f32.mrf.mxu0
      %v1109 = vpop.f32.mrf.mxu0
      %v1110 = vadd.f32 0.0, %v1109
      %v1111 = vpop.f32.mrf.mxu0
      %1112 = vdwg.mxu0
      %v1113 = vpack.c.bf16 %v1086, %v1083
      %v1114 = vpack.c.bf16 %v1094, %v1091
      %v1115 = vpack.c.bf16 %v1102, %v1099
      %v1116 = vpack.c.bf16 %v1110, %v1107
      %v1118 = vunpack.c.l.b16 %v517
      %v1119 = vpack.c.b16 %v1118, %v1118
      %v1120 = vrot.slane %v1119, 1
      %v1122 = vsel %vm535, %v1113, 0
      %v1125 = vsel %vm535, %v1114, 0
      %v1128 = vsel %vm535, %v1115, 0
      %v1131 = vsel %vm535, %v1116, 0
      %vm1133 = vcmask 1040384
      %v1135 = vsel %vm1133, %v1120, 0
      %1137 = vmatprep.subr.bf16.mxu0 0
      %1138 = vmatpush1.bf16.msra.mxu0 0
      %1139 = vmatprep.subr.bf16.mxu0 0
      %1140 = vmatpush1.bf16.msra.mxu0 0
      %1141 = vmatprep.subr.bf16.mxu0 0
      %1142 = vmatpush1.bf16.msra.mxu0 0
      %1143 = vmatprep.subr.bf16.mxu0 0
      %1144 = vmatpush1.bf16.msra.mxu0 0
      %1145 = vmatprep.subr.bf16.mxu0 0
      %1146 = vmatpush1.bf16.msra.mxu0 0
      %1147 = vmatprep.subr.bf16.mxu0 0
      %1148 = vmatpush1.bf16.msra.mxu0 0
      %1149 = vmatprep.subr.bf16.mxu0 0
      %1150 = vmatpush1.bf16.msra.mxu0 0
      %1151 = vmatprep.subr.bf16.mxu0 0
      %1152 = vmatpush1.bf16.msra.mxu0 %v1135
      %1153 = vmatprep.subr.bf16.mxu0 0
      %1154 = vmatpush2.bf16.msra.mxu0 0
      %1155 = vmatprep.subr.bf16.mxu0 0
      %1156 = vmatpush2.bf16.msra.mxu0 0
      %1157 = vmatprep.subr.bf16.mxu0 0
      %1158 = vmatpush2.bf16.msra.mxu0 0
      %1159 = vmatprep.subr.bf16.mxu0 0
      %1160 = vmatpush2.bf16.msra.mxu0 0
      %1161 = vmatprep.subr.bf16.mxu0 0
      %1162 = vmatpush2.bf16.msra.mxu0 0
      %1163 = vmatprep.subr.bf16.mxu0 0
      %1164 = vmatpush2.bf16.msra.mxu0 0
      %1165 = vmatprep.subr.bf16.mxu0 0
      %1166 = vmatpush2.bf16.msra.mxu0 0
      %1167 = vmatprep.subr.bf16.mxu0 0
      %1168 = vmatpush2.bf16.msra.mxu0 0
      %1169 = vmatprep.mubr.bf16.mxu0 0
      %1170 = vmatmul.mubr.bf16.gmra.mxu0 %v1122
      %v1171 = vpop.f32.mrf.mxu0
      %v1172 = vadd.f32 0.0, %v1171
      %v1173 = vpop.f32.mrf.mxu0
      %v1174 = vpop.f32.mrf.mxu0
      %v1175 = vadd.f32 0.0, %v1174
      %v1176 = vpop.f32.mrf.mxu0
      %1177 = vmatprep.mubr.bf16.mxu0 0
      %1178 = vmatmul.mubr.bf16.gmra.mxu0 %v1125
      %v1179 = vpop.f32.mrf.mxu0
      %v1180 = vadd.f32 0.0, %v1179
      %v1181 = vpop.f32.mrf.mxu0
      %v1182 = vpop.f32.mrf.mxu0
      %v1183 = vadd.f32 0.0, %v1182
      %v1184 = vpop.f32.mrf.mxu0
      %1185 = vmatprep.mubr.bf16.mxu0 0
      %1186 = vmatmul.mubr.bf16.gmra.mxu0 %v1128
      %v1187 = vpop.f32.mrf.mxu0
      %v1188 = vadd.f32 0.0, %v1187
      %v1189 = vpop.f32.mrf.mxu0
      %v1190 = vpop.f32.mrf.mxu0
      %v1191 = vadd.f32 0.0, %v1190
      %v1192 = vpop.f32.mrf.mxu0
      %1193 = vmatprep.mubr.bf16.mxu0 0
      %1194 = vmatmul.mubr.bf16.gmra.mxu0 %v1131
      %v1195 = vpop.f32.mrf.mxu0
      %v1196 = vadd.f32 0.0, %v1195
      %v1197 = vpop.f32.mrf.mxu0
      %v1198 = vpop.f32.mrf.mxu0
      %v1199 = vadd.f32 0.0, %v1198
      %v1200 = vpop.f32.mrf.mxu0
      %1201 = vdwg.mxu0
      %v1203 = vsel %vm535, %v815, 0
      %v1206 = vsel %vm535, %v816, 0
      %v1209 = vsel %vm535, %v817, 0
      %v1212 = vsel %vm535, %v818, 0
      %v1215 = vsel %vm1133, %v517, 0
      %1217 = vmatprep.subr.bf16.mxu0 0
      %1218 = vmatpush1.bf16.msra.mxu0 0
      %1219 = vmatprep.subr.bf16.mxu0 0
      %1220 = vmatpush1.bf16.msra.mxu0 0
      %1221 = vmatprep.subr.bf16.mxu0 0
      %1222 = vmatpush1.bf16.msra.mxu0 0
      %1223 = vmatprep.subr.bf16.mxu0 0
      %1224 = vmatpush1.bf16.msra.mxu0 0
      %1225 = vmatprep.subr.bf16.mxu0 0
      %1226 = vmatpush1.bf16.msra.mxu0 0
      %1227 = vmatprep.subr.bf16.mxu0 0
      %1228 = vmatpush1.bf16.msra.mxu0 0
      %1229 = vmatprep.subr.bf16.mxu0 0
      %1230 = vmatpush1.bf16.msra.mxu0 0
      %1231 = vmatprep.subr.bf16.mxu0 0
      %1232 = vmatpush1.bf16.msra.mxu0 %v1215
      %1233 = vmatprep.subr.bf16.mxu0 0
      %1234 = vmatpush2.bf16.msra.mxu0 0
      %1235 = vmatprep.subr.bf16.mxu0 0
      %1236 = vmatpush2.bf16.msra.mxu0 0
      %1237 = vmatprep.subr.bf16.mxu0 0
      %1238 = vmatpush2.bf16.msra.mxu0 0
      %1239 = vmatprep.subr.bf16.mxu0 0
      %1240 = vmatpush2.bf16.msra.mxu0 0
      %1241 = vmatprep.subr.bf16.mxu0 0
      %1242 = vmatpush2.bf16.msra.mxu0 0
      %1243 = vmatprep.subr.bf16.mxu0 0
      %1244 = vmatpush2.bf16.msra.mxu0 0
      %1245 = vmatprep.subr.bf16.mxu0 0
      %1246 = vmatpush2.bf16.msra.mxu0 0
      %1247 = vmatprep.subr.bf16.mxu0 0
      %1248 = vmatpush2.bf16.msra.mxu0 0
      %1249 = vmatprep.mubr.bf16.mxu0 0
      %1250 = vmatmul.mubr.bf16.gmra.mxu0 %v1203
      %v1251 = vpop.f32.mrf.mxu0
      %v1252 = vadd.f32 %v1172, %v1251
      %v1253 = vpop.f32.mrf.mxu0
      %v1254 = vpop.f32.mrf.mxu0
      %v1255 = vadd.f32 %v1175, %v1254
      %v1256 = vpop.f32.mrf.mxu0
      %1257 = vmatprep.mubr.bf16.mxu0 0
      %1258 = vmatmul.mubr.bf16.gmra.mxu0 %v1206
      %v1259 = vpop.f32.mrf.mxu0
      %v1260 = vadd.f32 %v1180, %v1259
      %v1261 = vpop.f32.mrf.mxu0
      %v1262 = vpop.f32.mrf.mxu0
      %v1263 = vadd.f32 %v1183, %v1262
      %v1264 = vpop.f32.mrf.mxu0
      %1265 = vmatprep.mubr.bf16.mxu0 0
      %1266 = vmatmul.mubr.bf16.gmra.mxu0 %v1209
      %v1267 = vpop.f32.mrf.mxu0
      %v1268 = vadd.f32 %v1188, %v1267
      %v1269 = vpop.f32.mrf.mxu0
      %v1270 = vpop.f32.mrf.mxu0
      %v1271 = vadd.f32 %v1191, %v1270
      %v1272 = vpop.f32.mrf.mxu0
      %1273 = vmatprep.mubr.bf16.mxu0 0
      %1274 = vmatmul.mubr.bf16.gmra.mxu0 %v1212
      %v1275 = vpop.f32.mrf.mxu0
      %v1276 = vadd.f32 %v1196, %v1275
      %v1277 = vpop.f32.mrf.mxu0
      %v1278 = vpop.f32.mrf.mxu0
      %v1279 = vadd.f32 %v1199, %v1278
      %v1280 = vpop.f32.mrf.mxu0
      %1281 = vdwg.mxu0
      %1282 = vrot.lane.b32.xlu0 %v519, 124
      %v1283 = vpop.permute.xlu0 %1282
      %1284 = vrot.lane.b32.xlu0 %v520, 124
      %v1285 = vpop.permute.xlu0 %1284
      %1286 = vrot.lane.b32.xlu0 %v521, 124
      %v1287 = vpop.permute.xlu0 %1286
      %1288 = vrot.lane.b32.xlu0 %v522, 124
      %v1289 = vpop.permute.xlu0 %1288
      %1290 = vrot.lane.b32.xlu0 %v519, 108
      %v1291 = vpop.permute.xlu0 %1290
      %1292 = vrot.lane.b32.xlu0 %v520, 108
      %v1293 = vpop.permute.xlu0 %1292
      %1294 = vrot.lane.b32.xlu0 %v521, 108
      %v1295 = vpop.permute.xlu0 %1294
      %1296 = vrot.lane.b32.xlu0 %v522, 108
      %v1297 = vpop.permute.xlu0 %1296
      %v1299 = vsel %vm535, %v1283, 0
      %v1302 = vsel %vm535, %v1285, 0
      %v1305 = vsel %vm535, %v1287, 0
      %v1308 = vsel %vm535, %v1289, 0
      %v1311 = vsel %vm535, %v1291, 0
      %v1314 = vsel %vm535, %v1293, 0
      %v1317 = vsel %vm535, %v1295, 0
      %v1320 = vsel %vm535, %v1297, 0
      %1322 = vmatprep.subr.bf16.mxu0 0
      %1323 = vmatpush1.bf16.xpose.msra.mxu0 0
      %1324 = vmatprep.subr.bf16.mxu0 0
      %1325 = vmatpush1.bf16.xpose.msra.mxu0 0
      %1326 = vmatprep.subr.bf16.mxu0 0
      %1327 = vmatpush1.bf16.xpose.msra.mxu0 0
      %1328 = vmatprep.subr.bf16.mxu0 0
      %1329 = vmatpush1.bf16.xpose.msra.mxu0 0
      %1330 = vmatprep.subr.bf16.mxu0 0
      %1331 = vmatpush1.bf16.xpose.msra.mxu0 %v1320
      %1332 = vmatprep.subr.bf16.mxu0 0
      %1333 = vmatpush1.bf16.xpose.msra.mxu0 %v1317
      %1334 = vmatprep.subr.bf16.mxu0 0
      %1335 = vmatpush1.bf16.xpose.msra.mxu0 %v1314
      %1336 = vmatprep.subr.bf16.mxu0 0
      %1337 = vmatpush1.bf16.xpose.msra.mxu0 %v1311
      %1338 = vmatprep.subr.bf16.mxu0 0
      %1339 = vmatpush2.bf16.xpose.msra.mxu0 0
      %1340 = vmatprep.subr.bf16.mxu0 0
      %1341 = vmatpush2.bf16.xpose.msra.mxu0 0
      %1342 = vmatprep.subr.bf16.mxu0 0
      %1343 = vmatpush2.bf16.xpose.msra.mxu0 0
      %1344 = vmatprep.subr.bf16.mxu0 0
      %1345 = vmatpush2.bf16.xpose.msra.mxu0 0
      %1346 = vmatprep.subr.bf16.mxu0 0
      %1347 = vmatpush2.bf16.xpose.msra.mxu0 0
      %1348 = vmatprep.subr.bf16.mxu0 0
      %1349 = vmatpush2.bf16.xpose.msra.mxu0 0
      %1350 = vmatprep.subr.bf16.mxu0 0
      %1351 = vmatpush2.bf16.xpose.msra.mxu0 0
      %1352 = vmatprep.subr.bf16.mxu0 0
      %1353 = vmatpush2.bf16.xpose.msra.mxu0 0
      %1354 = vmatprep.mubr.bf16.mxu0 0
      %1355 = vmatmul.mubr.bf16.gmra.mxu0 %v1299
      %v1356 = vpop.f32.mrf.mxu0
      %v1357 = vadd.f32 0.0, %v1356
      %v1358 = vpop.f32.mrf.mxu0
      %v1359 = vpop.f32.mrf.mxu0
      %v1360 = vadd.f32 0.0, %v1359
      %v1361 = vpop.f32.mrf.mxu0
      %1362 = vmatprep.mubr.bf16.mxu0 0
      %1363 = vmatmul.mubr.bf16.gmra.mxu0 %v1302
      %v1364 = vpop.f32.mrf.mxu0
      %v1365 = vadd.f32 0.0, %v1364
      %v1366 = vpop.f32.mrf.mxu0
      %v1367 = vpop.f32.mrf.mxu0
      %v1368 = vadd.f32 0.0, %v1367
      %v1369 = vpop.f32.mrf.mxu0
      %1370 = vmatprep.mubr.bf16.mxu0 0
      %1371 = vmatmul.mubr.bf16.gmra.mxu0 %v1305
      %v1372 = vpop.f32.mrf.mxu0
      %v1373 = vadd.f32 0.0, %v1372
      %v1374 = vpop.f32.mrf.mxu0
      %v1375 = vpop.f32.mrf.mxu0
      %v1376 = vadd.f32 0.0, %v1375
      %v1377 = vpop.f32.mrf.mxu0
      %1378 = vmatprep.mubr.bf16.mxu0 0
      %1379 = vmatmul.mubr.bf16.gmra.mxu0 %v1308
      %v1380 = vpop.f32.mrf.mxu0
      %v1381 = vadd.f32 0.0, %v1380
      %v1382 = vpop.f32.mrf.mxu0
      %v1383 = vpop.f32.mrf.mxu0
      %v1384 = vadd.f32 0.0, %v1383
      %v1385 = vpop.f32.mrf.mxu0
      %1386 = vdwg.mxu0
      %v1387 = vmul.f32 %v1357, 0.70710677
      %v1388 = vmul.f32 %v1360, 0.70710677
      %v1389 = vmul.f32 %v1365, 0.70710677
      %v1390 = vmul.f32 %v1368, 0.70710677
      %v1391 = vmul.f32 %v1373, 0.70710677
      %v1392 = vmul.f32 %v1376, 0.70710677
      %v1393 = vmul.f32 %v1381, 0.70710677
      %v1394 = vmul.f32 %v1384, 0.70710677
      %v1395 = vsel %vm633, %v1387, -inf
      %1396 = vmax.xlane.f32.xlu0 %v1395
      %v1397 = vpop.xlane.xlu0 %1396
      %v1398 = vsel %vm633, %v1388, -inf
      %1399 = vmax.xlane.f32.xlu0 %v1398
      %v1400 = vpop.xlane.xlu0 %1399
      %v1401 = vsel %vm633, %v1389, -inf
      %1402 = vmax.xlane.f32.xlu0 %v1401
      %v1403 = vpop.xlane.xlu0 %1402
      %v1404 = vsel %vm633, %v1390, -inf
      %1405 = vmax.xlane.f32.xlu0 %v1404
      %v1406 = vpop.xlane.xlu0 %1405
      %v1407 = vsel %vm633, %v1391, -inf
      %1408 = vmax.xlane.f32.xlu0 %v1407
      %v1409 = vpop.xlane.xlu0 %1408
      %v1410 = vsel %vm633, %v1392, -inf
      %1411 = vmax.xlane.f32.xlu0 %v1410
      %v1412 = vpop.xlane.xlu0 %1411
      %v1413 = vsel %vm633, %v1393, -inf
      %1414 = vmax.xlane.f32.xlu0 %v1413
      %v1415 = vpop.xlane.xlu0 %1414
      %v1416 = vsel %vm633, %v1394, -inf
      %1417 = vmax.xlane.f32.xlu0 %v1416
      %v1418 = vpop.xlane.xlu0 %1417
      %v1419 = vsub.f32 %v1387, %v1397
      %v1420 = vsub.f32 %v1388, %v1400
      %v1421 = vsub.f32 %v1389, %v1403
      %v1422 = vsub.f32 %v1390, %v1406
      %v1423 = vsub.f32 %v1391, %v1409
      %v1424 = vsub.f32 %v1392, %v1412
      %v1425 = vsub.f32 %v1393, %v1415
      %v1426 = vsub.f32 %v1394, %v1418
      %v1427 = vmul.f32 %v1419, 1.442695
      %v1428 = vpow.pop %v1427
      %v1429 = vmul.f32 %v1420, 1.442695
      %v1430 = vpow.pop %v1429
      %v1431 = vmul.f32 %v1421, 1.442695
      %v1432 = vpow.pop %v1431
      %v1433 = vmul.f32 %v1422, 1.442695
      %v1434 = vpow.pop %v1433
      %v1435 = vmul.f32 %v1423, 1.442695
      %v1436 = vpow.pop %v1435
      %v1437 = vmul.f32 %v1424, 1.442695
      %v1438 = vpow.pop %v1437
      %v1439 = vmul.f32 %v1425, 1.442695
      %v1440 = vpow.pop %v1439
      %v1441 = vmul.f32 %v1426, 1.442695
      %v1442 = vpow.pop %v1441
      %v1443 = vsel %vm633, %v1428, 0.0
      %1444 = vadd.xlane.f32.xlu0 %v1443
      %v1445 = vpop.xlane.xlu0 %1444
      %v1446 = vsel %vm633, %v1430, 0.0
      %1447 = vadd.xlane.f32.xlu0 %v1446
      %v1448 = vpop.xlane.xlu0 %1447
      %v1449 = vsel %vm633, %v1432, 0.0
      %1450 = vadd.xlane.f32.xlu0 %v1449
      %v1451 = vpop.xlane.xlu0 %1450
      %v1452 = vsel %vm633, %v1434, 0.0
      %1453 = vadd.xlane.f32.xlu0 %v1452
      %v1454 = vpop.xlane.xlu0 %1453
      %v1455 = vsel %vm633, %v1436, 0.0
      %1456 = vadd.xlane.f32.xlu0 %v1455
      %v1457 = vpop.xlane.xlu0 %1456
      %v1458 = vsel %vm633, %v1438, 0.0
      %1459 = vadd.xlane.f32.xlu0 %v1458
      %v1460 = vpop.xlane.xlu0 %1459
      %v1461 = vsel %vm633, %v1440, 0.0
      %1462 = vadd.xlane.f32.xlu0 %v1461
      %v1463 = vpop.xlane.xlu0 %1462
      %v1464 = vsel %vm633, %v1442, 0.0
      %1465 = vadd.xlane.f32.xlu0 %v1464
      %v1466 = vpop.xlane.xlu0 %1465
      %v1467 = vrcp.pop %v1445
      %v1468 = vmul.f32 %v1428, %v1467
      %v1469 = vrcp.pop %v1448
      %v1470 = vmul.f32 %v1430, %v1469
      %v1471 = vrcp.pop %v1451
      %v1472 = vmul.f32 %v1432, %v1471
      %v1473 = vrcp.pop %v1454
      %v1474 = vmul.f32 %v1434, %v1473
      %v1475 = vrcp.pop %v1457
      %v1476 = vmul.f32 %v1436, %v1475
      %v1477 = vrcp.pop %v1460
      %v1478 = vmul.f32 %v1438, %v1477
      %v1479 = vrcp.pop %v1463
      %v1480 = vmul.f32 %v1440, %v1479
      %v1481 = vrcp.pop %v1466
      %v1482 = vmul.f32 %v1442, %v1481
      %v1483 = vpack.c.bf16 %v1470, %v1468
      %v1484 = vpack.c.bf16 %v1474, %v1472
      %v1485 = vpack.c.bf16 %v1478, %v1476
      %v1486 = vpack.c.bf16 %v1482, %v1480
      %1487 = vrot.lane.b32.xlu0 %v519, 92
      %v1488 = vpop.permute.xlu0 %1487
      %1489 = vrot.lane.b32.xlu0 %v520, 92
      %v1490 = vpop.permute.xlu0 %1489
      %1491 = vrot.lane.b32.xlu0 %v521, 92
      %v1492 = vpop.permute.xlu0 %1491
      %1493 = vrot.lane.b32.xlu0 %v522, 92
      %v1494 = vpop.permute.xlu0 %1493
      %v1500 = vsel %vm633, %v1483, 0
      %v1503 = vsel %vm633, %v1484, 0
      %v1506 = vsel %vm633, %v1485, 0
      %v1509 = vsel %vm633, %v1486, 0
      %1511 = vmatprep.subr.bf16.mxu0 0
      %1512 = vmatpush1.bf16.msra.mxu0 0
      %1513 = vmatprep.subr.bf16.mxu0 0
      %1514 = vmatpush1.bf16.msra.mxu0 0
      %1515 = vmatprep.subr.bf16.mxu0 0
      %1516 = vmatpush1.bf16.msra.mxu0 0
      %1517 = vmatprep.subr.bf16.mxu0 0
      %1518 = vmatpush1.bf16.msra.mxu0 0
      %1519 = vmatprep.subr.bf16.mxu0 0
      %1520 = vmatpush1.bf16.msra.mxu0 %v1494
      %1521 = vmatprep.subr.bf16.mxu0 0
      %1522 = vmatpush1.bf16.msra.mxu0 %v1492
      %1523 = vmatprep.subr.bf16.mxu0 0
      %1524 = vmatpush1.bf16.msra.mxu0 %v1490
      %1525 = vmatprep.subr.bf16.mxu0 0
      %1526 = vmatpush1.bf16.msra.mxu0 %v1488
      %1527 = vmatprep.subr.bf16.mxu0 0
      %1528 = vmatpush2.bf16.msra.mxu0 0
      %1529 = vmatprep.subr.bf16.mxu0 0
      %1530 = vmatpush2.bf16.msra.mxu0 0
      %1531 = vmatprep.subr.bf16.mxu0 0
      %1532 = vmatpush2.bf16.msra.mxu0 0
      %1533 = vmatprep.subr.bf16.mxu0 0
      %1534 = vmatpush2.bf16.msra.mxu0 0
      %1535 = vmatprep.subr.bf16.mxu0 0
      %1536 = vmatpush2.bf16.msra.mxu0 0
      %1537 = vmatprep.subr.bf16.mxu0 0
      %1538 = vmatpush2.bf16.msra.mxu0 0
      %1539 = vmatprep.subr.bf16.mxu0 0
      %1540 = vmatpush2.bf16.msra.mxu0 0
      %1541 = vmatprep.subr.bf16.mxu0 0
      %1542 = vmatpush2.bf16.msra.mxu0 0
      %1543 = vmatprep.mubr.bf16.mxu0 0
      %1544 = vmatmul.mubr.bf16.gmra.mxu0 %v1500
      %v1545 = vpop.f32.mrf.mxu0
      %v1546 = vadd.f32 0.0, %v1545
      %v1547 = vpop.f32.mrf.mxu0
      %v1548 = vpop.f32.mrf.mxu0
      %v1549 = vadd.f32 0.0, %v1548
      %v1550 = vpop.f32.mrf.mxu0
      %1551 = vmatprep.mubr.bf16.mxu0 0
      %1552 = vmatmul.mubr.bf16.gmra.mxu0 %v1503
      %v1553 = vpop.f32.mrf.mxu0
      %v1554 = vadd.f32 0.0, %v1553
      %v1555 = vpop.f32.mrf.mxu0
      %v1556 = vpop.f32.mrf.mxu0
      %v1557 = vadd.f32 0.0, %v1556
      %v1558 = vpop.f32.mrf.mxu0
      %1559 = vmatprep.mubr.bf16.mxu0 0
      %1560 = vmatmul.mubr.bf16.gmra.mxu0 %v1506
      %v1561 = vpop.f32.mrf.mxu0
      %v1562 = vadd.f32 0.0, %v1561
      %v1563 = vpop.f32.mrf.mxu0
      %v1564 = vpop.f32.mrf.mxu0
      %v1565 = vadd.f32 0.0, %v1564
      %v1566 = vpop.f32.mrf.mxu0
      %1567 = vmatprep.mubr.bf16.mxu0 0
      %1568 = vmatmul.mubr.bf16.gmra.mxu0 %v1509
      %v1569 = vpop.f32.mrf.mxu0
      %v1570 = vadd.f32 0.0, %v1569
      %v1571 = vpop.f32.mrf.mxu0
      %v1572 = vpop.f32.mrf.mxu0
      %v1573 = vadd.f32 0.0, %v1572
      %v1574 = vpop.f32.mrf.mxu0
      %1575 = vdwg.mxu0
      %v1576 = vpack.c.bf16 %v1549, %v1546
      %v1577 = vpack.c.bf16 %v1557, %v1554
      %v1578 = vpack.c.bf16 %v1565, %v1562
      %v1579 = vpack.c.bf16 %v1573, %v1570
      %v1580 = vrot.slane %v1119, 2
      %v1582 = vsel %vm535, %v1576, 0
      %v1585 = vsel %vm535, %v1577, 0
      %v1588 = vsel %vm535, %v1578, 0
      %v1591 = vsel %vm535, %v1579, 0
      %v1594 = vsel %vm1133, %v1580, 0
      %1596 = vmatprep.subr.bf16.mxu0 0
      %1597 = vmatpush1.bf16.msra.mxu0 0
      %1598 = vmatprep.subr.bf16.mxu0 0
      %1599 = vmatpush1.bf16.msra.mxu0 0
      %1600 = vmatprep.subr.bf16.mxu0 0
      %1601 = vmatpush1.bf16.msra.mxu0 0
      %1602 = vmatprep.subr.bf16.mxu0 0
      %1603 = vmatpush1.bf16.msra.mxu0 0
      %1604 = vmatprep.subr.bf16.mxu0 0
      %1605 = vmatpush1.bf16.msra.mxu0 0
      %1606 = vmatprep.subr.bf16.mxu0 0
      %1607 = vmatpush1.bf16.msra.mxu0 0
      %1608 = vmatprep.subr.bf16.mxu0 0
      %1609 = vmatpush1.bf16.msra.mxu0 0
      %1610 = vmatprep.subr.bf16.mxu0 0
      %1611 = vmatpush1.bf16.msra.mxu0 %v1594
      %1612 = vmatprep.subr.bf16.mxu0 0
      %1613 = vmatpush2.bf16.msra.mxu0 0
      %1614 = vmatprep.subr.bf16.mxu0 0
      %1615 = vmatpush2.bf16.msra.mxu0 0
      %1616 = vmatprep.subr.bf16.mxu0 0
      %1617 = vmatpush2.bf16.msra.mxu0 0
      %1618 = vmatprep.subr.bf16.mxu0 0
      %1619 = vmatpush2.bf16.msra.mxu0 0
      %1620 = vmatprep.subr.bf16.mxu0 0
      %1621 = vmatpush2.bf16.msra.mxu0 0
      %1622 = vmatprep.subr.bf16.mxu0 0
      %1623 = vmatpush2.bf16.msra.mxu0 0
      %1624 = vmatprep.subr.bf16.mxu0 0
      %1625 = vmatpush2.bf16.msra.mxu0 0
      %1626 = vmatprep.subr.bf16.mxu0 0
      %1627 = vmatpush2.bf16.msra.mxu0 0
      %1628 = vmatprep.mubr.bf16.mxu0 0
      %1629 = vmatmul.mubr.bf16.gmra.mxu0 %v1582
      %v1630 = vpop.f32.mrf.mxu0
      %v1631 = vadd.f32 0.0, %v1630
      %v1632 = vpop.f32.mrf.mxu0
      %v1633 = vpop.f32.mrf.mxu0
      %v1634 = vadd.f32 0.0, %v1633
      %v1635 = vpop.f32.mrf.mxu0
      %1636 = vmatprep.mubr.bf16.mxu0 0
      %1637 = vmatmul.mubr.bf16.gmra.mxu0 %v1585
      %v1638 = vpop.f32.mrf.mxu0
      %v1639 = vadd.f32 0.0, %v1638
      %v1640 = vpop.f32.mrf.mxu0
      %v1641 = vpop.f32.mrf.mxu0
      %v1642 = vadd.f32 0.0, %v1641
      %v1643 = vpop.f32.mrf.mxu0
      %1644 = vmatprep.mubr.bf16.mxu0 0
      %1645 = vmatmul.mubr.bf16.gmra.mxu0 %v1588
      %v1646 = vpop.f32.mrf.mxu0
      %v1647 = vadd.f32 0.0, %v1646
      %v1648 = vpop.f32.mrf.mxu0
      %v1649 = vpop.f32.mrf.mxu0
      %v1650 = vadd.f32 0.0, %v1649
      %v1651 = vpop.f32.mrf.mxu0
      %1652 = vmatprep.mubr.bf16.mxu0 0
      %1653 = vmatmul.mubr.bf16.gmra.mxu0 %v1591
      %v1654 = vpop.f32.mrf.mxu0
      %v1655 = vadd.f32 0.0, %v1654
      %v1656 = vpop.f32.mrf.mxu0
      %v1657 = vpop.f32.mrf.mxu0
      %v1658 = vadd.f32 0.0, %v1657
      %v1659 = vpop.f32.mrf.mxu0
      %1660 = vdwg.mxu0
      %v1661 = vadd.f32 %v1252, %v1631
      %v1662 = vadd.f32 %v1255, %v1634
      %v1663 = vadd.f32 %v1260, %v1639
      %v1664 = vadd.f32 %v1263, %v1642
      %v1665 = vadd.f32 %v1268, %v1647
      %v1666 = vadd.f32 %v1271, %v1650
      %v1667 = vadd.f32 %v1276, %v1655
      %v1668 = vadd.f32 %v1279, %v1658
      %1669 = vrot.lane.b32.xlu0 %v519, 122
      %v1670 = vpop.permute.xlu0 %1669
      %1671 = vrot.lane.b32.xlu0 %v520, 122
      %v1672 = vpop.permute.xlu0 %1671
      %1673 = vrot.lane.b32.xlu0 %v521, 122
      %v1674 = vpop.permute.xlu0 %1673
      %1675 = vrot.lane.b32.xlu0 %v522, 122
      %v1676 = vpop.permute.xlu0 %1675
      %1677 = vrot.lane.b32.xlu0 %v519, 106
      %v1678 = vpop.permute.xlu0 %1677
      %1679 = vrot.lane.b32.xlu0 %v520, 106
      %v1680 = vpop.permute.xlu0 %1679
      %1681 = vrot.lane.b32.xlu0 %v521, 106
      %v1682 = vpop.permute.xlu0 %1681
      %1683 = vrot.lane.b32.xlu0 %v522, 106
      %v1684 = vpop.permute.xlu0 %1683
      %v1686 = vsel %vm535, %v1670, 0
      %v1689 = vsel %vm535, %v1672, 0
      %v1692 = vsel %vm535, %v1674, 0
      %v1695 = vsel %vm535, %v1676, 0
      %v1698 = vsel %vm535, %v1678, 0
      %v1701 = vsel %vm535, %v1680, 0
      %v1704 = vsel %vm535, %v1682, 0
      %v1707 = vsel %vm535, %v1684, 0
      %1709 = vmatprep.subr.bf16.mxu0 0
      %1710 = vmatpush1.bf16.xpose.msra.mxu0 0
      %1711 = vmatprep.subr.bf16.mxu0 0
      %1712 = vmatpush1.bf16.xpose.msra.mxu0 0
      %1713 = vmatprep.subr.bf16.mxu0 0
      %1714 = vmatpush1.bf16.xpose.msra.mxu0 0
      %1715 = vmatprep.subr.bf16.mxu0 0
      %1716 = vmatpush1.bf16.xpose.msra.mxu0 0
      %1717 = vmatprep.subr.bf16.mxu0 0
      %1718 = vmatpush1.bf16.xpose.msra.mxu0 %v1707
      %1719 = vmatprep.subr.bf16.mxu0 0
      %1720 = vmatpush1.bf16.xpose.msra.mxu0 %v1704
      %1721 = vmatprep.subr.bf16.mxu0 0
      %1722 = vmatpush1.bf16.xpose.msra.mxu0 %v1701
      %1723 = vmatprep.subr.bf16.mxu0 0
      %1724 = vmatpush1.bf16.xpose.msra.mxu0 %v1698
      %1725 = vmatprep.subr.bf16.mxu0 0
      %1726 = vmatpush2.bf16.xpose.msra.mxu0 0
      %1727 = vmatprep.subr.bf16.mxu0 0
      %1728 = vmatpush2.bf16.xpose.msra.mxu0 0
      %1729 = vmatprep.subr.bf16.mxu0 0
      %1730 = vmatpush2.bf16.xpose.msra.mxu0 0
      %1731 = vmatprep.subr.bf16.mxu0 0
      %1732 = vmatpush2.bf16.xpose.msra.mxu0 0
      %1733 = vmatprep.subr.bf16.mxu0 0
      %1734 = vmatpush2.bf16.xpose.msra.mxu0 0
      %1735 = vmatprep.subr.bf16.mxu0 0
      %1736 = vmatpush2.bf16.xpose.msra.mxu0 0
      %1737 = vmatprep.subr.bf16.mxu0 0
      %1738 = vmatpush2.bf16.xpose.msra.mxu0 0
      %1739 = vmatprep.subr.bf16.mxu0 0
      %1740 = vmatpush2.bf16.xpose.msra.mxu0 0
      %1741 = vmatprep.mubr.bf16.mxu0 0
      %1742 = vmatmul.mubr.bf16.gmra.mxu0 %v1686
      %v1743 = vpop.f32.mrf.mxu0
      %v1744 = vadd.f32 0.0, %v1743
      %v1745 = vpop.f32.mrf.mxu0
      %v1746 = vpop.f32.mrf.mxu0
      %v1747 = vadd.f32 0.0, %v1746
      %v1748 = vpop.f32.mrf.mxu0
      %1749 = vmatprep.mubr.bf16.mxu0 0
      %1750 = vmatmul.mubr.bf16.gmra.mxu0 %v1689
      %v1751 = vpop.f32.mrf.mxu0
      %v1752 = vadd.f32 0.0, %v1751
      %v1753 = vpop.f32.mrf.mxu0
      %v1754 = vpop.f32.mrf.mxu0
      %v1755 = vadd.f32 0.0, %v1754
      %v1756 = vpop.f32.mrf.mxu0
      %1757 = vmatprep.mubr.bf16.mxu0 0
      %1758 = vmatmul.mubr.bf16.gmra.mxu0 %v1692
      %v1759 = vpop.f32.mrf.mxu0
      %v1760 = vadd.f32 0.0, %v1759
      %v1761 = vpop.f32.mrf.mxu0
      %v1762 = vpop.f32.mrf.mxu0
      %v1763 = vadd.f32 0.0, %v1762
      %v1764 = vpop.f32.mrf.mxu0
      %1765 = vmatprep.mubr.bf16.mxu0 0
      %1766 = vmatmul.mubr.bf16.gmra.mxu0 %v1695
      %v1767 = vpop.f32.mrf.mxu0
      %v1768 = vadd.f32 0.0, %v1767
      %v1769 = vpop.f32.mrf.mxu0
      %v1770 = vpop.f32.mrf.mxu0
      %v1771 = vadd.f32 0.0, %v1770
      %v1772 = vpop.f32.mrf.mxu0
      %1773 = vdwg.mxu0
      %v1774 = vmul.f32 %v1744, 0.70710677
      %v1775 = vmul.f32 %v1747, 0.70710677
      %v1776 = vmul.f32 %v1752, 0.70710677
      %v1777 = vmul.f32 %v1755, 0.70710677
      %v1778 = vmul.f32 %v1760, 0.70710677
      %v1779 = vmul.f32 %v1763, 0.70710677
      %v1780 = vmul.f32 %v1768, 0.70710677
      %v1781 = vmul.f32 %v1771, 0.70710677
      %v1782 = vsel %vm633, %v1774, -inf
      %1783 = vmax.xlane.f32.xlu0 %v1782
      %v1784 = vpop.xlane.xlu0 %1783
      %v1785 = vsel %vm633, %v1775, -inf
      %1786 = vmax.xlane.f32.xlu0 %v1785
      %v1787 = vpop.xlane.xlu0 %1786
      %v1788 = vsel %vm633, %v1776, -inf
      %1789 = vmax.xlane.f32.xlu0 %v1788
      %v1790 = vpop.xlane.xlu0 %1789
      %v1791 = vsel %vm633, %v1777, -inf
      %1792 = vmax.xlane.f32.xlu0 %v1791
      %v1793 = vpop.xlane.xlu0 %1792
      %v1794 = vsel %vm633, %v1778, -inf
      %1795 = vmax.xlane.f32.xlu0 %v1794
      %v1796 = vpop.xlane.xlu0 %1795
      %v1797 = vsel %vm633, %v1779, -inf
      %1798 = vmax.xlane.f32.xlu0 %v1797
      %v1799 = vpop.xlane.xlu0 %1798
      %v1800 = vsel %vm633, %v1780, -inf
      %1801 = vmax.xlane.f32.xlu0 %v1800
      %v1802 = vpop.xlane.xlu0 %1801
      %v1803 = vsel %vm633, %v1781, -inf
      %1804 = vmax.xlane.f32.xlu0 %v1803
      %v1805 = vpop.xlane.xlu0 %1804
      %v1806 = vsub.f32 %v1774, %v1784
      %v1807 = vsub.f32 %v1775, %v1787
      %v1808 = vsub.f32 %v1776, %v1790
      %v1809 = vsub.f32 %v1777, %v1793
      %v1810 = vsub.f32 %v1778, %v1796
      %v1811 = vsub.f32 %v1779, %v1799
      %v1812 = vsub.f32 %v1780, %v1802
      %v1813 = vsub.f32 %v1781, %v1805
      %v1814 = vmul.f32 %v1806, 1.442695
      %v1815 = vpow.pop %v1814
      %v1816 = vmul.f32 %v1807, 1.442695
      %v1817 = vpow.pop %v1816
      %v1818 = vmul.f32 %v1808, 1.442695
      %v1819 = vpow.pop %v1818
      %v1820 = vmul.f32 %v1809, 1.442695
      %v1821 = vpow.pop %v1820
      %v1822 = vmul.f32 %v1810, 1.442695
      %v1823 = vpow.pop %v1822
      %v1824 = vmul.f32 %v1811, 1.442695
      %v1825 = vpow.pop %v1824
      %v1826 = vmul.f32 %v1812, 1.442695
      %v1827 = vpow.pop %v1826
      %v1828 = vmul.f32 %v1813, 1.442695
      %v1829 = vpow.pop %v1828
      %v1830 = vsel %vm633, %v1815, 0.0
      %1831 = vadd.xlane.f32.xlu0 %v1830
      %v1832 = vpop.xlane.xlu0 %1831
      %v1833 = vsel %vm633, %v1817, 0.0
      %1834 = vadd.xlane.f32.xlu0 %v1833
      %v1835 = vpop.xlane.xlu0 %1834
      %v1836 = vsel %vm633, %v1819, 0.0
      %1837 = vadd.xlane.f32.xlu0 %v1836
      %v1838 = vpop.xlane.xlu0 %1837
      %v1839 = vsel %vm633, %v1821, 0.0
      %1840 = vadd.xlane.f32.xlu0 %v1839
      %v1841 = vpop.xlane.xlu0 %1840
      %v1842 = vsel %vm633, %v1823, 0.0
      %1843 = vadd.xlane.f32.xlu0 %v1842
      %v1844 = vpop.xlane.xlu0 %1843
      %v1845 = vsel %vm633, %v1825, 0.0
      %1846 = vadd.xlane.f32.xlu0 %v1845
      %v1847 = vpop.xlane.xlu0 %1846
      %v1848 = vsel %vm633, %v1827, 0.0
      %1849 = vadd.xlane.f32.xlu0 %v1848
      %v1850 = vpop.xlane.xlu0 %1849
      %v1851 = vsel %vm633, %v1829, 0.0
      %1852 = vadd.xlane.f32.xlu0 %v1851
      %v1853 = vpop.xlane.xlu0 %1852
      %v1854 = vrcp.pop %v1832
      %v1855 = vmul.f32 %v1815, %v1854
      %v1856 = vrcp.pop %v1835
      %v1857 = vmul.f32 %v1817, %v1856
      %v1858 = vrcp.pop %v1838
      %v1859 = vmul.f32 %v1819, %v1858
      %v1860 = vrcp.pop %v1841
      %v1861 = vmul.f32 %v1821, %v1860
      %v1862 = vrcp.pop %v1844
      %v1863 = vmul.f32 %v1823, %v1862
      %v1864 = vrcp.pop %v1847
      %v1865 = vmul.f32 %v1825, %v1864
      %v1866 = vrcp.pop %v1850
      %v1867 = vmul.f32 %v1827, %v1866
      %v1868 = vrcp.pop %v1853
      %v1869 = vmul.f32 %v1829, %v1868
      %v1870 = vpack.c.bf16 %v1857, %v1855
      %v1871 = vpack.c.bf16 %v1861, %v1859
      %v1872 = vpack.c.bf16 %v1865, %v1863
      %v1873 = vpack.c.bf16 %v1869, %v1867
      %1874 = vrot.lane.b32.xlu0 %v519, 90
      %v1875 = vpop.permute.xlu0 %1874
      %1876 = vrot.lane.b32.xlu0 %v520, 90
      %v1877 = vpop.permute.xlu0 %1876
      %1878 = vrot.lane.b32.xlu0 %v521, 90
      %v1879 = vpop.permute.xlu0 %1878
      %1880 = vrot.lane.b32.xlu0 %v522, 90
      %v1881 = vpop.permute.xlu0 %1880
      %v1887 = vsel %vm633, %v1870, 0
      %v1890 = vsel %vm633, %v1871, 0
      %v1893 = vsel %vm633, %v1872, 0
      %v1896 = vsel %vm633, %v1873, 0
      %1898 = vmatprep.subr.bf16.mxu0 0
      %1899 = vmatpush1.bf16.msra.mxu0 0
      %1900 = vmatprep.subr.bf16.mxu0 0
      %1901 = vmatpush1.bf16.msra.mxu0 0
      %1902 = vmatprep.subr.bf16.mxu0 0
      %1903 = vmatpush1.bf16.msra.mxu0 0
      %1904 = vmatprep.subr.bf16.mxu0 0
      %1905 = vmatpush1.bf16.msra.mxu0 0
      %1906 = vmatprep.subr.bf16.mxu0 0
      %1907 = vmatpush1.bf16.msra.mxu0 %v1881
      %1908 = vmatprep.subr.bf16.mxu0 0
      %1909 = vmatpush1.bf16.msra.mxu0 %v1879
      %1910 = vmatprep.subr.bf16.mxu0 0
      %1911 = vmatpush1.bf16.msra.mxu0 %v1877
      %1912 = vmatprep.subr.bf16.mxu0 0
      %1913 = vmatpush1.bf16.msra.mxu0 %v1875
      %1914 = vmatprep.subr.bf16.mxu0 0
      %1915 = vmatpush2.bf16.msra.mxu0 0
      %1916 = vmatprep.subr.bf16.mxu0 0
      %1917 = vmatpush2.bf16.msra.mxu0 0
      %1918 = vmatprep.subr.bf16.mxu0 0
      %1919 = vmatpush2.bf16.msra.mxu0 0
      %1920 = vmatprep.subr.bf16.mxu0 0
      %1921 = vmatpush2.bf16.msra.mxu0 0
      %1922 = vmatprep.subr.bf16.mxu0 0
      %1923 = vmatpush2.bf16.msra.mxu0 0
      %1924 = vmatprep.subr.bf16.mxu0 0
      %1925 = vmatpush2.bf16.msra.mxu0 0
      %1926 = vmatprep.subr.bf16.mxu0 0
      %1927 = vmatpush2.bf16.msra.mxu0 0
      %1928 = vmatprep.subr.bf16.mxu0 0
      %1929 = vmatpush2.bf16.msra.mxu0 0
      %1930 = vmatprep.mubr.bf16.mxu0 0
      %1931 = vmatmul.mubr.bf16.gmra.mxu0 %v1887
      %v1932 = vpop.f32.mrf.mxu0
      %v1933 = vadd.f32 0.0, %v1932
      %v1934 = vpop.f32.mrf.mxu0
      %v1935 = vpop.f32.mrf.mxu0
      %v1936 = vadd.f32 0.0, %v1935
      %v1937 = vpop.f32.mrf.mxu0
      %1938 = vmatprep.mubr.bf16.mxu0 0
      %1939 = vmatmul.mubr.bf16.gmra.mxu0 %v1890
      %v1940 = vpop.f32.mrf.mxu0
      %v1941 = vadd.f32 0.0, %v1940
      %v1942 = vpop.f32.mrf.mxu0
      %v1943 = vpop.f32.mrf.mxu0
      %v1944 = vadd.f32 0.0, %v1943
      %v1945 = vpop.f32.mrf.mxu0
      %1946 = vmatprep.mubr.bf16.mxu0 0
      %1947 = vmatmul.mubr.bf16.gmra.mxu0 %v1893
      %v1948 = vpop.f32.mrf.mxu0
      %v1949 = vadd.f32 0.0, %v1948
      %v1950 = vpop.f32.mrf.mxu0
      %v1951 = vpop.f32.mrf.mxu0
      %v1952 = vadd.f32 0.0, %v1951
      %v1953 = vpop.f32.mrf.mxu0
      %1954 = vmatprep.mubr.bf16.mxu0 0
      %1955 = vmatmul.mubr.bf16.gmra.mxu0 %v1896
      %v1956 = vpop.f32.mrf.mxu0
      %v1957 = vadd.f32 0.0, %v1956
      %v1958 = vpop.f32.mrf.mxu0
      %v1959 = vpop.f32.mrf.mxu0
      %v1960 = vadd.f32 0.0, %v1959
      %v1961 = vpop.f32.mrf.mxu0
      %1962 = vdwg.mxu0
      %v1963 = vpack.c.bf16 %v1936, %v1933
      %v1964 = vpack.c.bf16 %v1944, %v1941
      %v1965 = vpack.c.bf16 %v1952, %v1949
      %v1966 = vpack.c.bf16 %v1960, %v1957
      %v1967 = vrot.slane %v1119, 3
      %v1969 = vsel %vm535, %v1963, 0
      %v1972 = vsel %vm535, %v1964, 0
      %v1975 = vsel %vm535, %v1965, 0
      %v1978 = vsel %vm535, %v1966, 0
      %v1981 = vsel %vm1133, %v1967, 0
      %1983 = vmatprep.subr.bf16.mxu0 0
      %1984 = vmatpush1.bf16.msra.mxu0 0
      %1985 = vmatprep.subr.bf16.mxu0 0
      %1986 = vmatpush1.bf16.msra.mxu0 0
      %1987 = vmatprep.subr.bf16.mxu0 0
      %1988 = vmatpush1.bf16.msra.mxu0 0
      %1989 = vmatprep.subr.bf16.mxu0 0
      %1990 = vmatpush1.bf16.msra.mxu0 0
      %1991 = vmatprep.subr.bf16.mxu0 0
      %1992 = vmatpush1.bf16.msra.mxu0 0
      %1993 = vmatprep.subr.bf16.mxu0 0
      %1994 = vmatpush1.bf16.msra.mxu0 0
      %1995 = vmatprep.subr.bf16.mxu0 0
      %1996 = vmatpush1.bf16.msra.mxu0 0
      %1997 = vmatprep.subr.bf16.mxu0 0
      %1998 = vmatpush1.bf16.msra.mxu0 %v1981
      %1999 = vmatprep.subr.bf16.mxu0 0
      %2000 = vmatpush2.bf16.msra.mxu0 0
      %2001 = vmatprep.subr.bf16.mxu0 0
      %2002 = vmatpush2.bf16.msra.mxu0 0
      %2003 = vmatprep.subr.bf16.mxu0 0
      %2004 = vmatpush2.bf16.msra.mxu0 0
      %2005 = vmatprep.subr.bf16.mxu0 0
      %2006 = vmatpush2.bf16.msra.mxu0 0
      %2007 = vmatprep.subr.bf16.mxu0 0
      %2008 = vmatpush2.bf16.msra.mxu0 0
      %2009 = vmatprep.subr.bf16.mxu0 0
      %2010 = vmatpush2.bf16.msra.mxu0 0
      %2011 = vmatprep.subr.bf16.mxu0 0
      %2012 = vmatpush2.bf16.msra.mxu0 0
      %2013 = vmatprep.subr.bf16.mxu0 0
      %2014 = vmatpush2.bf16.msra.mxu0 0
      %2015 = vmatprep.mubr.bf16.mxu0 0
      %2016 = vmatmul.mubr.bf16.gmra.mxu0 %v1969
      %v2017 = vpop.f32.mrf.mxu0
      %v2018 = vadd.f32 0.0, %v2017
      %v2019 = vpop.f32.mrf.mxu0
      %v2020 = vpop.f32.mrf.mxu0
      %v2021 = vadd.f32 0.0, %v2020
      %v2022 = vpop.f32.mrf.mxu0
      %2023 = vmatprep.mubr.bf16.mxu0 0
      %2024 = vmatmul.mubr.bf16.gmra.mxu0 %v1972
      %v2025 = vpop.f32.mrf.mxu0
      %v2026 = vadd.f32 0.0, %v2025
      %v2027 = vpop.f32.mrf.mxu0
      %v2028 = vpop.f32.mrf.mxu0
      %v2029 = vadd.f32 0.0, %v2028
      %v2030 = vpop.f32.mrf.mxu0
      %2031 = vmatprep.mubr.bf16.mxu0 0
      %2032 = vmatmul.mubr.bf16.gmra.mxu0 %v1975
      %v2033 = vpop.f32.mrf.mxu0
      %v2034 = vadd.f32 0.0, %v2033
      %v2035 = vpop.f32.mrf.mxu0
      %v2036 = vpop.f32.mrf.mxu0
      %v2037 = vadd.f32 0.0, %v2036
      %v2038 = vpop.f32.mrf.mxu0
      %2039 = vmatprep.mubr.bf16.mxu0 0
      %2040 = vmatmul.mubr.bf16.gmra.mxu0 %v1978
      %v2041 = vpop.f32.mrf.mxu0
      %v2042 = vadd.f32 0.0, %v2041
      %v2043 = vpop.f32.mrf.mxu0
      %v2044 = vpop.f32.mrf.mxu0
      %v2045 = vadd.f32 0.0, %v2044
      %v2046 = vpop.f32.mrf.mxu0
      %2047 = vdwg.mxu0
      %v2048 = vadd.f32 %v1661, %v2018
      %v2049 = vadd.f32 %v1662, %v2021
      %v2050 = vadd.f32 %v1663, %v2026
      %v2051 = vadd.f32 %v1664, %v2029
      %v2052 = vadd.f32 %v1665, %v2034
      %v2053 = vadd.f32 %v1666, %v2037
      %v2054 = vadd.f32 %v1667, %v2042
      %v2055 = vadd.f32 %v1668, %v2045
      %2056 = vrot.lane.b32.xlu0 %v519, 120
      %v2057 = vpop.permute.xlu0 %2056
      %2058 = vrot.lane.b32.xlu0 %v520, 120
      %v2059 = vpop.permute.xlu0 %2058
      %2060 = vrot.lane.b32.xlu0 %v521, 120
      %v2061 = vpop.permute.xlu0 %2060
      %2062 = vrot.lane.b32.xlu0 %v522, 120
      %v2063 = vpop.permute.xlu0 %2062
      %2064 = vrot.lane.b32.xlu0 %v519, 104
      %v2065 = vpop.permute.xlu0 %2064
      %2066 = vrot.lane.b32.xlu0 %v520, 104
      %v2067 = vpop.permute.xlu0 %2066
      %2068 = vrot.lane.b32.xlu0 %v521, 104
      %v2069 = vpop.permute.xlu0 %2068
      %2070 = vrot.lane.b32.xlu0 %v522, 104
      %v2071 = vpop.permute.xlu0 %2070
      %v2073 = vsel %vm535, %v2057, 0
      %v2076 = vsel %vm535, %v2059, 0
      %v2079 = vsel %vm535, %v2061, 0
      %v2082 = vsel %vm535, %v2063, 0
      %v2085 = vsel %vm535, %v2065, 0
      %v2088 = vsel %vm535, %v2067, 0
      %v2091 = vsel %vm535, %v2069, 0
      %v2094 = vsel %vm535, %v2071, 0
      %2096 = vmatprep.subr.bf16.mxu0 0
      %2097 = vmatpush1.bf16.xpose.msra.mxu0 0
      %2098 = vmatprep.subr.bf16.mxu0 0
      %2099 = vmatpush1.bf16.xpose.msra.mxu0 0
      %2100 = vmatprep.subr.bf16.mxu0 0
      %2101 = vmatpush1.bf16.xpose.msra.mxu0 0
      %2102 = vmatprep.subr.bf16.mxu0 0
      %2103 = vmatpush1.bf16.xpose.msra.mxu0 0
      %2104 = vmatprep.subr.bf16.mxu0 0
      %2105 = vmatpush1.bf16.xpose.msra.mxu0 %v2094
      %2106 = vmatprep.subr.bf16.mxu0 0
      %2107 = vmatpush1.bf16.xpose.msra.mxu0 %v2091
      %2108 = vmatprep.subr.bf16.mxu0 0
      %2109 = vmatpush1.bf16.xpose.msra.mxu0 %v2088
      %2110 = vmatprep.subr.bf16.mxu0 0
      %2111 = vmatpush1.bf16.xpose.msra.mxu0 %v2085
      %2112 = vmatprep.subr.bf16.mxu0 0
      %2113 = vmatpush2.bf16.xpose.msra.mxu0 0
      %2114 = vmatprep.subr.bf16.mxu0 0
      %2115 = vmatpush2.bf16.xpose.msra.mxu0 0
      %2116 = vmatprep.subr.bf16.mxu0 0
      %2117 = vmatpush2.bf16.xpose.msra.mxu0 0
      %2118 = vmatprep.subr.bf16.mxu0 0
      %2119 = vmatpush2.bf16.xpose.msra.mxu0 0
      %2120 = vmatprep.subr.bf16.mxu0 0
      %2121 = vmatpush2.bf16.xpose.msra.mxu0 0
      %2122 = vmatprep.subr.bf16.mxu0 0
      %2123 = vmatpush2.bf16.xpose.msra.mxu0 0
      %2124 = vmatprep.subr.bf16.mxu0 0
      %2125 = vmatpush2.bf16.xpose.msra.mxu0 0
      %2126 = vmatprep.subr.bf16.mxu0 0
      %2127 = vmatpush2.bf16.xpose.msra.mxu0 0
      %2128 = vmatprep.mubr.bf16.mxu0 0
      %2129 = vmatmul.mubr.bf16.gmra.mxu0 %v2073
      %v2130 = vpop.f32.mrf.mxu0
      %v2131 = vadd.f32 0.0, %v2130
      %v2132 = vpop.f32.mrf.mxu0
      %v2133 = vpop.f32.mrf.mxu0
      %v2134 = vadd.f32 0.0, %v2133
      %v2135 = vpop.f32.mrf.mxu0
      %2136 = vmatprep.mubr.bf16.mxu0 0
      %2137 = vmatmul.mubr.bf16.gmra.mxu0 %v2076
      %v2138 = vpop.f32.mrf.mxu0
      %v2139 = vadd.f32 0.0, %v2138
      %v2140 = vpop.f32.mrf.mxu0
      %v2141 = vpop.f32.mrf.mxu0
      %v2142 = vadd.f32 0.0, %v2141
      %v2143 = vpop.f32.mrf.mxu0
      %2144 = vmatprep.mubr.bf16.mxu0 0
      %2145 = vmatmul.mubr.bf16.gmra.mxu0 %v2079
      %v2146 = vpop.f32.mrf.mxu0
      %v2147 = vadd.f32 0.0, %v2146
      %v2148 = vpop.f32.mrf.mxu0
      %v2149 = vpop.f32.mrf.mxu0
      %v2150 = vadd.f32 0.0, %v2149
      %v2151 = vpop.f32.mrf.mxu0
      %2152 = vmatprep.mubr.bf16.mxu0 0
      %2153 = vmatmul.mubr.bf16.gmra.mxu0 %v2082
      %v2154 = vpop.f32.mrf.mxu0
      %v2155 = vadd.f32 0.0, %v2154
      %v2156 = vpop.f32.mrf.mxu0
      %v2157 = vpop.f32.mrf.mxu0
      %v2158 = vadd.f32 0.0, %v2157
      %v2159 = vpop.f32.mrf.mxu0
      %2160 = vdwg.mxu0
      %v2161 = vmul.f32 %v2131, 0.70710677
      %v2162 = vmul.f32 %v2134, 0.70710677
      %v2163 = vmul.f32 %v2139, 0.70710677
      %v2164 = vmul.f32 %v2142, 0.70710677
      %v2165 = vmul.f32 %v2147, 0.70710677
      %v2166 = vmul.f32 %v2150, 0.70710677
      %v2167 = vmul.f32 %v2155, 0.70710677
      %v2168 = vmul.f32 %v2158, 0.70710677
      %v2169 = vsel %vm633, %v2161, -inf
      %2170 = vmax.xlane.f32.xlu0 %v2169
      %v2171 = vpop.xlane.xlu0 %2170
      %v2172 = vsel %vm633, %v2162, -inf
      %2173 = vmax.xlane.f32.xlu0 %v2172
      %v2174 = vpop.xlane.xlu0 %2173
      %v2175 = vsel %vm633, %v2163, -inf
      %2176 = vmax.xlane.f32.xlu0 %v2175
      %v2177 = vpop.xlane.xlu0 %2176
      %v2178 = vsel %vm633, %v2164, -inf
      %2179 = vmax.xlane.f32.xlu0 %v2178
      %v2180 = vpop.xlane.xlu0 %2179
      %v2181 = vsel %vm633, %v2165, -inf
      %2182 = vmax.xlane.f32.xlu0 %v2181
      %v2183 = vpop.xlane.xlu0 %2182
      %v2184 = vsel %vm633, %v2166, -inf
      %2185 = vmax.xlane.f32.xlu0 %v2184
      %v2186 = vpop.xlane.xlu0 %2185
      %v2187 = vsel %vm633, %v2167, -inf
      %2188 = vmax.xlane.f32.xlu0 %v2187
      %v2189 = vpop.xlane.xlu0 %2188
      %v2190 = vsel %vm633, %v2168, -inf
      %2191 = vmax.xlane.f32.xlu0 %v2190
      %v2192 = vpop.xlane.xlu0 %2191
      %v2193 = vsub.f32 %v2161, %v2171
      %v2194 = vsub.f32 %v2162, %v2174
      %v2195 = vsub.f32 %v2163, %v2177
      %v2196 = vsub.f32 %v2164, %v2180
      %v2197 = vsub.f32 %v2165, %v2183
      %v2198 = vsub.f32 %v2166, %v2186
      %v2199 = vsub.f32 %v2167, %v2189
      %v2200 = vsub.f32 %v2168, %v2192
      %v2201 = vmul.f32 %v2193, 1.442695
      %v2202 = vpow.pop %v2201
      %v2203 = vmul.f32 %v2194, 1.442695
      %v2204 = vpow.pop %v2203
      %v2205 = vmul.f32 %v2195, 1.442695
      %v2206 = vpow.pop %v2205
      %v2207 = vmul.f32 %v2196, 1.442695
      %v2208 = vpow.pop %v2207
      %v2209 = vmul.f32 %v2197, 1.442695
      %v2210 = vpow.pop %v2209
      %v2211 = vmul.f32 %v2198, 1.442695
      %v2212 = vpow.pop %v2211
      %v2213 = vmul.f32 %v2199, 1.442695
      %v2214 = vpow.pop %v2213
      %v2215 = vmul.f32 %v2200, 1.442695
      %v2216 = vpow.pop %v2215
      %v2217 = vsel %vm633, %v2202, 0.0
      %2218 = vadd.xlane.f32.xlu0 %v2217
      %v2219 = vpop.xlane.xlu0 %2218
      %v2220 = vsel %vm633, %v2204, 0.0
      %2221 = vadd.xlane.f32.xlu0 %v2220
      %v2222 = vpop.xlane.xlu0 %2221
      %v2223 = vsel %vm633, %v2206, 0.0
      %2224 = vadd.xlane.f32.xlu0 %v2223
      %v2225 = vpop.xlane.xlu0 %2224
      %v2226 = vsel %vm633, %v2208, 0.0
      %2227 = vadd.xlane.f32.xlu0 %v2226
      %v2228 = vpop.xlane.xlu0 %2227
      %v2229 = vsel %vm633, %v2210, 0.0
      %2230 = vadd.xlane.f32.xlu0 %v2229
      %v2231 = vpop.xlane.xlu0 %2230
      %v2232 = vsel %vm633, %v2212, 0.0
      %2233 = vadd.xlane.f32.xlu0 %v2232
      %v2234 = vpop.xlane.xlu0 %2233
      %v2235 = vsel %vm633, %v2214, 0.0
      %2236 = vadd.xlane.f32.xlu0 %v2235
      %v2237 = vpop.xlane.xlu0 %2236
      %v2238 = vsel %vm633, %v2216, 0.0
      %2239 = vadd.xlane.f32.xlu0 %v2238
      %v2240 = vpop.xlane.xlu0 %2239
      %v2241 = vrcp.pop %v2219
      %v2242 = vmul.f32 %v2202, %v2241
      %v2243 = vrcp.pop %v2222
      %v2244 = vmul.f32 %v2204, %v2243
      %v2245 = vrcp.pop %v2225
      %v2246 = vmul.f32 %v2206, %v2245
      %v2247 = vrcp.pop %v2228
      %v2248 = vmul.f32 %v2208, %v2247
      %v2249 = vrcp.pop %v2231
      %v2250 = vmul.f32 %v2210, %v2249
      %v2251 = vrcp.pop %v2234
      %v2252 = vmul.f32 %v2212, %v2251
      %v2253 = vrcp.pop %v2237
      %v2254 = vmul.f32 %v2214, %v2253
      %v2255 = vrcp.pop %v2240
      %v2256 = vmul.f32 %v2216, %v2255
      %v2257 = vpack.c.bf16 %v2244, %v2242
      %v2258 = vpack.c.bf16 %v2248, %v2246
      %v2259 = vpack.c.bf16 %v2252, %v2250
      %v2260 = vpack.c.bf16 %v2256, %v2254
      %2261 = vrot.lane.b32.xlu0 %v519, 88
      %v2262 = vpop.permute.xlu0 %2261
      %2263 = vrot.lane.b32.xlu0 %v520, 88
      %v2264 = vpop.permute.xlu0 %2263
      %2265 = vrot.lane.b32.xlu0 %v521, 88
      %v2266 = vpop.permute.xlu0 %2265
      %2267 = vrot.lane.b32.xlu0 %v522, 88
      %v2268 = vpop.permute.xlu0 %2267
      %v2274 = vsel %vm633, %v2257, 0
      %v2277 = vsel %vm633, %v2258, 0
      %v2280 = vsel %vm633, %v2259, 0
      %v2283 = vsel %vm633, %v2260, 0
      %2285 = vmatprep.subr.bf16.mxu0 0
      %2286 = vmatpush1.bf16.msra.mxu0 0
      %2287 = vmatprep.subr.bf16.mxu0 0
      %2288 = vmatpush1.bf16.msra.mxu0 0
      %2289 = vmatprep.subr.bf16.mxu0 0
      %2290 = vmatpush1.bf16.msra.mxu0 0
      %2291 = vmatprep.subr.bf16.mxu0 0
      %2292 = vmatpush1.bf16.msra.mxu0 0
      %2293 = vmatprep.subr.bf16.mxu0 0
      %2294 = vmatpush1.bf16.msra.mxu0 %v2268
      %2295 = vmatprep.subr.bf16.mxu0 0
      %2296 = vmatpush1.bf16.msra.mxu0 %v2266
      %2297 = vmatprep.subr.bf16.mxu0 0
      %2298 = vmatpush1.bf16.msra.mxu0 %v2264
      %2299 = vmatprep.subr.bf16.mxu0 0
      %2300 = vmatpush1.bf16.msra.mxu0 %v2262
      %2301 = vmatprep.subr.bf16.mxu0 0
      %2302 = vmatpush2.bf16.msra.mxu0 0
      %2303 = vmatprep.subr.bf16.mxu0 0
      %2304 = vmatpush2.bf16.msra.mxu0 0
      %2305 = vmatprep.subr.bf16.mxu0 0
      %2306 = vmatpush2.bf16.msra.mxu0 0
      %2307 = vmatprep.subr.bf16.mxu0 0
      %2308 = vmatpush2.bf16.msra.mxu0 0
      %2309 = vmatprep.subr.bf16.mxu0 0
      %2310 = vmatpush2.bf16.msra.mxu0 0
      %2311 = vmatprep.subr.bf16.mxu0 0
      %2312 = vmatpush2.bf16.msra.mxu0 0
      %2313 = vmatprep.subr.bf16.mxu0 0
      %2314 = vmatpush2.bf16.msra.mxu0 0
      %2315 = vmatprep.subr.bf16.mxu0 0
      %2316 = vmatpush2.bf16.msra.mxu0 0
      %2317 = vmatprep.mubr.bf16.mxu0 0
      %2318 = vmatmul.mubr.bf16.gmra.mxu0 %v2274
      %v2319 = vpop.f32.mrf.mxu0
      %v2320 = vadd.f32 0.0, %v2319
      %v2321 = vpop.f32.mrf.mxu0
      %v2322 = vpop.f32.mrf.mxu0
      %v2323 = vadd.f32 0.0, %v2322
      %v2324 = vpop.f32.mrf.mxu0
      %2325 = vmatprep.mubr.bf16.mxu0 0
      %2326 = vmatmul.mubr.bf16.gmra.mxu0 %v2277
      %v2327 = vpop.f32.mrf.mxu0
      %v2328 = vadd.f32 0.0, %v2327
      %v2329 = vpop.f32.mrf.mxu0
      %v2330 = vpop.f32.mrf.mxu0
      %v2331 = vadd.f32 0.0, %v2330
      %v2332 = vpop.f32.mrf.mxu0
      %2333 = vmatprep.mubr.bf16.mxu0 0
      %2334 = vmatmul.mubr.bf16.gmra.mxu0 %v2280
      %v2335 = vpop.f32.mrf.mxu0
      %v2336 = vadd.f32 0.0, %v2335
      %v2337 = vpop.f32.mrf.mxu0
      %v2338 = vpop.f32.mrf.mxu0
      %v2339 = vadd.f32 0.0, %v2338
      %v2340 = vpop.f32.mrf.mxu0
      %2341 = vmatprep.mubr.bf16.mxu0 0
      %2342 = vmatmul.mubr.bf16.gmra.mxu0 %v2283
      %v2343 = vpop.f32.mrf.mxu0
      %v2344 = vadd.f32 0.0, %v2343
      %v2345 = vpop.f32.mrf.mxu0
      %v2346 = vpop.f32.mrf.mxu0
      %v2347 = vadd.f32 0.0, %v2346
      %v2348 = vpop.f32.mrf.mxu0
      %2349 = vdwg.mxu0
      %v2350 = vpack.c.bf16 %v2323, %v2320
      %v2351 = vpack.c.bf16 %v2331, %v2328
      %v2352 = vpack.c.bf16 %v2339, %v2336
      %v2353 = vpack.c.bf16 %v2347, %v2344
      %v2355 = vsel %vm535, %v2350, 0
      %v2358 = vsel %vm535, %v2351, 0
      %v2361 = vsel %vm535, %v2352, 0
      %v2364 = vsel %vm535, %v2353, 0
      %v2367 = vsel %vm1133, %v518, 0
      %2369 = vmatprep.subr.bf16.mxu0 0
      %2370 = vmatpush1.bf16.msra.mxu0 0
      %2371 = vmatprep.subr.bf16.mxu0 0
      %2372 = vmatpush1.bf16.msra.mxu0 0
      %2373 = vmatprep.subr.bf16.mxu0 0
      %2374 = vmatpush1.bf16.msra.mxu0 0
      %2375 = vmatprep.subr.bf16.mxu0 0
      %2376 = vmatpush1.bf16.msra.mxu0 0
      %2377 = vmatprep.subr.bf16.mxu0 0
      %2378 = vmatpush1.bf16.msra.mxu0 0
      %2379 = vmatprep.subr.bf16.mxu0 0
      %2380 = vmatpush1.bf16.msra.mxu0 0
      %2381 = vmatprep.subr.bf16.mxu0 0
      %2382 = vmatpush1.bf16.msra.mxu0 0
      %2383 = vmatprep.subr.bf16.mxu0 0
      %2384 = vmatpush1.bf16.msra.mxu0 %v2367
      %2385 = vmatprep.subr.bf16.mxu0 0
      %2386 = vmatpush2.bf16.msra.mxu0 0
      %2387 = vmatprep.subr.bf16.mxu0 0
      %2388 = vmatpush2.bf16.msra.mxu0 0
      %2389 = vmatprep.subr.bf16.mxu0 0
      %2390 = vmatpush2.bf16.msra.mxu0 0
      %2391 = vmatprep.subr.bf16.mxu0 0
      %2392 = vmatpush2.bf16.msra.mxu0 0
      %2393 = vmatprep.subr.bf16.mxu0 0
      %2394 = vmatpush2.bf16.msra.mxu0 0
      %2395 = vmatprep.subr.bf16.mxu0 0
      %2396 = vmatpush2.bf16.msra.mxu0 0
      %2397 = vmatprep.subr.bf16.mxu0 0
      %2398 = vmatpush2.bf16.msra.mxu0 0
      %2399 = vmatprep.subr.bf16.mxu0 0
      %2400 = vmatpush2.bf16.msra.mxu0 0
      %2401 = vmatprep.mubr.bf16.mxu0 0
      %2402 = vmatmul.mubr.bf16.gmra.mxu0 %v2355
      %v2403 = vpop.f32.mrf.mxu0
      %v2404 = vadd.f32 0.0, %v2403
      %v2405 = vpop.f32.mrf.mxu0
      %v2406 = vpop.f32.mrf.mxu0
      %v2407 = vadd.f32 0.0, %v2406
      %v2408 = vpop.f32.mrf.mxu0
      %2409 = vmatprep.mubr.bf16.mxu0 0
      %2410 = vmatmul.mubr.bf16.gmra.mxu0 %v2358
      %v2411 = vpop.f32.mrf.mxu0
      %v2412 = vadd.f32 0.0, %v2411
      %v2413 = vpop.f32.mrf.mxu0
      %v2414 = vpop.f32.mrf.mxu0
      %v2415 = vadd.f32 0.0, %v2414
      %v2416 = vpop.f32.mrf.mxu0
      %2417 = vmatprep.mubr.bf16.mxu0 0
      %2418 = vmatmul.mubr.bf16.gmra.mxu0 %v2361
      %v2419 = vpop.f32.mrf.mxu0
      %v2420 = vadd.f32 0.0, %v2419
      %v2421 = vpop.f32.mrf.mxu0
      %v2422 = vpop.f32.mrf.mxu0
      %v2423 = vadd.f32 0.0, %v2422
      %v2424 = vpop.f32.mrf.mxu0
      %2425 = vmatprep.mubr.bf16.mxu0 0
      %2426 = vmatmul.mubr.bf16.gmra.mxu0 %v2364
      %v2427 = vpop.f32.mrf.mxu0
      %v2428 = vadd.f32 0.0, %v2427
      %v2429 = vpop.f32.mrf.mxu0
      %v2430 = vpop.f32.mrf.mxu0
      %v2431 = vadd.f32 0.0, %v2430
      %v2432 = vpop.f32.mrf.mxu0
      %2433 = vdwg.mxu0
      %v2434 = vadd.f32 %v2048, %v2404
      %v2435 = vadd.f32 %v2049, %v2407
      %v2436 = vadd.f32 %v2050, %v2412
      %v2437 = vadd.f32 %v2051, %v2415
      %v2438 = vadd.f32 %v2052, %v2420
      %v2439 = vadd.f32 %v2053, %v2423
      %v2440 = vadd.f32 %v2054, %v2428
      %v2441 = vadd.f32 %v2055, %v2431
      %2442 = vrot.lane.b32.xlu0 %v519, 118
      %v2443 = vpop.permute.xlu0 %2442
      %2444 = vrot.lane.b32.xlu0 %v520, 118
      %v2445 = vpop.permute.xlu0 %2444
      %2446 = vrot.lane.b32.xlu0 %v521, 118
      %v2447 = vpop.permute.xlu0 %2446
      %2448 = vrot.lane.b32.xlu0 %v522, 118
      %v2449 = vpop.permute.xlu0 %2448
      %2450 = vrot.lane.b32.xlu0 %v519, 102
      %v2451 = vpop.permute.xlu0 %2450
      %2452 = vrot.lane.b32.xlu0 %v520, 102
      %v2453 = vpop.permute.xlu0 %2452
      %2454 = vrot.lane.b32.xlu0 %v521, 102
      %v2455 = vpop.permute.xlu0 %2454
      %2456 = vrot.lane.b32.xlu0 %v522, 102
      %v2457 = vpop.permute.xlu0 %2456
      %v2459 = vsel %vm535, %v2443, 0
      %v2462 = vsel %vm535, %v2445, 0
      %v2465 = vsel %vm535, %v2447, 0
      %v2468 = vsel %vm535, %v2449, 0
      %v2471 = vsel %vm535, %v2451, 0
      %v2474 = vsel %vm535, %v2453, 0
      %v2477 = vsel %vm535, %v2455, 0
      %v2480 = vsel %vm535, %v2457, 0
      %2482 = vmatprep.subr.bf16.mxu0 0
      %2483 = vmatpush1.bf16.xpose.msra.mxu0 0
      %2484 = vmatprep.subr.bf16.mxu0 0
      %2485 = vmatpush1.bf16.xpose.msra.mxu0 0
      %2486 = vmatprep.subr.bf16.mxu0 0
      %2487 = vmatpush1.bf16.xpose.msra.mxu0 0
      %2488 = vmatprep.subr.bf16.mxu0 0
      %2489 = vmatpush1.bf16.xpose.msra.mxu0 0
      %2490 = vmatprep.subr.bf16.mxu0 0
      %2491 = vmatpush1.bf16.xpose.msra.mxu0 %v2480
      %2492 = vmatprep.subr.bf16.mxu0 0
      %2493 = vmatpush1.bf16.xpose.msra.mxu0 %v2477
      %2494 = vmatprep.subr.bf16.mxu0 0
      %2495 = vmatpush1.bf16.xpose.msra.mxu0 %v2474
      %2496 = vmatprep.subr.bf16.mxu0 0
      %2497 = vmatpush1.bf16.xpose.msra.mxu0 %v2471
      %2498 = vmatprep.subr.bf16.mxu0 0
      %2499 = vmatpush2.bf16.xpose.msra.mxu0 0
      %2500 = vmatprep.subr.bf16.mxu0 0
      %2501 = vmatpush2.bf16.xpose.msra.mxu0 0
      %2502 = vmatprep.subr.bf16.mxu0 0
      %2503 = vmatpush2.bf16.xpose.msra.mxu0 0
      %2504 = vmatprep.subr.bf16.mxu0 0
      %2505 = vmatpush2.bf16.xpose.msra.mxu0 0
      %2506 = vmatprep.subr.bf16.mxu0 0
      %2507 = vmatpush2.bf16.xpose.msra.mxu0 0
      %2508 = vmatprep.subr.bf16.mxu0 0
      %2509 = vmatpush2.bf16.xpose.msra.mxu0 0
      %2510 = vmatprep.subr.bf16.mxu0 0
      %2511 = vmatpush2.bf16.xpose.msra.mxu0 0
      %2512 = vmatprep.subr.bf16.mxu0 0
      %2513 = vmatpush2.bf16.xpose.msra.mxu0 0
      %2514 = vmatprep.mubr.bf16.mxu0 0
      %2515 = vmatmul.mubr.bf16.gmra.mxu0 %v2459
      %v2516 = vpop.f32.mrf.mxu0
      %v2517 = vadd.f32 0.0, %v2516
      %v2518 = vpop.f32.mrf.mxu0
      %v2519 = vpop.f32.mrf.mxu0
      %v2520 = vadd.f32 0.0, %v2519
      %v2521 = vpop.f32.mrf.mxu0
      %2522 = vmatprep.mubr.bf16.mxu0 0
      %2523 = vmatmul.mubr.bf16.gmra.mxu0 %v2462
      %v2524 = vpop.f32.mrf.mxu0
      %v2525 = vadd.f32 0.0, %v2524
      %v2526 = vpop.f32.mrf.mxu0
      %v2527 = vpop.f32.mrf.mxu0
      %v2528 = vadd.f32 0.0, %v2527
      %v2529 = vpop.f32.mrf.mxu0
      %2530 = vmatprep.mubr.bf16.mxu0 0
      %2531 = vmatmul.mubr.bf16.gmra.mxu0 %v2465
      %v2532 = vpop.f32.mrf.mxu0
      %v2533 = vadd.f32 0.0, %v2532
      %v2534 = vpop.f32.mrf.mxu0
      %v2535 = vpop.f32.mrf.mxu0
      %v2536 = vadd.f32 0.0, %v2535
      %v2537 = vpop.f32.mrf.mxu0
      %2538 = vmatprep.mubr.bf16.mxu0 0
      %2539 = vmatmul.mubr.bf16.gmra.mxu0 %v2468
      %v2540 = vpop.f32.mrf.mxu0
      %v2541 = vadd.f32 0.0, %v2540
      %v2542 = vpop.f32.mrf.mxu0
      %v2543 = vpop.f32.mrf.mxu0
      %v2544 = vadd.f32 0.0, %v2543
      %v2545 = vpop.f32.mrf.mxu0
      %2546 = vdwg.mxu0
      %v2547 = vmul.f32 %v2517, 0.70710677
      %v2548 = vmul.f32 %v2520, 0.70710677
      %v2549 = vmul.f32 %v2525, 0.70710677
      %v2550 = vmul.f32 %v2528, 0.70710677
      %v2551 = vmul.f32 %v2533, 0.70710677
      %v2552 = vmul.f32 %v2536, 0.70710677
      %v2553 = vmul.f32 %v2541, 0.70710677
      %v2554 = vmul.f32 %v2544, 0.70710677
      %v2555 = vsel %vm633, %v2547, -inf
      %2556 = vmax.xlane.f32.xlu0 %v2555
      %v2557 = vpop.xlane.xlu0 %2556
      %v2558 = vsel %vm633, %v2548, -inf
      %2559 = vmax.xlane.f32.xlu0 %v2558
      %v2560 = vpop.xlane.xlu0 %2559
      %v2561 = vsel %vm633, %v2549, -inf
      %2562 = vmax.xlane.f32.xlu0 %v2561
      %v2563 = vpop.xlane.xlu0 %2562
      %v2564 = vsel %vm633, %v2550, -inf
      %2565 = vmax.xlane.f32.xlu0 %v2564
      %v2566 = vpop.xlane.xlu0 %2565
      %v2567 = vsel %vm633, %v2551, -inf
      %2568 = vmax.xlane.f32.xlu0 %v2567
      %v2569 = vpop.xlane.xlu0 %2568
      %v2570 = vsel %vm633, %v2552, -inf
      %2571 = vmax.xlane.f32.xlu0 %v2570
      %v2572 = vpop.xlane.xlu0 %2571
      %v2573 = vsel %vm633, %v2553, -inf
      %2574 = vmax.xlane.f32.xlu0 %v2573
      %v2575 = vpop.xlane.xlu0 %2574
      %v2576 = vsel %vm633, %v2554, -inf
      %2577 = vmax.xlane.f32.xlu0 %v2576
      %v2578 = vpop.xlane.xlu0 %2577
      %v2579 = vsub.f32 %v2547, %v2557
      %v2580 = vsub.f32 %v2548, %v2560
      %v2581 = vsub.f32 %v2549, %v2563
      %v2582 = vsub.f32 %v2550, %v2566
      %v2583 = vsub.f32 %v2551, %v2569
      %v2584 = vsub.f32 %v2552, %v2572
      %v2585 = vsub.f32 %v2553, %v2575
      %v2586 = vsub.f32 %v2554, %v2578
      %v2587 = vmul.f32 %v2579, 1.442695
      %v2588 = vpow.pop %v2587
      %v2589 = vmul.f32 %v2580, 1.442695
      %v2590 = vpow.pop %v2589
      %v2591 = vmul.f32 %v2581, 1.442695
      %v2592 = vpow.pop %v2591
      %v2593 = vmul.f32 %v2582, 1.442695
      %v2594 = vpow.pop %v2593
      %v2595 = vmul.f32 %v2583, 1.442695
      %v2596 = vpow.pop %v2595
      %v2597 = vmul.f32 %v2584, 1.442695
      %v2598 = vpow.pop %v2597
      %v2599 = vmul.f32 %v2585, 1.442695
      %v2600 = vpow.pop %v2599
      %v2601 = vmul.f32 %v2586, 1.442695
      %v2602 = vpow.pop %v2601
      %v2603 = vsel %vm633, %v2588, 0.0
      %2604 = vadd.xlane.f32.xlu0 %v2603
      %v2605 = vpop.xlane.xlu0 %2604
      %v2606 = vsel %vm633, %v2590, 0.0
      %2607 = vadd.xlane.f32.xlu0 %v2606
      %v2608 = vpop.xlane.xlu0 %2607
      %v2609 = vsel %vm633, %v2592, 0.0
      %2610 = vadd.xlane.f32.xlu0 %v2609
      %v2611 = vpop.xlane.xlu0 %2610
      %v2612 = vsel %vm633, %v2594, 0.0
      %2613 = vadd.xlane.f32.xlu0 %v2612
      %v2614 = vpop.xlane.xlu0 %2613
      %v2615 = vsel %vm633, %v2596, 0.0
      %2616 = vadd.xlane.f32.xlu0 %v2615
      %v2617 = vpop.xlane.xlu0 %2616
      %v2618 = vsel %vm633, %v2598, 0.0
      %2619 = vadd.xlane.f32.xlu0 %v2618
      %v2620 = vpop.xlane.xlu0 %2619
      %v2621 = vsel %vm633, %v2600, 0.0
      %2622 = vadd.xlane.f32.xlu0 %v2621
      %v2623 = vpop.xlane.xlu0 %2622
      %v2624 = vsel %vm633, %v2602, 0.0
      %2625 = vadd.xlane.f32.xlu0 %v2624
      %v2626 = vpop.xlane.xlu0 %2625
      %v2627 = vrcp.pop %v2605
      %v2628 = vmul.f32 %v2588, %v2627
      %v2629 = vrcp.pop %v2608
      %v2630 = vmul.f32 %v2590, %v2629
      %v2631 = vrcp.pop %v2611
      %v2632 = vmul.f32 %v2592, %v2631
      %v2633 = vrcp.pop %v2614
      %v2634 = vmul.f32 %v2594, %v2633
      %v2635 = vrcp.pop %v2617
      %v2636 = vmul.f32 %v2596, %v2635
      %v2637 = vrcp.pop %v2620
      %v2638 = vmul.f32 %v2598, %v2637
      %v2639 = vrcp.pop %v2623
      %v2640 = vmul.f32 %v2600, %v2639
      %v2641 = vrcp.pop %v2626
      %v2642 = vmul.f32 %v2602, %v2641
      %v2643 = vpack.c.bf16 %v2630, %v2628
      %v2644 = vpack.c.bf16 %v2634, %v2632
      %v2645 = vpack.c.bf16 %v2638, %v2636
      %v2646 = vpack.c.bf16 %v2642, %v2640
      %2647 = vrot.lane.b32.xlu0 %v519, 86
      %v2648 = vpop.permute.xlu0 %2647
      %2649 = vrot.lane.b32.xlu0 %v520, 86
      %v2650 = vpop.permute.xlu0 %2649
      %2651 = vrot.lane.b32.xlu0 %v521, 86
      %v2652 = vpop.permute.xlu0 %2651
      %2653 = vrot.lane.b32.xlu0 %v522, 86
      %v2654 = vpop.permute.xlu0 %2653
      %v2660 = vsel %vm633, %v2643, 0
      %v2663 = vsel %vm633, %v2644, 0
      %v2666 = vsel %vm633, %v2645, 0
      %v2669 = vsel %vm633, %v2646, 0
      %2671 = vmatprep.subr.bf16.mxu0 0
      %2672 = vmatpush1.bf16.msra.mxu0 0
      %2673 = vmatprep.subr.bf16.mxu0 0
      %2674 = vmatpush1.bf16.msra.mxu0 0
      %2675 = vmatprep.subr.bf16.mxu0 0
      %2676 = vmatpush1.bf16.msra.mxu0 0
      %2677 = vmatprep.subr.bf16.mxu0 0
      %2678 = vmatpush1.bf16.msra.mxu0 0
      %2679 = vmatprep.subr.bf16.mxu0 0
      %2680 = vmatpush1.bf16.msra.mxu0 %v2654
      %2681 = vmatprep.subr.bf16.mxu0 0
      %2682 = vmatpush1.bf16.msra.mxu0 %v2652
      %2683 = vmatprep.subr.bf16.mxu0 0
      %2684 = vmatpush1.bf16.msra.mxu0 %v2650
      %2685 = vmatprep.subr.bf16.mxu0 0
      %2686 = vmatpush1.bf16.msra.mxu0 %v2648
      %2687 = vmatprep.subr.bf16.mxu0 0
      %2688 = vmatpush2.bf16.msra.mxu0 0
      %2689 = vmatprep.subr.bf16.mxu0 0
      %2690 = vmatpush2.bf16.msra.mxu0 0
      %2691 = vmatprep.subr.bf16.mxu0 0
      %2692 = vmatpush2.bf16.msra.mxu0 0
      %2693 = vmatprep.subr.bf16.mxu0 0
      %2694 = vmatpush2.bf16.msra.mxu0 0
      %2695 = vmatprep.subr.bf16.mxu0 0
      %2696 = vmatpush2.bf16.msra.mxu0 0
      %2697 = vmatprep.subr.bf16.mxu0 0
      %2698 = vmatpush2.bf16.msra.mxu0 0
      %2699 = vmatprep.subr.bf16.mxu0 0
      %2700 = vmatpush2.bf16.msra.mxu0 0
      %2701 = vmatprep.subr.bf16.mxu0 0
      %2702 = vmatpush2.bf16.msra.mxu0 0
      %2703 = vmatprep.mubr.bf16.mxu0 0
      %2704 = vmatmul.mubr.bf16.gmra.mxu0 %v2660
      %v2705 = vpop.f32.mrf.mxu0
      %v2706 = vadd.f32 0.0, %v2705
      %v2707 = vpop.f32.mrf.mxu0
      %v2708 = vpop.f32.mrf.mxu0
      %v2709 = vadd.f32 0.0, %v2708
      %v2710 = vpop.f32.mrf.mxu0
      %2711 = vmatprep.mubr.bf16.mxu0 0
      %2712 = vmatmul.mubr.bf16.gmra.mxu0 %v2663
      %v2713 = vpop.f32.mrf.mxu0
      %v2714 = vadd.f32 0.0, %v2713
      %v2715 = vpop.f32.mrf.mxu0
      %v2716 = vpop.f32.mrf.mxu0
      %v2717 = vadd.f32 0.0, %v2716
      %v2718 = vpop.f32.mrf.mxu0
      %2719 = vmatprep.mubr.bf16.mxu0 0
      %2720 = vmatmul.mubr.bf16.gmra.mxu0 %v2666
      %v2721 = vpop.f32.mrf.mxu0
      %v2722 = vadd.f32 0.0, %v2721
      %v2723 = vpop.f32.mrf.mxu0
      %v2724 = vpop.f32.mrf.mxu0
      %v2725 = vadd.f32 0.0, %v2724
      %v2726 = vpop.f32.mrf.mxu0
      %2727 = vmatprep.mubr.bf16.mxu0 0
      %2728 = vmatmul.mubr.bf16.gmra.mxu0 %v2669
      %v2729 = vpop.f32.mrf.mxu0
      %v2730 = vadd.f32 0.0, %v2729
      %v2731 = vpop.f32.mrf.mxu0
      %v2732 = vpop.f32.mrf.mxu0
      %v2733 = vadd.f32 0.0, %v2732
      %v2734 = vpop.f32.mrf.mxu0
      %2735 = vdwg.mxu0
      %v2736 = vpack.c.bf16 %v2709, %v2706
      %v2737 = vpack.c.bf16 %v2717, %v2714
      %v2738 = vpack.c.bf16 %v2725, %v2722
      %v2739 = vpack.c.bf16 %v2733, %v2730
      %v2741 = vunpack.c.l.b16 %v518
      %v2742 = vpack.c.b16 %v2741, %v2741
      %v2743 = vrot.slane %v2742, 1
      %v2745 = vsel %vm535, %v2736, 0
      %v2748 = vsel %vm535, %v2737, 0
      %v2751 = vsel %vm535, %v2738, 0
      %v2754 = vsel %vm535, %v2739, 0
      %v2757 = vsel %vm1133, %v2743, 0
      %2759 = vmatprep.subr.bf16.mxu0 0
      %2760 = vmatpush1.bf16.msra.mxu0 0
      %2761 = vmatprep.subr.bf16.mxu0 0
      %2762 = vmatpush1.bf16.msra.mxu0 0
      %2763 = vmatprep.subr.bf16.mxu0 0
      %2764 = vmatpush1.bf16.msra.mxu0 0
      %2765 = vmatprep.subr.bf16.mxu0 0
      %2766 = vmatpush1.bf16.msra.mxu0 0
      %2767 = vmatprep.subr.bf16.mxu0 0
      %2768 = vmatpush1.bf16.msra.mxu0 0
      %2769 = vmatprep.subr.bf16.mxu0 0
      %2770 = vmatpush1.bf16.msra.mxu0 0
      %2771 = vmatprep.subr.bf16.mxu0 0
      %2772 = vmatpush1.bf16.msra.mxu0 0
      %2773 = vmatprep.subr.bf16.mxu0 0
      %2774 = vmatpush1.bf16.msra.mxu0 %v2757
      %2775 = vmatprep.subr.bf16.mxu0 0
      %2776 = vmatpush2.bf16.msra.mxu0 0
      %2777 = vmatprep.subr.bf16.mxu0 0
      %2778 = vmatpush2.bf16.msra.mxu0 0
      %2779 = vmatprep.subr.bf16.mxu0 0
      %2780 = vmatpush2.bf16.msra.mxu0 0
      %2781 = vmatprep.subr.bf16.mxu0 0
      %2782 = vmatpush2.bf16.msra.mxu0 0
      %2783 = vmatprep.subr.bf16.mxu0 0
      %2784 = vmatpush2.bf16.msra.mxu0 0
      %2785 = vmatprep.subr.bf16.mxu0 0
      %2786 = vmatpush2.bf16.msra.mxu0 0
      %2787 = vmatprep.subr.bf16.mxu0 0
      %2788 = vmatpush2.bf16.msra.mxu0 0
      %2789 = vmatprep.subr.bf16.mxu0 0
      %2790 = vmatpush2.bf16.msra.mxu0 0
      %2791 = vmatprep.mubr.bf16.mxu0 0
      %2792 = vmatmul.mubr.bf16.gmra.mxu0 %v2745
      %v2793 = vpop.f32.mrf.mxu0
      %v2794 = vadd.f32 0.0, %v2793
      %v2795 = vpop.f32.mrf.mxu0
      %v2796 = vpop.f32.mrf.mxu0
      %v2797 = vadd.f32 0.0, %v2796
      %v2798 = vpop.f32.mrf.mxu0
      %2799 = vmatprep.mubr.bf16.mxu0 0
      %2800 = vmatmul.mubr.bf16.gmra.mxu0 %v2748
      %v2801 = vpop.f32.mrf.mxu0
      %v2802 = vadd.f32 0.0, %v2801
      %v2803 = vpop.f32.mrf.mxu0
      %v2804 = vpop.f32.mrf.mxu0
      %v2805 = vadd.f32 0.0, %v2804
      %v2806 = vpop.f32.mrf.mxu0
      %2807 = vmatprep.mubr.bf16.mxu0 0
      %2808 = vmatmul.mubr.bf16.gmra.mxu0 %v2751
      %v2809 = vpop.f32.mrf.mxu0
      %v2810 = vadd.f32 0.0, %v2809
      %v2811 = vpop.f32.mrf.mxu0
      %v2812 = vpop.f32.mrf.mxu0
      %v2813 = vadd.f32 0.0, %v2812
      %v2814 = vpop.f32.mrf.mxu0
      %2815 = vmatprep.mubr.bf16.mxu0 0
      %2816 = vmatmul.mubr.bf16.gmra.mxu0 %v2754
      %v2817 = vpop.f32.mrf.mxu0
      %v2818 = vadd.f32 0.0, %v2817
      %v2819 = vpop.f32.mrf.mxu0
      %v2820 = vpop.f32.mrf.mxu0
      %v2821 = vadd.f32 0.0, %v2820
      %v2822 = vpop.f32.mrf.mxu0
      %2823 = vdwg.mxu0
      %v2824 = vadd.f32 %v2434, %v2794
      %v2825 = vadd.f32 %v2435, %v2797
      %v2826 = vadd.f32 %v2436, %v2802
      %v2827 = vadd.f32 %v2437, %v2805
      %v2828 = vadd.f32 %v2438, %v2810
      %v2829 = vadd.f32 %v2439, %v2813
      %v2830 = vadd.f32 %v2440, %v2818
      %v2831 = vadd.f32 %v2441, %v2821
      %2832 = vrot.lane.b32.xlu0 %v519, 116
      %v2833 = vpop.permute.xlu0 %2832
      %2834 = vrot.lane.b32.xlu0 %v520, 116
      %v2835 = vpop.permute.xlu0 %2834
      %2836 = vrot.lane.b32.xlu0 %v521, 116
      %v2837 = vpop.permute.xlu0 %2836
      %2838 = vrot.lane.b32.xlu0 %v522, 116
      %v2839 = vpop.permute.xlu0 %2838
      %2840 = vrot.lane.b32.xlu0 %v519, 100
      %v2841 = vpop.permute.xlu0 %2840
      %2842 = vrot.lane.b32.xlu0 %v520, 100
      %v2843 = vpop.permute.xlu0 %2842
      %2844 = vrot.lane.b32.xlu0 %v521, 100
      %v2845 = vpop.permute.xlu0 %2844
      %2846 = vrot.lane.b32.xlu0 %v522, 100
      %v2847 = vpop.permute.xlu0 %2846
      %v2849 = vsel %vm535, %v2833, 0
      %v2852 = vsel %vm535, %v2835, 0
      %v2855 = vsel %vm535, %v2837, 0
      %v2858 = vsel %vm535, %v2839, 0
      %v2861 = vsel %vm535, %v2841, 0
      %v2864 = vsel %vm535, %v2843, 0
      %v2867 = vsel %vm535, %v2845, 0
      %v2870 = vsel %vm535, %v2847, 0
      %2872 = vmatprep.subr.bf16.mxu0 0
      %2873 = vmatpush1.bf16.xpose.msra.mxu0 0
      %2874 = vmatprep.subr.bf16.mxu0 0
      %2875 = vmatpush1.bf16.xpose.msra.mxu0 0
      %2876 = vmatprep.subr.bf16.mxu0 0
      %2877 = vmatpush1.bf16.xpose.msra.mxu0 0
      %2878 = vmatprep.subr.bf16.mxu0 0
      %2879 = vmatpush1.bf16.xpose.msra.mxu0 0
      %2880 = vmatprep.subr.bf16.mxu0 0
      %2881 = vmatpush1.bf16.xpose.msra.mxu0 %v2870
      %2882 = vmatprep.subr.bf16.mxu0 0
      %2883 = vmatpush1.bf16.xpose.msra.mxu0 %v2867
      %2884 = vmatprep.subr.bf16.mxu0 0
      %2885 = vmatpush1.bf16.xpose.msra.mxu0 %v2864
      %2886 = vmatprep.subr.bf16.mxu0 0
      %2887 = vmatpush1.bf16.xpose.msra.mxu0 %v2861
      %2888 = vmatprep.subr.bf16.mxu0 0
      %2889 = vmatpush2.bf16.xpose.msra.mxu0 0
      %2890 = vmatprep.subr.bf16.mxu0 0
      %2891 = vmatpush2.bf16.xpose.msra.mxu0 0
      %2892 = vmatprep.subr.bf16.mxu0 0
      %2893 = vmatpush2.bf16.xpose.msra.mxu0 0
      %2894 = vmatprep.subr.bf16.mxu0 0
      %2895 = vmatpush2.bf16.xpose.msra.mxu0 0
      %2896 = vmatprep.subr.bf16.mxu0 0
      %2897 = vmatpush2.bf16.xpose.msra.mxu0 0
      %2898 = vmatprep.subr.bf16.mxu0 0
      %2899 = vmatpush2.bf16.xpose.msra.mxu0 0
      %2900 = vmatprep.subr.bf16.mxu0 0
      %2901 = vmatpush2.bf16.xpose.msra.mxu0 0
      %2902 = vmatprep.subr.bf16.mxu0 0
      %2903 = vmatpush2.bf16.xpose.msra.mxu0 0
      %2904 = vmatprep.mubr.bf16.mxu0 0
      %2905 = vmatmul.mubr.bf16.gmra.mxu0 %v2849
      %v2906 = vpop.f32.mrf.mxu0
      %v2907 = vadd.f32 0.0, %v2906
      %v2908 = vpop.f32.mrf.mxu0
      %v2909 = vpop.f32.mrf.mxu0
      %v2910 = vadd.f32 0.0, %v2909
      %v2911 = vpop.f32.mrf.mxu0
      %2912 = vmatprep.mubr.bf16.mxu0 0
      %2913 = vmatmul.mubr.bf16.gmra.mxu0 %v2852
      %v2914 = vpop.f32.mrf.mxu0
      %v2915 = vadd.f32 0.0, %v2914
      %v2916 = vpop.f32.mrf.mxu0
      %v2917 = vpop.f32.mrf.mxu0
      %v2918 = vadd.f32 0.0, %v2917
      %v2919 = vpop.f32.mrf.mxu0
      %2920 = vmatprep.mubr.bf16.mxu0 0
      %2921 = vmatmul.mubr.bf16.gmra.mxu0 %v2855
      %v2922 = vpop.f32.mrf.mxu0
      %v2923 = vadd.f32 0.0, %v2922
      %v2924 = vpop.f32.mrf.mxu0
      %v2925 = vpop.f32.mrf.mxu0
      %v2926 = vadd.f32 0.0, %v2925
      %v2927 = vpop.f32.mrf.mxu0
      %2928 = vmatprep.mubr.bf16.mxu0 0
      %2929 = vmatmul.mubr.bf16.gmra.mxu0 %v2858
      %v2930 = vpop.f32.mrf.mxu0
      %v2931 = vadd.f32 0.0, %v2930
      %v2932 = vpop.f32.mrf.mxu0
      %v2933 = vpop.f32.mrf.mxu0
      %v2934 = vadd.f32 0.0, %v2933
      %v2935 = vpop.f32.mrf.mxu0
      %2936 = vdwg.mxu0
      %v2937 = vmul.f32 %v2907, 0.70710677
      %v2938 = vmul.f32 %v2910, 0.70710677
      %v2939 = vmul.f32 %v2915, 0.70710677
      %v2940 = vmul.f32 %v2918, 0.70710677
      %v2941 = vmul.f32 %v2923, 0.70710677
      %v2942 = vmul.f32 %v2926, 0.70710677
      %v2943 = vmul.f32 %v2931, 0.70710677
      %v2944 = vmul.f32 %v2934, 0.70710677
      %v2945 = vsel %vm633, %v2937, -inf
      %2946 = vmax.xlane.f32.xlu0 %v2945
      %v2947 = vpop.xlane.xlu0 %2946
      %v2948 = vsel %vm633, %v2938, -inf
      %2949 = vmax.xlane.f32.xlu0 %v2948
      %v2950 = vpop.xlane.xlu0 %2949
      %v2951 = vsel %vm633, %v2939, -inf
      %2952 = vmax.xlane.f32.xlu0 %v2951
      %v2953 = vpop.xlane.xlu0 %2952
      %v2954 = vsel %vm633, %v2940, -inf
      %2955 = vmax.xlane.f32.xlu0 %v2954
      %v2956 = vpop.xlane.xlu0 %2955
      %v2957 = vsel %vm633, %v2941, -inf
      %2958 = vmax.xlane.f32.xlu0 %v2957
      %v2959 = vpop.xlane.xlu0 %2958
      %v2960 = vsel %vm633, %v2942, -inf
      %2961 = vmax.xlane.f32.xlu0 %v2960
      %v2962 = vpop.xlane.xlu0 %2961
      %v2963 = vsel %vm633, %v2943, -inf
      %2964 = vmax.xlane.f32.xlu0 %v2963
      %v2965 = vpop.xlane.xlu0 %2964
      %v2966 = vsel %vm633, %v2944, -inf
      %2967 = vmax.xlane.f32.xlu0 %v2966
      %v2968 = vpop.xlane.xlu0 %2967
      %v2969 = vsub.f32 %v2937, %v2947
      %v2970 = vsub.f32 %v2938, %v2950
      %v2971 = vsub.f32 %v2939, %v2953
      %v2972 = vsub.f32 %v2940, %v2956
      %v2973 = vsub.f32 %v2941, %v2959
      %v2974 = vsub.f32 %v2942, %v2962
      %v2975 = vsub.f32 %v2943, %v2965
      %v2976 = vsub.f32 %v2944, %v2968
      %v2977 = vmul.f32 %v2969, 1.442695
      %v2978 = vpow.pop %v2977
      %v2979 = vmul.f32 %v2970, 1.442695
      %v2980 = vpow.pop %v2979
      %v2981 = vmul.f32 %v2971, 1.442695
      %v2982 = vpow.pop %v2981
      %v2983 = vmul.f32 %v2972, 1.442695
      %v2984 = vpow.pop %v2983
      %v2985 = vmul.f32 %v2973, 1.442695
      %v2986 = vpow.pop %v2985
      %v2987 = vmul.f32 %v2974, 1.442695
      %v2988 = vpow.pop %v2987
      %v2989 = vmul.f32 %v2975, 1.442695
      %v2990 = vpow.pop %v2989
      %v2991 = vmul.f32 %v2976, 1.442695
      %v2992 = vpow.pop %v2991
      %v2993 = vsel %vm633, %v2978, 0.0
      %2994 = vadd.xlane.f32.xlu0 %v2993
      %v2995 = vpop.xlane.xlu0 %2994
      %v2996 = vsel %vm633, %v2980, 0.0
      %2997 = vadd.xlane.f32.xlu0 %v2996
      %v2998 = vpop.xlane.xlu0 %2997
      %v2999 = vsel %vm633, %v2982, 0.0
      %3000 = vadd.xlane.f32.xlu0 %v2999
      %v3001 = vpop.xlane.xlu0 %3000
      %v3002 = vsel %vm633, %v2984, 0.0
      %3003 = vadd.xlane.f32.xlu0 %v3002
      %v3004 = vpop.xlane.xlu0 %3003
      %v3005 = vsel %vm633, %v2986, 0.0
      %3006 = vadd.xlane.f32.xlu0 %v3005
      %v3007 = vpop.xlane.xlu0 %3006
      %v3008 = vsel %vm633, %v2988, 0.0
      %3009 = vadd.xlane.f32.xlu0 %v3008
      %v3010 = vpop.xlane.xlu0 %3009
      %v3011 = vsel %vm633, %v2990, 0.0
      %3012 = vadd.xlane.f32.xlu0 %v3011
      %v3013 = vpop.xlane.xlu0 %3012
      %v3014 = vsel %vm633, %v2992, 0.0
      %3015 = vadd.xlane.f32.xlu0 %v3014
      %v3016 = vpop.xlane.xlu0 %3015
      %v3017 = vrcp.pop %v2995
      %v3018 = vmul.f32 %v2978, %v3017
      %v3019 = vrcp.pop %v2998
      %v3020 = vmul.f32 %v2980, %v3019
      %v3021 = vrcp.pop %v3001
      %v3022 = vmul.f32 %v2982, %v3021
      %v3023 = vrcp.pop %v3004
      %v3024 = vmul.f32 %v2984, %v3023
      %v3025 = vrcp.pop %v3007
      %v3026 = vmul.f32 %v2986, %v3025
      %v3027 = vrcp.pop %v3010
      %v3028 = vmul.f32 %v2988, %v3027
      %v3029 = vrcp.pop %v3013
      %v3030 = vmul.f32 %v2990, %v3029
      %v3031 = vrcp.pop %v3016
      %v3032 = vmul.f32 %v2992, %v3031
      %v3033 = vpack.c.bf16 %v3020, %v3018
      %v3034 = vpack.c.bf16 %v3024, %v3022
      %v3035 = vpack.c.bf16 %v3028, %v3026
      %v3036 = vpack.c.bf16 %v3032, %v3030
      %3037 = vrot.lane.b32.xlu0 %v519, 84
      %v3038 = vpop.permute.xlu0 %3037
      %3039 = vrot.lane.b32.xlu0 %v520, 84
      %v3040 = vpop.permute.xlu0 %3039
      %3041 = vrot.lane.b32.xlu0 %v521, 84
      %v3042 = vpop.permute.xlu0 %3041
      %3043 = vrot.lane.b32.xlu0 %v522, 84
      %v3044 = vpop.permute.xlu0 %3043
      %v3050 = vsel %vm633, %v3033, 0
      %v3053 = vsel %vm633, %v3034, 0
      %v3056 = vsel %vm633, %v3035, 0
      %v3059 = vsel %vm633, %v3036, 0
      %3061 = vmatprep.subr.bf16.mxu0 0
      %3062 = vmatpush1.bf16.msra.mxu0 0
      %3063 = vmatprep.subr.bf16.mxu0 0
      %3064 = vmatpush1.bf16.msra.mxu0 0
      %3065 = vmatprep.subr.bf16.mxu0 0
      %3066 = vmatpush1.bf16.msra.mxu0 0
      %3067 = vmatprep.subr.bf16.mxu0 0
      %3068 = vmatpush1.bf16.msra.mxu0 0
      %3069 = vmatprep.subr.bf16.mxu0 0
      %3070 = vmatpush1.bf16.msra.mxu0 %v3044
      %3071 = vmatprep.subr.bf16.mxu0 0
      %3072 = vmatpush1.bf16.msra.mxu0 %v3042
      %3073 = vmatprep.subr.bf16.mxu0 0
      %3074 = vmatpush1.bf16.msra.mxu0 %v3040
      %3075 = vmatprep.subr.bf16.mxu0 0
      %3076 = vmatpush1.bf16.msra.mxu0 %v3038
      %3077 = vmatprep.subr.bf16.mxu0 0
      %3078 = vmatpush2.bf16.msra.mxu0 0
      %3079 = vmatprep.subr.bf16.mxu0 0
      %3080 = vmatpush2.bf16.msra.mxu0 0
      %3081 = vmatprep.subr.bf16.mxu0 0
      %3082 = vmatpush2.bf16.msra.mxu0 0
      %3083 = vmatprep.subr.bf16.mxu0 0
      %3084 = vmatpush2.bf16.msra.mxu0 0
      %3085 = vmatprep.subr.bf16.mxu0 0
      %3086 = vmatpush2.bf16.msra.mxu0 0
      %3087 = vmatprep.subr.bf16.mxu0 0
      %3088 = vmatpush2.bf16.msra.mxu0 0
      %3089 = vmatprep.subr.bf16.mxu0 0
      %3090 = vmatpush2.bf16.msra.mxu0 0
      %3091 = vmatprep.subr.bf16.mxu0 0
      %3092 = vmatpush2.bf16.msra.mxu0 0
      %3093 = vmatprep.mubr.bf16.mxu0 0
      %3094 = vmatmul.mubr.bf16.gmra.mxu0 %v3050
      %v3095 = vpop.f32.mrf.mxu0
      %v3096 = vadd.f32 0.0, %v3095
      %v3097 = vpop.f32.mrf.mxu0
      %v3098 = vpop.f32.mrf.mxu0
      %v3099 = vadd.f32 0.0, %v3098
      %v3100 = vpop.f32.mrf.mxu0
      %3101 = vmatprep.mubr.bf16.mxu0 0
      %3102 = vmatmul.mubr.bf16.gmra.mxu0 %v3053
      %v3103 = vpop.f32.mrf.mxu0
      %v3104 = vadd.f32 0.0, %v3103
      %v3105 = vpop.f32.mrf.mxu0
      %v3106 = vpop.f32.mrf.mxu0
      %v3107 = vadd.f32 0.0, %v3106
      %v3108 = vpop.f32.mrf.mxu0
      %3109 = vmatprep.mubr.bf16.mxu0 0
      %3110 = vmatmul.mubr.bf16.gmra.mxu0 %v3056
      %v3111 = vpop.f32.mrf.mxu0
      %v3112 = vadd.f32 0.0, %v3111
      %v3113 = vpop.f32.mrf.mxu0
      %v3114 = vpop.f32.mrf.mxu0
      %v3115 = vadd.f32 0.0, %v3114
      %v3116 = vpop.f32.mrf.mxu0
      %3117 = vmatprep.mubr.bf16.mxu0 0
      %3118 = vmatmul.mubr.bf16.gmra.mxu0 %v3059
      %v3119 = vpop.f32.mrf.mxu0
      %v3120 = vadd.f32 0.0, %v3119
      %v3121 = vpop.f32.mrf.mxu0
      %v3122 = vpop.f32.mrf.mxu0
      %v3123 = vadd.f32 0.0, %v3122
      %v3124 = vpop.f32.mrf.mxu0
      %3125 = vdwg.mxu0
      %v3126 = vpack.c.bf16 %v3099, %v3096
      %v3127 = vpack.c.bf16 %v3107, %v3104
      %v3128 = vpack.c.bf16 %v3115, %v3112
      %v3129 = vpack.c.bf16 %v3123, %v3120
      %v3130 = vrot.slane %v2742, 2
      %v3132 = vsel %vm535, %v3126, 0
      %v3135 = vsel %vm535, %v3127, 0
      %v3138 = vsel %vm535, %v3128, 0
      %v3141 = vsel %vm535, %v3129, 0
      %v3144 = vsel %vm1133, %v3130, 0
      %3146 = vmatprep.subr.bf16.mxu0 0
      %3147 = vmatpush1.bf16.msra.mxu0 0
      %3148 = vmatprep.subr.bf16.mxu0 0
      %3149 = vmatpush1.bf16.msra.mxu0 0
      %3150 = vmatprep.subr.bf16.mxu0 0
      %3151 = vmatpush1.bf16.msra.mxu0 0
      %3152 = vmatprep.subr.bf16.mxu0 0
      %3153 = vmatpush1.bf16.msra.mxu0 0
      %3154 = vmatprep.subr.bf16.mxu0 0
      %3155 = vmatpush1.bf16.msra.mxu0 0
      %3156 = vmatprep.subr.bf16.mxu0 0
      %3157 = vmatpush1.bf16.msra.mxu0 0
      %3158 = vmatprep.subr.bf16.mxu0 0
      %3159 = vmatpush1.bf16.msra.mxu0 0
      %3160 = vmatprep.subr.bf16.mxu0 0
      %3161 = vmatpush1.bf16.msra.mxu0 %v3144
      %3162 = vmatprep.subr.bf16.mxu0 0
      %3163 = vmatpush2.bf16.msra.mxu0 0
      %3164 = vmatprep.subr.bf16.mxu0 0
      %3165 = vmatpush2.bf16.msra.mxu0 0
      %3166 = vmatprep.subr.bf16.mxu0 0
      %3167 = vmatpush2.bf16.msra.mxu0 0
      %3168 = vmatprep.subr.bf16.mxu0 0
      %3169 = vmatpush2.bf16.msra.mxu0 0
      %3170 = vmatprep.subr.bf16.mxu0 0
      %3171 = vmatpush2.bf16.msra.mxu0 0
      %3172 = vmatprep.subr.bf16.mxu0 0
      %3173 = vmatpush2.bf16.msra.mxu0 0
      %3174 = vmatprep.subr.bf16.mxu0 0
      %3175 = vmatpush2.bf16.msra.mxu0 0
      %3176 = vmatprep.subr.bf16.mxu0 0
      %3177 = vmatpush2.bf16.msra.mxu0 0
      %3178 = vmatprep.mubr.bf16.mxu0 0
      %3179 = vmatmul.mubr.bf16.gmra.mxu0 %v3132
      %v3180 = vpop.f32.mrf.mxu0
      %v3181 = vadd.f32 0.0, %v3180
      %v3182 = vpop.f32.mrf.mxu0
      %v3183 = vpop.f32.mrf.mxu0
      %v3184 = vadd.f32 0.0, %v3183
      %v3185 = vpop.f32.mrf.mxu0
      %3186 = vmatprep.mubr.bf16.mxu0 0
      %3187 = vmatmul.mubr.bf16.gmra.mxu0 %v3135
      %v3188 = vpop.f32.mrf.mxu0
      %v3189 = vadd.f32 0.0, %v3188
      %v3190 = vpop.f32.mrf.mxu0
      %v3191 = vpop.f32.mrf.mxu0
      %v3192 = vadd.f32 0.0, %v3191
      %v3193 = vpop.f32.mrf.mxu0
      %3194 = vmatprep.mubr.bf16.mxu0 0
      %3195 = vmatmul.mubr.bf16.gmra.mxu0 %v3138
      %v3196 = vpop.f32.mrf.mxu0
      %v3197 = vadd.f32 0.0, %v3196
      %v3198 = vpop.f32.mrf.mxu0
      %v3199 = vpop.f32.mrf.mxu0
      %v3200 = vadd.f32 0.0, %v3199
      %v3201 = vpop.f32.mrf.mxu0
      %3202 = vmatprep.mubr.bf16.mxu0 0
      %3203 = vmatmul.mubr.bf16.gmra.mxu0 %v3141
      %v3204 = vpop.f32.mrf.mxu0
      %v3205 = vadd.f32 0.0, %v3204
      %v3206 = vpop.f32.mrf.mxu0
      %v3207 = vpop.f32.mrf.mxu0
      %v3208 = vadd.f32 0.0, %v3207
      %v3209 = vpop.f32.mrf.mxu0
      %3210 = vdwg.mxu0
      %v3211 = vadd.f32 %v2824, %v3181
      %v3212 = vadd.f32 %v2825, %v3184
      %v3213 = vadd.f32 %v2826, %v3189
      %v3214 = vadd.f32 %v2827, %v3192
      %v3215 = vadd.f32 %v2828, %v3197
      %v3216 = vadd.f32 %v2829, %v3200
      %v3217 = vadd.f32 %v2830, %v3205
      %v3218 = vadd.f32 %v2831, %v3208
      %3219 = vrot.lane.b32.xlu0 %v519, 114
      %v3220 = vpop.permute.xlu0 %3219
      %3221 = vrot.lane.b32.xlu0 %v520, 114
      %v3222 = vpop.permute.xlu0 %3221
      %3223 = vrot.lane.b32.xlu0 %v521, 114
      %v3224 = vpop.permute.xlu0 %3223
      %3225 = vrot.lane.b32.xlu0 %v522, 114
      %v3226 = vpop.permute.xlu0 %3225
      %3227 = vrot.lane.b32.xlu0 %v519, 98
      %v3228 = vpop.permute.xlu0 %3227
      %3229 = vrot.lane.b32.xlu0 %v520, 98
      %v3230 = vpop.permute.xlu0 %3229
      %3231 = vrot.lane.b32.xlu0 %v521, 98
      %v3232 = vpop.permute.xlu0 %3231
      %3233 = vrot.lane.b32.xlu0 %v522, 98
      %v3234 = vpop.permute.xlu0 %3233
      %v3236 = vsel %vm535, %v3220, 0
      %v3239 = vsel %vm535, %v3222, 0
      %v3242 = vsel %vm535, %v3224, 0
      %v3245 = vsel %vm535, %v3226, 0
      %v3248 = vsel %vm535, %v3228, 0
      %v3251 = vsel %vm535, %v3230, 0
      %v3254 = vsel %vm535, %v3232, 0
      %v3257 = vsel %vm535, %v3234, 0
      %3259 = vmatprep.subr.bf16.mxu0 0
      %3260 = vmatpush1.bf16.xpose.msra.mxu0 0
      %3261 = vmatprep.subr.bf16.mxu0 0
      %3262 = vmatpush1.bf16.xpose.msra.mxu0 0
      %3263 = vmatprep.subr.bf16.mxu0 0
      %3264 = vmatpush1.bf16.xpose.msra.mxu0 0
      %3265 = vmatprep.subr.bf16.mxu0 0
      %3266 = vmatpush1.bf16.xpose.msra.mxu0 0
      %3267 = vmatprep.subr.bf16.mxu0 0
      %3268 = vmatpush1.bf16.xpose.msra.mxu0 %v3257
      %3269 = vmatprep.subr.bf16.mxu0 0
      %3270 = vmatpush1.bf16.xpose.msra.mxu0 %v3254
      %3271 = vmatprep.subr.bf16.mxu0 0
      %3272 = vmatpush1.bf16.xpose.msra.mxu0 %v3251
      %3273 = vmatprep.subr.bf16.mxu0 0
      %3274 = vmatpush1.bf16.xpose.msra.mxu0 %v3248
      %3275 = vmatprep.subr.bf16.mxu0 0
      %3276 = vmatpush2.bf16.xpose.msra.mxu0 0
      %3277 = vmatprep.subr.bf16.mxu0 0
      %3278 = vmatpush2.bf16.xpose.msra.mxu0 0
      %3279 = vmatprep.subr.bf16.mxu0 0
      %3280 = vmatpush2.bf16.xpose.msra.mxu0 0
      %3281 = vmatprep.subr.bf16.mxu0 0
      %3282 = vmatpush2.bf16.xpose.msra.mxu0 0
      %3283 = vmatprep.subr.bf16.mxu0 0
      %3284 = vmatpush2.bf16.xpose.msra.mxu0 0
      %3285 = vmatprep.subr.bf16.mxu0 0
      %3286 = vmatpush2.bf16.xpose.msra.mxu0 0
      %3287 = vmatprep.subr.bf16.mxu0 0
      %3288 = vmatpush2.bf16.xpose.msra.mxu0 0
      %3289 = vmatprep.subr.bf16.mxu0 0
      %3290 = vmatpush2.bf16.xpose.msra.mxu0 0
      %3291 = vmatprep.mubr.bf16.mxu0 0
      %3292 = vmatmul.mubr.bf16.gmra.mxu0 %v3236
      %v3293 = vpop.f32.mrf.mxu0
      %v3294 = vadd.f32 0.0, %v3293
      %v3295 = vpop.f32.mrf.mxu0
      %v3296 = vpop.f32.mrf.mxu0
      %v3297 = vadd.f32 0.0, %v3296
      %v3298 = vpop.f32.mrf.mxu0
      %3299 = vmatprep.mubr.bf16.mxu0 0
      %3300 = vmatmul.mubr.bf16.gmra.mxu0 %v3239
      %v3301 = vpop.f32.mrf.mxu0
      %v3302 = vadd.f32 0.0, %v3301
      %v3303 = vpop.f32.mrf.mxu0
      %v3304 = vpop.f32.mrf.mxu0
      %v3305 = vadd.f32 0.0, %v3304
      %v3306 = vpop.f32.mrf.mxu0
      %3307 = vmatprep.mubr.bf16.mxu0 0
      %3308 = vmatmul.mubr.bf16.gmra.mxu0 %v3242
      %v3309 = vpop.f32.mrf.mxu0
      %v3310 = vadd.f32 0.0, %v3309
      %v3311 = vpop.f32.mrf.mxu0
      %v3312 = vpop.f32.mrf.mxu0
      %v3313 = vadd.f32 0.0, %v3312
      %v3314 = vpop.f32.mrf.mxu0
      %3315 = vmatprep.mubr.bf16.mxu0 0
      %3316 = vmatmul.mubr.bf16.gmra.mxu0 %v3245
      %v3317 = vpop.f32.mrf.mxu0
      %v3318 = vadd.f32 0.0, %v3317
      %v3319 = vpop.f32.mrf.mxu0
      %v3320 = vpop.f32.mrf.mxu0
      %v3321 = vadd.f32 0.0, %v3320
      %v3322 = vpop.f32.mrf.mxu0
      %3323 = vdwg.mxu0
      %v3324 = vmul.f32 %v3294, 0.70710677
      %v3325 = vmul.f32 %v3297, 0.70710677
      %v3326 = vmul.f32 %v3302, 0.70710677
      %v3327 = vmul.f32 %v3305, 0.70710677
      %v3328 = vmul.f32 %v3310, 0.70710677
      %v3329 = vmul.f32 %v3313, 0.70710677
      %v3330 = vmul.f32 %v3318, 0.70710677
      %v3331 = vmul.f32 %v3321, 0.70710677
      %v3332 = vsel %vm633, %v3324, -inf
      %3333 = vmax.xlane.f32.xlu0 %v3332
      %v3334 = vpop.xlane.xlu0 %3333
      %v3335 = vsel %vm633, %v3325, -inf
      %3336 = vmax.xlane.f32.xlu0 %v3335
      %v3337 = vpop.xlane.xlu0 %3336
      %v3338 = vsel %vm633, %v3326, -inf
      %3339 = vmax.xlane.f32.xlu0 %v3338
      %v3340 = vpop.xlane.xlu0 %3339
      %v3341 = vsel %vm633, %v3327, -inf
      %3342 = vmax.xlane.f32.xlu0 %v3341
      %v3343 = vpop.xlane.xlu0 %3342
      %v3344 = vsel %vm633, %v3328, -inf
      %3345 = vmax.xlane.f32.xlu0 %v3344
      %v3346 = vpop.xlane.xlu0 %3345
      %v3347 = vsel %vm633, %v3329, -inf
      %3348 = vmax.xlane.f32.xlu0 %v3347
      %v3349 = vpop.xlane.xlu0 %3348
      %v3350 = vsel %vm633, %v3330, -inf
      %3351 = vmax.xlane.f32.xlu0 %v3350
      %v3352 = vpop.xlane.xlu0 %3351
      %v3353 = vsel %vm633, %v3331, -inf
      %3354 = vmax.xlane.f32.xlu0 %v3353
      %v3355 = vpop.xlane.xlu0 %3354
      %v3356 = vsub.f32 %v3324, %v3334
      %v3357 = vsub.f32 %v3325, %v3337
      %v3358 = vsub.f32 %v3326, %v3340
      %v3359 = vsub.f32 %v3327, %v3343
      %v3360 = vsub.f32 %v3328, %v3346
      %v3361 = vsub.f32 %v3329, %v3349
      %v3362 = vsub.f32 %v3330, %v3352
      %v3363 = vsub.f32 %v3331, %v3355
      %v3364 = vmul.f32 %v3356, 1.442695
      %v3365 = vpow.pop %v3364
      %v3366 = vmul.f32 %v3357, 1.442695
      %v3367 = vpow.pop %v3366
      %v3368 = vmul.f32 %v3358, 1.442695
      %v3369 = vpow.pop %v3368
      %v3370 = vmul.f32 %v3359, 1.442695
      %v3371 = vpow.pop %v3370
      %v3372 = vmul.f32 %v3360, 1.442695
      %v3373 = vpow.pop %v3372
      %v3374 = vmul.f32 %v3361, 1.442695
      %v3375 = vpow.pop %v3374
      %v3376 = vmul.f32 %v3362, 1.442695
      %v3377 = vpow.pop %v3376
      %v3378 = vmul.f32 %v3363, 1.442695
      %v3379 = vpow.pop %v3378
      %v3380 = vsel %vm633, %v3365, 0.0
      %3381 = vadd.xlane.f32.xlu0 %v3380
      %v3382 = vpop.xlane.xlu0 %3381
      %v3383 = vsel %vm633, %v3367, 0.0
      %3384 = vadd.xlane.f32.xlu0 %v3383
      %v3385 = vpop.xlane.xlu0 %3384
      %v3386 = vsel %vm633, %v3369, 0.0
      %3387 = vadd.xlane.f32.xlu0 %v3386
      %v3388 = vpop.xlane.xlu0 %3387
      %v3389 = vsel %vm633, %v3371, 0.0
      %3390 = vadd.xlane.f32.xlu0 %v3389
      %v3391 = vpop.xlane.xlu0 %3390
      %v3392 = vsel %vm633, %v3373, 0.0
      %3393 = vadd.xlane.f32.xlu0 %v3392
      %v3394 = vpop.xlane.xlu0 %3393
      %v3395 = vsel %vm633, %v3375, 0.0
      %3396 = vadd.xlane.f32.xlu0 %v3395
      %v3397 = vpop.xlane.xlu0 %3396
      %v3398 = vsel %vm633, %v3377, 0.0
      %3399 = vadd.xlane.f32.xlu0 %v3398
      %v3400 = vpop.xlane.xlu0 %3399
      %v3401 = vsel %vm633, %v3379, 0.0
      %3402 = vadd.xlane.f32.xlu0 %v3401
      %v3403 = vpop.xlane.xlu0 %3402
      %v3404 = vrcp.pop %v3382
      %v3405 = vmul.f32 %v3365, %v3404
      %v3406 = vrcp.pop %v3385
      %v3407 = vmul.f32 %v3367, %v3406
      %v3408 = vrcp.pop %v3388
      %v3409 = vmul.f32 %v3369, %v3408
      %v3410 = vrcp.pop %v3391
      %v3411 = vmul.f32 %v3371, %v3410
      %v3412 = vrcp.pop %v3394
      %v3413 = vmul.f32 %v3373, %v3412
      %v3414 = vrcp.pop %v3397
      %v3415 = vmul.f32 %v3375, %v3414
      %v3416 = vrcp.pop %v3400
      %v3417 = vmul.f32 %v3377, %v3416
      %v3418 = vrcp.pop %v3403
      %v3419 = vmul.f32 %v3379, %v3418
      %v3420 = vpack.c.bf16 %v3407, %v3405
      %v3421 = vpack.c.bf16 %v3411, %v3409
      %v3422 = vpack.c.bf16 %v3415, %v3413
      %v3423 = vpack.c.bf16 %v3419, %v3417
      %3424 = vrot.lane.b32.xlu0 %v519, 82
      %v3425 = vpop.permute.xlu0 %3424
      %3426 = vrot.lane.b32.xlu0 %v520, 82
      %v3427 = vpop.permute.xlu0 %3426
      %3428 = vrot.lane.b32.xlu0 %v521, 82
      %v3429 = vpop.permute.xlu0 %3428
      %3430 = vrot.lane.b32.xlu0 %v522, 82
      %v3431 = vpop.permute.xlu0 %3430
      %v3437 = vsel %vm633, %v3420, 0
      %v3440 = vsel %vm633, %v3421, 0
      %v3443 = vsel %vm633, %v3422, 0
      %v3446 = vsel %vm633, %v3423, 0
      %3448 = vmatprep.subr.bf16.mxu0 0
      %3449 = vmatpush1.bf16.msra.mxu0 0
      %3450 = vmatprep.subr.bf16.mxu0 0
      %3451 = vmatpush1.bf16.msra.mxu0 0
      %3452 = vmatprep.subr.bf16.mxu0 0
      %3453 = vmatpush1.bf16.msra.mxu0 0
      %3454 = vmatprep.subr.bf16.mxu0 0
      %3455 = vmatpush1.bf16.msra.mxu0 0
      %3456 = vmatprep.subr.bf16.mxu0 0
      %3457 = vmatpush1.bf16.msra.mxu0 %v3431
      %3458 = vmatprep.subr.bf16.mxu0 0
      %3459 = vmatpush1.bf16.msra.mxu0 %v3429
      %3460 = vmatprep.subr.bf16.mxu0 0
      %3461 = vmatpush1.bf16.msra.mxu0 %v3427
      %3462 = vmatprep.subr.bf16.mxu0 0
      %3463 = vmatpush1.bf16.msra.mxu0 %v3425
      %3464 = vmatprep.subr.bf16.mxu0 0
      %3465 = vmatpush2.bf16.msra.mxu0 0
      %3466 = vmatprep.subr.bf16.mxu0 0
      %3467 = vmatpush2.bf16.msra.mxu0 0
      %3468 = vmatprep.subr.bf16.mxu0 0
      %3469 = vmatpush2.bf16.msra.mxu0 0
      %3470 = vmatprep.subr.bf16.mxu0 0
      %3471 = vmatpush2.bf16.msra.mxu0 0
      %3472 = vmatprep.subr.bf16.mxu0 0
      %3473 = vmatpush2.bf16.msra.mxu0 0
      %3474 = vmatprep.subr.bf16.mxu0 0
      %3475 = vmatpush2.bf16.msra.mxu0 0
      %3476 = vmatprep.subr.bf16.mxu0 0
      %3477 = vmatpush2.bf16.msra.mxu0 0
      %3478 = vmatprep.subr.bf16.mxu0 0
      %3479 = vmatpush2.bf16.msra.mxu0 0
      %3480 = vmatprep.mubr.bf16.mxu0 0
      %3481 = vmatmul.mubr.bf16.gmra.mxu0 %v3437
      %v3482 = vpop.f32.mrf.mxu0
      %v3483 = vadd.f32 0.0, %v3482
      %v3484 = vpop.f32.mrf.mxu0
      %v3485 = vpop.f32.mrf.mxu0
      %v3486 = vadd.f32 0.0, %v3485
      %v3487 = vpop.f32.mrf.mxu0
      %3488 = vmatprep.mubr.bf16.mxu0 0
      %3489 = vmatmul.mubr.bf16.gmra.mxu0 %v3440
      %v3490 = vpop.f32.mrf.mxu0
      %v3491 = vadd.f32 0.0, %v3490
      %v3492 = vpop.f32.mrf.mxu0
      %v3493 = vpop.f32.mrf.mxu0
      %v3494 = vadd.f32 0.0, %v3493
      %v3495 = vpop.f32.mrf.mxu0
      %3496 = vmatprep.mubr.bf16.mxu0 0
      %3497 = vmatmul.mubr.bf16.gmra.mxu0 %v3443
      %v3498 = vpop.f32.mrf.mxu0
      %v3499 = vadd.f32 0.0, %v3498
      %v3500 = vpop.f32.mrf.mxu0
      %v3501 = vpop.f32.mrf.mxu0
      %v3502 = vadd.f32 0.0, %v3501
      %v3503 = vpop.f32.mrf.mxu0
      %3504 = vmatprep.mubr.bf16.mxu0 0
      %3505 = vmatmul.mubr.bf16.gmra.mxu0 %v3446
      %v3506 = vpop.f32.mrf.mxu0
      %v3507 = vadd.f32 0.0, %v3506
      %v3508 = vpop.f32.mrf.mxu0
      %v3509 = vpop.f32.mrf.mxu0
      %v3510 = vadd.f32 0.0, %v3509
      %v3511 = vpop.f32.mrf.mxu0
      %3512 = vdwg.mxu0
      %v3513 = vpack.c.bf16 %v3486, %v3483
      %v3514 = vpack.c.bf16 %v3494, %v3491
      %v3515 = vpack.c.bf16 %v3502, %v3499
      %v3516 = vpack.c.bf16 %v3510, %v3507
      %v3517 = vrot.slane %v2742, 3
      %v3519 = vsel %vm535, %v3513, 0
      %v3522 = vsel %vm535, %v3514, 0
      %v3525 = vsel %vm535, %v3515, 0
      %v3528 = vsel %vm535, %v3516, 0
      %v3531 = vsel %vm1133, %v3517, 0
      %3533 = vmatprep.subr.bf16.mxu0 0
      %3534 = vmatpush1.bf16.msra.mxu0 0
      %3535 = vmatprep.subr.bf16.mxu0 0
      %3536 = vmatpush1.bf16.msra.mxu0 0
      %3537 = vmatprep.subr.bf16.mxu0 0
      %3538 = vmatpush1.bf16.msra.mxu0 0
      %3539 = vmatprep.subr.bf16.mxu0 0
      %3540 = vmatpush1.bf16.msra.mxu0 0
      %3541 = vmatprep.subr.bf16.mxu0 0
      %3542 = vmatpush1.bf16.msra.mxu0 0
      %3543 = vmatprep.subr.bf16.mxu0 0
      %3544 = vmatpush1.bf16.msra.mxu0 0
      %3545 = vmatprep.subr.bf16.mxu0 0
      %3546 = vmatpush1.bf16.msra.mxu0 0
      %3547 = vmatprep.subr.bf16.mxu0 0
      %3548 = vmatpush1.bf16.msra.mxu0 %v3531
      %3549 = vmatprep.subr.bf16.mxu0 0
      %3550 = vmatpush2.bf16.msra.mxu0 0
      %3551 = vmatprep.subr.bf16.mxu0 0
      %3552 = vmatpush2.bf16.msra.mxu0 0
      %3553 = vmatprep.subr.bf16.mxu0 0
      %3554 = vmatpush2.bf16.msra.mxu0 0
      %3555 = vmatprep.subr.bf16.mxu0 0
      %3556 = vmatpush2.bf16.msra.mxu0 0
      %3557 = vmatprep.subr.bf16.mxu0 0
      %3558 = vmatpush2.bf16.msra.mxu0 0
      %3559 = vmatprep.subr.bf16.mxu0 0
      %3560 = vmatpush2.bf16.msra.mxu0 0
      %3561 = vmatprep.subr.bf16.mxu0 0
      %3562 = vmatpush2.bf16.msra.mxu0 0
      %3563 = vmatprep.subr.bf16.mxu0 0
      %3564 = vmatpush2.bf16.msra.mxu0 0
      %3565 = vmatprep.mubr.bf16.mxu0 0
      %3566 = vmatmul.mubr.bf16.gmra.mxu0 %v3519
      %v3567 = vpop.f32.mrf.mxu0
      %v3568 = vadd.f32 0.0, %v3567
      %v3569 = vpop.f32.mrf.mxu0
      %v3570 = vpop.f32.mrf.mxu0
      %v3571 = vadd.f32 0.0, %v3570
      %v3572 = vpop.f32.mrf.mxu0
      %3573 = vmatprep.mubr.bf16.mxu0 0
      %3574 = vmatmul.mubr.bf16.gmra.mxu0 %v3522
      %v3575 = vpop.f32.mrf.mxu0
      %v3576 = vadd.f32 0.0, %v3575
      %v3577 = vpop.f32.mrf.mxu0
      %v3578 = vpop.f32.mrf.mxu0
      %v3579 = vadd.f32 0.0, %v3578
      %v3580 = vpop.f32.mrf.mxu0
      %3581 = vmatprep.mubr.bf16.mxu0 0
      %3582 = vmatmul.mubr.bf16.gmra.mxu0 %v3525
      %v3583 = vpop.f32.mrf.mxu0
      %v3584 = vadd.f32 0.0, %v3583
      %v3585 = vpop.f32.mrf.mxu0
      %v3586 = vpop.f32.mrf.mxu0
      %v3587 = vadd.f32 0.0, %v3586
      %v3588 = vpop.f32.mrf.mxu0
      %3589 = vmatprep.mubr.bf16.mxu0 0
      %3590 = vmatmul.mubr.bf16.gmra.mxu0 %v3528
      %v3591 = vpop.f32.mrf.mxu0
      %v3592 = vadd.f32 0.0, %v3591
      %v3593 = vpop.f32.mrf.mxu0
      %v3594 = vpop.f32.mrf.mxu0
      %v3595 = vadd.f32 0.0, %v3594
      %v3596 = vpop.f32.mrf.mxu0
      %3597 = vdwg.mxu0
      %v3598 = vadd.f32 %v3211, %v3568
      %v3599 = vadd.f32 %v3212, %v3571
      %v3600 = vadd.f32 %v3213, %v3576
      %v3601 = vadd.f32 %v3214, %v3579
      %v3602 = vadd.f32 %v3215, %v3584
      %v3603 = vadd.f32 %v3216, %v3587
      %v3604 = vadd.f32 %v3217, %v3592
      %v3605 = vadd.f32 %v3218, %v3595
      %v3606 = vadd.f32 %v396, %v3598
      %v3607 = vadd.f32 %v397, %v3599
      %v3608 = vadd.f32 %v398, %v3600
      %v3609 = vadd.f32 %v399, %v3601
      %v3610 = vadd.f32 %v400, %v3602
      %v3611 = vadd.f32 %v401, %v3603
      %v3612 = vadd.f32 %v402, %v3604
      %v3613 = vadd.f32 %v403, %v3605
      %v3614 = vld [vmem:[%s4] sm:$0x1]
      %v3616 = vlaneseq
      %v3617 = vshrl.u32 %v3616, 7
      %v3618 = vsub.s32 0, %v3617
      %v3619 = vrot.slane %v3614, %v3618
      %v3621 = vadd.f32 %v3606, %v3619
      %v3622 = vadd.f32 %v3607, %v3619
      %v3623 = vadd.f32 %v3608, %v3619
      %v3624 = vadd.f32 %v3609, %v3619
      %v3625 = vadd.f32 %v3610, %v3619
      %v3626 = vadd.f32 %v3611, %v3619
      %v3627 = vadd.f32 %v3612, %v3619
      %v3628 = vadd.f32 %v3613, %v3619
      %v3629 = vld [vmem:[%s9] sm:$0x1]
      %v3630 = vld [vmem:[%s10] sm:$0x1]
      %v3631 = vsel %vm439, %v3621, 0.0
      %3632 = vadd.xlane.f32.xlu0 %v3631
      %v3633 = vpop.xlane.xlu0 %3632
      %v3634 = vsel %vm439, %v3622, 0.0
      %3635 = vadd.xlane.f32.xlu0 %v3634
      %v3636 = vpop.xlane.xlu0 %3635
      %v3637 = vsel %vm439, %v3623, 0.0
      %3638 = vadd.xlane.f32.xlu0 %v3637
      %v3639 = vpop.xlane.xlu0 %3638
      %v3640 = vsel %vm439, %v3624, 0.0
      %3641 = vadd.xlane.f32.xlu0 %v3640
      %v3642 = vpop.xlane.xlu0 %3641
      %v3643 = vsel %vm439, %v3625, 0.0
      %3644 = vadd.xlane.f32.xlu0 %v3643
      %v3645 = vpop.xlane.xlu0 %3644
      %v3646 = vsel %vm439, %v3626, 0.0
      %3647 = vadd.xlane.f32.xlu0 %v3646
      %v3648 = vpop.xlane.xlu0 %3647
      %v3649 = vsel %vm439, %v3627, 0.0
      %3650 = vadd.xlane.f32.xlu0 %v3649
      %v3651 = vpop.xlane.xlu0 %3650
      %v3652 = vsel %vm439, %v3628, 0.0
      %3653 = vadd.xlane.f32.xlu0 %v3652
      %v3654 = vpop.xlane.xlu0 %3653
      %v3655 = vrcp.pop 16.0
      %v3656 = vmul.f32 %v3633, %v3655
      %v3657 = vmul.f32 %v3636, %v3655
      %v3658 = vmul.f32 %v3639, %v3655
      %v3659 = vmul.f32 %v3642, %v3655
      %v3660 = vmul.f32 %v3645, %v3655
      %v3661 = vmul.f32 %v3648, %v3655
      %v3662 = vmul.f32 %v3651, %v3655
      %v3663 = vmul.f32 %v3654, %v3655
      %v3664 = vsub.f32 %v3621, %v3656
      %v3665 = vsub.f32 %v3622, %v3657
      %v3666 = vsub.f32 %v3623, %v3658
      %v3667 = vsub.f32 %v3624, %v3659
      %v3668 = vsub.f32 %v3625, %v3660
      %v3669 = vsub.f32 %v3626, %v3661
      %v3670 = vsub.f32 %v3627, %v3662
      %v3671 = vsub.f32 %v3628, %v3663
      %v3672 = vmul.f32 %v3664, %v3664
      %v3673 = vmul.f32 %v3665, %v3665
      %v3674 = vmul.f32 %v3666, %v3666
      %v3675 = vmul.f32 %v3667, %v3667
      %v3676 = vmul.f32 %v3668, %v3668
      %v3677 = vmul.f32 %v3669, %v3669
      %v3678 = vmul.f32 %v3670, %v3670
      %v3679 = vmul.f32 %v3671, %v3671
      %v3680 = vsel %vm439, %v3672, 0.0
      %3681 = vadd.xlane.f32.xlu0 %v3680
      %v3682 = vpop.xlane.xlu0 %3681
      %v3683 = vsel %vm439, %v3673, 0.0
      %3684 = vadd.xlane.f32.xlu0 %v3683
      %v3685 = vpop.xlane.xlu0 %3684
      %v3686 = vsel %vm439, %v3674, 0.0
      %3687 = vadd.xlane.f32.xlu0 %v3686
      %v3688 = vpop.xlane.xlu0 %3687
      %v3689 = vsel %vm439, %v3675, 0.0
      %3690 = vadd.xlane.f32.xlu0 %v3689
      %v3691 = vpop.xlane.xlu0 %3690
      %v3692 = vsel %vm439, %v3676, 0.0
      %3693 = vadd.xlane.f32.xlu0 %v3692
      %v3694 = vpop.xlane.xlu0 %3693
      %v3695 = vsel %vm439, %v3677, 0.0
      %3696 = vadd.xlane.f32.xlu0 %v3695
      %v3697 = vpop.xlane.xlu0 %3696
      %v3698 = vsel %vm439, %v3678, 0.0
      %3699 = vadd.xlane.f32.xlu0 %v3698
      %v3700 = vpop.xlane.xlu0 %3699
      %v3701 = vsel %vm439, %v3679, 0.0
      %3702 = vadd.xlane.f32.xlu0 %v3701
      %v3703 = vpop.xlane.xlu0 %3702
      %v3704 = vmul.f32 %v3682, %v3655
      %v3705 = vmul.f32 %v3685, %v3655
      %v3706 = vmul.f32 %v3688, %v3655
      %v3707 = vmul.f32 %v3691, %v3655
      %v3708 = vmul.f32 %v3694, %v3655
      %v3709 = vmul.f32 %v3697, %v3655
      %v3710 = vmul.f32 %v3700, %v3655
      %v3711 = vmul.f32 %v3703, %v3655
      %v3712 = vadd.f32 %v3704, 1e-05
      %v3713 = vadd.f32 %v3705, 1e-05
      %v3714 = vadd.f32 %v3706, 1e-05
      %v3715 = vadd.f32 %v3707, 1e-05
      %v3716 = vadd.f32 %v3708, 1e-05
      %v3717 = vadd.f32 %v3709, 1e-05
      %v3718 = vadd.f32 %v3710, 1e-05
      %v3719 = vadd.f32 %v3711, 1e-05
      %v3720 = vrsqrt.pop %v3712
      %v3721 = vrsqrt.pop %v3713
      %v3722 = vrsqrt.pop %v3714
      %v3723 = vrsqrt.pop %v3715
      %v3724 = vrsqrt.pop %v3716
      %v3725 = vrsqrt.pop %v3717
      %v3726 = vrsqrt.pop %v3718
      %v3727 = vrsqrt.pop %v3719
      %v3728 = vmul.f32 %v3664, %v3720
      %v3729 = vmul.f32 %v3665, %v3721
      %v3730 = vmul.f32 %v3666, %v3722
      %v3731 = vmul.f32 %v3667, %v3723
      %v3732 = vmul.f32 %v3668, %v3724
      %v3733 = vmul.f32 %v3669, %v3725
      %v3734 = vmul.f32 %v3670, %v3726
      %v3735 = vmul.f32 %v3671, %v3727
      %v3737 = vlaneseq
      %v3738 = vshrl.u32 %v3737, 7
      %v3739 = vsub.s32 0, %v3738
      %v3740 = vrot.slane %v3629, %v3739
      %v3742 = vmul.f32 %v3728, %v3740
      %v3743 = vmul.f32 %v3729, %v3740
      %v3744 = vmul.f32 %v3730, %v3740
      %v3745 = vmul.f32 %v3731, %v3740
      %v3746 = vmul.f32 %v3732, %v3740
      %v3747 = vmul.f32 %v3733, %v3740
      %v3748 = vmul.f32 %v3734, %v3740
      %v3749 = vmul.f32 %v3735, %v3740
      %v3751 = vlaneseq
      %v3752 = vshrl.u32 %v3751, 7
      %v3753 = vsub.s32 0, %v3752
      %v3754 = vrot.slane %v3630, %v3753
      %v3756 = vadd.f32 %v3742, %v3754
      %v3757 = vadd.f32 %v3743, %v3754
      %v3758 = vadd.f32 %v3744, %v3754
      %v3759 = vadd.f32 %v3745, %v3754
      %v3760 = vadd.f32 %v3746, %v3754
      %v3761 = vadd.f32 %v3747, %v3754
      %v3762 = vadd.f32 %v3748, %v3754
      %v3763 = vadd.f32 %v3749, %v3754
      %v3764 = vpack.c.bf16 %v3757, %v3756
      %v3765 = vpack.c.bf16 %v3759, %v3758
      %v3766 = vpack.c.bf16 %v3761, %v3760
      %v3767 = vpack.c.bf16 %v3763, %v3762
      %v3768 = vld [vmem:[%s5] sm:$0xf]
      %v3769 = vld [vmem:[%s5 + $0x4] sm:$0xf]
      %v3770 = vld [vmem:[%s6] sm:$0x1]
      %v3772 = vlaneseq
      %v3773 = vshrl.u32 %v3772, 7
      %v3774 = vsub.s32 0, %v3773
      %v3775 = vrot.slane %v3770, %v3774
      %v3779 = vunpack.c.l.b16 %v3768
      %v3780 = vunpack.c.l.b16 %v3769
      %v3781 = vpack.c.b16 %v3780, %v3779
      %v3784 = vsel %vm439, %v3764, 0
      %v3787 = vsel %vm439, %v3765, 0
      %v3790 = vsel %vm439, %v3766, 0
      %v3793 = vsel %vm439, %v3767, 0
      %3795 = vmatprep.subr.bf16.mxu0 0
      %3796 = vmatpush1.bf16.msra.mxu0 0
      %3797 = vmatprep.subr.bf16.mxu0 0
      %3798 = vmatpush1.bf16.msra.mxu0 0
      %3799 = vmatprep.subr.bf16.mxu0 0
      %3800 = vmatpush1.bf16.msra.mxu0 0
      %3801 = vmatprep.subr.bf16.mxu0 0
      %3802 = vmatpush1.bf16.msra.mxu0 0
      %3803 = vmatprep.subr.bf16.mxu0 0
      %3804 = vmatpush1.bf16.msra.mxu0 0
      %3805 = vmatprep.subr.bf16.mxu0 0
      %3806 = vmatpush1.bf16.msra.mxu0 0
      %3807 = vmatprep.subr.bf16.mxu0 0
      %3808 = vmatpush1.bf16.msra.mxu0 0
      %3809 = vmatprep.subr.bf16.mxu0 0
      %3810 = vmatpush1.bf16.msra.mxu0 %v3781
      %3811 = vmatprep.subr.bf16.mxu0 0
      %3812 = vmatpush2.bf16.msra.mxu0 0
      %3813 = vmatprep.subr.bf16.mxu0 0
      %3814 = vmatpush2.bf16.msra.mxu0 0
      %3815 = vmatprep.subr.bf16.mxu0 0
      %3816 = vmatpush2.bf16.msra.mxu0 0
      %3817 = vmatprep.subr.bf16.mxu0 0
      %3818 = vmatpush2.bf16.msra.mxu0 0
      %3819 = vmatprep.subr.bf16.mxu0 0
      %3820 = vmatpush2.bf16.msra.mxu0 0
      %3821 = vmatprep.subr.bf16.mxu0 0
      %3822 = vmatpush2.bf16.msra.mxu0 0
      %3823 = vmatprep.subr.bf16.mxu0 0
      %3824 = vmatpush2.bf16.msra.mxu0 0
      %3825 = vmatprep.subr.bf16.mxu0 0
      %3826 = vmatpush2.bf16.msra.mxu0 0
      %3827 = vmatprep.mubr.bf16.mxu0 0
      %3828 = vmatmul.mubr.bf16.gmra.mxu0 %v3784
      %v3829 = vpop.f32.mrf.mxu0
      %v3830 = vadd.f32 %v3775, %v3829
      %v3831 = vpop.f32.mrf.mxu0
      %v3832 = vpop.f32.mrf.mxu0
      %v3833 = vadd.f32 %v3775, %v3832
      %v3834 = vpop.f32.mrf.mxu0
      %3835 = vmatprep.mubr.bf16.mxu0 0
      %3836 = vmatmul.mubr.bf16.gmra.mxu0 %v3787
      %v3837 = vpop.f32.mrf.mxu0
      %v3838 = vadd.f32 %v3775, %v3837
      %v3839 = vpop.f32.mrf.mxu0
      %v3840 = vpop.f32.mrf.mxu0
      %v3841 = vadd.f32 %v3775, %v3840
      %v3842 = vpop.f32.mrf.mxu0
      %3843 = vmatprep.mubr.bf16.mxu0 0
      %3844 = vmatmul.mubr.bf16.gmra.mxu0 %v3790
      %v3845 = vpop.f32.mrf.mxu0
      %v3846 = vadd.f32 %v3775, %v3845
      %v3847 = vpop.f32.mrf.mxu0
      %v3848 = vpop.f32.mrf.mxu0
      %v3849 = vadd.f32 %v3775, %v3848
      %v3850 = vpop.f32.mrf.mxu0
      %3851 = vmatprep.mubr.bf16.mxu0 0
      %3852 = vmatmul.mubr.bf16.gmra.mxu0 %v3793
      %v3853 = vpop.f32.mrf.mxu0
      %v3854 = vadd.f32 %v3775, %v3853
      %v3855 = vpop.f32.mrf.mxu0
      %v3856 = vpop.f32.mrf.mxu0
      %v3857 = vadd.f32 %v3775, %v3856
      %v3858 = vpop.f32.mrf.mxu0
      %3859 = vdwg.mxu0
      %v3860 = vmul.f32 %v3830, 0.5
      %v3861 = vmul.f32 %v3833, 0.5
      %v3862 = vmul.f32 %v3838, 0.5
      %v3863 = vmul.f32 %v3841, 0.5
      %v3864 = vmul.f32 %v3846, 0.5
      %v3865 = vmul.f32 %v3849, 0.5
      %v3866 = vmul.f32 %v3854, 0.5
      %v3867 = vmul.f32 %v3857, 0.5
      %v3868 = vmul.f32 %v3830, 0.70710677
      %v3869 = vmul.f32 %v3833, 0.70710677
      %v3870 = vmul.f32 %v3838, 0.70710677
      %v3871 = vmul.f32 %v3841, 0.70710677
      %v3872 = vmul.f32 %v3846, 0.70710677
      %v3873 = vmul.f32 %v3849, 0.70710677
      %v3874 = vmul.f32 %v3854, 0.70710677
      %v3875 = vmul.f32 %v3857, 0.70710677
      %v3876 = verf.f32.pop %v3868
      %v3877 = verf.f32.pop %v3869
      %v3878 = verf.f32.pop %v3870
      %v3879 = verf.f32.pop %v3871
      %v3880 = verf.f32.pop %v3872
      %v3881 = verf.f32.pop %v3873
      %v3882 = verf.f32.pop %v3874
      %v3883 = verf.f32.pop %v3875
      %v3884 = vadd.f32 %v3876, 1.0
      %v3885 = vadd.f32 %v3877, 1.0
      %v3886 = vadd.f32 %v3878, 1.0
      %v3887 = vadd.f32 %v3879, 1.0
      %v3888 = vadd.f32 %v3880, 1.0
      %v3889 = vadd.f32 %v3881, 1.0
      %v3890 = vadd.f32 %v3882, 1.0
      %v3891 = vadd.f32 %v3883, 1.0
      %v3892 = vmul.f32 %v3860, %v3884
      %v3893 = vmul.f32 %v3861, %v3885
      %v3894 = vmul.f32 %v3862, %v3886
      %v3895 = vmul.f32 %v3863, %v3887
      %v3896 = vmul.f32 %v3864, %v3888
      %v3897 = vmul.f32 %v3865, %v3889
      %v3898 = vmul.f32 %v3866, %v3890
      %v3899 = vmul.f32 %v3867, %v3891
      %v3900 = vpack.c.bf16 %v3893, %v3892
      %v3901 = vpack.c.bf16 %v3895, %v3894
      %v3902 = vpack.c.bf16 %v3897, %v3896
      %v3903 = vpack.c.bf16 %v3899, %v3898
      %v3904 = vld [vmem:[%s7] sm:$0xf]
      %v3905 = vld [vmem:[%s7 + $0x4] sm:$0xf]
      %v3906 = vld [vmem:[%s7 + $0x8] sm:$0xf]
      %v3907 = vld [vmem:[%s7 + $0xc] sm:$0xf]
      %v3908 = vld [vmem:[%s7 + $0x10] sm:$0xf]
      %v3909 = vld [vmem:[%s7 + $0x14] sm:$0xf]
      %v3910 = vld [vmem:[%s7 + $0x18] sm:$0xf]
      %v3911 = vld [vmem:[%s7 + $0x1c] sm:$0xf]
      %v3912 = vld [vmem:[%s8] sm:$0x1]
      %v3914 = vlaneseq
      %v3915 = vshrl.u32 %v3914, 7
      %v3916 = vsub.s32 0, %v3915
      %v3917 = vrot.slane %v3912, %v3916
      %v3927 = vunpack.c.l.b16 %v3904
      %v3928 = vunpack.c.l.b16 %v3905
      %v3929 = vunpack.c.l.b16 %v3906
      %v3930 = vunpack.c.l.b16 %v3907
      %v3931 = vunpack.c.l.b16 %v3908
      %v3932 = vunpack.c.l.b16 %v3909
      %v3933 = vunpack.c.l.b16 %v3910
      %v3934 = vunpack.c.l.b16 %v3911
      %v3935 = vpack.c.b16 %v3928, %v3927
      %v3936 = vpack.c.b16 %v3930, %v3929
      %v3937 = vpack.c.b16 %v3932, %v3931
      %v3938 = vpack.c.b16 %v3934, %v3933
      %v3944 = vsel %vm633, %v3900, 0
      %v3947 = vsel %vm633, %v3901, 0
      %v3950 = vsel %vm633, %v3902, 0
      %v3953 = vsel %vm633, %v3903, 0
      %3955 = vmatprep.subr.bf16.mxu0 0
      %3956 = vmatpush1.bf16.msra.mxu0 0
      %3957 = vmatprep.subr.bf16.mxu0 0
      %3958 = vmatpush1.bf16.msra.mxu0 0
      %3959 = vmatprep.subr.bf16.mxu0 0
      %3960 = vmatpush1.bf16.msra.mxu0 0
      %3961 = vmatprep.subr.bf16.mxu0 0
      %3962 = vmatpush1.bf16.msra.mxu0 0
      %3963 = vmatprep.subr.bf16.mxu0 0
      %3964 = vmatpush1.bf16.msra.mxu0 %v3938
      %3965 = vmatprep.subr.bf16.mxu0 0
      %3966 = vmatpush1.bf16.msra.mxu0 %v3937
      %3967 = vmatprep.subr.bf16.mxu0 0
      %3968 = vmatpush1.bf16.msra.mxu0 %v3936
      %3969 = vmatprep.subr.bf16.mxu0 0
      %3970 = vmatpush1.bf16.msra.mxu0 %v3935
      %3971 = vmatprep.subr.bf16.mxu0 0
      %3972 = vmatpush2.bf16.msra.mxu0 0
      %3973 = vmatprep.subr.bf16.mxu0 0
      %3974 = vmatpush2.bf16.msra.mxu0 0
      %3975 = vmatprep.subr.bf16.mxu0 0
      %3976 = vmatpush2.bf16.msra.mxu0 0
      %3977 = vmatprep.subr.bf16.mxu0 0
      %3978 = vmatpush2.bf16.msra.mxu0 0
      %3979 = vmatprep.subr.bf16.mxu0 0
      %3980 = vmatpush2.bf16.msra.mxu0 0
      %3981 = vmatprep.subr.bf16.mxu0 0
      %3982 = vmatpush2.bf16.msra.mxu0 0
      %3983 = vmatprep.subr.bf16.mxu0 0
      %3984 = vmatpush2.bf16.msra.mxu0 0
      %3985 = vmatprep.subr.bf16.mxu0 0
      %3986 = vmatpush2.bf16.msra.mxu0 0
      %3987 = vmatprep.mubr.bf16.mxu0 0
      %3988 = vmatmul.mubr.bf16.gmra.mxu0 %v3944
      %v3989 = vpop.f32.mrf.mxu0
      %v3990 = vadd.f32 %v3917, %v3989
      %v3991 = vpop.f32.mrf.mxu0
      %v3992 = vpop.f32.mrf.mxu0
      %v3993 = vadd.f32 %v3917, %v3992
      %v3994 = vpop.f32.mrf.mxu0
      %3995 = vmatprep.mubr.bf16.mxu0 0
      %3996 = vmatmul.mubr.bf16.gmra.mxu0 %v3947
      %v3997 = vpop.f32.mrf.mxu0
      %v3998 = vadd.f32 %v3917, %v3997
      %v3999 = vpop.f32.mrf.mxu0
      %v4000 = vpop.f32.mrf.mxu0
      %v4001 = vadd.f32 %v3917, %v4000
      %v4002 = vpop.f32.mrf.mxu0
      %4003 = vmatprep.mubr.bf16.mxu0 0
      %4004 = vmatmul.mubr.bf16.gmra.mxu0 %v3950
      %v4005 = vpop.f32.mrf.mxu0
      %v4006 = vadd.f32 %v3917, %v4005
      %v4007 = vpop.f32.mrf.mxu0
      %v4008 = vpop.f32.mrf.mxu0
      %v4009 = vadd.f32 %v3917, %v4008
      %v4010 = vpop.f32.mrf.mxu0
      %4011 = vmatprep.mubr.bf16.mxu0 0
      %4012 = vmatmul.mubr.bf16.gmra.mxu0 %v3953
      %v4013 = vpop.f32.mrf.mxu0
      %v4014 = vadd.f32 %v3917, %v4013
      %v4015 = vpop.f32.mrf.mxu0
      %v4016 = vpop.f32.mrf.mxu0
      %v4017 = vadd.f32 %v3917, %v4016
      %v4018 = vpop.f32.mrf.mxu0
      %4019 = vdwg.mxu0
      %v4020 = vadd.f32 %v3756, %v3990
      %v4021 = vadd.f32 %v3757, %v3993
      %v4022 = vadd.f32 %v3758, %v3998
      %v4023 = vadd.f32 %v3759, %v4001
      %v4024 = vadd.f32 %v3760, %v4006
      %v4025 = vadd.f32 %v3761, %v4009
      %v4026 = vadd.f32 %v3762, %v4014
      %v4027 = vadd.f32 %v3763, %v4017
      %v4028 = vsel %vm439, %v4020, 0.0
      %4029 = vadd.xlane.f32.xlu0 %v4028
      %v4030 = vpop.xlane.xlu0 %4029
      %v4031 = vsel %vm439, %v4021, 0.0
      %4032 = vadd.xlane.f32.xlu0 %v4031
      %v4033 = vpop.xlane.xlu0 %4032
      %v4034 = vsel %vm439, %v4022, 0.0
      %4035 = vadd.xlane.f32.xlu0 %v4034
      %v4036 = vpop.xlane.xlu0 %4035
      %v4037 = vsel %vm439, %v4023, 0.0
      %4038 = vadd.xlane.f32.xlu0 %v4037
      %v4039 = vpop.xlane.xlu0 %4038
      %v4040 = vsel %vm439, %v4024, 0.0
      %4041 = vadd.xlane.f32.xlu0 %v4040
      %v4042 = vpop.xlane.xlu0 %4041
      %v4043 = vsel %vm439, %v4025, 0.0
      %4044 = vadd.xlane.f32.xlu0 %v4043
      %v4045 = vpop.xlane.xlu0 %4044
      %v4046 = vsel %vm439, %v4026, 0.0
      %4047 = vadd.xlane.f32.xlu0 %v4046
      %v4048 = vpop.xlane.xlu0 %4047
      %v4049 = vsel %vm439, %v4027, 0.0
      %4050 = vadd.xlane.f32.xlu0 %v4049
      %v4051 = vpop.xlane.xlu0 %4050
      %v4052 = vmul.f32 %v4030, %v3655
      %v4053 = vmul.f32 %v4033, %v3655
      %v4054 = vmul.f32 %v4036, %v3655
      %v4055 = vmul.f32 %v4039, %v3655
      %v4056 = vmul.f32 %v4042, %v3655
      %v4057 = vmul.f32 %v4045, %v3655
      %v4058 = vmul.f32 %v4048, %v3655
      %v4059 = vmul.f32 %v4051, %v3655
      %v4060 = vsub.f32 %v4020, %v4052
      %v4061 = vsub.f32 %v4021, %v4053
      %v4062 = vsub.f32 %v4022, %v4054
      %v4063 = vsub.f32 %v4023, %v4055
      %v4064 = vsub.f32 %v4024, %v4056
      %v4065 = vsub.f32 %v4025, %v4057
      %v4066 = vsub.f32 %v4026, %v4058
      %v4067 = vsub.f32 %v4027, %v4059
      %v4068 = vmul.f32 %v4060, %v4060
      %v4069 = vmul.f32 %v4061, %v4061
      %v4070 = vmul.f32 %v4062, %v4062
      %v4071 = vmul.f32 %v4063, %v4063
      %v4072 = vmul.f32 %v4064, %v4064
      %v4073 = vmul.f32 %v4065, %v4065
      %v4074 = vmul.f32 %v4066, %v4066
      %v4075 = vmul.f32 %v4067, %v4067
      %v4076 = vsel %vm439, %v4068, 0.0
      %4077 = vadd.xlane.f32.xlu0 %v4076
      %v4078 = vpop.xlane.xlu0 %4077
      %v4079 = vsel %vm439, %v4069, 0.0
      %4080 = vadd.xlane.f32.xlu0 %v4079
      %v4081 = vpop.xlane.xlu0 %4080
      %v4082 = vsel %vm439, %v4070, 0.0
      %4083 = vadd.xlane.f32.xlu0 %v4082
      %v4084 = vpop.xlane.xlu0 %4083
      %v4085 = vsel %vm439, %v4071, 0.0
      %4086 = vadd.xlane.f32.xlu0 %v4085
      %v4087 = vpop.xlane.xlu0 %4086
      %v4088 = vsel %vm439, %v4072, 0.0
      %4089 = vadd.xlane.f32.xlu0 %v4088
      %v4090 = vpop.xlane.xlu0 %4089
      %v4091 = vsel %vm439, %v4073, 0.0
      %4092 = vadd.xlane.f32.xlu0 %v4091
      %v4093 = vpop.xlane.xlu0 %4092
      %v4094 = vsel %vm439, %v4074, 0.0
      %4095 = vadd.xlane.f32.xlu0 %v4094
      %v4096 = vpop.xlane.xlu0 %4095
      %v4097 = vsel %vm439, %v4075, 0.0
      %4098 = vadd.xlane.f32.xlu0 %v4097
      %v4099 = vpop.xlane.xlu0 %4098
      %v4100 = vmul.f32 %v4078, %v3655
      %v4101 = vmul.f32 %v4081, %v3655
      %v4102 = vmul.f32 %v4084, %v3655
      %v4103 = vmul.f32 %v4087, %v3655
      %v4104 = vmul.f32 %v4090, %v3655
      %v4105 = vmul.f32 %v4093, %v3655
      %v4106 = vmul.f32 %v4096, %v3655
      %v4107 = vmul.f32 %v4099, %v3655
      %v4108 = vadd.f32 %v4100, 1e-05
      %v4109 = vadd.f32 %v4101, 1e-05
      %v4110 = vadd.f32 %v4102, 1e-05
      %v4111 = vadd.f32 %v4103, 1e-05
      %v4112 = vadd.f32 %v4104, 1e-05
      %v4113 = vadd.f32 %v4105, 1e-05
      %v4114 = vadd.f32 %v4106, 1e-05
      %v4115 = vadd.f32 %v4107, 1e-05
      %v4116 = vrsqrt.pop %v4108
      %v4117 = vrsqrt.pop %v4109
      %v4118 = vrsqrt.pop %v4110
      %v4119 = vrsqrt.pop %v4111
      %v4120 = vrsqrt.pop %v4112
      %v4121 = vrsqrt.pop %v4113
      %v4122 = vrsqrt.pop %v4114
      %v4123 = vrsqrt.pop %v4115
      %v4124 = vmul.f32 %v4060, %v4116
      %v4125 = vmul.f32 %v4061, %v4117
      %v4126 = vmul.f32 %v4062, %v4118
      %v4127 = vmul.f32 %v4063, %v4119
      %v4128 = vmul.f32 %v4064, %v4120
      %v4129 = vmul.f32 %v4065, %v4121
      %v4130 = vmul.f32 %v4066, %v4122
      %v4131 = vmul.f32 %v4067, %v4123
      %v4132 = vmul.f32 %v4124, %v3740
      %v4133 = vmul.f32 %v4125, %v3740
      %v4134 = vmul.f32 %v4126, %v3740
      %v4135 = vmul.f32 %v4127, %v3740
      %v4136 = vmul.f32 %v4128, %v3740
      %v4137 = vmul.f32 %v4129, %v3740
      %v4138 = vmul.f32 %v4130, %v3740
      %v4139 = vmul.f32 %v4131, %v3740
      %v4140 = vadd.f32 %v4132, %v3754
      %v4141 = vadd.f32 %v4133, %v3754
      %v4142 = vadd.f32 %v4134, %v3754
      %v4143 = vadd.f32 %v4135, %v3754
      %v4144 = vadd.f32 %v4136, %v3754
      %v4145 = vadd.f32 %v4137, %v3754
      %v4146 = vadd.f32 %v4138, %v3754
      %v4147 = vadd.f32 %v4139, %v3754
      %v4148 = vpack.c.bf16 %v4141, %v4140
      %v4149 = vpack.c.bf16 %v4143, %v4142
      %v4150 = vpack.c.bf16 %v4145, %v4144
      %v4151 = vpack.c.bf16 %v4147, %v4146
      %v4156 = vunpack.c.l.b16 %v4148
      %v4157 = vunpack.c.h.b16 %v4148
      %v4158 = vunpack.c.l.b16 %v4149
      %v4159 = vunpack.c.h.b16 %v4149
      %v4160 = vunpack.c.l.b16 %v4150
      %v4161 = vunpack.c.h.b16 %v4150
      %v4162 = vunpack.c.l.b16 %v4151
      %v4163 = vunpack.c.h.b16 %v4151
      %v4164 = vpack.c.b16 %v4156, %v4156
      %v4165 = vpack.c.b16 %v4157, %v4157
      %v4166 = vpack.c.b16 %v4158, %v4158
      %v4167 = vpack.c.b16 %v4159, %v4159
      %v4168 = vpack.c.b16 %v4160, %v4160
      %v4169 = vpack.c.b16 %v4161, %v4161
      %v4170 = vpack.c.b16 %v4162, %v4162
      %v4171 = vpack.c.b16 %v4163, %v4163
      %vm4180 = vcmask 125952
      %4181 = vst.msk [vmem:[%s386] sm:$0xf] %vm4180, %v4164
      %4182 = vst.msk [vmem:[%s386 + $0x4] sm:$0xf] %vm4180, %v4165
      %4183 = vst.msk [vmem:[%s386 + $0x8] sm:$0xf] %vm4180, %v4166
      %4184 = vst.msk [vmem:[%s386 + $0xc] sm:$0xf] %vm4180, %v4167
      %4185 = vst.msk [vmem:[%s386 + $0x10] sm:$0xf] %vm4180, %v4168
      %4186 = vst.msk [vmem:[%s386 + $0x14] sm:$0xf] %vm4180, %v4169
      %4187 = vst.msk [vmem:[%s386 + $0x18] sm:$0xf] %vm4180, %v4170
      %4188 = vst.msk [vmem:[%s386 + $0x1c] sm:$0xf] %vm4180, %v4171
      %p4189 = scmp.lt.s32.totalorder %s22, 1
      %s4190 = scalar_select %p4189, %s22, 1
      %s4191 = smul.addr %s4190, 8
      %s4192 = smul.addr %s4191, 4
      %s4193 = scalar_lea.vmem %s11, %s4192
      // Predicated region
      $region65: #{_lambda_.7} parent=63 // pred_check
        %p4194 = pneg %p276
      $region66: #{_lambda_.7} parent=63 // pred_check_branch
        %4196 = sbr.rel (%p4194) target = $region68
      $region67: #{_lambda_.7} parent=63 // pred_region
        _
      $region68: #{_lambda_.7} parent=63 // pred_fallthru
        _
    $region64: #{_lambda_.7} parent=5 // pred_fallthru
      _
    %p4197 = scmp.le.s32.totalorder 2, %s17
    // Predicated region
    $region69: #{_lambda_.7} parent=5 // pred_check
      %p4198 = pneg %p4197
    $region70: #{_lambda_.7} parent=5 // pred_check_branch
      %4200 = sbr.rel (%p4198) target = $region72
    $region71: #{_lambda_.7} parent=5 // pred_region
      %s4201 = ssub.s32 %s17, 2
      // Predicated region
      $region73: #{_lambda_.7} parent=71 // pred_check
        %p4202 = pneg %p282
      $region74: #{_lambda_.7} parent=71 // pred_check_branch
        %4204 = sbr.rel (%p4202) target = $region76
      $region75: #{_lambda_.7} parent=71 // pred_region
        %p4205 = scmp.lt.s32.totalorder %s23, 1
        %s4206 = scalar_select %p4205, %s23, 1
        %s4207 = smul.addr %s4206, 8
        %s4208 = smul.addr %s4207, 4
        %s4209 = scalar_lea.vmem %s11, %s4208
      $region76: #{_lambda_.7} parent=71 // pred_fallthru
        _
    $region72: #{_lambda_.7} parent=5 // pred_fallthru
      _
  $region6: #{_lambda_.7} parent=0 // loop_footer
    %s21 = sadd.s32 1, %s17
  $region7: #{_lambda_.7} parent=0 // loop_footer_branch
    %16 = sbr.rel target = $region3
  $region8: #{_lambda_.7} parent=0 // loop_exit
    _

</llo_original>
